<compile_context>
chip_gen: v5e
topology: v5e:2x2
jax: 0.10.0
libtpu: 0.0.40
codegen_flags: <defaults>
</compile_context>

<pallas_src>
import functools
import math

import numpy as np
import jax
import jax.numpy as jnp
from jax.experimental import pallas as pl
from jax.experimental.pallas import tpu as pltpu

BN_EPS = 1e-5


def _vmem_limit_bytes():
    cap = 64 * 1024 * 1024
    try:
        cap = int(pltpu.get_tpu_info().vmem_capacity_bytes)
    except Exception:
        pass
    # Leave headroom for double buffering; never above 96 MiB (~48 MiB on v7x).
    return int(min((cap * 3) // 4, 96 * 1024 * 1024))


_VMEM_LIMIT = _vmem_limit_bytes()


def _pick_th(H, W, max_rows=1024):
    """Largest divisor of H whose h-tile keeps th*W (matmul M dim) <= max_rows."""
    best = 1
    for t in range(1, H + 1):
        if H % t == 0 and t * W <= max_rows:
            best = t
    return best


# ----------------------------------------------------------------------------
# Conv kernel: im2col (th*W, 9*Cin) in VMEM -> single MXU matmul, plus
# per-(n, h) partial batch stats.  Optionally fuses BN+PReLU on its input.
# ----------------------------------------------------------------------------
def _make_conv_kernel(*, th, H, W, cin, cout, fuse_bn_prelu):
    Wp, thp, rows = W + 2, th + 2, th * W

    def _body(xpad_ref, w_ref, y_ref, stat_ref, col_ref, sc_ref, sh_ref, al_ref):
        h0 = pl.multiple_of(pl.program_id(1) * th, th)
        # (th+2)-row window of the resident padded image for this h-tile.
        win = xpad_ref[:, pl.ds(h0, thp), :, :].reshape(thp, Wp, cin)
        if fuse_bn_prelu:
            sc = sc_ref[...].reshape(1, 1, cin)
            sh = sh_ref[...].reshape(1, 1, cin)
            al = al_ref[...].reshape(1, 1, cin)
            v = win.astype(jnp.float32) * sc + sh
            v = jnp.where(v >= 0.0, v, al * v)
            # Re-establish conv2's zero padding: pad values must NOT be BN/PReLU'd.
            grow = jax.lax.broadcasted_iota(jnp.int32, (thp, Wp, cin), 0) + h0
            gcol = jax.lax.broadcasted_iota(jnp.int32, (thp, Wp, cin), 1)
            interior = (grow >= 1) & (grow <= H) & (gcol >= 1) & (gcol <= W)
            win = jnp.where(interior, v, 0.0).astype(jnp.bfloat16)
        # im2col: 9 shifted taps copied into the (th, W, 9*cin) bf16 scratch.
        for kh in range(3):
            for kw in range(3):
                tap = kh * 3 + kw
                col_ref[:, :, tap * cin:(tap + 1) * cin] = win[kh:kh + th, kw:kw + W, :]
        # One MXU matmul: (th*W, 9*cin) x (9*cin, cout), f32 accumulation.
        acc = jnp.dot(col_ref[...].reshape(rows, 9 * cin), w_ref[...],
                      preferred_element_type=jnp.float32)
        y_ref[...] = acc.reshape(1, th, W, cout).astype(y_ref.dtype)
        # Per-(n, h) partial batch stats, written with one full (8, cout) store.
        srow = jnp.sum(acc, axis=0, keepdims=True)            # (1, cout)
        sqrow = jnp.sum(acc * acc, axis=0, keepdims=True)      # (1, cout)
        ridx = jax.lax.broadcasted_iota(jnp.int32, (8, cout), 0)
        st = jnp.where(ridx == 0, srow, jnp.where(ridx == 1, sqrow, 0.0))
        stat_ref[...] = st.reshape(1, 1, 8, cout)

    if fuse_bn_prelu:
        def kernel(xpad_ref, w_ref, sc_ref, sh_ref, al_ref, y_ref, stat_ref, col_ref):
            _body(xpad_ref, w_ref, y_ref, stat_ref, col_ref, sc_ref, sh_ref, al_ref)
    else:
        def kernel(xpad_ref, w_ref, y_ref, stat_ref, col_ref):
            _body(xpad_ref, w_ref, y_ref, stat_ref, col_ref, None, None, None)
    return kernel


def conv3x3_block(x_pad, w_mat, *, H, W, th, bn_args=None):
    """x_pad: (N, H+2, W+2, Cin) bf16 (zero-padded); w_mat: (9*Cin, Cout) bf16.

    If bn_args = (scale, shift, alpha) is given, BN + PReLU are applied to the
    input window inside the kernel (conv2 path).  Returns (y bf16, stats f32).
    """
    N, Hp, Wp, Cin = x_pad.shape
    Cout = w_mat.shape[-1]
    h_tiles = H // th
    fuse = bn_args is not None
    kern = _make_conv_kernel(th=th, H=H, W=W, cin=Cin, cout=Cout, fuse_bn_prelu=fuse)
    in_specs = [
        # TODO(synk): for very large images, slab-DMA (memory_space=pl.ANY) or
        # single-buffer this resident block so it fits v7x's 64 MiB VMEM.
        pl.BlockSpec((1, Hp, Wp, Cin), lambda n, h: (n, 0, 0, 0)),
        pl.BlockSpec((9 * Cin, Cout), lambda n, h: (0, 0)),
    ]
    args = [x_pad, w_mat]
    if fuse:
        vec_spec = pl.BlockSpec((1, Cin), lambda n, h: (0, 0))
        in_specs += [vec_spec, vec_spec, vec_spec]
        args += list(bn_args)
    y, stats = pl.pallas_call(
        kern,
        grid=(N, h_tiles),
        in_specs=in_specs,
        out_specs=[
            pl.BlockSpec((1, th, W, Cout), lambda n, h: (n, h, 0, 0)),
            pl.BlockSpec((1, 1, 8, Cout), lambda n, h: (n, h, 0, 0)),
        ],
        out_shape=[
            jax.ShapeDtypeStruct((N, H, W, Cout), jnp.bfloat16),
            jax.ShapeDtypeStruct((N, h_tiles, 8, Cout), jnp.float32),
        ],
        scratch_shapes=[pltpu.VMEM((th, W, 9 * Cin), jnp.bfloat16)],
        compiler_params=pltpu.CompilerParams(
            dimension_semantics=("parallel", "parallel"),
            vmem_limit_bytes=_VMEM_LIMIT),
    )(*args)
    return y, stats


# ----------------------------------------------------------------------------
# Epilogue kernel: BN2 scale/shift + residual add + PReLU (tiled over rows)
# ----------------------------------------------------------------------------
def _bn2_res_prelu_kernel(y_ref, sc_ref, sh_ref, al_ref, res_ref, o_ref):
    y = y_ref[...].astype(jnp.float32) * sc_ref[...] + sh_ref[...]
    y = y + res_ref[...]
    o_ref[...] = jnp.where(y >= 0.0, y, al_ref[...] * y).astype(o_ref.dtype)


def bn2_residual_prelu(y_flat, scale, shift, alpha_vec, residual):
    M, C = y_flat.shape
    tm = next((t for t in (2048, 1024, 512, 256, 128, 64, 32, 16, 8) if M % t == 0), M)
    # TODO(synk): masked tail (cdiv grid) instead of tm = M fallback when M % 8 != 0.
    row_spec = pl.BlockSpec((tm, C), lambda m: (m, 0))
    vec_spec = pl.BlockSpec((1, C), lambda m: (0, 0))
    return pl.pallas_call(
        _bn2_res_prelu_kernel,
        grid=(M // tm,),
        in_specs=[row_spec, vec_spec, vec_spec, vec_spec, row_spec],
        out_specs=row_spec,
        out_shape=jax.ShapeDtypeStruct((M, C), jnp.float32),
        compiler_params=pltpu.CompilerParams(
            dimension_semantics=("parallel",),
            vmem_limit_bytes=_VMEM_LIMIT),
    )(y_flat, scale, shift, alpha_vec, residual)


# ----------------------------------------------------------------------------
# Thin JAX glue: stat finalization, weight layout
# ----------------------------------------------------------------------------
def bn_scale_shift(stats, count, gamma, beta):
    """stats: (N, h_tiles, 8, C), row0=sum, row1=sumsq; training-mode (biased) BN."""
    total = jnp.sum(stats[:, :, 0, :], axis=(0, 1))
    total_sq = jnp.sum(stats[:, :, 1, :], axis=(0, 1))
    mean = total / count
    # TODO(synk): E[x^2]-E[x]^2 is cancellation-prone for very large M; use
    # per-tile shifted sums if that regime matters.
    var = jnp.maximum(total_sq / count - mean * mean, 0.0)
    scale = gamma * jax.lax.rsqrt(var + BN_EPS)
    shift = beta - mean * scale
    return scale.reshape(1, -1), shift.reshape(1, -1)


def dense3x3_to_mat(w):
    """PyTorch OIHW (Cout,Cin,3,3) -> (9*Cin, Cout) bf16 (tap-major, then channel)."""
    t = np.transpose(np.asarray(w), (2, 3, 1, 0))          # (3,3,Cin,Cout)
    return jnp.asarray(t.reshape(-1, t.shape[-1]), jnp.bfloat16)


def grouped3x3_to_mat(w, groups):
    """Grouped (Cout, Cin/g, 3, 3) -> block-diagonal (9*Cin, Cout) bf16 (kept
    dense so the MXU runs at full rate; tiny-K per-group matmuls would be slower)."""
    w = np.asarray(w)
    cout, cin_pg = w.shape[0], w.shape[1]
    cin = cin_pg * groups
    cout_pg = cout // groups
    mat = np.zeros((3, 3, cin, cout), np.float32)
    for g in range(groups):
        wg = w[g * cout_pg:(g + 1) * cout_pg]               # (Cout_pg, Cin_pg, 3, 3)
        mat[:, :, g * cin_pg:(g + 1) * cin_pg,
            g * cout_pg:(g + 1) * cout_pg] = np.transpose(wg, (2, 3, 1, 0))
    return jnp.asarray(mat.reshape(9 * cin, cout), jnp.bfloat16)


# ----------------------------------------------------------------------------
# BasicBlock forward (stride=1, downsample=None — constructor defaults)
# ----------------------------------------------------------------------------
def basic_block_forward(x_nchw, params):
    # TODO(synk): stride>1 + explicit downsample path is not implemented (the
    # module default is stride=1, downsample=None, required for the residual add).
    x = jnp.transpose(x_nchw, (0, 2, 3, 1)).astype(jnp.float32)      # NHWC
    N, H, W, C = x.shape
    M = N * H * W
    count = jnp.float32(M)
    th = _pick_th(H, W)

    # conv1 (dense 3x3, bias-free) + per-tile batch stats
    x_pad = jnp.pad(x, ((0, 0), (1, 1), (1, 1), (0, 0))).astype(jnp.bfloat16)
    y1, st1 = conv3x3_block(x_pad, params["w1m"], H=H, W=W, th=th)
    C2 = y1.shape[-1]
    alpha_vec = jnp.full((1, C2), params["alpha"], jnp.float32)
    sc1, sh1 = bn_scale_shift(st1, count, params["gamma1"], params["beta1"])

    # conv2 (grouped 3x3 as block-diagonal weight) with BN1 + PReLU fused on
    # its input window; y1 is padded with zeros (border re-masked in-kernel).
    y1_pad = jnp.pad(y1, ((0, 0), (1, 1), (1, 1), (0, 0)))           # bf16
    y2, st2 = conv3x3_block(y1_pad, params["w2m"], H=H, W=W, th=th,
                            bn_args=(sc1, sh1, alpha_vec))
    sc2, sh2 = bn_scale_shift(st2, count, params["gamma2"], params["beta2"])

    # BN2 + residual add + PReLU epilogue
    out = bn2_residual_prelu(y2.reshape(M, C2), sc2, sh2, alpha_vec,
                             x.reshape(M, C2))
    return jnp.transpose(out.reshape(N, H, W, C2), (0, 3, 1, 2))     # NCHW


# ----------------------------------------------------------------------------
# Deterministic parameters (PyTorch-default-equivalent BN/PReLU init)
# ----------------------------------------------------------------------------
def make_params(inplanes, planes, num_group, seed=0):
    width = planes * 2
    assert inplanes == width, "downsample=None requires inplanes == planes*2"
    assert width % num_group == 0
    k1, k2 = jax.random.split(jax.random.PRNGKey(seed))
    std = math.sqrt(2.0 / (9 * width))
    w1 = jax.random.normal(k1, (width, inplanes, 3, 3), jnp.float32) * std
    w2 = jax.random.normal(k2, (width, width // num_group, 3, 3),
                           jnp.float32) * std
    return {
        "w1m": dense3x3_to_mat(w1),
        "w2m": grouped3x3_to_mat(w2, num_group),
        "w1_f32": w1, "w2_f32": w2,                   # for the pure-JAX reference
        "gamma1": jnp.ones((width,), jnp.float32),
        "beta1": jnp.zeros((width,), jnp.float32),
        "gamma2": jnp.ones((width,), jnp.float32),
        "beta2": jnp.zeros((width,), jnp.float32),
        "alpha": 0.25,                                # nn.PReLU() default init
        "num_group": num_group,
    }


# ----------------------------------------------------------------------------
# Pure-JAX reference with matched quantization points
# ----------------------------------------------------------------------------
def _reference_forward(x_nchw, params):
    groups = params["num_group"]
    a = params["alpha"]
    x = jnp.transpose(x_nchw, (0, 2, 3, 1)).astype(jnp.float32)

    def conv(inp, w_oihw, g):
        lhs = inp.astype(jnp.bfloat16).astype(jnp.float32)
        rhs = jnp.transpose(w_oihw, (2, 3, 1, 0)).astype(jnp.bfloat16)
        rhs = rhs.astype(jnp.float32)
        return jax.lax.conv_general_dilated(
            lhs, rhs, window_strides=(1, 1), padding="SAME",
            dimension_numbers=("NHWC", "HWIO", "NHWC"),
            feature_group_count=g, preferred_element_type=jnp.float32)

    def bn_ss(y, gamma, beta):
        m = y.shape[0] * y.shape[1] * y.shape[2]
        s = jnp.sum(y, axis=(0, 1, 2))
        sq = jnp.sum(y * y, axis=(0, 1, 2))
        mean = s / m
        var = jnp.maximum(sq / m - mean * mean, 0.0)
        scale = gamma * jax.lax.rsqrt(var + BN_EPS)
        return scale, beta - mean * scale

    prelu = lambda y: jnp.where(y >= 0.0, y, a * y)

    y1 = conv(x, params["w1_f32"], 1)
    sc1, sh1 = bn_ss(y1, params["gamma1"], params["beta1"])
    y1q = y1.astype(jnp.bfloat16).astype(jnp.float32)       # kernel stores y1 in bf16
    h1 = prelu(y1q * sc1 + sh1)
    h1 = h1.astype(jnp.bfloat16).astype(jnp.float32)        # MXU input cast
    y2 = conv(h1, params["w2_f32"], groups)
    sc2, sh2 = bn_ss(y2, params["gamma2"], params["beta2"])
    y2q = y2.astype(jnp.bfloat16).astype(jnp.float32)       # kernel stores y2 in bf16
    out = prelu(y2q * sc2 + sh2 + x)
    return jnp.transpose(out, (0, 3, 1, 2))


if __name__ == "__main__":
    # BasicBlock(inplanes=128, planes=64, num_group=32): residual add requires
    # inplanes == planes*2; channels = 128 keeps lane-dense (8,128) tiles.
    inplanes, planes, num_group = 128, 64, 32
    N, H, W = 2, 16, 16

    params = make_params(inplanes, planes, num_group, seed=0)
    x = jax.random.normal(jax.random.PRNGKey(0), (N, inplanes, H, W),
                          jnp.float32)

    fwd = jax.jit(functools.partial(basic_block_forward, params=params))
    out = jax.block_until_ready(fwd(x))

    assert out.shape == (N, planes * 2, H, W)
    assert bool(jnp.all(jnp.isfinite(out)))

    ref = jax.block_until_ready(_reference_forward(x, params))
    err = float(jnp.max(jnp.abs(out - ref)))
    assert err < 3e-2, f"max abs error vs reference: {err}"

    print("KERNEL_OK")
</pallas_src>

<mosaic_0001>
module attributes {stable_mosaic.version = 11 : i64} {
  func.func @kernel(%arg0: i32, %arg1: i32, %arg2: memref<1x18x18x128xbf16, #tpu.memory_space<vmem>>, %arg3: memref<1152x128xbf16, #tpu.memory_space<vmem>>, %arg4: memref<1x16x16x128xbf16, #tpu.memory_space<vmem>>, %arg5: memref<1x1x8x128xf32, #tpu.memory_space<vmem>>, %arg6: memref<16x16x1152xbf16, #tpu.memory_space<vmem>>) attributes {dimension_semantics = [#tpu.dimension_semantics<parallel>, #tpu.dimension_semantics<parallel>], iteration_bounds = array<i64: 2, 1>, scalar_prefetch = 0 : i64, scratch_operands = 1 : i64, tpu.core_type = #tpu.core_type<tc>, window_params = [{transform_indices = @transform_0, window_bounds = array<i64: 1, 18, 18, 128>}, {pipeline_mode = #tpu.pipeline_mode<synchronous>, transform_indices = @transform_1, window_bounds = array<i64: 1152, 128>}, {transform_indices = @transform_2, window_bounds = array<i64: 1, 16, 16, 128>}, {transform_indices = @transform_3, window_bounds = array<i64: 1, 1, 8, 128>}]} {
    %c16_i32 = arith.constant 16 : i32
    %0 = arith.muli %arg1, %c16_i32 : i32
    %1 = tpu.assume_multiple %0, 16 : i32
    %c0 = arith.constant 0 : index
    %2 = arith.index_cast %1 : i32 to index
    %c0_0 = arith.constant 0 : index
    %c0_1 = arith.constant 0 : index
    %3 = vector.load %arg2[%c0, %2, %c0_0, %c0_1] : memref<1x18x18x128xbf16, #tpu.memory_space<vmem>>, vector<1x18x18x128xbf16>
    %4 = vector.shape_cast %3 : vector<1x18x18x128xbf16> to vector<18x18x128xbf16>
    %5 = vector.extract_strided_slice %4 {offsets = [0, 0, 0], sizes = [16, 16, 128], strides = [1, 1, 1]} : vector<18x18x128xbf16> to vector<16x16x128xbf16>
    %c0_2 = arith.constant 0 : index
    %c0_3 = arith.constant 0 : index
    %c0_4 = arith.constant 0 : index
    %6 = vector.load %arg6[%c0_2, %c0_3, %c0_4] : memref<16x16x1152xbf16, #tpu.memory_space<vmem>>, vector<16x16x128xbf16>
    tpu.vector_store %arg6[%c0_2, %c0_3, %c0_4], %5 {strides = array<i32>} : memref<16x16x1152xbf16, #tpu.memory_space<vmem>>, vector<16x16x128xbf16>,
    %7 = vector.extract_strided_slice %4 {offsets = [0, 1, 0], sizes = [16, 16, 128], strides = [1, 1, 1]} : vector<18x18x128xbf16> to vector<16x16x128xbf16>
    %c0_5 = arith.constant 0 : index
    %c0_6 = arith.constant 0 : index
    %c128 = arith.constant 128 : index
    %8 = vector.load %arg6[%c0_5, %c0_6, %c128] : memref<16x16x1152xbf16, #tpu.memory_space<vmem>>, vector<16x16x128xbf16>
    tpu.vector_store %arg6[%c0_5, %c0_6, %c128], %7 {strides = array<i32>} : memref<16x16x1152xbf16, #tpu.memory_space<vmem>>, vector<16x16x128xbf16>,
    %9 = vector.extract_strided_slice %4 {offsets = [0, 2, 0], sizes = [16, 16, 128], strides = [1, 1, 1]} : vector<18x18x128xbf16> to vector<16x16x128xbf16>
    %c0_7 = arith.constant 0 : index
    %c0_8 = arith.constant 0 : index
    %c256 = arith.constant 256 : index
    %10 = vector.load %arg6[%c0_7, %c0_8, %c256] : memref<16x16x1152xbf16, #tpu.memory_space<vmem>>, vector<16x16x128xbf16>
    tpu.vector_store %arg6[%c0_7, %c0_8, %c256], %9 {strides = array<i32>} : memref<16x16x1152xbf16, #tpu.memory_space<vmem>>, vector<16x16x128xbf16>,
    %11 = vector.extract_strided_slice %4 {offsets = [1, 0, 0], sizes = [16, 16, 128], strides = [1, 1, 1]} : vector<18x18x128xbf16> to vector<16x16x128xbf16>
    %c0_9 = arith.constant 0 : index
    %c0_10 = arith.constant 0 : index
    %c384 = arith.constant 384 : index
    %12 = vector.load %arg6[%c0_9, %c0_10, %c384] : memref<16x16x1152xbf16, #tpu.memory_space<vmem>>, vector<16x16x128xbf16>
    tpu.vector_store %arg6[%c0_9, %c0_10, %c384], %11 {strides = array<i32>} : memref<16x16x1152xbf16, #tpu.memory_space<vmem>>, vector<16x16x128xbf16>,
    %13 = vector.extract_strided_slice %4 {offsets = [1, 1, 0], sizes = [16, 16, 128], strides = [1, 1, 1]} : vector<18x18x128xbf16> to vector<16x16x128xbf16>
    %c0_11 = arith.constant 0 : index
    %c0_12 = arith.constant 0 : index
    %c512 = arith.constant 512 : index
    %14 = vector.load %arg6[%c0_11, %c0_12, %c512] : memref<16x16x1152xbf16, #tpu.memory_space<vmem>>, vector<16x16x128xbf16>
    tpu.vector_store %arg6[%c0_11, %c0_12, %c512], %13 {strides = array<i32>} : memref<16x16x1152xbf16, #tpu.memory_space<vmem>>, vector<16x16x128xbf16>,
    %15 = vector.extract_strided_slice %4 {offsets = [1, 2, 0], sizes = [16, 16, 128], strides = [1, 1, 1]} : vector<18x18x128xbf16> to vector<16x16x128xbf16>
    %c0_13 = arith.constant 0 : index
    %c0_14 = arith.constant 0 : index
    %c640 = arith.constant 640 : index
    %16 = vector.load %arg6[%c0_13, %c0_14, %c640] : memref<16x16x1152xbf16, #tpu.memory_space<vmem>>, vector<16x16x128xbf16>
    tpu.vector_store %arg6[%c0_13, %c0_14, %c640], %15 {strides = array<i32>} : memref<16x16x1152xbf16, #tpu.memory_space<vmem>>, vector<16x16x128xbf16>,
    %17 = vector.extract_strided_slice %4 {offsets = [2, 0, 0], sizes = [16, 16, 128], strides = [1, 1, 1]} : vector<18x18x128xbf16> to vector<16x16x128xbf16>
    %c0_15 = arith.constant 0 : index
    %c0_16 = arith.constant 0 : index
    %c768 = arith.constant 768 : index
    %18 = vector.load %arg6[%c0_15, %c0_16, %c768] : memref<16x16x1152xbf16, #tpu.memory_space<vmem>>, vector<16x16x128xbf16>
    tpu.vector_store %arg6[%c0_15, %c0_16, %c768], %17 {strides = array<i32>} : memref<16x16x1152xbf16, #tpu.memory_space<vmem>>, vector<16x16x128xbf16>,
    %19 = vector.extract_strided_slice %4 {offsets = [2, 1, 0], sizes = [16, 16, 128], strides = [1, 1, 1]} : vector<18x18x128xbf16> to vector<16x16x128xbf16>
    %c0_17 = arith.constant 0 : index
    %c0_18 = arith.constant 0 : index
    %c896 = arith.constant 896 : index
    %20 = vector.load %arg6[%c0_17, %c0_18, %c896] : memref<16x16x1152xbf16, #tpu.memory_space<vmem>>, vector<16x16x128xbf16>
    tpu.vector_store %arg6[%c0_17, %c0_18, %c896], %19 {strides = array<i32>} : memref<16x16x1152xbf16, #tpu.memory_space<vmem>>, vector<16x16x128xbf16>,
    %21 = vector.extract_strided_slice %4 {offsets = [2, 2, 0], sizes = [16, 16, 128], strides = [1, 1, 1]} : vector<18x18x128xbf16> to vector<16x16x128xbf16>
    %c0_19 = arith.constant 0 : index
    %c0_20 = arith.constant 0 : index
    %c1024 = arith.constant 1024 : index
    %22 = vector.load %arg6[%c0_19, %c0_20, %c1024] : memref<16x16x1152xbf16, #tpu.memory_space<vmem>>, vector<16x16x128xbf16>
    tpu.vector_store %arg6[%c0_19, %c0_20, %c1024], %21 {strides = array<i32>} : memref<16x16x1152xbf16, #tpu.memory_space<vmem>>, vector<16x16x128xbf16>,
    %c0_21 = arith.constant 0 : index
    %c0_22 = arith.constant 0 : index
    %c0_23 = arith.constant 0 : index
    %23 = vector.load %arg6[%c0_21, %c0_22, %c0_23] : memref<16x16x1152xbf16, #tpu.memory_space<vmem>>, vector<16x16x1152xbf16>
    %24 = vector.shape_cast %23 : vector<16x16x1152xbf16> to vector<256x1152xbf16>
    %c0_24 = arith.constant 0 : index
    %c0_25 = arith.constant 0 : index
    %25 = vector.load %arg3[%c0_24, %c0_25] : memref<1152x128xbf16, #tpu.memory_space<vmem>>, vector<1152x128xbf16>
    %cst = arith.constant dense<0.000000e+00> : vector<256x128xf32>
    %26 = tpu.matmul %24, %25, %cst {dimension_numbers = #tpu.dot_dimension_numbers<[1], [0], [0], [1], [0, 0, 1, 1], [], []>} : vector<256x1152xbf16>, vector<1152x128xbf16>, vector<256x128xf32> -> vector<256x128xf32>
    %27 = vector.shape_cast %26 : vector<256x128xf32> to vector<1x16x16x128xf32>
    %28 = arith.truncf %27 : vector<1x16x16x128xf32> to vector<1x16x16x128xbf16>
    %c0_26 = arith.constant 0 : index
    %c0_27 = arith.constant 0 : index
    %c0_28 = arith.constant 0 : index
    %c0_29 = arith.constant 0 : index
    %29 = vector.load %arg4[%c0_26, %c0_27, %c0_28, %c0_29] : memref<1x16x16x128xbf16, #tpu.memory_space<vmem>>, vector<1x16x16x128xbf16>
    tpu.vector_store %arg4[%c0_26, %c0_27, %c0_28, %c0_29], %28 {strides = array<i32>} : memref<1x16x16x128xbf16, #tpu.memory_space<vmem>>, vector<1x16x16x128xbf16>,
    %cst_30 = arith.constant dense<0.000000e+00> : vector<128xf32>
    %30 = vector.multi_reduction <add>, %26, %cst_30 [0] : vector<256x128xf32> to vector<128xf32>
    %31 = vector.shape_cast %30 : vector<128xf32> to vector<1x128xf32>
    %32 = arith.mulf %26, %26 : vector<256x128xf32>
    %cst_31 = arith.constant dense<0.000000e+00> : vector<128xf32>
    %33 = vector.multi_reduction <add>, %32, %cst_31 [0] : vector<256x128xf32> to vector<128xf32>
    %34 = vector.shape_cast %33 : vector<128xf32> to vector<1x128xf32>
    %35 = tpu.iota {dimensions = array<i32: 0>} : vector<8x128xi32>
    %c0_i32 = arith.constant 0 : i32
    %36 = vector.broadcast %c0_i32 : i32 to vector<8x128xi32>
    %37 = arith.cmpi eq, %35, %36 : vector<8x128xi32>
    %c1_i32 = arith.constant 1 : i32
    %38 = vector.broadcast %c1_i32 : i32 to vector<8x128xi32>
    %39 = arith.cmpi eq, %35, %38 : vector<8x128xi32>
    %cst_32 = arith.constant 0.000000e+00 : f32
    %40 = vector.shape_cast %34 : vector<1x128xf32> to vector<1x128xf32>
    %41 = vector.broadcast %40 : vector<1x128xf32> to vector<8x128xf32>
    %42 = vector.broadcast %cst_32 : f32 to vector<8x128xf32>
    %43 = arith.select %39, %41, %42 : vector<8x128xi1>, vector<8x128xf32>
    %44 = vector.shape_cast %31 : vector<1x128xf32> to vector<1x128xf32>
    %45 = vector.broadcast %44 : vector<1x128xf32> to vector<8x128xf32>
    %46 = arith.select %37, %45, %43 : vector<8x128xi1>, vector<8x128xf32>
    %47 = vector.shape_cast %46 : vector<8x128xf32> to vector<1x1x8x128xf32>
    %c0_33 = arith.constant 0 : index
    %c0_34 = arith.constant 0 : index
    %c0_35 = arith.constant 0 : index
    %c0_36 = arith.constant 0 : index
    %48 = vector.load %arg5[%c0_33, %c0_34, %c0_35, %c0_36] : memref<1x1x8x128xf32, #tpu.memory_space<vmem>>, vector<1x1x8x128xf32>
    tpu.vector_store %arg5[%c0_33, %c0_34, %c0_35, %c0_36], %47 {strides = array<i32>} : memref<1x1x8x128xf32, #tpu.memory_space<vmem>>, vector<1x1x8x128xf32>,
    return
  }
  func.func @transform_0(%arg0: i32, %arg1: i32) -> (i32, i32, i32, i32) {
    %c0_i32 = arith.constant 0 : i32
    %c0_i32_0 = arith.constant 0 : i32
    %c0_i32_1 = arith.constant 0 : i32
    %c0_i32_2 = arith.constant 0 : i32
    return %arg0, %c0_i32, %c0_i32_0, %c0_i32_1 : i32, i32, i32, i32
  }
  func.func @transform_1(%arg0: i32, %arg1: i32) -> (i32, i32) {
    %c0_i32 = arith.constant 0 : i32
    %c0_i32_0 = arith.constant 0 : i32
    %c0_i32_1 = arith.constant 0 : i32
    return %c0_i32, %c0_i32_0 : i32, i32
  }
  func.func @transform_2(%arg0: i32, %arg1: i32) -> (i32, i32, i32, i32) {
    %c0_i32 = arith.constant 0 : i32
    %c0_i32_0 = arith.constant 0 : i32
    %c0_i32_1 = arith.constant 0 : i32
    return %arg0, %arg1, %c0_i32, %c0_i32_0 : i32, i32, i32, i32
  }
  func.func @transform_3(%arg0: i32, %arg1: i32) -> (i32, i32, i32, i32) {
    %c0_i32 = arith.constant 0 : i32
    %c0_i32_0 = arith.constant 0 : i32
    %c0_i32_1 = arith.constant 0 : i32
    return %arg0, %arg1, %c0_i32, %c0_i32_0 : i32, i32, i32, i32
  }
}

module attributes {stable_mosaic.version = 11 : i64} {
  func.func @kernel(%arg0: i32, %arg1: i32, %arg2: memref<1x18x18x128xbf16, #tpu.memory_space<vmem>>, %arg3: memref<1152x128xbf16, #tpu.memory_space<vmem>>, %arg4: memref<1x128xf32, #tpu.memory_space<vmem>>, %arg5: memref<1x128xf32, #tpu.memory_space<vmem>>, %arg6: memref<1x128xf32, #tpu.memory_space<vmem>>, %arg7: memref<1x16x16x128xbf16, #tpu.memory_space<vmem>>, %arg8: memref<1x1x8x128xf32, #tpu.memory_space<vmem>>, %arg9: memref<16x16x1152xbf16, #tpu.memory_space<vmem>>) attributes {dimension_semantics = [#tpu.dimension_semantics<parallel>, #tpu.dimension_semantics<parallel>], iteration_bounds = array<i64: 2, 1>, scalar_prefetch = 0 : i64, scratch_operands = 1 : i64, tpu.core_type = #tpu.core_type<tc>, window_params = [{transform_indices = @transform_0, window_bounds = array<i64: 1, 18, 18, 128>}, {pipeline_mode = #tpu.pipeline_mode<synchronous>, transform_indices = @transform_1, window_bounds = array<i64: 1152, 128>}, {pipeline_mode = #tpu.pipeline_mode<synchronous>, transform_indices = @transform_2, window_bounds = array<i64: 1, 128>}, {pipeline_mode = #tpu.pipeline_mode<synchronous>, transform_indices = @transform_3, window_bounds = array<i64: 1, 128>}, {pipeline_mode = #tpu.pipeline_mode<synchronous>, transform_indices = @transform_4, window_bounds = array<i64: 1, 128>}, {transform_indices = @transform_5, window_bounds = array<i64: 1, 16, 16, 128>}, {transform_indices = @transform_6, window_bounds = array<i64: 1, 1, 8, 128>}]} {
    %c16_i32 = arith.constant 16 : i32
    %0 = arith.muli %arg1, %c16_i32 : i32
    %1 = tpu.assume_multiple %0, 16 : i32
    %c0 = arith.constant 0 : index
    %2 = arith.index_cast %1 : i32 to index
    %c0_0 = arith.constant 0 : index
    %c0_1 = arith.constant 0 : index
    %3 = vector.load %arg2[%c0, %2, %c0_0, %c0_1] : memref<1x18x18x128xbf16, #tpu.memory_space<vmem>>, vector<1x18x18x128xbf16>
    %4 = vector.shape_cast %3 : vector<1x18x18x128xbf16> to vector<18x18x128xbf16>
    %c0_2 = arith.constant 0 : index
    %c0_3 = arith.constant 0 : index
    %5 = vector.load %arg4[%c0_2, %c0_3] : memref<1x128xf32, #tpu.memory_space<vmem>>, vector<1x128xf32>
    %6 = vector.shape_cast %5 : vector<1x128xf32> to vector<1x1x128xf32>
    %c0_4 = arith.constant 0 : index
    %c0_5 = arith.constant 0 : index
    %7 = vector.load %arg5[%c0_4, %c0_5] : memref<1x128xf32, #tpu.memory_space<vmem>>, vector<1x128xf32>
    %8 = vector.shape_cast %7 : vector<1x128xf32> to vector<1x1x128xf32>
    %c0_6 = arith.constant 0 : index
    %c0_7 = arith.constant 0 : index
    %9 = vector.load %arg6[%c0_6, %c0_7] : memref<1x128xf32, #tpu.memory_space<vmem>>, vector<1x128xf32>
    %10 = vector.shape_cast %9 : vector<1x128xf32> to vector<1x1x128xf32>
    %11 = arith.extf %4 : vector<18x18x128xbf16> to vector<18x18x128xf32>
    %12 = vector.broadcast %6 : vector<1x1x128xf32> to vector<18x18x128xf32>
    %13 = arith.mulf %11, %12 : vector<18x18x128xf32>
    %14 = vector.broadcast %8 : vector<1x1x128xf32> to vector<18x18x128xf32>
    %15 = arith.addf %13, %14 : vector<18x18x128xf32>
    %cst = arith.constant 0.000000e+00 : f32
    %16 = vector.broadcast %cst : f32 to vector<18x18x128xf32>
    %17 = arith.cmpf oge, %15, %16 : vector<18x18x128xf32>
    %18 = vector.broadcast %10 : vector<1x1x128xf32> to vector<18x18x128xf32>
    %19 = arith.mulf %18, %15 : vector<18x18x128xf32>
    %20 = arith.select %17, %15, %19 : vector<18x18x128xi1>, vector<18x18x128xf32>
    %21 = tpu.iota {dimensions = array<i32: 0>} : vector<18x18x128xi32>
    %22 = vector.broadcast %1 : i32 to vector<18x18x128xi32>
    %23 = arith.addi %21, %22 : vector<18x18x128xi32>
    %24 = tpu.iota {dimensions = array<i32: 1>} : vector<18x18x128xi32>
    %c1_i32 = arith.constant 1 : i32
    %25 = vector.broadcast %c1_i32 : i32 to vector<18x18x128xi32>
    %26 = arith.cmpi sge, %23, %25 : vector<18x18x128xi32>
    %c16_i32_8 = arith.constant 16 : i32
    %27 = vector.broadcast %c16_i32_8 : i32 to vector<18x18x128xi32>
    %28 = arith.cmpi sle, %23, %27 : vector<18x18x128xi32>
    %29 = arith.andi %26, %28 : vector<18x18x128xi1>
    %c1_i32_9 = arith.constant 1 : i32
    %30 = vector.broadcast %c1_i32_9 : i32 to vector<18x18x128xi32>
    %31 = arith.cmpi sge, %24, %30 : vector<18x18x128xi32>
    %32 = arith.andi %29, %31 : vector<18x18x128xi1>
    %c16_i32_10 = arith.constant 16 : i32
    %33 = vector.broadcast %c16_i32_10 : i32 to vector<18x18x128xi32>
    %34 = arith.cmpi sle, %24, %33 : vector<18x18x128xi32>
    %35 = arith.andi %32, %34 : vector<18x18x128xi1>
    %cst_11 = arith.constant 0.000000e+00 : f32
    %36 = vector.broadcast %cst_11 : f32 to vector<18x18x128xf32>
    %37 = arith.select %35, %20, %36 : vector<18x18x128xi1>, vector<18x18x128xf32>
    %38 = arith.truncf %37 : vector<18x18x128xf32> to vector<18x18x128xbf16>
    %39 = vector.extract_strided_slice %38 {offsets = [0, 0, 0], sizes = [16, 16, 128], strides = [1, 1, 1]} : vector<18x18x128xbf16> to vector<16x16x128xbf16>
    %c0_12 = arith.constant 0 : index
    %c0_13 = arith.constant 0 : index
    %c0_14 = arith.constant 0 : index
    %40 = vector.load %arg9[%c0_12, %c0_13, %c0_14] : memref<16x16x1152xbf16, #tpu.memory_space<vmem>>, vector<16x16x128xbf16>
    tpu.vector_store %arg9[%c0_12, %c0_13, %c0_14], %39 {strides = array<i32>} : memref<16x16x1152xbf16, #tpu.memory_space<vmem>>, vector<16x16x128xbf16>,
    %41 = vector.extract_strided_slice %38 {offsets = [0, 1, 0], sizes = [16, 16, 128], strides = [1, 1, 1]} : vector<18x18x128xbf16> to vector<16x16x128xbf16>
    %c0_15 = arith.constant 0 : index
    %c0_16 = arith.constant 0 : index
    %c128 = arith.constant 128 : index
    %42 = vector.load %arg9[%c0_15, %c0_16, %c128] : memref<16x16x1152xbf16, #tpu.memory_space<vmem>>, vector<16x16x128xbf16>
    tpu.vector_store %arg9[%c0_15, %c0_16, %c128], %41 {strides = array<i32>} : memref<16x16x1152xbf16, #tpu.memory_space<vmem>>, vector<16x16x128xbf16>,
    %43 = vector.extract_strided_slice %38 {offsets = [0, 2, 0], sizes = [16, 16, 128], strides = [1, 1, 1]} : vector<18x18x128xbf16> to vector<16x16x128xbf16>
    %c0_17 = arith.constant 0 : index
    %c0_18 = arith.constant 0 : index
    %c256 = arith.constant 256 : index
    %44 = vector.load %arg9[%c0_17, %c0_18, %c256] : memref<16x16x1152xbf16, #tpu.memory_space<vmem>>, vector<16x16x128xbf16>
    tpu.vector_store %arg9[%c0_17, %c0_18, %c256], %43 {strides = array<i32>} : memref<16x16x1152xbf16, #tpu.memory_space<vmem>>, vector<16x16x128xbf16>,
    %45 = vector.extract_strided_slice %38 {offsets = [1, 0, 0], sizes = [16, 16, 128], strides = [1, 1, 1]} : vector<18x18x128xbf16> to vector<16x16x128xbf16>
    %c0_19 = arith.constant 0 : index
    %c0_20 = arith.constant 0 : index
    %c384 = arith.constant 384 : index
    %46 = vector.load %arg9[%c0_19, %c0_20, %c384] : memref<16x16x1152xbf16, #tpu.memory_space<vmem>>, vector<16x16x128xbf16>
    tpu.vector_store %arg9[%c0_19, %c0_20, %c384], %45 {strides = array<i32>} : memref<16x16x1152xbf16, #tpu.memory_space<vmem>>, vector<16x16x128xbf16>,
    %47 = vector.extract_strided_slice %38 {offsets = [1, 1, 0], sizes = [16, 16, 128], strides = [1, 1, 1]} : vector<18x18x128xbf16> to vector<16x16x128xbf16>
    %c0_21 = arith.constant 0 : index
    %c0_22 = arith.constant 0 : index
    %c512 = arith.constant 512 : index
    %48 = vector.load %arg9[%c0_21, %c0_22, %c512] : memref<16x16x1152xbf16, #tpu.memory_space<vmem>>, vector<16x16x128xbf16>
    tpu.vector_store %arg9[%c0_21, %c0_22, %c512], %47 {strides = array<i32>} : memref<16x16x1152xbf16, #tpu.memory_space<vmem>>, vector<16x16x128xbf16>,
    %49 = vector.extract_strided_slice %38 {offsets = [1, 2, 0], sizes = [16, 16, 128], strides = [1, 1, 1]} : vector<18x18x128xbf16> to vector<16x16x128xbf16>
    %c0_23 = arith.constant 0 : index
    %c0_24 = arith.constant 0 : index
    %c640 = arith.constant 640 : index
    %50 = vector.load %arg9[%c0_23, %c0_24, %c640] : memref<16x16x1152xbf16, #tpu.memory_space<vmem>>, vector<16x16x128xbf16>
    tpu.vector_store %arg9[%c0_23, %c0_24, %c640], %49 {strides = array<i32>} : memref<16x16x1152xbf16, #tpu.memory_space<vmem>>, vector<16x16x128xbf16>,
    %51 = vector.extract_strided_slice %38 {offsets = [2, 0, 0], sizes = [16, 16, 128], strides = [1, 1, 1]} : vector<18x18x128xbf16> to vector<16x16x128xbf16>
    %c0_25 = arith.constant 0 : index
    %c0_26 = arith.constant 0 : index
    %c768 = arith.constant 768 : index
    %52 = vector.load %arg9[%c0_25, %c0_26, %c768] : memref<16x16x1152xbf16, #tpu.memory_space<vmem>>, vector<16x16x128xbf16>
    tpu.vector_store %arg9[%c0_25, %c0_26, %c768], %51 {strides = array<i32>} : memref<16x16x1152xbf16, #tpu.memory_space<vmem>>, vector<16x16x128xbf16>,
    %53 = vector.extract_strided_slice %38 {offsets = [2, 1, 0], sizes = [16, 16, 128], strides = [1, 1, 1]} : vector<18x18x128xbf16> to vector<16x16x128xbf16>
    %c0_27 = arith.constant 0 : index
    %c0_28 = arith.constant 0 : index
    %c896 = arith.constant 896 : index
    %54 = vector.load %arg9[%c0_27, %c0_28, %c896] : memref<16x16x1152xbf16, #tpu.memory_space<vmem>>, vector<16x16x128xbf16>
    tpu.vector_store %arg9[%c0_27, %c0_28, %c896], %53 {strides = array<i32>} : memref<16x16x1152xbf16, #tpu.memory_space<vmem>>, vector<16x16x128xbf16>,
    %55 = vector.extract_strided_slice %38 {offsets = [2, 2, 0], sizes = [16, 16, 128], strides = [1, 1, 1]} : vector<18x18x128xbf16> to vector<16x16x128xbf16>
    %c0_29 = arith.constant 0 : index
    %c0_30 = arith.constant 0 : index
    %c1024 = arith.constant 1024 : index
    %56 = vector.load %arg9[%c0_29, %c0_30, %c1024] : memref<16x16x1152xbf16, #tpu.memory_space<vmem>>, vector<16x16x128xbf16>
    tpu.vector_store %arg9[%c0_29, %c0_30, %c1024], %55 {strides = array<i32>} : memref<16x16x1152xbf16, #tpu.memory_space<vmem>>, vector<16x16x128xbf16>,
    %c0_31 = arith.constant 0 : index
    %c0_32 = arith.constant 0 : index
    %c0_33 = arith.constant 0 : index
    %57 = vector.load %arg9[%c0_31, %c0_32, %c0_33] : memref<16x16x1152xbf16, #tpu.memory_space<vmem>>, vector<16x16x1152xbf16>
    %58 = vector.shape_cast %57 : vector<16x16x1152xbf16> to vector<256x1152xbf16>
    %c0_34 = arith.constant 0 : index
    %c0_35 = arith.constant 0 : index
    %59 = vector.load %arg3[%c0_34, %c0_35] : memref<1152x128xbf16, #tpu.memory_space<vmem>>, vector<1152x128xbf16>
    %cst_36 = arith.constant dense<0.000000e+00> : vector<256x128xf32>
    %60 = tpu.matmul %58, %59, %cst_36 {dimension_numbers = #tpu.dot_dimension_numbers<[1], [0], [0], [1], [0, 0, 1, 1], [], []>} : vector<256x1152xbf16>, vector<1152x128xbf16>, vector<256x128xf32> -> vector<256x128xf32>
    %61 = vector.shape_cast %60 : vector<256x128xf32> to vector<1x16x16x128xf32>
    %62 = arith.truncf %61 : vector<1x16x16x128xf32> to vector<1x16x16x128xbf16>
    %c0_37 = arith.constant 0 : index
    %c0_38 = arith.constant 0 : index
    %c0_39 = arith.constant 0 : index
    %c0_40 = arith.constant 0 : index
    %63 = vector.load %arg7[%c0_37, %c0_38, %c0_39, %c0_40] : memref<1x16x16x128xbf16, #tpu.memory_space<vmem>>, vector<1x16x16x128xbf16>
    tpu.vector_store %arg7[%c0_37, %c0_38, %c0_39, %c0_40], %62 {strides = array<i32>} : memref<1x16x16x128xbf16, #tpu.memory_space<vmem>>, vector<1x16x16x128xbf16>,
    %cst_41 = arith.constant dense<0.000000e+00> : vector<128xf32>
    %64 = vector.multi_reduction <add>, %60, %cst_41 [0] : vector<256x128xf32> to vector<128xf32>
    %65 = vector.shape_cast %64 : vector<128xf32> to vector<1x128xf32>
    %66 = arith.mulf %60, %60 : vector<256x128xf32>
    %cst_42 = arith.constant dense<0.000000e+00> : vector<128xf32>
    %67 = vector.multi_reduction <add>, %66, %cst_42 [0] : vector<256x128xf32> to vector<128xf32>
    %68 = vector.shape_cast %67 : vector<128xf32> to vector<1x128xf32>
    %69 = tpu.iota {dimensions = array<i32: 0>} : vector<8x128xi32>
    %c0_i32 = arith.constant 0 : i32
    %70 = vector.broadcast %c0_i32 : i32 to vector<8x128xi32>
    %71 = arith.cmpi eq, %69, %70 : vector<8x128xi32>
    %c1_i32_43 = arith.constant 1 : i32
    %72 = vector.broadcast %c1_i32_43 : i32 to vector<8x128xi32>
    %73 = arith.cmpi eq, %69, %72 : vector<8x128xi32>
    %cst_44 = arith.constant 0.000000e+00 : f32
    %74 = vector.shape_cast %68 : vector<1x128xf32> to vector<1x128xf32>
    %75 = vector.broadcast %74 : vector<1x128xf32> to vector<8x128xf32>
    %76 = vector.broadcast %cst_44 : f32 to vector<8x128xf32>
    %77 = arith.select %73, %75, %76 : vector<8x128xi1>, vector<8x128xf32>
    %78 = vector.shape_cast %65 : vector<1x128xf32> to vector<1x128xf32>
    %79 = vector.broadcast %78 : vector<1x128xf32> to vector<8x128xf32>
    %80 = arith.select %71, %79, %77 : vector<8x128xi1>, vector<8x128xf32>
    %81 = vector.shape_cast %80 : vector<8x128xf32> to vector<1x1x8x128xf32>
    %c0_45 = arith.constant 0 : index
    %c0_46 = arith.constant 0 : index
    %c0_47 = arith.constant 0 : index
    %c0_48 = arith.constant 0 : index
    %82 = vector.load %arg8[%c0_45, %c0_46, %c0_47, %c0_48] : memref<1x1x8x128xf32, #tpu.memory_space<vmem>>, vector<1x1x8x128xf32>
    tpu.vector_store %arg8[%c0_45, %c0_46, %c0_47, %c0_48], %81 {strides = array<i32>} : memref<1x1x8x128xf32, #tpu.memory_space<vmem>>, vector<1x1x8x128xf32>,
    return
  }
  func.func @transform_0(%arg0: i32, %arg1: i32) -> (i32, i32, i32, i32) {
    %c0_i32 = arith.constant 0 : i32
    %c0_i32_0 = arith.constant 0 : i32
    %c0_i32_1 = arith.constant 0 : i32
    %c0_i32_2 = arith.constant 0 : i32
    return %arg0, %c0_i32, %c0_i32_0, %c0_i32_1 : i32, i32, i32, i32
  }
  func.func @transform_1(%arg0: i32, %arg1: i32) -> (i32, i32) {
    %c0_i32 = arith.constant 0 : i32
    %c0_i32_0 = arith.constant 0 : i32
    %c0_i32_1 = arith.constant 0 : i32
    return %c0_i32, %c0_i32_0 : i32, i32
  }
  func.func @transform_2(%arg0: i32, %arg1: i32) -> (i32, i32) {
    %c0_i32 = arith.constant 0 : i32
    %c0_i32_0 = arith.constant 0 : i32
    %c0_i32_1 = arith.constant 0 : i32
    return %c0_i32, %c0_i32_0 : i32, i32
  }
  func.func @transform_3(%arg0: i32, %arg1: i32) -> (i32, i32) {
    %c0_i32 = arith.constant 0 : i32
    %c0_i32_0 = arith.constant 0 : i32
    %c0_i32_1 = arith.constant 0 : i32
    return %c0_i32, %c0_i32_0 : i32, i32
  }
  func.func @transform_4(%arg0: i32, %arg1: i32) -> (i32, i32) {
    %c0_i32 = arith.constant 0 : i32
    %c0_i32_0 = arith.constant 0 : i32
    %c0_i32_1 = arith.constant 0 : i32
    return %c0_i32, %c0_i32_0 : i32, i32
  }
  func.func @transform_5(%arg0: i32, %arg1: i32) -> (i32, i32, i32, i32) {
    %c0_i32 = arith.constant 0 : i32
    %c0_i32_0 = arith.constant 0 : i32
    %c0_i32_1 = arith.constant 0 : i32
    return %arg0, %arg1, %c0_i32, %c0_i32_0 : i32, i32, i32, i32
  }
  func.func @transform_6(%arg0: i32, %arg1: i32) -> (i32, i32, i32, i32) {
    %c0_i32 = arith.constant 0 : i32
    %c0_i32_0 = arith.constant 0 : i32
    %c0_i32_1 = arith.constant 0 : i32
    return %arg0, %arg1, %c0_i32, %c0_i32_0 : i32, i32, i32, i32
  }
}

module attributes {stable_mosaic.version = 11 : i64} {
  func.func @_bn2_res_prelu_kernel(%arg0: i32, %arg1: memref<512x128xbf16, #tpu.memory_space<vmem>>, %arg2: memref<1x128xf32, #tpu.memory_space<vmem>>, %arg3: memref<1x128xf32, #tpu.memory_space<vmem>>, %arg4: memref<1x128xf32, #tpu.memory_space<vmem>>, %arg5: memref<512x128xf32, #tpu.memory_space<vmem>>, %arg6: memref<512x128xf32, #tpu.memory_space<vmem>>) attributes {dimension_semantics = [#tpu.dimension_semantics<parallel>], iteration_bounds = array<i64: 1>, scalar_prefetch = 0 : i64, scratch_operands = 0 : i64, tpu.core_type = #tpu.core_type<tc>, window_params = [{transform_indices = @transform_0, window_bounds = array<i64: 512, 128>}, {pipeline_mode = #tpu.pipeline_mode<synchronous>, transform_indices = @transform_1, window_bounds = array<i64: 1, 128>}, {pipeline_mode = #tpu.pipeline_mode<synchronous>, transform_indices = @transform_2, window_bounds = array<i64: 1, 128>}, {pipeline_mode = #tpu.pipeline_mode<synchronous>, transform_indices = @transform_3, window_bounds = array<i64: 1, 128>}, {transform_indices = @transform_4, window_bounds = array<i64: 512, 128>}, {transform_indices = @transform_5, window_bounds = array<i64: 512, 128>}]} {
    %c0 = arith.constant 0 : index
    %c0_0 = arith.constant 0 : index
    %0 = vector.load %arg1[%c0, %c0_0] : memref<512x128xbf16, #tpu.memory_space<vmem>>, vector<512x128xbf16>
    %1 = arith.extf %0 : vector<512x128xbf16> to vector<512x128xf32>
    %c0_1 = arith.constant 0 : index
    %c0_2 = arith.constant 0 : index
    %2 = vector.load %arg2[%c0_1, %c0_2] : memref<1x128xf32, #tpu.memory_space<vmem>>, vector<1x128xf32>
    %3 = vector.broadcast %2 : vector<1x128xf32> to vector<512x128xf32>
    %4 = arith.mulf %1, %3 : vector<512x128xf32>
    %c0_3 = arith.constant 0 : index
    %c0_4 = arith.constant 0 : index
    %5 = vector.load %arg3[%c0_3, %c0_4] : memref<1x128xf32, #tpu.memory_space<vmem>>, vector<1x128xf32>
    %6 = vector.broadcast %5 : vector<1x128xf32> to vector<512x128xf32>
    %7 = arith.addf %4, %6 : vector<512x128xf32>
    %c0_5 = arith.constant 0 : index
    %c0_6 = arith.constant 0 : index
    %8 = vector.load %arg5[%c0_5, %c0_6] : memref<512x128xf32, #tpu.memory_space<vmem>>, vector<512x128xf32>
    %9 = arith.addf %7, %8 : vector<512x128xf32>
    %cst = arith.constant 0.000000e+00 : f32
    %10 = vector.broadcast %cst : f32 to vector<512x128xf32>
    %11 = arith.cmpf oge, %9, %10 : vector<512x128xf32>
    %c0_7 = arith.constant 0 : index
    %c0_8 = arith.constant 0 : index
    %12 = vector.load %arg4[%c0_7, %c0_8] : memref<1x128xf32, #tpu.memory_space<vmem>>, vector<1x128xf32>
    %13 = vector.broadcast %12 : vector<1x128xf32> to vector<512x128xf32>
    %14 = arith.mulf %13, %9 : vector<512x128xf32>
    %15 = arith.select %11, %9, %14 : vector<512x128xi1>, vector<512x128xf32>
    %c0_9 = arith.constant 0 : index
    %c0_10 = arith.constant 0 : index
    %16 = vector.load %arg6[%c0_9, %c0_10] : memref<512x128xf32, #tpu.memory_space<vmem>>, vector<512x128xf32>
    tpu.vector_store %arg6[%c0_9, %c0_10], %15 {strides = array<i32>} : memref<512x128xf32, #tpu.memory_space<vmem>>, vector<512x128xf32>,
    return
  }
  func.func @transform_0(%arg0: i32) -> (i32, i32) {
    %c0_i32 = arith.constant 0 : i32
    %c0_i32_0 = arith.constant 0 : i32
    return %arg0, %c0_i32 : i32, i32
  }
  func.func @transform_1(%arg0: i32) -> (i32, i32) {
    %c0_i32 = arith.constant 0 : i32
    %c0_i32_0 = arith.constant 0 : i32
    %c0_i32_1 = arith.constant 0 : i32
    return %c0_i32, %c0_i32_0 : i32, i32
  }
  func.func @transform_2(%arg0: i32) -> (i32, i32) {
    %c0_i32 = arith.constant 0 : i32
    %c0_i32_0 = arith.constant 0 : i32
    %c0_i32_1 = arith.constant 0 : i32
    return %c0_i32, %c0_i32_0 : i32, i32
  }
  func.func @transform_3(%arg0: i32) -> (i32, i32) {
    %c0_i32 = arith.constant 0 : i32
    %c0_i32_0 = arith.constant 0 : i32
    %c0_i32_1 = arith.constant 0 : i32
    return %c0_i32, %c0_i32_0 : i32, i32
  }
  func.func @transform_4(%arg0: i32) -> (i32, i32) {
    %c0_i32 = arith.constant 0 : i32
    %c0_i32_0 = arith.constant 0 : i32
    return %arg0, %c0_i32 : i32, i32
  }
  func.func @transform_5(%arg0: i32) -> (i32, i32) {
    %c0_i32 = arith.constant 0 : i32
    %c0_i32_0 = arith.constant 0 : i32
    return %arg0, %c0_i32 : i32, i32
  }
}

</mosaic_0001>

<llo_original>
// kernel: basic_block_forward.5
$region0: #{basic_block_forward.5}
  #allocation0 [shape = 'u32[]', space=smem, size = 0x4, offset = 0x4, fixed_abs, tag = 'smem constant byte address 0x4 - core index']
  #allocation1 [shape = 'u32[72,128]{1,0:T(1,128)}', space=vmem, size = 0x9000, scoped, tag = 'internal scratch']
  %s0 = inlined_call_operand.vmem [shape: bf16[512,128], index: 0, kind: input, shape index: {}]
  %s1 = inlined_call_operand.vmem [shape: f32[1,128], index: 1, kind: input, shape index: {}]
  %s2 = inlined_call_operand.vmem [shape: f32[1,128], index: 2, kind: input, shape index: {}]
  %s3 = inlined_call_operand.vmem [shape: f32[1,128], index: 3, kind: input, shape index: {}]
  %s4 = inlined_call_operand.vmem [shape: f32[512,128], index: 4, kind: input, shape index: {}]
  %s5 = inlined_call_operand.hbm [shape: f32[512,128], index: 5, kind: output, shape index: {}]
  %s6 = sld [smem:[#allocation0]]
  $region30: #{basic_block_forward.5} parent=0
    _
  %s8 = ssub.s32 1, %s6
  %s9 = scalar_select 0, %s8, %s6
  $region1: #{basic_block_forward.5} parent=0
    #allocation2 [shape = 'u8[262144]{0}', space=vmem, size = 0x40000, scoped, tag = 'output window, operand 0, single buffered']
    #allocation3 [shape = 's32[1]{0}', space=sflag, size = 0x4, scoped, tag = 'scoped memory for basic_block_forward.5']
    %10 = vsyncpa [#allocation3], 0
    // Predicated region
    $region2: #{basic_block_forward.5} parent=1 // pred_check
      _
    $region3: #{basic_block_forward.5} parent=1 // pred_check_branch
      %12 = sbr.rel (0) target = $region5
    $region4: #{basic_block_forward.5} parent=1 // pred_region
      _
    $region5: #{basic_block_forward.5} parent=1 // pred_fallthru
      _
    // Predicated region
    $region6: #{basic_block_forward.5} parent=1 // pred_check
      _
    $region7: #{basic_block_forward.5} parent=1 // pred_check_branch
      %14 = sbr.rel (0) target = $region9
    $region8: #{basic_block_forward.5} parent=1 // pred_region
      _
    $region9: #{basic_block_forward.5} parent=1 // pred_fallthru
      _
    // Predicated region
    $region10: #{basic_block_forward.5} parent=1 // pred_check
      _
    $region11: #{basic_block_forward.5} parent=1 // pred_check_branch
      %16 = sbr.rel (0) target = $region13
    $region12: #{basic_block_forward.5} parent=1 // pred_region
      _
    $region13: #{basic_block_forward.5} parent=1 // pred_fallthru
      _
    // Predicated region
    $region14: #{basic_block_forward.5} parent=1 // pred_check
      _
    $region15: #{basic_block_forward.5} parent=1 // pred_check_branch
      %18 = sbr.rel (0) target = $region17
    $region16: #{basic_block_forward.5} parent=1 // pred_region
      _
    $region17: #{basic_block_forward.5} parent=1 // pred_fallthru
      _
    // Predicated region
    $region18: #{basic_block_forward.5} parent=1 // pred_check
      _
    $region19: #{basic_block_forward.5} parent=1 // pred_check_branch
      %20 = sbr.rel (0) target = $region21
    $region20: #{basic_block_forward.5} parent=1 // pred_region
      _
    $region21: #{basic_block_forward.5} parent=1 // pred_fallthru
      _
    %v21 = vld [vmem:[%s0] sm:$0xf]
    %v22 = vld [vmem:[%s0 + $0x4] sm:$0xf]
    %v23 = vld [vmem:[%s0 + $0x8] sm:$0xf]
    %v24 = vld [vmem:[%s0 + $0xc] sm:$0xf]
    %v25 = vld [vmem:[%s0 + $0x10] sm:$0xf]
    %v26 = vld [vmem:[%s0 + $0x14] sm:$0xf]
    %v27 = vld [vmem:[%s0 + $0x18] sm:$0xf]
    %v28 = vld [vmem:[%s0 + $0x1c] sm:$0xf]
    %v29 = vld [vmem:[%s0 + $0x20] sm:$0xf]
    %v30 = vld [vmem:[%s0 + $0x24] sm:$0xf]
    %v31 = vld [vmem:[%s0 + $0x28] sm:$0xf]
    %v32 = vld [vmem:[%s0 + $0x2c] sm:$0xf]
    %v33 = vld [vmem:[%s0 + $0x30] sm:$0xf]
    %v34 = vld [vmem:[%s0 + $0x34] sm:$0xf]
    %v35 = vld [vmem:[%s0 + $0x38] sm:$0xf]
    %v36 = vld [vmem:[%s0 + $0x3c] sm:$0xf]
    %v37 = vld [vmem:[%s0 + $0x40] sm:$0xf]
    %v38 = vld [vmem:[%s0 + $0x44] sm:$0xf]
    %v39 = vld [vmem:[%s0 + $0x48] sm:$0xf]
    %v40 = vld [vmem:[%s0 + $0x4c] sm:$0xf]
    %v41 = vld [vmem:[%s0 + $0x50] sm:$0xf]
    %v42 = vld [vmem:[%s0 + $0x54] sm:$0xf]
    %v43 = vld [vmem:[%s0 + $0x58] sm:$0xf]
    %v44 = vld [vmem:[%s0 + $0x5c] sm:$0xf]
    %v45 = vld [vmem:[%s0 + $0x60] sm:$0xf]
    %v46 = vld [vmem:[%s0 + $0x64] sm:$0xf]
    %v47 = vld [vmem:[%s0 + $0x68] sm:$0xf]
    %v48 = vld [vmem:[%s0 + $0x6c] sm:$0xf]
    %v49 = vld [vmem:[%s0 + $0x70] sm:$0xf]
    %v50 = vld [vmem:[%s0 + $0x74] sm:$0xf]
    %v51 = vld [vmem:[%s0 + $0x78] sm:$0xf]
    %v52 = vld [vmem:[%s0 + $0x7c] sm:$0xf]
    %v53 = vld [vmem:[%s0 + $0x80] sm:$0xf]
    %v54 = vld [vmem:[%s0 + $0x84] sm:$0xf]
    %v55 = vld [vmem:[%s0 + $0x88] sm:$0xf]
    %v56 = vld [vmem:[%s0 + $0x8c] sm:$0xf]
    %v57 = vld [vmem:[%s0 + $0x90] sm:$0xf]
    %v58 = vld [vmem:[%s0 + $0x94] sm:$0xf]
    %v59 = vld [vmem:[%s0 + $0x98] sm:$0xf]
    %v60 = vld [vmem:[%s0 + $0x9c] sm:$0xf]
    %v61 = vld [vmem:[%s0 + $0xa0] sm:$0xf]
    %v62 = vld [vmem:[%s0 + $0xa4] sm:$0xf]
    %v63 = vld [vmem:[%s0 + $0xa8] sm:$0xf]
    %v64 = vld [vmem:[%s0 + $0xac] sm:$0xf]
    %v65 = vld [vmem:[%s0 + $0xb0] sm:$0xf]
    %v66 = vld [vmem:[%s0 + $0xb4] sm:$0xf]
    %v67 = vld [vmem:[%s0 + $0xb8] sm:$0xf]
    %v68 = vld [vmem:[%s0 + $0xbc] sm:$0xf]
    %v69 = vld [vmem:[%s0 + $0xc0] sm:$0xf]
    %v70 = vld [vmem:[%s0 + $0xc4] sm:$0xf]
    %v71 = vld [vmem:[%s0 + $0xc8] sm:$0xf]
    %v72 = vld [vmem:[%s0 + $0xcc] sm:$0xf]
    %v73 = vld [vmem:[%s0 + $0xd0] sm:$0xf]
    %v74 = vld [vmem:[%s0 + $0xd4] sm:$0xf]
    %v75 = vld [vmem:[%s0 + $0xd8] sm:$0xf]
    %v76 = vld [vmem:[%s0 + $0xdc] sm:$0xf]
    %v77 = vld [vmem:[%s0 + $0xe0] sm:$0xf]
    %v78 = vld [vmem:[%s0 + $0xe4] sm:$0xf]
    %v79 = vld [vmem:[%s0 + $0xe8] sm:$0xf]
    %v80 = vld [vmem:[%s0 + $0xec] sm:$0xf]
    %v81 = vld [vmem:[%s0 + $0xf0] sm:$0xf]
    %v82 = vld [vmem:[%s0 + $0xf4] sm:$0xf]
    %v83 = vld [vmem:[%s0 + $0xf8] sm:$0xf]
    %v84 = vld [vmem:[%s0 + $0xfc] sm:$0xf]
    %v85 = vunpack.c.l.bf16 %v21
    %v86 = vunpack.c.l.bf16 %v22
    %v87 = vunpack.c.l.bf16 %v23
    %v88 = vunpack.c.l.bf16 %v24
    %v89 = vunpack.c.l.bf16 %v25
    %v90 = vunpack.c.l.bf16 %v26
    %v91 = vunpack.c.l.bf16 %v27
    %v92 = vunpack.c.l.bf16 %v28
    %v93 = vunpack.c.l.bf16 %v29
    %v94 = vunpack.c.l.bf16 %v30
    %v95 = vunpack.c.l.bf16 %v31
    %v96 = vunpack.c.l.bf16 %v32
    %v97 = vunpack.c.l.bf16 %v33
    %v98 = vunpack.c.l.bf16 %v34
    %v99 = vunpack.c.l.bf16 %v35
    %v100 = vunpack.c.l.bf16 %v36
    %v101 = vunpack.c.l.bf16 %v37
    %v102 = vunpack.c.l.bf16 %v38
    %v103 = vunpack.c.l.bf16 %v39
    %v104 = vunpack.c.l.bf16 %v40
    %v105 = vunpack.c.l.bf16 %v41
    %v106 = vunpack.c.l.bf16 %v42
    %v107 = vunpack.c.l.bf16 %v43
    %v108 = vunpack.c.l.bf16 %v44
    %v109 = vunpack.c.l.bf16 %v45
    %v110 = vunpack.c.l.bf16 %v46
    %v111 = vunpack.c.l.bf16 %v47
    %v112 = vunpack.c.l.bf16 %v48
    %v113 = vunpack.c.l.bf16 %v49
    %v114 = vunpack.c.l.bf16 %v50
    %v115 = vunpack.c.l.bf16 %v51
    %v116 = vunpack.c.l.bf16 %v52
    %v117 = vunpack.c.l.bf16 %v53
    %v118 = vunpack.c.l.bf16 %v54
    %v119 = vunpack.c.l.bf16 %v55
    %v120 = vunpack.c.l.bf16 %v56
    %v121 = vunpack.c.l.bf16 %v57
    %v122 = vunpack.c.l.bf16 %v58
    %v123 = vunpack.c.l.bf16 %v59
    %v124 = vunpack.c.l.bf16 %v60
    %v125 = vunpack.c.l.bf16 %v61
    %v126 = vunpack.c.l.bf16 %v62
    %v127 = vunpack.c.l.bf16 %v63
    %v128 = vunpack.c.l.bf16 %v64
    %v129 = vunpack.c.l.bf16 %v65
    %v130 = vunpack.c.l.bf16 %v66
    %v131 = vunpack.c.l.bf16 %v67
    %v132 = vunpack.c.l.bf16 %v68
    %v133 = vunpack.c.l.bf16 %v69
    %v134 = vunpack.c.l.bf16 %v70
    %v135 = vunpack.c.l.bf16 %v71
    %v136 = vunpack.c.l.bf16 %v72
    %v137 = vunpack.c.l.bf16 %v73
    %v138 = vunpack.c.l.bf16 %v74
    %v139 = vunpack.c.l.bf16 %v75
    %v140 = vunpack.c.l.bf16 %v76
    %v141 = vunpack.c.l.bf16 %v77
    %v142 = vunpack.c.l.bf16 %v78
    %v143 = vunpack.c.l.bf16 %v79
    %v144 = vunpack.c.l.bf16 %v80
    %v145 = vunpack.c.l.bf16 %v81
    %v146 = vunpack.c.l.bf16 %v82
    %v147 = vunpack.c.l.bf16 %v83
    %v148 = vunpack.c.l.bf16 %v84
    %v149 = vld [vmem:[%s1] sm:$0x1]
    %v151 = vperm.slane %v149, 0
    %v153 = vmul.f32 %v85, %v151
    %v154 = vmul.f32 %v86, %v151
    %v155 = vmul.f32 %v87, %v151
    %v156 = vmul.f32 %v88, %v151
    %v157 = vmul.f32 %v89, %v151
    %v158 = vmul.f32 %v90, %v151
    %v159 = vmul.f32 %v91, %v151
    %v160 = vmul.f32 %v92, %v151
    %v161 = vmul.f32 %v93, %v151
    %v162 = vmul.f32 %v94, %v151
    %v163 = vmul.f32 %v95, %v151
    %v164 = vmul.f32 %v96, %v151
    %v165 = vmul.f32 %v97, %v151
    %v166 = vmul.f32 %v98, %v151
    %v167 = vmul.f32 %v99, %v151
    %v168 = vmul.f32 %v100, %v151
    %v169 = vmul.f32 %v101, %v151
    %v170 = vmul.f32 %v102, %v151
    %v171 = vmul.f32 %v103, %v151
    %v172 = vmul.f32 %v104, %v151
    %v173 = vmul.f32 %v105, %v151
    %v174 = vmul.f32 %v106, %v151
    %v175 = vmul.f32 %v107, %v151
    %v176 = vmul.f32 %v108, %v151
    %v177 = vmul.f32 %v109, %v151
    %v178 = vmul.f32 %v110, %v151
    %v179 = vmul.f32 %v111, %v151
    %v180 = vmul.f32 %v112, %v151
    %v181 = vmul.f32 %v113, %v151
    %v182 = vmul.f32 %v114, %v151
    %v183 = vmul.f32 %v115, %v151
    %v184 = vmul.f32 %v116, %v151
    %v185 = vmul.f32 %v117, %v151
    %v186 = vmul.f32 %v118, %v151
    %v187 = vmul.f32 %v119, %v151
    %v188 = vmul.f32 %v120, %v151
    %v189 = vmul.f32 %v121, %v151
    %v190 = vmul.f32 %v122, %v151
    %v191 = vmul.f32 %v123, %v151
    %v192 = vmul.f32 %v124, %v151
    %v193 = vmul.f32 %v125, %v151
    %v194 = vmul.f32 %v126, %v151
    %v195 = vmul.f32 %v127, %v151
    %v196 = vmul.f32 %v128, %v151
    %v197 = vmul.f32 %v129, %v151
    %v198 = vmul.f32 %v130, %v151
    %v199 = vmul.f32 %v131, %v151
    %v200 = vmul.f32 %v132, %v151
    %v201 = vmul.f32 %v133, %v151
    %v202 = vmul.f32 %v134, %v151
    %v203 = vmul.f32 %v135, %v151
    %v204 = vmul.f32 %v136, %v151
    %v205 = vmul.f32 %v137, %v151
    %v206 = vmul.f32 %v138, %v151
    %v207 = vmul.f32 %v139, %v151
    %v208 = vmul.f32 %v140, %v151
    %v209 = vmul.f32 %v141, %v151
    %v210 = vmul.f32 %v142, %v151
    %v211 = vmul.f32 %v143, %v151
    %v212 = vmul.f32 %v144, %v151
    %v213 = vmul.f32 %v145, %v151
    %v214 = vmul.f32 %v146, %v151
    %v215 = vmul.f32 %v147, %v151
    %v216 = vmul.f32 %v148, %v151
    %v217 = vld [vmem:[%s2] sm:$0x1]
    %v219 = vperm.slane %v217, 0
    %v221 = vadd.f32 %v153, %v219
    %v222 = vadd.f32 %v154, %v219
    %v223 = vadd.f32 %v155, %v219
    %v224 = vadd.f32 %v156, %v219
    %v225 = vadd.f32 %v157, %v219
    %v226 = vadd.f32 %v158, %v219
    %v227 = vadd.f32 %v159, %v219
    %v228 = vadd.f32 %v160, %v219
    %v229 = vadd.f32 %v161, %v219
    %v230 = vadd.f32 %v162, %v219
    %v231 = vadd.f32 %v163, %v219
    %v232 = vadd.f32 %v164, %v219
    %v233 = vadd.f32 %v165, %v219
    %v234 = vadd.f32 %v166, %v219
    %v235 = vadd.f32 %v167, %v219
    %v236 = vadd.f32 %v168, %v219
    %v237 = vadd.f32 %v169, %v219
    %v238 = vadd.f32 %v170, %v219
    %v239 = vadd.f32 %v171, %v219
    %v240 = vadd.f32 %v172, %v219
    %v241 = vadd.f32 %v173, %v219
    %v242 = vadd.f32 %v174, %v219
    %v243 = vadd.f32 %v175, %v219
    %v244 = vadd.f32 %v176, %v219
    %v245 = vadd.f32 %v177, %v219
    %v246 = vadd.f32 %v178, %v219
    %v247 = vadd.f32 %v179, %v219
    %v248 = vadd.f32 %v180, %v219
    %v249 = vadd.f32 %v181, %v219
    %v250 = vadd.f32 %v182, %v219
    %v251 = vadd.f32 %v183, %v219
    %v252 = vadd.f32 %v184, %v219
    %v253 = vadd.f32 %v185, %v219
    %v254 = vadd.f32 %v186, %v219
    %v255 = vadd.f32 %v187, %v219
    %v256 = vadd.f32 %v188, %v219
    %v257 = vadd.f32 %v189, %v219
    %v258 = vadd.f32 %v190, %v219
    %v259 = vadd.f32 %v191, %v219
    %v260 = vadd.f32 %v192, %v219
    %v261 = vadd.f32 %v193, %v219
    %v262 = vadd.f32 %v194, %v219
    %v263 = vadd.f32 %v195, %v219
    %v264 = vadd.f32 %v196, %v219
    %v265 = vadd.f32 %v197, %v219
    %v266 = vadd.f32 %v198, %v219
    %v267 = vadd.f32 %v199, %v219
    %v268 = vadd.f32 %v200, %v219
    %v269 = vadd.f32 %v201, %v219
    %v270 = vadd.f32 %v202, %v219
    %v271 = vadd.f32 %v203, %v219
    %v272 = vadd.f32 %v204, %v219
    %v273 = vadd.f32 %v205, %v219
    %v274 = vadd.f32 %v206, %v219
    %v275 = vadd.f32 %v207, %v219
    %v276 = vadd.f32 %v208, %v219
    %v277 = vadd.f32 %v209, %v219
    %v278 = vadd.f32 %v210, %v219
    %v279 = vadd.f32 %v211, %v219
    %v280 = vadd.f32 %v212, %v219
    %v281 = vadd.f32 %v213, %v219
    %v282 = vadd.f32 %v214, %v219
    %v283 = vadd.f32 %v215, %v219
    %v284 = vadd.f32 %v216, %v219
    %v285 = vld [vmem:[%s4] sm:$0xff]
    %v286 = vld [vmem:[%s4 + $0x8] sm:$0xff]
    %v287 = vld [vmem:[%s4 + $0x10] sm:$0xff]
    %v288 = vld [vmem:[%s4 + $0x18] sm:$0xff]
    %v289 = vld [vmem:[%s4 + $0x20] sm:$0xff]
    %v290 = vld [vmem:[%s4 + $0x28] sm:$0xff]
    %v291 = vld [vmem:[%s4 + $0x30] sm:$0xff]
    %v292 = vld [vmem:[%s4 + $0x38] sm:$0xff]
    %v293 = vld [vmem:[%s4 + $0x40] sm:$0xff]
    %v294 = vld [vmem:[%s4 + $0x48] sm:$0xff]
    %v295 = vld [vmem:[%s4 + $0x50] sm:$0xff]
    %v296 = vld [vmem:[%s4 + $0x58] sm:$0xff]
    %v297 = vld [vmem:[%s4 + $0x60] sm:$0xff]
    %v298 = vld [vmem:[%s4 + $0x68] sm:$0xff]
    %v299 = vld [vmem:[%s4 + $0x70] sm:$0xff]
    %v300 = vld [vmem:[%s4 + $0x78] sm:$0xff]
    %v301 = vld [vmem:[%s4 + $0x80] sm:$0xff]
    %v302 = vld [vmem:[%s4 + $0x88] sm:$0xff]
    %v303 = vld [vmem:[%s4 + $0x90] sm:$0xff]
    %v304 = vld [vmem:[%s4 + $0x98] sm:$0xff]
    %v305 = vld [vmem:[%s4 + $0xa0] sm:$0xff]
    %v306 = vld [vmem:[%s4 + $0xa8] sm:$0xff]
    %v307 = vld [vmem:[%s4 + $0xb0] sm:$0xff]
    %v308 = vld [vmem:[%s4 + $0xb8] sm:$0xff]
    %v309 = vld [vmem:[%s4 + $0xc0] sm:$0xff]
    %v310 = vld [vmem:[%s4 + $0xc8] sm:$0xff]
    %v311 = vld [vmem:[%s4 + $0xd0] sm:$0xff]
    %v312 = vld [vmem:[%s4 + $0xd8] sm:$0xff]
    %v313 = vld [vmem:[%s4 + $0xe0] sm:$0xff]
    %v314 = vld [vmem:[%s4 + $0xe8] sm:$0xff]
    %v315 = vld [vmem:[%s4 + $0xf0] sm:$0xff]
    %v316 = vld [vmem:[%s4 + $0xf8] sm:$0xff]
    %v317 = vld [vmem:[%s4 + $0x100] sm:$0xff]
    %v318 = vld [vmem:[%s4 + $0x108] sm:$0xff]
    %v319 = vld [vmem:[%s4 + $0x110] sm:$0xff]
    %v320 = vld [vmem:[%s4 + $0x118] sm:$0xff]
    %v321 = vld [vmem:[%s4 + $0x120] sm:$0xff]
    %v322 = vld [vmem:[%s4 + $0x128] sm:$0xff]
    %v323 = vld [vmem:[%s4 + $0x130] sm:$0xff]
    %v324 = vld [vmem:[%s4 + $0x138] sm:$0xff]
    %v325 = vld [vmem:[%s4 + $0x140] sm:$0xff]
    %v326 = vld [vmem:[%s4 + $0x148] sm:$0xff]
    %v327 = vld [vmem:[%s4 + $0x150] sm:$0xff]
    %v328 = vld [vmem:[%s4 + $0x158] sm:$0xff]
    %v329 = vld [vmem:[%s4 + $0x160] sm:$0xff]
    %v330 = vld [vmem:[%s4 + $0x168] sm:$0xff]
    %v331 = vld [vmem:[%s4 + $0x170] sm:$0xff]
    %v332 = vld [vmem:[%s4 + $0x178] sm:$0xff]
    %v333 = vld [vmem:[%s4 + $0x180] sm:$0xff]
    %v334 = vld [vmem:[%s4 + $0x188] sm:$0xff]
    %v335 = vld [vmem:[%s4 + $0x190] sm:$0xff]
    %v336 = vld [vmem:[%s4 + $0x198] sm:$0xff]
    %v337 = vld [vmem:[%s4 + $0x1a0] sm:$0xff]
    %v338 = vld [vmem:[%s4 + $0x1a8] sm:$0xff]
    %v339 = vld [vmem:[%s4 + $0x1b0] sm:$0xff]
    %v340 = vld [vmem:[%s4 + $0x1b8] sm:$0xff]
    %v341 = vld [vmem:[%s4 + $0x1c0] sm:$0xff]
    %v342 = vld [vmem:[%s4 + $0x1c8] sm:$0xff]
    %v343 = vld [vmem:[%s4 + $0x1d0] sm:$0xff]
    %v344 = vld [vmem:[%s4 + $0x1d8] sm:$0xff]
    %v345 = vld [vmem:[%s4 + $0x1e0] sm:$0xff]
    %v346 = vld [vmem:[%s4 + $0x1e8] sm:$0xff]
    %v347 = vld [vmem:[%s4 + $0x1f0] sm:$0xff]
    %v348 = vld [vmem:[%s4 + $0x1f8] sm:$0xff]
    %v349 = vadd.f32 %v221, %v285
    %v350 = vadd.f32 %v222, %v286
    %v351 = vadd.f32 %v223, %v287
    %v352 = vadd.f32 %v224, %v288
    %v353 = vadd.f32 %v225, %v289
    %v354 = vadd.f32 %v226, %v290
    %v355 = vadd.f32 %v227, %v291
    %v356 = vadd.f32 %v228, %v292
    %v357 = vadd.f32 %v229, %v293
    %v358 = vadd.f32 %v230, %v294
    %v359 = vadd.f32 %v231, %v295
    %v360 = vadd.f32 %v232, %v296
    %v361 = vadd.f32 %v233, %v297
    %v362 = vadd.f32 %v234, %v298
    %v363 = vadd.f32 %v235, %v299
    %v364 = vadd.f32 %v236, %v300
    %v365 = vadd.f32 %v237, %v301
    %v366 = vadd.f32 %v238, %v302
    %v367 = vadd.f32 %v239, %v303
    %v368 = vadd.f32 %v240, %v304
    %v369 = vadd.f32 %v241, %v305
    %v370 = vadd.f32 %v242, %v306
    %v371 = vadd.f32 %v243, %v307
    %v372 = vadd.f32 %v244, %v308
    %v373 = vadd.f32 %v245, %v309
    %v374 = vadd.f32 %v246, %v310
    %v375 = vadd.f32 %v247, %v311
    %v376 = vadd.f32 %v248, %v312
    %v377 = vadd.f32 %v249, %v313
    %v378 = vadd.f32 %v250, %v314
    %v379 = vadd.f32 %v251, %v315
    %v380 = vadd.f32 %v252, %v316
    %v381 = vadd.f32 %v253, %v317
    %v382 = vadd.f32 %v254, %v318
    %v383 = vadd.f32 %v255, %v319
    %v384 = vadd.f32 %v256, %v320
    %v385 = vadd.f32 %v257, %v321
    %v386 = vadd.f32 %v258, %v322
    %v387 = vadd.f32 %v259, %v323
    %v388 = vadd.f32 %v260, %v324
    %v389 = vadd.f32 %v261, %v325
    %v390 = vadd.f32 %v262, %v326
    %v391 = vadd.f32 %v263, %v327
    %v392 = vadd.f32 %v264, %v328
    %v393 = vadd.f32 %v265, %v329
    %v394 = vadd.f32 %v266, %v330
    %v395 = vadd.f32 %v267, %v331
    %v396 = vadd.f32 %v268, %v332
    %v397 = vadd.f32 %v269, %v333
    %v398 = vadd.f32 %v270, %v334
    %v399 = vadd.f32 %v271, %v335
    %v400 = vadd.f32 %v272, %v336
    %v401 = vadd.f32 %v273, %v337
    %v402 = vadd.f32 %v274, %v338
    %v403 = vadd.f32 %v275, %v339
    %v404 = vadd.f32 %v276, %v340
    %v405 = vadd.f32 %v277, %v341
    %v406 = vadd.f32 %v278, %v342
    %v407 = vadd.f32 %v279, %v343
    %v408 = vadd.f32 %v280, %v344
    %v409 = vadd.f32 %v281, %v345
    %v410 = vadd.f32 %v282, %v346
    %v411 = vadd.f32 %v283, %v347
    %v412 = vadd.f32 %v284, %v348
    %vm413 = vcmp.ge.f32.partialorder %v349, 0.0
    %vm414 = vcmp.ge.f32.partialorder %v350, 0.0
    %vm415 = vcmp.ge.f32.partialorder %v351, 0.0
    %vm416 = vcmp.ge.f32.partialorder %v352, 0.0
    %vm417 = vcmp.ge.f32.partialorder %v353, 0.0
    %vm418 = vcmp.ge.f32.partialorder %v354, 0.0
    %vm419 = vcmp.ge.f32.partialorder %v355, 0.0
    %vm420 = vcmp.ge.f32.partialorder %v356, 0.0
    %vm421 = vcmp.ge.f32.partialorder %v357, 0.0
    %vm422 = vcmp.ge.f32.partialorder %v358, 0.0
    %vm423 = vcmp.ge.f32.partialorder %v359, 0.0
    %vm424 = vcmp.ge.f32.partialorder %v360, 0.0
    %vm425 = vcmp.ge.f32.partialorder %v361, 0.0
    %vm426 = vcmp.ge.f32.partialorder %v362, 0.0
    %vm427 = vcmp.ge.f32.partialorder %v363, 0.0
    %vm428 = vcmp.ge.f32.partialorder %v364, 0.0
    %vm429 = vcmp.ge.f32.partialorder %v365, 0.0
    %vm430 = vcmp.ge.f32.partialorder %v366, 0.0
    %vm431 = vcmp.ge.f32.partialorder %v367, 0.0
    %vm432 = vcmp.ge.f32.partialorder %v368, 0.0
    %vm433 = vcmp.ge.f32.partialorder %v369, 0.0
    %vm434 = vcmp.ge.f32.partialorder %v370, 0.0
    %vm435 = vcmp.ge.f32.partialorder %v371, 0.0
    %vm436 = vcmp.ge.f32.partialorder %v372, 0.0
    %vm437 = vcmp.ge.f32.partialorder %v373, 0.0
    %vm438 = vcmp.ge.f32.partialorder %v374, 0.0
    %vm439 = vcmp.ge.f32.partialorder %v375, 0.0
    %vm440 = vcmp.ge.f32.partialorder %v376, 0.0
    %vm441 = vcmp.ge.f32.partialorder %v377, 0.0
    %vm442 = vcmp.ge.f32.partialorder %v378, 0.0
    %vm443 = vcmp.ge.f32.partialorder %v379, 0.0
    %vm444 = vcmp.ge.f32.partialorder %v380, 0.0
    %vm445 = vcmp.ge.f32.partialorder %v381, 0.0
    %vm446 = vcmp.ge.f32.partialorder %v382, 0.0
    %vm447 = vcmp.ge.f32.partialorder %v383, 0.0
    %vm448 = vcmp.ge.f32.partialorder %v384, 0.0
    %vm449 = vcmp.ge.f32.partialorder %v385, 0.0
    %vm450 = vcmp.ge.f32.partialorder %v386, 0.0
    %vm451 = vcmp.ge.f32.partialorder %v387, 0.0
    %vm452 = vcmp.ge.f32.partialorder %v388, 0.0
    %vm453 = vcmp.ge.f32.partialorder %v389, 0.0
    %vm454 = vcmp.ge.f32.partialorder %v390, 0.0
    %vm455 = vcmp.ge.f32.partialorder %v391, 0.0
    %vm456 = vcmp.ge.f32.partialorder %v392, 0.0
    %vm457 = vcmp.ge.f32.partialorder %v393, 0.0
    %vm458 = vcmp.ge.f32.partialorder %v394, 0.0
    %vm459 = vcmp.ge.f32.partialorder %v395, 0.0
    %vm460 = vcmp.ge.f32.partialorder %v396, 0.0
    %vm461 = vcmp.ge.f32.partialorder %v397, 0.0
    %vm462 = vcmp.ge.f32.partialorder %v398, 0.0
    %vm463 = vcmp.ge.f32.partialorder %v399, 0.0
    %vm464 = vcmp.ge.f32.partialorder %v400, 0.0
    %vm465 = vcmp.ge.f32.partialorder %v401, 0.0
    %vm466 = vcmp.ge.f32.partialorder %v402, 0.0
    %vm467 = vcmp.ge.f32.partialorder %v403, 0.0
    %vm468 = vcmp.ge.f32.partialorder %v404, 0.0
    %vm469 = vcmp.ge.f32.partialorder %v405, 0.0
    %vm470 = vcmp.ge.f32.partialorder %v406, 0.0
    %vm471 = vcmp.ge.f32.partialorder %v407, 0.0
    %vm472 = vcmp.ge.f32.partialorder %v408, 0.0
    %vm473 = vcmp.ge.f32.partialorder %v409, 0.0
    %vm474 = vcmp.ge.f32.partialorder %v410, 0.0
    %vm475 = vcmp.ge.f32.partialorder %v411, 0.0
    %vm476 = vcmp.ge.f32.partialorder %v412, 0.0
    %v477 = vld [vmem:[%s3] sm:$0x1]
    %v479 = vperm.slane %v477, 0
    %v481 = vmul.f32 %v479, %v349
    %v482 = vmul.f32 %v479, %v350
    %v483 = vmul.f32 %v479, %v351
    %v484 = vmul.f32 %v479, %v352
    %v485 = vmul.f32 %v479, %v353
    %v486 = vmul.f32 %v479, %v354
    %v487 = vmul.f32 %v479, %v355
    %v488 = vmul.f32 %v479, %v356
    %v489 = vmul.f32 %v479, %v357
    %v490 = vmul.f32 %v479, %v358
    %v491 = vmul.f32 %v479, %v359
    %v492 = vmul.f32 %v479, %v360
    %v493 = vmul.f32 %v479, %v361
    %v494 = vmul.f32 %v479, %v362
    %v495 = vmul.f32 %v479, %v363
    %v496 = vmul.f32 %v479, %v364
    %v497 = vmul.f32 %v479, %v365
    %v498 = vmul.f32 %v479, %v366
    %v499 = vmul.f32 %v479, %v367
    %v500 = vmul.f32 %v479, %v368
    %v501 = vmul.f32 %v479, %v369
    %v502 = vmul.f32 %v479, %v370
    %v503 = vmul.f32 %v479, %v371
    %v504 = vmul.f32 %v479, %v372
    %v505 = vmul.f32 %v479, %v373
    %v506 = vmul.f32 %v479, %v374
    %v507 = vmul.f32 %v479, %v375
    %v508 = vmul.f32 %v479, %v376
    %v509 = vmul.f32 %v479, %v377
    %v510 = vmul.f32 %v479, %v378
    %v511 = vmul.f32 %v479, %v379
    %v512 = vmul.f32 %v479, %v380
    %v513 = vmul.f32 %v479, %v381
    %v514 = vmul.f32 %v479, %v382
    %v515 = vmul.f32 %v479, %v383
    %v516 = vmul.f32 %v479, %v384
    %v517 = vmul.f32 %v479, %v385
    %v518 = vmul.f32 %v479, %v386
    %v519 = vmul.f32 %v479, %v387
    %v520 = vmul.f32 %v479, %v388
    %v521 = vmul.f32 %v479, %v389
    %v522 = vmul.f32 %v479, %v390
    %v523 = vmul.f32 %v479, %v391
    %v524 = vmul.f32 %v479, %v392
    %v525 = vmul.f32 %v479, %v393
    %v526 = vmul.f32 %v479, %v394
    %v527 = vmul.f32 %v479, %v395
    %v528 = vmul.f32 %v479, %v396
    %v529 = vmul.f32 %v479, %v397
    %v530 = vmul.f32 %v479, %v398
    %v531 = vmul.f32 %v479, %v399
    %v532 = vmul.f32 %v479, %v400
    %v533 = vmul.f32 %v479, %v401
    %v534 = vmul.f32 %v479, %v402
    %v535 = vmul.f32 %v479, %v403
    %v536 = vmul.f32 %v479, %v404
    %v537 = vmul.f32 %v479, %v405
    %v538 = vmul.f32 %v479, %v406
    %v539 = vmul.f32 %v479, %v407
    %v540 = vmul.f32 %v479, %v408
    %v541 = vmul.f32 %v479, %v409
    %v542 = vmul.f32 %v479, %v410
    %v543 = vmul.f32 %v479, %v411
    %v544 = vmul.f32 %v479, %v412
    %v545 = vsel %vm413, %v349, %v481
    %v546 = vsel %vm414, %v350, %v482
    %v547 = vsel %vm415, %v351, %v483
    %v548 = vsel %vm416, %v352, %v484
    %v549 = vsel %vm417, %v353, %v485
    %v550 = vsel %vm418, %v354, %v486
    %v551 = vsel %vm419, %v355, %v487
    %v552 = vsel %vm420, %v356, %v488
    %v553 = vsel %vm421, %v357, %v489
    %v554 = vsel %vm422, %v358, %v490
    %v555 = vsel %vm423, %v359, %v491
    %v556 = vsel %vm424, %v360, %v492
    %v557 = vsel %vm425, %v361, %v493
    %v558 = vsel %vm426, %v362, %v494
    %v559 = vsel %vm427, %v363, %v495
    %v560 = vsel %vm428, %v364, %v496
    %v561 = vsel %vm429, %v365, %v497
    %v562 = vsel %vm430, %v366, %v498
    %v563 = vsel %vm431, %v367, %v499
    %v564 = vsel %vm432, %v368, %v500
    %v565 = vsel %vm433, %v369, %v501
    %v566 = vsel %vm434, %v370, %v502
    %v567 = vsel %vm435, %v371, %v503
    %v568 = vsel %vm436, %v372, %v504
    %v569 = vsel %vm437, %v373, %v505
    %v570 = vsel %vm438, %v374, %v506
    %v571 = vsel %vm439, %v375, %v507
    %v572 = vsel %vm440, %v376, %v508
    %v573 = vsel %vm441, %v377, %v509
    %v574 = vsel %vm442, %v378, %v510
    %v575 = vsel %vm443, %v379, %v511
    %v576 = vsel %vm444, %v380, %v512
    %v577 = vsel %vm445, %v381, %v513
    %v578 = vsel %vm446, %v382, %v514
    %v579 = vsel %vm447, %v383, %v515
    %v580 = vsel %vm448, %v384, %v516
    %v581 = vsel %vm449, %v385, %v517
    %v582 = vsel %vm450, %v386, %v518
    %v583 = vsel %vm451, %v387, %v519
    %v584 = vsel %vm452, %v388, %v520
    %v585 = vsel %vm453, %v389, %v521
    %v586 = vsel %vm454, %v390, %v522
    %v587 = vsel %vm455, %v391, %v523
    %v588 = vsel %vm456, %v392, %v524
    %v589 = vsel %vm457, %v393, %v525
    %v590 = vsel %vm458, %v394, %v526
    %v591 = vsel %vm459, %v395, %v527
    %v592 = vsel %vm460, %v396, %v528
    %v593 = vsel %vm461, %v397, %v529
    %v594 = vsel %vm462, %v398, %v530
    %v595 = vsel %vm463, %v399, %v531
    %v596 = vsel %vm464, %v400, %v532
    %v597 = vsel %vm465, %v401, %v533
    %v598 = vsel %vm466, %v402, %v534
    %v599 = vsel %vm467, %v403, %v535
    %v600 = vsel %vm468, %v404, %v536
    %v601 = vsel %vm469, %v405, %v537
    %v602 = vsel %vm470, %v406, %v538
    %v603 = vsel %vm471, %v407, %v539
    %v604 = vsel %vm472, %v408, %v540
    %v605 = vsel %vm473, %v409, %v541
    %v606 = vsel %vm474, %v410, %v542
    %v607 = vsel %vm475, %v411, %v543
    %v608 = vsel %vm476, %v412, %v544
    %609 = vst [vmem:[#allocation2] sm:$0xff] %v545
    %610 = vst [vmem:[#allocation2 + $0x8] sm:$0xff] %v546
    %611 = vst [vmem:[#allocation2 + $0x10] sm:$0xff] %v547
    %612 = vst [vmem:[#allocation2 + $0x18] sm:$0xff] %v548
    %613 = vst [vmem:[#allocation2 + $0x20] sm:$0xff] %v549
    %614 = vst [vmem:[#allocation2 + $0x28] sm:$0xff] %v550
    %615 = vst [vmem:[#allocation2 + $0x30] sm:$0xff] %v551
    %616 = vst [vmem:[#allocation2 + $0x38] sm:$0xff] %v552
    %617 = vst [vmem:[#allocation2 + $0x40] sm:$0xff] %v553
    %618 = vst [vmem:[#allocation2 + $0x48] sm:$0xff] %v554
    %619 = vst [vmem:[#allocation2 + $0x50] sm:$0xff] %v555
    %620 = vst [vmem:[#allocation2 + $0x58] sm:$0xff] %v556
    %621 = vst [vmem:[#allocation2 + $0x60] sm:$0xff] %v557
    %622 = vst [vmem:[#allocation2 + $0x68] sm:$0xff] %v558
    %623 = vst [vmem:[#allocation2 + $0x70] sm:$0xff] %v559
    %624 = vst [vmem:[#allocation2 + $0x78] sm:$0xff] %v560
    %625 = vst [vmem:[#allocation2 + $0x80] sm:$0xff] %v561
    %626 = vst [vmem:[#allocation2 + $0x88] sm:$0xff] %v562
    %627 = vst [vmem:[#allocation2 + $0x90] sm:$0xff] %v563
    %628 = vst [vmem:[#allocation2 + $0x98] sm:$0xff] %v564
    %629 = vst [vmem:[#allocation2 + $0xa0] sm:$0xff] %v565
    %630 = vst [vmem:[#allocation2 + $0xa8] sm:$0xff] %v566
    %631 = vst [vmem:[#allocation2 + $0xb0] sm:$0xff] %v567
    %632 = vst [vmem:[#allocation2 + $0xb8] sm:$0xff] %v568
    %633 = vst [vmem:[#allocation2 + $0xc0] sm:$0xff] %v569
    %634 = vst [vmem:[#allocation2 + $0xc8] sm:$0xff] %v570
    %635 = vst [vmem:[#allocation2 + $0xd0] sm:$0xff] %v571
    %636 = vst [vmem:[#allocation2 + $0xd8] sm:$0xff] %v572
    %637 = vst [vmem:[#allocation2 + $0xe0] sm:$0xff] %v573
    %638 = vst [vmem:[#allocation2 + $0xe8] sm:$0xff] %v574
    %639 = vst [vmem:[#allocation2 + $0xf0] sm:$0xff] %v575
    %640 = vst [vmem:[#allocation2 + $0xf8] sm:$0xff] %v576
    %641 = vst [vmem:[#allocation2 + $0x100] sm:$0xff] %v577
    %642 = vst [vmem:[#allocation2 + $0x108] sm:$0xff] %v578
    %643 = vst [vmem:[#allocation2 + $0x110] sm:$0xff] %v579
    %644 = vst [vmem:[#allocation2 + $0x118] sm:$0xff] %v580
    %645 = vst [vmem:[#allocation2 + $0x120] sm:$0xff] %v581
    %646 = vst [vmem:[#allocation2 + $0x128] sm:$0xff] %v582
    %647 = vst [vmem:[#allocation2 + $0x130] sm:$0xff] %v583
    %648 = vst [vmem:[#allocation2 + $0x138] sm:$0xff] %v584
    %649 = vst [vmem:[#allocation2 + $0x140] sm:$0xff] %v585
    %650 = vst [vmem:[#allocation2 + $0x148] sm:$0xff] %v586
    %651 = vst [vmem:[#allocation2 + $0x150] sm:$0xff] %v587
    %652 = vst [vmem:[#allocation2 + $0x158] sm:$0xff] %v588
    %653 = vst [vmem:[#allocation2 + $0x160] sm:$0xff] %v589
    %654 = vst [vmem:[#allocation2 + $0x168] sm:$0xff] %v590
    %655 = vst [vmem:[#allocation2 + $0x170] sm:$0xff] %v591
    %656 = vst [vmem:[#allocation2 + $0x178] sm:$0xff] %v592
    %657 = vst [vmem:[#allocation2 + $0x180] sm:$0xff] %v593
    %658 = vst [vmem:[#allocation2 + $0x188] sm:$0xff] %v594
    %659 = vst [vmem:[#allocation2 + $0x190] sm:$0xff] %v595
    %660 = vst [vmem:[#allocation2 + $0x198] sm:$0xff] %v596
    %661 = vst [vmem:[#allocation2 + $0x1a0] sm:$0xff] %v597
    %662 = vst [vmem:[#allocation2 + $0x1a8] sm:$0xff] %v598
    %663 = vst [vmem:[#allocation2 + $0x1b0] sm:$0xff] %v599
    %664 = vst [vmem:[#allocation2 + $0x1b8] sm:$0xff] %v600
    %665 = vst [vmem:[#allocation2 + $0x1c0] sm:$0xff] %v601
    %666 = vst [vmem:[#allocation2 + $0x1c8] sm:$0xff] %v602
    %667 = vst [vmem:[#allocation2 + $0x1d0] sm:$0xff] %v603
    %668 = vst [vmem:[#allocation2 + $0x1d8] sm:$0xff] %v604
    %669 = vst [vmem:[#allocation2 + $0x1e0] sm:$0xff] %v605
    %670 = vst [vmem:[#allocation2 + $0x1e8] sm:$0xff] %v606
    %671 = vst [vmem:[#allocation2 + $0x1f0] sm:$0xff] %v607
    %672 = vst [vmem:[#allocation2 + $0x1f8] sm:$0xff] %v608
    // Predicated region
    $region22: #{basic_block_forward.5} parent=1 // pred_check
      _
    $region23: #{basic_block_forward.5} parent=1 // pred_check_branch
      %674 = sbr.rel (0) target = $region25
    $region24: #{basic_block_forward.5} parent=1 // pred_region
      %676 = vsyncadd [#allocation3], 0
      %s677 = sshll.u32 [#allocation2], 4
      %s678 = int_to_ptr.vmem [resolvable:$true] %s677
      %s679 = sshll.u32 %s5, 4
      %s680 = int_to_ptr.hbm [resolvable:$true] %s679
      %685 = dma.vmem_to_hbm [thread:$0]  %s678, 8192, %s680, [#allocation3], 128, 128, 8
    $region25: #{basic_block_forward.5} parent=1 // pred_fallthru
      _
    // Predicated region
    $region26: #{basic_block_forward.5} parent=1 // pred_check
      _
    $region27: #{basic_block_forward.5} parent=1 // pred_check_branch
      %687 = sbr.rel (0) target = $region29
    $region28: #{basic_block_forward.5} parent=1 // pred_region
      %689 = dma.done [#allocation3], 8192
    $region29: #{basic_block_forward.5} parent=1 // pred_fallthru
      _
    %690 = vsyncpa [#allocation3], 1

// kernel: basic_block_forward.3
$region0: #{basic_block_forward.3}
  #allocation0 [shape = 'u32[]', space=smem, size = 0x4, offset = 0x4, fixed_abs, tag = 'smem constant byte address 0x4 - core index']
  #allocation1 [shape = 'u32[72,128]{1,0:T(1,128)}', space=vmem, size = 0x9000, scoped, tag = 'internal scratch']
  #allocation2 [shape = 'bf16[16,16,1152]{2,1,0:T(8,128)(2,1)}', space=vmem, size = 0x90000, scoped, tag = 'scratch operand']
  %s0 = inlined_call_operand.vmem [shape: bf16[2,18,18,128], index: 0, kind: input, shape index: {}]
  %s1 = inlined_call_operand.vmem [shape: bf16[1152,128], index: 1, kind: input, shape index: {}]
  %s2 = inlined_call_operand.vmem [shape: bf16[2,16,16,128], index: 2, kind: output, shape index: {0}]
  %s3 = inlined_call_operand.vmem [shape: f32[2,1,8,128], index: 3, kind: output, shape index: {1}]
  %4 = xla_tuple %s2, %s3
  %s5 = sld [smem:[#allocation0]]
  $region49: #{basic_block_forward.3} parent=0
    _
  %s7 = ssub.s32 1, %s5
  %s8 = scalar_select 0, %s7, %s5
  loop: start=0, step=1, limit=4
  $region2: #{basic_block_forward.3} parent=0 // loop_pre_header
    _
  $region3: #{basic_block_forward.3} parent=0 // loop_header
    %s10 = sphi 0, %s14
    %p11 = scmp.ge.s32.totalorder %s10, 4
    %s17 = sphi 0, %s29
    %s18 = sphi 0, %s25
    %s19 = sphi 0, %s17
    %s20 = sphi 0, %s18
    %s21 = sphi 0, %s19
    %s22 = sphi 0, %s20
    %s32 = sphi 0, %s34
    %s35 = sphi 0, %s32
    %s36 = sphi 0, %s35
    %s52 = sphi 0, %s36
    %s56 = sphi 0, %s56
    %s58 = sphi 0, %s56
    %s59 = sphi 0, %s58
    %s73 = sphi 0, %s59
    %s81 = sphi 0, %s83
    %s84 = sphi 0, %s81
    %s85 = sphi 0, %s84
    %s101 = sphi 0, %s85
    %s109 = sphi 0, %s111
    %s112 = sphi 0, %s109
    %s113 = sphi 0, %s112
    %s129 = sphi 0, %s113
  $region4: #{basic_block_forward.3} parent=0 // loop_header_branch
    %13 = sbr.rel (%p11) target = $region8
  $region5: #{basic_block_forward.3} parent=0 // loop_body
    %s15 = ssub.s32 %s10, 1
    %s16 = ssub.s32 %s10, 2
    %s23 = sadd.s32 1, %s18
    %p24 = scmp.ge.s32.totalorder %s23, 1
    %s25 = scalar_select %p24, 0, %s23
    %s26 = sadd.s32 1, %s17
    %s27 = scalar_select %p24, %s26, %s17
    %p28 = scmp.ge.s32.totalorder %s27, 2
    %s29 = scalar_select %p28, 0, %s27
    %s30 = ssub.s32 %s17, %s29
    %p31 = scmp.eq.s32.totalorder %s30, 0
    %s33 = sadd.s32 %s32, 1
    %s34 = scalar_select %p31, %s32, %s33
    %p37 = pneg %p31
    %p38 = scmp.eq.s32.totalorder %s10, 1
    %p39 = por %p37, %p38
    %p40 = scmp.ne.s32.totalorder %s32, %s35
    %p41 = scmp.eq.s32.totalorder %s10, 0
    %p42 = por %p40, %p41
    %p43 = scmp.ne.s32.totalorder %s32, %s35
    %p44 = scmp.eq.s32.totalorder %s15, 1
    %p45 = por %p43, %p44
    %p46 = scmp.ne.s32.totalorder %s35, %s36
    %p47 = scmp.eq.s32.totalorder %s15, 0
    %p48 = por %p46, %p47
    %p49 = scmp.ne.s32.totalorder %s35, %s36
    %p50 = scmp.eq.s32.totalorder %s16, 1
    %p51 = por %p49, %p50
    %p53 = scmp.ne.s32.totalorder %s36, %s52
    %p54 = scmp.eq.s32.totalorder %s16, 0
    %p55 = por %p53, %p54
    %s57 = sadd.s32 %s56, 1
    %p60 = scmp.eq.s32.totalorder %s10, 1
    %p61 = scmp.ne.s32.totalorder %s56, %s58
    %p62 = scmp.eq.s32.totalorder %s10, 0
    %p63 = por %p61, %p62
    %p64 = scmp.ne.s32.totalorder %s56, %s58
    %p65 = scmp.eq.s32.totalorder %s15, 1
    %p66 = por %p64, %p65
    %p67 = scmp.ne.s32.totalorder %s58, %s59
    %p68 = scmp.eq.s32.totalorder %s15, 0
    %p69 = por %p67, %p68
    %p70 = scmp.ne.s32.totalorder %s58, %s59
    %p71 = scmp.eq.s32.totalorder %s16, 1
    %p72 = por %p70, %p71
    %p74 = scmp.ne.s32.totalorder %s59, %s73
    %p75 = scmp.eq.s32.totalorder %s16, 0
    %p76 = por %p74, %p75
    %s77 = ssub.s32 %s17, %s29
    %s78 = ssub.s32 %s18, %s25
    %s79 = sor.u32 %s77, %s78
    %p80 = scmp.eq.s32.totalorder %s79, 0
    %s82 = sadd.s32 %s81, 1
    %s83 = scalar_select %p80, %s81, %s82
    %p86 = pneg %p80
    %p87 = scmp.eq.s32.totalorder %s10, 1
    %p88 = por %p86, %p87
    %p89 = scmp.ne.s32.totalorder %s81, %s84
    %p90 = scmp.eq.s32.totalorder %s10, 0
    %p91 = por %p89, %p90
    %p92 = scmp.ne.s32.totalorder %s81, %s84
    %p93 = scmp.eq.s32.totalorder %s15, 1
    %p94 = por %p92, %p93
    %p95 = scmp.ne.s32.totalorder %s84, %s85
    %p96 = scmp.eq.s32.totalorder %s15, 0
    %p97 = por %p95, %p96
    %p98 = scmp.ne.s32.totalorder %s84, %s85
    %p99 = scmp.eq.s32.totalorder %s16, 1
    %p100 = por %p98, %p99
    %p102 = scmp.ne.s32.totalorder %s85, %s101
    %p103 = scmp.eq.s32.totalorder %s16, 0
    %p104 = por %p102, %p103
    %s105 = ssub.s32 %s17, %s29
    %s106 = ssub.s32 %s18, %s25
    %s107 = sor.u32 %s105, %s106
    %p108 = scmp.eq.s32.totalorder %s107, 0
    %s110 = sadd.s32 %s109, 1
    %s111 = scalar_select %p108, %s109, %s110
    %p114 = pneg %p108
    %p115 = scmp.eq.s32.totalorder %s10, 1
    %p116 = por %p114, %p115
    %p117 = scmp.ne.s32.totalorder %s109, %s112
    %p118 = scmp.eq.s32.totalorder %s10, 0
    %p119 = por %p117, %p118
    %p120 = scmp.ne.s32.totalorder %s109, %s112
    %p121 = scmp.eq.s32.totalorder %s15, 1
    %p122 = por %p120, %p121
    %p123 = scmp.ne.s32.totalorder %s112, %s113
    %p124 = scmp.eq.s32.totalorder %s15, 0
    %p125 = por %p123, %p124
    %p126 = scmp.ne.s32.totalorder %s112, %s113
    %p127 = scmp.eq.s32.totalorder %s16, 1
    %p128 = por %p126, %p127
    %p130 = scmp.ne.s32.totalorder %s113, %s129
    %p131 = scmp.eq.s32.totalorder %s16, 0
    %p132 = por %p130, %p131
    %p133 = scmp.le.s32.totalorder 1, %s10
    %p134 = scmp.lt.s32.totalorder %s10, 3
    %p135 = pnand %p133, %p134
    %p136 = pneg %p135
    // Predicated region
    $region9: #{basic_block_forward.3} parent=5 // pred_check
      _
    $region10: #{basic_block_forward.3} parent=5 // pred_check_branch
      %138 = sbr.rel (%p135) target = $region12
    $region11: #{basic_block_forward.3} parent=5 // pred_region
      %s139 = ssub.s32 %s10, 1
      // Predicated region
      $region13: #{basic_block_forward.3} parent=11 // pred_check
        %p140 = pneg %p69
      $region14: #{basic_block_forward.3} parent=11 // pred_check_branch
        %142 = sbr.rel (%p140) target = $region16
      $region15: #{basic_block_forward.3} parent=11 // pred_region
        _
      $region16: #{basic_block_forward.3} parent=11 // pred_fallthru
        _
    $region12: #{basic_block_forward.3} parent=5 // pred_fallthru
      _
    %p143 = scmp.lt.s32.totalorder %s10, 2
    // Predicated region
    $region17: #{basic_block_forward.3} parent=5 // pred_check
      %p144 = pneg %p143
    $region18: #{basic_block_forward.3} parent=5 // pred_check_branch
      %146 = sbr.rel (%p144) target = $region20
    $region19: #{basic_block_forward.3} parent=5 // pred_region
      // Predicated region
      $region21: #{basic_block_forward.3} parent=19 // pred_check
        %p147 = pneg %p42
      $region22: #{basic_block_forward.3} parent=19 // pred_check_branch
        %149 = sbr.rel (%p147) target = $region24
      $region23: #{basic_block_forward.3} parent=19 // pred_region
        %p150 = scmp.lt.s32.totalorder %s17, 1
        %s151 = scalar_select %p150, %s17, 1
        %s152 = smul.addr %s151, 54
        %s153 = smul.addr %s152, 4
        %s154 = scalar_lea.vmem %s0, %s153
      $region24: #{basic_block_forward.3} parent=19 // pred_fallthru
        _
    $region20: #{basic_block_forward.3} parent=5 // pred_fallthru
      _
    %p155 = scmp.le.s32.totalorder 1, %s10
    %p156 = scmp.lt.s32.totalorder %s10, 3
    %p157 = pnand %p155, %p156
    %p158 = pneg %p157
    // Predicated region
    $region25: #{basic_block_forward.3} parent=5 // pred_check
      _
    $region26: #{basic_block_forward.3} parent=5 // pred_check_branch
      %160 = sbr.rel (%p157) target = $region28
    $region27: #{basic_block_forward.3} parent=5 // pred_region
      %s161 = ssub.s32 %s10, 1
      %p162 = scmp.lt.s32.totalorder %s19, 1
      %s163 = scalar_select %p162, %s19, 1
      %s164 = smul.addr %s163, 54
      %s165 = smul.addr %s164, 4
      %s166 = scalar_lea.vmem %s0, %s165
      %p167 = pneg %p48
      %p168 = pneg %p45
      %p169 = pneg %p69
      %p170 = pneg %p66
      %p171 = pneg %p97
      %p172 = pneg %p94
      %s173 = smul.u32 16, %s20
      %p174 = scmp.lt.s32.totalorder %s19, 1
      %s175 = scalar_select %p174, %s19, 1
      %p176 = scmp.lt.s32.totalorder %s173, 15
      %s177 = scalar_select %p176, %s173, 15
      %s178 = smul.addr %s177, 2
      %s179 = smul.addr %s175, 32
      %s180 = sadd.s32 %s178, %s179
      %s181 = smul.addr %s180, 4
      %s182 = scalar_lea.vmem %s2, %s181
      %p183 = pneg %p125
      %p184 = pneg %p122
      %p185 = scmp.lt.s32.totalorder %s19, 1
      %s186 = scalar_select %p185, %s19, 1
      %p187 = scmp.lt.s32.totalorder %s20, 0
      %s188 = scalar_select %p187, %s20, 0
      %s189 = sadd.s32 %s188, %s186
      %s190 = smul.addr %s189, 8
      %s191 = scalar_lea.vmem %s3, %s190
      %p192 = scmp.lt.s32.totalorder %s19, 1
      %s193 = scalar_select %p192, %s19, 1
      %s194 = smul.addr %s193, 54
      %s195 = smul.addr %s194, 4
      %s196 = scalar_lea.vmem %s0, %s195
      %s197 = smul.u32 16, %s20
      %p198 = scmp.lt.s32.totalorder %s19, 1
      %s199 = scalar_select %p198, %s19, 1
      %p200 = scmp.lt.s32.totalorder %s197, 15
      %s201 = scalar_select %p200, %s197, 15
      %s202 = smul.addr %s201, 2
      %s203 = smul.addr %s199, 32
      %s204 = sadd.s32 %s202, %s203
      %s205 = smul.addr %s204, 4
      %s206 = scalar_lea.vmem %s2, %s205
      %s207 = smul.u32 16, %s20
      %p208 = scmp.lt.s32.totalorder %s19, 1
      %s209 = scalar_select %p208, %s19, 1
      %p210 = scmp.lt.s32.totalorder %s20, 0
      %s211 = scalar_select %p210, %s20, 0
      %s212 = sadd.s32 %s211, %s209
      %s213 = smul.addr %s212, 8
      %s214 = scalar_lea.vmem %s3, %s213
      %s215 = smul.u32 %s20, 16
      %s216 = smul.u32 %s215, 3
      %s217 = smul.addr %s216, 4
      %s218 = scalar_lea.vmem %s196, %s217
      %v219 = vld [vmem:[%s218] sm:$0xf]
      %v220 = vld [vmem:[%s218 + $0x4] sm:$0xf]
      %v221 = vld [vmem:[%s218 + $0x8] sm:$0x1]
      %v222 = vld [vmem:[%s218 + $0xc] sm:$0xf]
      %v223 = vld [vmem:[%s218 + $0x10] sm:$0xf]
      %v224 = vld [vmem:[%s218 + $0x14] sm:$0x1]
      %v225 = vld [vmem:[%s218 + $0x18] sm:$0xf]
      %v226 = vld [vmem:[%s218 + $0x1c] sm:$0xf]
      %v227 = vld [vmem:[%s218 + $0x20] sm:$0x1]
      %v228 = vld [vmem:[%s218 + $0x24] sm:$0xf]
      %v229 = vld [vmem:[%s218 + $0x28] sm:$0xf]
      %v230 = vld [vmem:[%s218 + $0x2c] sm:$0x1]
      %v231 = vld [vmem:[%s218 + $0x30] sm:$0xf]
      %v232 = vld [vmem:[%s218 + $0x34] sm:$0xf]
      %v233 = vld [vmem:[%s218 + $0x38] sm:$0x1]
      %v234 = vld [vmem:[%s218 + $0x3c] sm:$0xf]
      %v235 = vld [vmem:[%s218 + $0x40] sm:$0xf]
      %v236 = vld [vmem:[%s218 + $0x44] sm:$0x1]
      %v237 = vld [vmem:[%s218 + $0x48] sm:$0xf]
      %v238 = vld [vmem:[%s218 + $0x4c] sm:$0xf]
      %v239 = vld [vmem:[%s218 + $0x50] sm:$0x1]
      %v240 = vld [vmem:[%s218 + $0x54] sm:$0xf]
      %v241 = vld [vmem:[%s218 + $0x58] sm:$0xf]
      %v242 = vld [vmem:[%s218 + $0x5c] sm:$0x1]
      %v243 = vld [vmem:[%s218 + $0x60] sm:$0xf]
      %v244 = vld [vmem:[%s218 + $0x64] sm:$0xf]
      %v245 = vld [vmem:[%s218 + $0x68] sm:$0x1]
      %v246 = vld [vmem:[%s218 + $0x6c] sm:$0xf]
      %v247 = vld [vmem:[%s218 + $0x70] sm:$0xf]
      %v248 = vld [vmem:[%s218 + $0x74] sm:$0x1]
      %v249 = vld [vmem:[%s218 + $0x78] sm:$0xf]
      %v250 = vld [vmem:[%s218 + $0x7c] sm:$0xf]
      %v251 = vld [vmem:[%s218 + $0x80] sm:$0x1]
      %v252 = vld [vmem:[%s218 + $0x84] sm:$0xf]
      %v253 = vld [vmem:[%s218 + $0x88] sm:$0xf]
      %v254 = vld [vmem:[%s218 + $0x8c] sm:$0x1]
      %v255 = vld [vmem:[%s218 + $0x90] sm:$0xf]
      %v256 = vld [vmem:[%s218 + $0x94] sm:$0xf]
      %v257 = vld [vmem:[%s218 + $0x98] sm:$0x1]
      %v258 = vld [vmem:[%s218 + $0x9c] sm:$0xf]
      %v259 = vld [vmem:[%s218 + $0xa0] sm:$0xf]
      %v260 = vld [vmem:[%s218 + $0xa4] sm:$0x1]
      %v261 = vld [vmem:[%s218 + $0xa8] sm:$0xf]
      %v262 = vld [vmem:[%s218 + $0xac] sm:$0xf]
      %v263 = vld [vmem:[%s218 + $0xb0] sm:$0x1]
      %v264 = vld [vmem:[%s218 + $0xb4] sm:$0xf]
      %v265 = vld [vmem:[%s218 + $0xb8] sm:$0xf]
      %v266 = vld [vmem:[%s218 + $0xbc] sm:$0x1]
      %v267 = vld [vmem:[%s218 + $0xc0] sm:$0xf]
      %v268 = vld [vmem:[%s218 + $0xc4] sm:$0xf]
      %v269 = vld [vmem:[%s218 + $0xc8] sm:$0x1]
      %v270 = vld [vmem:[%s218 + $0xcc] sm:$0xf]
      %v271 = vld [vmem:[%s218 + $0xd0] sm:$0xf]
      %v272 = vld [vmem:[%s218 + $0xd4] sm:$0x1]
      %273 = vst [vmem:[#allocation2] sm:$0xf] %v219
      %274 = vst [vmem:[#allocation2 + $0x24] sm:$0xf] %v220
      %275 = vst [vmem:[#allocation2 + $0x48] sm:$0xf] %v222
      %276 = vst [vmem:[#allocation2 + $0x6c] sm:$0xf] %v223
      %277 = vst [vmem:[#allocation2 + $0x90] sm:$0xf] %v225
      %278 = vst [vmem:[#allocation2 + $0xb4] sm:$0xf] %v226
      %279 = vst [vmem:[#allocation2 + $0xd8] sm:$0xf] %v228
      %280 = vst [vmem:[#allocation2 + $0xfc] sm:$0xf] %v229
      %281 = vst [vmem:[#allocation2 + $0x120] sm:$0xf] %v231
      %282 = vst [vmem:[#allocation2 + $0x144] sm:$0xf] %v232
      %283 = vst [vmem:[#allocation2 + $0x168] sm:$0xf] %v234
      %284 = vst [vmem:[#allocation2 + $0x18c] sm:$0xf] %v235
      %285 = vst [vmem:[#allocation2 + $0x1b0] sm:$0xf] %v237
      %286 = vst [vmem:[#allocation2 + $0x1d4] sm:$0xf] %v238
      %287 = vst [vmem:[#allocation2 + $0x1f8] sm:$0xf] %v240
      %288 = vst [vmem:[#allocation2 + $0x21c] sm:$0xf] %v241
      %289 = vst [vmem:[#allocation2 + $0x240] sm:$0xf] %v243
      %290 = vst [vmem:[#allocation2 + $0x264] sm:$0xf] %v244
      %291 = vst [vmem:[#allocation2 + $0x288] sm:$0xf] %v246
      %292 = vst [vmem:[#allocation2 + $0x2ac] sm:$0xf] %v247
      %293 = vst [vmem:[#allocation2 + $0x2d0] sm:$0xf] %v249
      %294 = vst [vmem:[#allocation2 + $0x2f4] sm:$0xf] %v250
      %295 = vst [vmem:[#allocation2 + $0x318] sm:$0xf] %v252
      %296 = vst [vmem:[#allocation2 + $0x33c] sm:$0xf] %v253
      %297 = vst [vmem:[#allocation2 + $0x360] sm:$0xf] %v255
      %298 = vst [vmem:[#allocation2 + $0x384] sm:$0xf] %v256
      %299 = vst [vmem:[#allocation2 + $0x3a8] sm:$0xf] %v258
      %300 = vst [vmem:[#allocation2 + $0x3cc] sm:$0xf] %v259
      %301 = vst [vmem:[#allocation2 + $0x3f0] sm:$0xf] %v261
      %302 = vst [vmem:[#allocation2 + $0x414] sm:$0xf] %v262
      %303 = vst [vmem:[#allocation2 + $0x438] sm:$0xf] %v264
      %304 = vst [vmem:[#allocation2 + $0x45c] sm:$0xf] %v265
      %vm305 = vsmask.f32 3328
      %vm306 = vsmask.f32 7440
      %vm307 = vmor %vm305, %vm306
      %v309 = vshrl.u32 %v219, 16
      %v311 = vrot.slane %v309, 4
      %v312 = vshll.u32 %v219, 16
      %v314 = vrot.slane %v312, 5
      %v315 = vor.u32 %v311, %v314
      %v316 = vrot.slane %v315, 4
      %v318 = vshll.u32 %v220, 16
      %v320 = vrot.slane %v318, 5
      %v321 = vsel %vm307, %v316, %v320
      %v322 = vshrl.u32 %v220, 16
      %v324 = vrot.slane %v322, 4
      %v325 = vor.u32 %v324, %v320
      %v326 = vrot.slane %v325, 4
      %v328 = vshll.u32 %v221, 16
      %v330 = vrot.slane %v328, 5
      %v331 = vsel %vm307, %v326, %v330
      %v333 = vshrl.u32 %v222, 16
      %v335 = vrot.slane %v333, 4
      %v336 = vshll.u32 %v222, 16
      %v338 = vrot.slane %v336, 5
      %v339 = vor.u32 %v335, %v338
      %v340 = vrot.slane %v339, 4
      %v342 = vshll.u32 %v223, 16
      %v344 = vrot.slane %v342, 5
      %v345 = vsel %vm307, %v340, %v344
      %v346 = vshrl.u32 %v223, 16
      %v348 = vrot.slane %v346, 4
      %v349 = vor.u32 %v348, %v344
      %v350 = vrot.slane %v349, 4
      %v352 = vshll.u32 %v224, 16
      %v354 = vrot.slane %v352, 5
      %v355 = vsel %vm307, %v350, %v354
      %v357 = vshrl.u32 %v225, 16
      %v359 = vrot.slane %v357, 4
      %v360 = vshll.u32 %v225, 16
      %v362 = vrot.slane %v360, 5
      %v363 = vor.u32 %v359, %v362
      %v364 = vrot.slane %v363, 4
      %v366 = vshll.u32 %v226, 16
      %v368 = vrot.slane %v366, 5
      %v369 = vsel %vm307, %v364, %v368
      %v370 = vshrl.u32 %v226, 16
      %v372 = vrot.slane %v370, 4
      %v373 = vor.u32 %v372, %v368
      %v374 = vrot.slane %v373, 4
      %v376 = vshll.u32 %v227, 16
      %v378 = vrot.slane %v376, 5
      %v379 = vsel %vm307, %v374, %v378
      %v381 = vshrl.u32 %v228, 16
      %v383 = vrot.slane %v381, 4
      %v384 = vshll.u32 %v228, 16
      %v386 = vrot.slane %v384, 5
      %v387 = vor.u32 %v383, %v386
      %v388 = vrot.slane %v387, 4
      %v390 = vshll.u32 %v229, 16
      %v392 = vrot.slane %v390, 5
      %v393 = vsel %vm307, %v388, %v392
      %v394 = vshrl.u32 %v229, 16
      %v396 = vrot.slane %v394, 4
      %v397 = vor.u32 %v396, %v392
      %v398 = vrot.slane %v397, 4
      %v400 = vshll.u32 %v230, 16
      %v402 = vrot.slane %v400, 5
      %v403 = vsel %vm307, %v398, %v402
      %v405 = vshrl.u32 %v231, 16
      %v407 = vrot.slane %v405, 4
      %v408 = vshll.u32 %v231, 16
      %v410 = vrot.slane %v408, 5
      %v411 = vor.u32 %v407, %v410
      %v412 = vrot.slane %v411, 4
      %v414 = vshll.u32 %v232, 16
      %v416 = vrot.slane %v414, 5
      %v417 = vsel %vm307, %v412, %v416
      %v418 = vshrl.u32 %v232, 16
      %v420 = vrot.slane %v418, 4
      %v421 = vor.u32 %v420, %v416
      %v422 = vrot.slane %v421, 4
      %v424 = vshll.u32 %v233, 16
      %v426 = vrot.slane %v424, 5
      %v427 = vsel %vm307, %v422, %v426
      %v429 = vshrl.u32 %v234, 16
      %v431 = vrot.slane %v429, 4
      %v432 = vshll.u32 %v234, 16
      %v434 = vrot.slane %v432, 5
      %v435 = vor.u32 %v431, %v434
      %v436 = vrot.slane %v435, 4
      %v438 = vshll.u32 %v235, 16
      %v440 = vrot.slane %v438, 5
      %v441 = vsel %vm307, %v436, %v440
      %v442 = vshrl.u32 %v235, 16
      %v444 = vrot.slane %v442, 4
      %v445 = vor.u32 %v444, %v440
      %v446 = vrot.slane %v445, 4
      %v448 = vshll.u32 %v236, 16
      %v450 = vrot.slane %v448, 5
      %v451 = vsel %vm307, %v446, %v450
      %v453 = vshrl.u32 %v237, 16
      %v455 = vrot.slane %v453, 4
      %v456 = vshll.u32 %v237, 16
      %v458 = vrot.slane %v456, 5
      %v459 = vor.u32 %v455, %v458
      %v460 = vrot.slane %v459, 4
      %v462 = vshll.u32 %v238, 16
      %v464 = vrot.slane %v462, 5
      %v465 = vsel %vm307, %v460, %v464
      %v466 = vshrl.u32 %v238, 16
      %v468 = vrot.slane %v466, 4
      %v469 = vor.u32 %v468, %v464
      %v470 = vrot.slane %v469, 4
      %v472 = vshll.u32 %v239, 16
      %v474 = vrot.slane %v472, 5
      %v475 = vsel %vm307, %v470, %v474
      %v477 = vshrl.u32 %v240, 16
      %v479 = vrot.slane %v477, 4
      %v480 = vshll.u32 %v240, 16
      %v482 = vrot.slane %v480, 5
      %v483 = vor.u32 %v479, %v482
      %v484 = vrot.slane %v483, 4
      %v486 = vshll.u32 %v241, 16
      %v488 = vrot.slane %v486, 5
      %v489 = vsel %vm307, %v484, %v488
      %v490 = vshrl.u32 %v241, 16
      %v492 = vrot.slane %v490, 4
      %v493 = vor.u32 %v492, %v488
      %v494 = vrot.slane %v493, 4
      %v496 = vshll.u32 %v242, 16
      %v498 = vrot.slane %v496, 5
      %v499 = vsel %vm307, %v494, %v498
      %v501 = vshrl.u32 %v243, 16
      %v503 = vrot.slane %v501, 4
      %v504 = vshll.u32 %v243, 16
      %v506 = vrot.slane %v504, 5
      %v507 = vor.u32 %v503, %v506
      %v508 = vrot.slane %v507, 4
      %v510 = vshll.u32 %v244, 16
      %v512 = vrot.slane %v510, 5
      %v513 = vsel %vm307, %v508, %v512
      %v514 = vshrl.u32 %v244, 16
      %v516 = vrot.slane %v514, 4
      %v517 = vor.u32 %v516, %v512
      %v518 = vrot.slane %v517, 4
      %v520 = vshll.u32 %v245, 16
      %v522 = vrot.slane %v520, 5
      %v523 = vsel %vm307, %v518, %v522
      %v525 = vshrl.u32 %v246, 16
      %v527 = vrot.slane %v525, 4
      %v528 = vshll.u32 %v246, 16
      %v530 = vrot.slane %v528, 5
      %v531 = vor.u32 %v527, %v530
      %v532 = vrot.slane %v531, 4
      %v534 = vshll.u32 %v247, 16
      %v536 = vrot.slane %v534, 5
      %v537 = vsel %vm307, %v532, %v536
      %v538 = vshrl.u32 %v247, 16
      %v540 = vrot.slane %v538, 4
      %v541 = vor.u32 %v540, %v536
      %v542 = vrot.slane %v541, 4
      %v544 = vshll.u32 %v248, 16
      %v546 = vrot.slane %v544, 5
      %v547 = vsel %vm307, %v542, %v546
      %v549 = vshrl.u32 %v249, 16
      %v551 = vrot.slane %v549, 4
      %v552 = vshll.u32 %v249, 16
      %v554 = vrot.slane %v552, 5
      %v555 = vor.u32 %v551, %v554
      %v556 = vrot.slane %v555, 4
      %v558 = vshll.u32 %v250, 16
      %v560 = vrot.slane %v558, 5
      %v561 = vsel %vm307, %v556, %v560
      %v562 = vshrl.u32 %v250, 16
      %v564 = vrot.slane %v562, 4
      %v565 = vor.u32 %v564, %v560
      %v566 = vrot.slane %v565, 4
      %v568 = vshll.u32 %v251, 16
      %v570 = vrot.slane %v568, 5
      %v571 = vsel %vm307, %v566, %v570
      %v573 = vshrl.u32 %v252, 16
      %v575 = vrot.slane %v573, 4
      %v576 = vshll.u32 %v252, 16
      %v578 = vrot.slane %v576, 5
      %v579 = vor.u32 %v575, %v578
      %v580 = vrot.slane %v579, 4
      %v582 = vshll.u32 %v253, 16
      %v584 = vrot.slane %v582, 5
      %v585 = vsel %vm307, %v580, %v584
      %v586 = vshrl.u32 %v253, 16
      %v588 = vrot.slane %v586, 4
      %v589 = vor.u32 %v588, %v584
      %v590 = vrot.slane %v589, 4
      %v592 = vshll.u32 %v254, 16
      %v594 = vrot.slane %v592, 5
      %v595 = vsel %vm307, %v590, %v594
      %v597 = vshrl.u32 %v255, 16
      %v599 = vrot.slane %v597, 4
      %v600 = vshll.u32 %v255, 16
      %v602 = vrot.slane %v600, 5
      %v603 = vor.u32 %v599, %v602
      %v604 = vrot.slane %v603, 4
      %v606 = vshll.u32 %v256, 16
      %v608 = vrot.slane %v606, 5
      %v609 = vsel %vm307, %v604, %v608
      %v610 = vshrl.u32 %v256, 16
      %v612 = vrot.slane %v610, 4
      %v613 = vor.u32 %v612, %v608
      %v614 = vrot.slane %v613, 4
      %v616 = vshll.u32 %v257, 16
      %v618 = vrot.slane %v616, 5
      %v619 = vsel %vm307, %v614, %v618
      %v621 = vshrl.u32 %v258, 16
      %v623 = vrot.slane %v621, 4
      %v624 = vshll.u32 %v258, 16
      %v626 = vrot.slane %v624, 5
      %v627 = vor.u32 %v623, %v626
      %v628 = vrot.slane %v627, 4
      %v630 = vshll.u32 %v259, 16
      %v632 = vrot.slane %v630, 5
      %v633 = vsel %vm307, %v628, %v632
      %v634 = vshrl.u32 %v259, 16
      %v636 = vrot.slane %v634, 4
      %v637 = vor.u32 %v636, %v632
      %v638 = vrot.slane %v637, 4
      %v640 = vshll.u32 %v260, 16
      %v642 = vrot.slane %v640, 5
      %v643 = vsel %vm307, %v638, %v642
      %v645 = vshrl.u32 %v261, 16
      %v647 = vrot.slane %v645, 4
      %v648 = vshll.u32 %v261, 16
      %v650 = vrot.slane %v648, 5
      %v651 = vor.u32 %v647, %v650
      %v652 = vrot.slane %v651, 4
      %v654 = vshll.u32 %v262, 16
      %v656 = vrot.slane %v654, 5
      %v657 = vsel %vm307, %v652, %v656
      %v658 = vshrl.u32 %v262, 16
      %v660 = vrot.slane %v658, 4
      %v661 = vor.u32 %v660, %v656
      %v662 = vrot.slane %v661, 4
      %v664 = vshll.u32 %v263, 16
      %v666 = vrot.slane %v664, 5
      %v667 = vsel %vm307, %v662, %v666
      %v669 = vshrl.u32 %v264, 16
      %v671 = vrot.slane %v669, 4
      %v672 = vshll.u32 %v264, 16
      %v674 = vrot.slane %v672, 5
      %v675 = vor.u32 %v671, %v674
      %v676 = vrot.slane %v675, 4
      %v678 = vshll.u32 %v265, 16
      %v680 = vrot.slane %v678, 5
      %v681 = vsel %vm307, %v676, %v680
      %v682 = vshrl.u32 %v265, 16
      %v684 = vrot.slane %v682, 4
      %v685 = vor.u32 %v684, %v680
      %v686 = vrot.slane %v685, 4
      %v688 = vshll.u32 %v266, 16
      %v690 = vrot.slane %v688, 5
      %v691 = vsel %vm307, %v686, %v690
      %724 = vst [vmem:[#allocation2 + $0x4] sm:$0xf] %v321
      %725 = vst [vmem:[#allocation2 + $0x28] sm:$0xf] %v331
      %726 = vst [vmem:[#allocation2 + $0x4c] sm:$0xf] %v345
      %727 = vst [vmem:[#allocation2 + $0x70] sm:$0xf] %v355
      %728 = vst [vmem:[#allocation2 + $0x94] sm:$0xf] %v369
      %729 = vst [vmem:[#allocation2 + $0xb8] sm:$0xf] %v379
      %730 = vst [vmem:[#allocation2 + $0xdc] sm:$0xf] %v393
      %731 = vst [vmem:[#allocation2 + $0x100] sm:$0xf] %v403
      %732 = vst [vmem:[#allocation2 + $0x124] sm:$0xf] %v417
      %733 = vst [vmem:[#allocation2 + $0x148] sm:$0xf] %v427
      %734 = vst [vmem:[#allocation2 + $0x16c] sm:$0xf] %v441
      %735 = vst [vmem:[#allocation2 + $0x190] sm:$0xf] %v451
      %736 = vst [vmem:[#allocation2 + $0x1b4] sm:$0xf] %v465
      %737 = vst [vmem:[#allocation2 + $0x1d8] sm:$0xf] %v475
      %738 = vst [vmem:[#allocation2 + $0x1fc] sm:$0xf] %v489
      %739 = vst [vmem:[#allocation2 + $0x220] sm:$0xf] %v499
      %740 = vst [vmem:[#allocation2 + $0x244] sm:$0xf] %v513
      %741 = vst [vmem:[#allocation2 + $0x268] sm:$0xf] %v523
      %742 = vst [vmem:[#allocation2 + $0x28c] sm:$0xf] %v537
      %743 = vst [vmem:[#allocation2 + $0x2b0] sm:$0xf] %v547
      %744 = vst [vmem:[#allocation2 + $0x2d4] sm:$0xf] %v561
      %745 = vst [vmem:[#allocation2 + $0x2f8] sm:$0xf] %v571
      %746 = vst [vmem:[#allocation2 + $0x31c] sm:$0xf] %v585
      %747 = vst [vmem:[#allocation2 + $0x340] sm:$0xf] %v595
      %748 = vst [vmem:[#allocation2 + $0x364] sm:$0xf] %v609
      %749 = vst [vmem:[#allocation2 + $0x388] sm:$0xf] %v619
      %750 = vst [vmem:[#allocation2 + $0x3ac] sm:$0xf] %v633
      %751 = vst [vmem:[#allocation2 + $0x3d0] sm:$0xf] %v643
      %752 = vst [vmem:[#allocation2 + $0x3f4] sm:$0xf] %v657
      %753 = vst [vmem:[#allocation2 + $0x418] sm:$0xf] %v667
      %754 = vst [vmem:[#allocation2 + $0x43c] sm:$0xf] %v681
      %755 = vst [vmem:[#allocation2 + $0x460] sm:$0xf] %v691
      %vm804 = vcmask 1042432
      %vm805 = vcmask 1046532
      %vm806 = vmor %vm804, %vm805
      %v807 = vrot.slane %v219, 5
      %v808 = vrot.slane %v807, 4
      %v809 = vrot.slane %v220, 5
      %v810 = vsel %vm806, %v808, %v809
      %v811 = vrot.slane %v809, 4
      %v812 = vrot.slane %v221, 5
      %v813 = vsel %vm806, %v811, %v812
      %v814 = vrot.slane %v222, 5
      %v815 = vrot.slane %v814, 4
      %v816 = vrot.slane %v223, 5
      %v817 = vsel %vm806, %v815, %v816
      %v818 = vrot.slane %v816, 4
      %v819 = vrot.slane %v224, 5
      %v820 = vsel %vm806, %v818, %v819
      %v821 = vrot.slane %v225, 5
      %v822 = vrot.slane %v821, 4
      %v823 = vrot.slane %v226, 5
      %v824 = vsel %vm806, %v822, %v823
      %v825 = vrot.slane %v823, 4
      %v826 = vrot.slane %v227, 5
      %v827 = vsel %vm806, %v825, %v826
      %v828 = vrot.slane %v228, 5
      %v829 = vrot.slane %v828, 4
      %v830 = vrot.slane %v229, 5
      %v831 = vsel %vm806, %v829, %v830
      %v832 = vrot.slane %v830, 4
      %v833 = vrot.slane %v230, 5
      %v834 = vsel %vm806, %v832, %v833
      %v835 = vrot.slane %v231, 5
      %v836 = vrot.slane %v835, 4
      %v837 = vrot.slane %v232, 5
      %v838 = vsel %vm806, %v836, %v837
      %v839 = vrot.slane %v837, 4
      %v840 = vrot.slane %v233, 5
      %v841 = vsel %vm806, %v839, %v840
      %v842 = vrot.slane %v234, 5
      %v843 = vrot.slane %v842, 4
      %v844 = vrot.slane %v235, 5
      %v845 = vsel %vm806, %v843, %v844
      %v846 = vrot.slane %v844, 4
      %v847 = vrot.slane %v236, 5
      %v848 = vsel %vm806, %v846, %v847
      %v849 = vrot.slane %v237, 5
      %v850 = vrot.slane %v849, 4
      %v851 = vrot.slane %v238, 5
      %v852 = vsel %vm806, %v850, %v851
      %v853 = vrot.slane %v851, 4
      %v854 = vrot.slane %v239, 5
      %v855 = vsel %vm806, %v853, %v854
      %v856 = vrot.slane %v240, 5
      %v857 = vrot.slane %v856, 4
      %v858 = vrot.slane %v241, 5
      %v859 = vsel %vm806, %v857, %v858
      %v860 = vrot.slane %v858, 4
      %v861 = vrot.slane %v242, 5
      %v862 = vsel %vm806, %v860, %v861
      %v863 = vrot.slane %v243, 5
      %v864 = vrot.slane %v863, 4
      %v865 = vrot.slane %v244, 5
      %v866 = vsel %vm806, %v864, %v865
      %v867 = vrot.slane %v865, 4
      %v868 = vrot.slane %v245, 5
      %v869 = vsel %vm806, %v867, %v868
      %v870 = vrot.slane %v246, 5
      %v871 = vrot.slane %v870, 4
      %v872 = vrot.slane %v247, 5
      %v873 = vsel %vm806, %v871, %v872
      %v874 = vrot.slane %v872, 4
      %v875 = vrot.slane %v248, 5
      %v876 = vsel %vm806, %v874, %v875
      %v877 = vrot.slane %v249, 5
      %v878 = vrot.slane %v877, 4
      %v879 = vrot.slane %v250, 5
      %v880 = vsel %vm806, %v878, %v879
      %v881 = vrot.slane %v879, 4
      %v882 = vrot.slane %v251, 5
      %v883 = vsel %vm806, %v881, %v882
      %v884 = vrot.slane %v252, 5
      %v885 = vrot.slane %v884, 4
      %v886 = vrot.slane %v253, 5
      %v887 = vsel %vm806, %v885, %v886
      %v888 = vrot.slane %v886, 4
      %v889 = vrot.slane %v254, 5
      %v890 = vsel %vm806, %v888, %v889
      %v891 = vrot.slane %v255, 5
      %v892 = vrot.slane %v891, 4
      %v893 = vrot.slane %v256, 5
      %v894 = vsel %vm806, %v892, %v893
      %v895 = vrot.slane %v893, 4
      %v896 = vrot.slane %v257, 5
      %v897 = vsel %vm806, %v895, %v896
      %v898 = vrot.slane %v258, 5
      %v899 = vrot.slane %v898, 4
      %v900 = vrot.slane %v259, 5
      %v901 = vsel %vm806, %v899, %v900
      %v902 = vrot.slane %v900, 4
      %v903 = vrot.slane %v260, 5
      %v904 = vsel %vm806, %v902, %v903
      %v905 = vrot.slane %v261, 5
      %v906 = vrot.slane %v905, 4
      %v907 = vrot.slane %v262, 5
      %v908 = vsel %vm806, %v906, %v907
      %v909 = vrot.slane %v907, 4
      %v910 = vrot.slane %v263, 5
      %v911 = vsel %vm806, %v909, %v910
      %v912 = vrot.slane %v264, 5
      %v913 = vrot.slane %v912, 4
      %v914 = vrot.slane %v265, 5
      %v915 = vsel %vm806, %v913, %v914
      %v916 = vrot.slane %v914, 4
      %v917 = vrot.slane %v266, 5
      %v918 = vsel %vm806, %v916, %v917
      %951 = vst [vmem:[#allocation2 + $0x8] sm:$0xf] %v810
      %952 = vst [vmem:[#allocation2 + $0x2c] sm:$0xf] %v813
      %953 = vst [vmem:[#allocation2 + $0x50] sm:$0xf] %v817
      %954 = vst [vmem:[#allocation2 + $0x74] sm:$0xf] %v820
      %955 = vst [vmem:[#allocation2 + $0x98] sm:$0xf] %v824
      %956 = vst [vmem:[#allocation2 + $0xbc] sm:$0xf] %v827
      %957 = vst [vmem:[#allocation2 + $0xe0] sm:$0xf] %v831
      %958 = vst [vmem:[#allocation2 + $0x104] sm:$0xf] %v834
      %959 = vst [vmem:[#allocation2 + $0x128] sm:$0xf] %v838
      %960 = vst [vmem:[#allocation2 + $0x14c] sm:$0xf] %v841
      %961 = vst [vmem:[#allocation2 + $0x170] sm:$0xf] %v845
      %962 = vst [vmem:[#allocation2 + $0x194] sm:$0xf] %v848
      %963 = vst [vmem:[#allocation2 + $0x1b8] sm:$0xf] %v852
      %964 = vst [vmem:[#allocation2 + $0x1dc] sm:$0xf] %v855
      %965 = vst [vmem:[#allocation2 + $0x200] sm:$0xf] %v859
      %966 = vst [vmem:[#allocation2 + $0x224] sm:$0xf] %v862
      %967 = vst [vmem:[#allocation2 + $0x248] sm:$0xf] %v866
      %968 = vst [vmem:[#allocation2 + $0x26c] sm:$0xf] %v869
      %969 = vst [vmem:[#allocation2 + $0x290] sm:$0xf] %v873
      %970 = vst [vmem:[#allocation2 + $0x2b4] sm:$0xf] %v876
      %971 = vst [vmem:[#allocation2 + $0x2d8] sm:$0xf] %v880
      %972 = vst [vmem:[#allocation2 + $0x2fc] sm:$0xf] %v883
      %973 = vst [vmem:[#allocation2 + $0x320] sm:$0xf] %v887
      %974 = vst [vmem:[#allocation2 + $0x344] sm:$0xf] %v890
      %975 = vst [vmem:[#allocation2 + $0x368] sm:$0xf] %v894
      %976 = vst [vmem:[#allocation2 + $0x38c] sm:$0xf] %v897
      %977 = vst [vmem:[#allocation2 + $0x3b0] sm:$0xf] %v901
      %978 = vst [vmem:[#allocation2 + $0x3d4] sm:$0xf] %v904
      %979 = vst [vmem:[#allocation2 + $0x3f8] sm:$0xf] %v908
      %980 = vst [vmem:[#allocation2 + $0x41c] sm:$0xf] %v911
      %981 = vst [vmem:[#allocation2 + $0x440] sm:$0xf] %v915
      %982 = vst [vmem:[#allocation2 + $0x464] sm:$0xf] %v918
      %983 = vst [vmem:[#allocation2 + $0xc] sm:$0xf] %v222
      %984 = vst [vmem:[#allocation2 + $0x30] sm:$0xf] %v223
      %985 = vst [vmem:[#allocation2 + $0x54] sm:$0xf] %v225
      %986 = vst [vmem:[#allocation2 + $0x78] sm:$0xf] %v226
      %987 = vst [vmem:[#allocation2 + $0x9c] sm:$0xf] %v228
      %988 = vst [vmem:[#allocation2 + $0xc0] sm:$0xf] %v229
      %989 = vst [vmem:[#allocation2 + $0xe4] sm:$0xf] %v231
      %990 = vst [vmem:[#allocation2 + $0x108] sm:$0xf] %v232
      %991 = vst [vmem:[#allocation2 + $0x12c] sm:$0xf] %v234
      %992 = vst [vmem:[#allocation2 + $0x150] sm:$0xf] %v235
      %993 = vst [vmem:[#allocation2 + $0x174] sm:$0xf] %v237
      %994 = vst [vmem:[#allocation2 + $0x198] sm:$0xf] %v238
      %995 = vst [vmem:[#allocation2 + $0x1bc] sm:$0xf] %v240
      %996 = vst [vmem:[#allocation2 + $0x1e0] sm:$0xf] %v241
      %997 = vst [vmem:[#allocation2 + $0x204] sm:$0xf] %v243
      %998 = vst [vmem:[#allocation2 + $0x228] sm:$0xf] %v244
      %999 = vst [vmem:[#allocation2 + $0x24c] sm:$0xf] %v246
      %1000 = vst [vmem:[#allocation2 + $0x270] sm:$0xf] %v247
      %1001 = vst [vmem:[#allocation2 + $0x294] sm:$0xf] %v249
      %1002 = vst [vmem:[#allocation2 + $0x2b8] sm:$0xf] %v250
      %1003 = vst [vmem:[#allocation2 + $0x2dc] sm:$0xf] %v252
      %1004 = vst [vmem:[#allocation2 + $0x300] sm:$0xf] %v253
      %1005 = vst [vmem:[#allocation2 + $0x324] sm:$0xf] %v255
      %1006 = vst [vmem:[#allocation2 + $0x348] sm:$0xf] %v256
      %1007 = vst [vmem:[#allocation2 + $0x36c] sm:$0xf] %v258
      %1008 = vst [vmem:[#allocation2 + $0x390] sm:$0xf] %v259
      %1009 = vst [vmem:[#allocation2 + $0x3b4] sm:$0xf] %v261
      %1010 = vst [vmem:[#allocation2 + $0x3d8] sm:$0xf] %v262
      %1011 = vst [vmem:[#allocation2 + $0x3fc] sm:$0xf] %v264
      %1012 = vst [vmem:[#allocation2 + $0x420] sm:$0xf] %v265
      %1013 = vst [vmem:[#allocation2 + $0x444] sm:$0xf] %v267
      %1014 = vst [vmem:[#allocation2 + $0x468] sm:$0xf] %v268
      %v1016 = vshrl.u32 %v267, 16
      %v1018 = vrot.slane %v1016, 4
      %v1019 = vshll.u32 %v267, 16
      %v1021 = vrot.slane %v1019, 5
      %v1022 = vor.u32 %v1018, %v1021
      %v1023 = vrot.slane %v1022, 4
      %v1025 = vshll.u32 %v268, 16
      %v1027 = vrot.slane %v1025, 5
      %v1028 = vsel %vm307, %v1023, %v1027
      %v1029 = vshrl.u32 %v268, 16
      %v1031 = vrot.slane %v1029, 4
      %v1032 = vor.u32 %v1031, %v1027
      %v1033 = vrot.slane %v1032, 4
      %v1035 = vshll.u32 %v269, 16
      %v1037 = vrot.slane %v1035, 5
      %v1038 = vsel %vm307, %v1033, %v1037
      %1041 = vst [vmem:[#allocation2 + $0x10] sm:$0xf] %v345
      %1042 = vst [vmem:[#allocation2 + $0x34] sm:$0xf] %v355
      %1043 = vst [vmem:[#allocation2 + $0x58] sm:$0xf] %v369
      %1044 = vst [vmem:[#allocation2 + $0x7c] sm:$0xf] %v379
      %1045 = vst [vmem:[#allocation2 + $0xa0] sm:$0xf] %v393
      %1046 = vst [vmem:[#allocation2 + $0xc4] sm:$0xf] %v403
      %1047 = vst [vmem:[#allocation2 + $0xe8] sm:$0xf] %v417
      %1048 = vst [vmem:[#allocation2 + $0x10c] sm:$0xf] %v427
      %1049 = vst [vmem:[#allocation2 + $0x130] sm:$0xf] %v441
      %1050 = vst [vmem:[#allocation2 + $0x154] sm:$0xf] %v451
      %1051 = vst [vmem:[#allocation2 + $0x178] sm:$0xf] %v465
      %1052 = vst [vmem:[#allocation2 + $0x19c] sm:$0xf] %v475
      %1053 = vst [vmem:[#allocation2 + $0x1c0] sm:$0xf] %v489
      %1054 = vst [vmem:[#allocation2 + $0x1e4] sm:$0xf] %v499
      %1055 = vst [vmem:[#allocation2 + $0x208] sm:$0xf] %v513
      %1056 = vst [vmem:[#allocation2 + $0x22c] sm:$0xf] %v523
      %1057 = vst [vmem:[#allocation2 + $0x250] sm:$0xf] %v537
      %1058 = vst [vmem:[#allocation2 + $0x274] sm:$0xf] %v547
      %1059 = vst [vmem:[#allocation2 + $0x298] sm:$0xf] %v561
      %1060 = vst [vmem:[#allocation2 + $0x2bc] sm:$0xf] %v571
      %1061 = vst [vmem:[#allocation2 + $0x2e0] sm:$0xf] %v585
      %1062 = vst [vmem:[#allocation2 + $0x304] sm:$0xf] %v595
      %1063 = vst [vmem:[#allocation2 + $0x328] sm:$0xf] %v609
      %1064 = vst [vmem:[#allocation2 + $0x34c] sm:$0xf] %v619
      %1065 = vst [vmem:[#allocation2 + $0x370] sm:$0xf] %v633
      %1066 = vst [vmem:[#allocation2 + $0x394] sm:$0xf] %v643
      %1067 = vst [vmem:[#allocation2 + $0x3b8] sm:$0xf] %v657
      %1068 = vst [vmem:[#allocation2 + $0x3dc] sm:$0xf] %v667
      %1069 = vst [vmem:[#allocation2 + $0x400] sm:$0xf] %v681
      %1070 = vst [vmem:[#allocation2 + $0x424] sm:$0xf] %v691
      %1071 = vst [vmem:[#allocation2 + $0x448] sm:$0xf] %v1028
      %1072 = vst [vmem:[#allocation2 + $0x46c] sm:$0xf] %v1038
      %v1076 = vrot.slane %v267, 5
      %v1077 = vrot.slane %v1076, 4
      %v1078 = vrot.slane %v268, 5
      %v1079 = vsel %vm806, %v1077, %v1078
      %v1080 = vrot.slane %v1078, 4
      %v1081 = vrot.slane %v269, 5
      %v1082 = vsel %vm806, %v1080, %v1081
      %1085 = vst [vmem:[#allocation2 + $0x14] sm:$0xf] %v817
      %1086 = vst [vmem:[#allocation2 + $0x38] sm:$0xf] %v820
      %1087 = vst [vmem:[#allocation2 + $0x5c] sm:$0xf] %v824
      %1088 = vst [vmem:[#allocation2 + $0x80] sm:$0xf] %v827
      %1089 = vst [vmem:[#allocation2 + $0xa4] sm:$0xf] %v831
      %1090 = vst [vmem:[#allocation2 + $0xc8] sm:$0xf] %v834
      %1091 = vst [vmem:[#allocation2 + $0xec] sm:$0xf] %v838
      %1092 = vst [vmem:[#allocation2 + $0x110] sm:$0xf] %v841
      %1093 = vst [vmem:[#allocation2 + $0x134] sm:$0xf] %v845
      %1094 = vst [vmem:[#allocation2 + $0x158] sm:$0xf] %v848
      %1095 = vst [vmem:[#allocation2 + $0x17c] sm:$0xf] %v852
      %1096 = vst [vmem:[#allocation2 + $0x1a0] sm:$0xf] %v855
      %1097 = vst [vmem:[#allocation2 + $0x1c4] sm:$0xf] %v859
      %1098 = vst [vmem:[#allocation2 + $0x1e8] sm:$0xf] %v862
      %1099 = vst [vmem:[#allocation2 + $0x20c] sm:$0xf] %v866
      %1100 = vst [vmem:[#allocation2 + $0x230] sm:$0xf] %v869
      %1101 = vst [vmem:[#allocation2 + $0x254] sm:$0xf] %v873
      %1102 = vst [vmem:[#allocation2 + $0x278] sm:$0xf] %v876
      %1103 = vst [vmem:[#allocation2 + $0x29c] sm:$0xf] %v880
      %1104 = vst [vmem:[#allocation2 + $0x2c0] sm:$0xf] %v883
      %1105 = vst [vmem:[#allocation2 + $0x2e4] sm:$0xf] %v887
      %1106 = vst [vmem:[#allocation2 + $0x308] sm:$0xf] %v890
      %1107 = vst [vmem:[#allocation2 + $0x32c] sm:$0xf] %v894
      %1108 = vst [vmem:[#allocation2 + $0x350] sm:$0xf] %v897
      %1109 = vst [vmem:[#allocation2 + $0x374] sm:$0xf] %v901
      %1110 = vst [vmem:[#allocation2 + $0x398] sm:$0xf] %v904
      %1111 = vst [vmem:[#allocation2 + $0x3bc] sm:$0xf] %v908
      %1112 = vst [vmem:[#allocation2 + $0x3e0] sm:$0xf] %v911
      %1113 = vst [vmem:[#allocation2 + $0x404] sm:$0xf] %v915
      %1114 = vst [vmem:[#allocation2 + $0x428] sm:$0xf] %v918
      %1115 = vst [vmem:[#allocation2 + $0x44c] sm:$0xf] %v1079
      %1116 = vst [vmem:[#allocation2 + $0x470] sm:$0xf] %v1082
      %1117 = vst [vmem:[#allocation2 + $0x18] sm:$0xf] %v225
      %1118 = vst [vmem:[#allocation2 + $0x3c] sm:$0xf] %v226
      %1119 = vst [vmem:[#allocation2 + $0x60] sm:$0xf] %v228
      %1120 = vst [vmem:[#allocation2 + $0x84] sm:$0xf] %v229
      %1121 = vst [vmem:[#allocation2 + $0xa8] sm:$0xf] %v231
      %1122 = vst [vmem:[#allocation2 + $0xcc] sm:$0xf] %v232
      %1123 = vst [vmem:[#allocation2 + $0xf0] sm:$0xf] %v234
      %1124 = vst [vmem:[#allocation2 + $0x114] sm:$0xf] %v235
      %1125 = vst [vmem:[#allocation2 + $0x138] sm:$0xf] %v237
      %1126 = vst [vmem:[#allocation2 + $0x15c] sm:$0xf] %v238
      %1127 = vst [vmem:[#allocation2 + $0x180] sm:$0xf] %v240
      %1128 = vst [vmem:[#allocation2 + $0x1a4] sm:$0xf] %v241
      %1129 = vst [vmem:[#allocation2 + $0x1c8] sm:$0xf] %v243
      %1130 = vst [vmem:[#allocation2 + $0x1ec] sm:$0xf] %v244
      %1131 = vst [vmem:[#allocation2 + $0x210] sm:$0xf] %v246
      %1132 = vst [vmem:[#allocation2 + $0x234] sm:$0xf] %v247
      %1133 = vst [vmem:[#allocation2 + $0x258] sm:$0xf] %v249
      %1134 = vst [vmem:[#allocation2 + $0x27c] sm:$0xf] %v250
      %1135 = vst [vmem:[#allocation2 + $0x2a0] sm:$0xf] %v252
      %1136 = vst [vmem:[#allocation2 + $0x2c4] sm:$0xf] %v253
      %1137 = vst [vmem:[#allocation2 + $0x2e8] sm:$0xf] %v255
      %1138 = vst [vmem:[#allocation2 + $0x30c] sm:$0xf] %v256
      %1139 = vst [vmem:[#allocation2 + $0x330] sm:$0xf] %v258
      %1140 = vst [vmem:[#allocation2 + $0x354] sm:$0xf] %v259
      %1141 = vst [vmem:[#allocation2 + $0x378] sm:$0xf] %v261
      %1142 = vst [vmem:[#allocation2 + $0x39c] sm:$0xf] %v262
      %1143 = vst [vmem:[#allocation2 + $0x3c0] sm:$0xf] %v264
      %1144 = vst [vmem:[#allocation2 + $0x3e4] sm:$0xf] %v265
      %1145 = vst [vmem:[#allocation2 + $0x408] sm:$0xf] %v267
      %1146 = vst [vmem:[#allocation2 + $0x42c] sm:$0xf] %v268
      %1147 = vst [vmem:[#allocation2 + $0x450] sm:$0xf] %v270
      %1148 = vst [vmem:[#allocation2 + $0x474] sm:$0xf] %v271
      %v1150 = vshrl.u32 %v270, 16
      %v1152 = vrot.slane %v1150, 4
      %v1153 = vshll.u32 %v270, 16
      %v1155 = vrot.slane %v1153, 5
      %v1156 = vor.u32 %v1152, %v1155
      %v1157 = vrot.slane %v1156, 4
      %v1159 = vshll.u32 %v271, 16
      %v1161 = vrot.slane %v1159, 5
      %v1162 = vsel %vm307, %v1157, %v1161
      %v1163 = vshrl.u32 %v271, 16
      %v1165 = vrot.slane %v1163, 4
      %v1166 = vor.u32 %v1165, %v1161
      %v1167 = vrot.slane %v1166, 4
      %v1169 = vshll.u32 %v272, 16
      %v1171 = vrot.slane %v1169, 5
      %v1172 = vsel %vm307, %v1167, %v1171
      %1175 = vst [vmem:[#allocation2 + $0x1c] sm:$0xf] %v369
      %1176 = vst [vmem:[#allocation2 + $0x40] sm:$0xf] %v379
      %1177 = vst [vmem:[#allocation2 + $0x64] sm:$0xf] %v393
      %1178 = vst [vmem:[#allocation2 + $0x88] sm:$0xf] %v403
      %1179 = vst [vmem:[#allocation2 + $0xac] sm:$0xf] %v417
      %1180 = vst [vmem:[#allocation2 + $0xd0] sm:$0xf] %v427
      %1181 = vst [vmem:[#allocation2 + $0xf4] sm:$0xf] %v441
      %1182 = vst [vmem:[#allocation2 + $0x118] sm:$0xf] %v451
      %1183 = vst [vmem:[#allocation2 + $0x13c] sm:$0xf] %v465
      %1184 = vst [vmem:[#allocation2 + $0x160] sm:$0xf] %v475
      %1185 = vst [vmem:[#allocation2 + $0x184] sm:$0xf] %v489
      %1186 = vst [vmem:[#allocation2 + $0x1a8] sm:$0xf] %v499
      %1187 = vst [vmem:[#allocation2 + $0x1cc] sm:$0xf] %v513
      %1188 = vst [vmem:[#allocation2 + $0x1f0] sm:$0xf] %v523
      %1189 = vst [vmem:[#allocation2 + $0x214] sm:$0xf] %v537
      %1190 = vst [vmem:[#allocation2 + $0x238] sm:$0xf] %v547
      %1191 = vst [vmem:[#allocation2 + $0x25c] sm:$0xf] %v561
      %1192 = vst [vmem:[#allocation2 + $0x280] sm:$0xf] %v571
      %1193 = vst [vmem:[#allocation2 + $0x2a4] sm:$0xf] %v585
      %1194 = vst [vmem:[#allocation2 + $0x2c8] sm:$0xf] %v595
      %1195 = vst [vmem:[#allocation2 + $0x2ec] sm:$0xf] %v609
      %1196 = vst [vmem:[#allocation2 + $0x310] sm:$0xf] %v619
      %1197 = vst [vmem:[#allocation2 + $0x334] sm:$0xf] %v633
      %1198 = vst [vmem:[#allocation2 + $0x358] sm:$0xf] %v643
      %1199 = vst [vmem:[#allocation2 + $0x37c] sm:$0xf] %v657
      %1200 = vst [vmem:[#allocation2 + $0x3a0] sm:$0xf] %v667
      %1201 = vst [vmem:[#allocation2 + $0x3c4] sm:$0xf] %v681
      %1202 = vst [vmem:[#allocation2 + $0x3e8] sm:$0xf] %v691
      %1203 = vst [vmem:[#allocation2 + $0x40c] sm:$0xf] %v1028
      %1204 = vst [vmem:[#allocation2 + $0x430] sm:$0xf] %v1038
      %1205 = vst [vmem:[#allocation2 + $0x454] sm:$0xf] %v1162
      %1206 = vst [vmem:[#allocation2 + $0x478] sm:$0xf] %v1172
      %v1210 = vrot.slane %v270, 5
      %v1211 = vrot.slane %v1210, 4
      %v1212 = vrot.slane %v271, 5
      %v1213 = vsel %vm806, %v1211, %v1212
      %v1214 = vrot.slane %v1212, 4
      %v1215 = vrot.slane %v272, 5
      %v1216 = vsel %vm806, %v1214, %v1215
      %1219 = vst [vmem:[#allocation2 + $0x20] sm:$0xf] %v824
      %1220 = vst [vmem:[#allocation2 + $0x44] sm:$0xf] %v827
      %1221 = vst [vmem:[#allocation2 + $0x68] sm:$0xf] %v831
      %1222 = vst [vmem:[#allocation2 + $0x8c] sm:$0xf] %v834
      %1223 = vst [vmem:[#allocation2 + $0xb0] sm:$0xf] %v838
      %1224 = vst [vmem:[#allocation2 + $0xd4] sm:$0xf] %v841
      %1225 = vst [vmem:[#allocation2 + $0xf8] sm:$0xf] %v845
      %1226 = vst [vmem:[#allocation2 + $0x11c] sm:$0xf] %v848
      %1227 = vst [vmem:[#allocation2 + $0x140] sm:$0xf] %v852
      %1228 = vst [vmem:[#allocation2 + $0x164] sm:$0xf] %v855
      %1229 = vst [vmem:[#allocation2 + $0x188] sm:$0xf] %v859
      %1230 = vst [vmem:[#allocation2 + $0x1ac] sm:$0xf] %v862
      %1231 = vst [vmem:[#allocation2 + $0x1d0] sm:$0xf] %v866
      %1232 = vst [vmem:[#allocation2 + $0x1f4] sm:$0xf] %v869
      %1233 = vst [vmem:[#allocation2 + $0x218] sm:$0xf] %v873
      %1234 = vst [vmem:[#allocation2 + $0x23c] sm:$0xf] %v876
      %1235 = vst [vmem:[#allocation2 + $0x260] sm:$0xf] %v880
      %1236 = vst [vmem:[#allocation2 + $0x284] sm:$0xf] %v883
      %1237 = vst [vmem:[#allocation2 + $0x2a8] sm:$0xf] %v887
      %1238 = vst [vmem:[#allocation2 + $0x2cc] sm:$0xf] %v890
      %1239 = vst [vmem:[#allocation2 + $0x2f0] sm:$0xf] %v894
      %1240 = vst [vmem:[#allocation2 + $0x314] sm:$0xf] %v897
      %1241 = vst [vmem:[#allocation2 + $0x338] sm:$0xf] %v901
      %1242 = vst [vmem:[#allocation2 + $0x35c] sm:$0xf] %v904
      %1243 = vst [vmem:[#allocation2 + $0x380] sm:$0xf] %v908
      %1244 = vst [vmem:[#allocation2 + $0x3a4] sm:$0xf] %v911
      %1245 = vst [vmem:[#allocation2 + $0x3c8] sm:$0xf] %v915
      %1246 = vst [vmem:[#allocation2 + $0x3ec] sm:$0xf] %v918
      %1247 = vst [vmem:[#allocation2 + $0x410] sm:$0xf] %v1079
      %1248 = vst [vmem:[#allocation2 + $0x434] sm:$0xf] %v1082
      %1249 = vst [vmem:[#allocation2 + $0x458] sm:$0xf] %v1213
      %1250 = vst [vmem:[#allocation2 + $0x47c] sm:$0xf] %v1216
      %v1251 = vld [vmem:[#allocation2] sm:$0xff]
      %v1252 = vld [vmem:[#allocation2 + $0x8] sm:$0xff]
      %v1253 = vld [vmem:[#allocation2 + $0x10] sm:$0xff]
      %v1254 = vld [vmem:[#allocation2 + $0x18] sm:$0xff]
      %v1255 = vld [vmem:[#allocation2 + $0x20] sm:$0xf]
      %v1256 = vld [vmem:[#allocation2 + $0x24] sm:$0xff]
      %v1257 = vld [vmem:[#allocation2 + $0x2c] sm:$0xff]
      %v1258 = vld [vmem:[#allocation2 + $0x34] sm:$0xff]
      %v1259 = vld [vmem:[#allocation2 + $0x3c] sm:$0xff]
      %v1260 = vld [vmem:[#allocation2 + $0x44] sm:$0xf]
      %v1261 = vld [vmem:[#allocation2 + $0x48] sm:$0xff]
      %v1262 = vld [vmem:[#allocation2 + $0x50] sm:$0xff]
      %v1263 = vld [vmem:[#allocation2 + $0x58] sm:$0xff]
      %v1264 = vld [vmem:[#allocation2 + $0x60] sm:$0xff]
      %v1265 = vld [vmem:[#allocation2 + $0x68] sm:$0xf]
      %v1266 = vld [vmem:[#allocation2 + $0x6c] sm:$0xff]
      %v1267 = vld [vmem:[#allocation2 + $0x74] sm:$0xff]
      %v1268 = vld [vmem:[#allocation2 + $0x7c] sm:$0xff]
      %v1269 = vld [vmem:[#allocation2 + $0x84] sm:$0xff]
      %v1270 = vld [vmem:[#allocation2 + $0x8c] sm:$0xf]
      %v1271 = vld [vmem:[#allocation2 + $0x90] sm:$0xff]
      %v1272 = vld [vmem:[#allocation2 + $0x98] sm:$0xff]
      %v1273 = vld [vmem:[#allocation2 + $0xa0] sm:$0xff]
      %v1274 = vld [vmem:[#allocation2 + $0xa8] sm:$0xff]
      %v1275 = vld [vmem:[#allocation2 + $0xb0] sm:$0xf]
      %v1276 = vld [vmem:[#allocation2 + $0xb4] sm:$0xff]
      %v1277 = vld [vmem:[#allocation2 + $0xbc] sm:$0xff]
      %v1278 = vld [vmem:[#allocation2 + $0xc4] sm:$0xff]
      %v1279 = vld [vmem:[#allocation2 + $0xcc] sm:$0xff]
      %v1280 = vld [vmem:[#allocation2 + $0xd4] sm:$0xf]
      %v1281 = vld [vmem:[#allocation2 + $0xd8] sm:$0xff]
      %v1282 = vld [vmem:[#allocation2 + $0xe0] sm:$0xff]
      %v1283 = vld [vmem:[#allocation2 + $0xe8] sm:$0xff]
      %v1284 = vld [vmem:[#allocation2 + $0xf0] sm:$0xff]
      %v1285 = vld [vmem:[#allocation2 + $0xf8] sm:$0xf]
      %v1286 = vld [vmem:[#allocation2 + $0xfc] sm:$0xff]
      %v1287 = vld [vmem:[#allocation2 + $0x104] sm:$0xff]
      %v1288 = vld [vmem:[#allocation2 + $0x10c] sm:$0xff]
      %v1289 = vld [vmem:[#allocation2 + $0x114] sm:$0xff]
      %v1290 = vld [vmem:[#allocation2 + $0x11c] sm:$0xf]
      %v1291 = vld [vmem:[#allocation2 + $0x120] sm:$0xff]
      %v1292 = vld [vmem:[#allocation2 + $0x128] sm:$0xff]
      %v1293 = vld [vmem:[#allocation2 + $0x130] sm:$0xff]
      %v1294 = vld [vmem:[#allocation2 + $0x138] sm:$0xff]
      %v1295 = vld [vmem:[#allocation2 + $0x140] sm:$0xf]
      %v1296 = vld [vmem:[#allocation2 + $0x144] sm:$0xff]
      %v1297 = vld [vmem:[#allocation2 + $0x14c] sm:$0xff]
      %v1298 = vld [vmem:[#allocation2 + $0x154] sm:$0xff]
      %v1299 = vld [vmem:[#allocation2 + $0x15c] sm:$0xff]
      %v1300 = vld [vmem:[#allocation2 + $0x164] sm:$0xf]
      %v1301 = vld [vmem:[#allocation2 + $0x168] sm:$0xff]
      %v1302 = vld [vmem:[#allocation2 + $0x170] sm:$0xff]
      %v1303 = vld [vmem:[#allocation2 + $0x178] sm:$0xff]
      %v1304 = vld [vmem:[#allocation2 + $0x180] sm:$0xff]
      %v1305 = vld [vmem:[#allocation2 + $0x188] sm:$0xf]
      %v1306 = vld [vmem:[#allocation2 + $0x18c] sm:$0xff]
      %v1307 = vld [vmem:[#allocation2 + $0x194] sm:$0xff]
      %v1308 = vld [vmem:[#allocation2 + $0x19c] sm:$0xff]
      %v1309 = vld [vmem:[#allocation2 + $0x1a4] sm:$0xff]
      %v1310 = vld [vmem:[#allocation2 + $0x1ac] sm:$0xf]
      %v1311 = vld [vmem:[#allocation2 + $0x1b0] sm:$0xff]
      %v1312 = vld [vmem:[#allocation2 + $0x1b8] sm:$0xff]
      %v1313 = vld [vmem:[#allocation2 + $0x1c0] sm:$0xff]
      %v1314 = vld [vmem:[#allocation2 + $0x1c8] sm:$0xff]
      %v1315 = vld [vmem:[#allocation2 + $0x1d0] sm:$0xf]
      %v1316 = vld [vmem:[#allocation2 + $0x1d4] sm:$0xff]
      %v1317 = vld [vmem:[#allocation2 + $0x1dc] sm:$0xff]
      %v1318 = vld [vmem:[#allocation2 + $0x1e4] sm:$0xff]
      %v1319 = vld [vmem:[#allocation2 + $0x1ec] sm:$0xff]
      %v1320 = vld [vmem:[#allocation2 + $0x1f4] sm:$0xf]
      %v1321 = vld [vmem:[#allocation2 + $0x1f8] sm:$0xff]
      %v1322 = vld [vmem:[#allocation2 + $0x200] sm:$0xff]
      %v1323 = vld [vmem:[#allocation2 + $0x208] sm:$0xff]
      %v1324 = vld [vmem:[#allocation2 + $0x210] sm:$0xff]
      %v1325 = vld [vmem:[#allocation2 + $0x218] sm:$0xf]
      %v1326 = vld [vmem:[#allocation2 + $0x21c] sm:$0xff]
      %v1327 = vld [vmem:[#allocation2 + $0x224] sm:$0xff]
      %v1328 = vld [vmem:[#allocation2 + $0x22c] sm:$0xff]
      %v1329 = vld [vmem:[#allocation2 + $0x234] sm:$0xff]
      %v1330 = vld [vmem:[#allocation2 + $0x23c] sm:$0xf]
      %v1331 = vld [vmem:[#allocation2 + $0x240] sm:$0xff]
      %v1332 = vld [vmem:[#allocation2 + $0x248] sm:$0xff]
      %v1333 = vld [vmem:[#allocation2 + $0x250] sm:$0xff]
      %v1334 = vld [vmem:[#allocation2 + $0x258] sm:$0xff]
      %v1335 = vld [vmem:[#allocation2 + $0x260] sm:$0xf]
      %v1336 = vld [vmem:[#allocation2 + $0x264] sm:$0xff]
      %v1337 = vld [vmem:[#allocation2 + $0x26c] sm:$0xff]
      %v1338 = vld [vmem:[#allocation2 + $0x274] sm:$0xff]
      %v1339 = vld [vmem:[#allocation2 + $0x27c] sm:$0xff]
      %v1340 = vld [vmem:[#allocation2 + $0x284] sm:$0xf]
      %v1341 = vld [vmem:[#allocation2 + $0x288] sm:$0xff]
      %v1342 = vld [vmem:[#allocation2 + $0x290] sm:$0xff]
      %v1343 = vld [vmem:[#allocation2 + $0x298] sm:$0xff]
      %v1344 = vld [vmem:[#allocation2 + $0x2a0] sm:$0xff]
      %v1345 = vld [vmem:[#allocation2 + $0x2a8] sm:$0xf]
      %v1346 = vld [vmem:[#allocation2 + $0x2ac] sm:$0xff]
      %v1347 = vld [vmem:[#allocation2 + $0x2b4] sm:$0xff]
      %v1348 = vld [vmem:[#allocation2 + $0x2bc] sm:$0xff]
      %v1349 = vld [vmem:[#allocation2 + $0x2c4] sm:$0xff]
      %v1350 = vld [vmem:[#allocation2 + $0x2cc] sm:$0xf]
      %v1351 = vld [vmem:[#allocation2 + $0x2d0] sm:$0xff]
      %v1352 = vld [vmem:[#allocation2 + $0x2d8] sm:$0xff]
      %v1353 = vld [vmem:[#allocation2 + $0x2e0] sm:$0xff]
      %v1354 = vld [vmem:[#allocation2 + $0x2e8] sm:$0xff]
      %v1355 = vld [vmem:[#allocation2 + $0x2f0] sm:$0xf]
      %v1356 = vld [vmem:[#allocation2 + $0x2f4] sm:$0xff]
      %v1357 = vld [vmem:[#allocation2 + $0x2fc] sm:$0xff]
      %v1358 = vld [vmem:[#allocation2 + $0x304] sm:$0xff]
      %v1359 = vld [vmem:[#allocation2 + $0x30c] sm:$0xff]
      %v1360 = vld [vmem:[#allocation2 + $0x314] sm:$0xf]
      %v1361 = vld [vmem:[#allocation2 + $0x318] sm:$0xff]
      %v1362 = vld [vmem:[#allocation2 + $0x320] sm:$0xff]
      %v1363 = vld [vmem:[#allocation2 + $0x328] sm:$0xff]
      %v1364 = vld [vmem:[#allocation2 + $0x330] sm:$0xff]
      %v1365 = vld [vmem:[#allocation2 + $0x338] sm:$0xf]
      %v1366 = vld [vmem:[#allocation2 + $0x33c] sm:$0xff]
      %v1367 = vld [vmem:[#allocation2 + $0x344] sm:$0xff]
      %v1368 = vld [vmem:[#allocation2 + $0x34c] sm:$0xff]
      %v1369 = vld [vmem:[#allocation2 + $0x354] sm:$0xff]
      %v1370 = vld [vmem:[#allocation2 + $0x35c] sm:$0xf]
      %v1371 = vld [vmem:[#allocation2 + $0x360] sm:$0xff]
      %v1372 = vld [vmem:[#allocation2 + $0x368] sm:$0xff]
      %v1373 = vld [vmem:[#allocation2 + $0x370] sm:$0xff]
      %v1374 = vld [vmem:[#allocation2 + $0x378] sm:$0xff]
      %v1375 = vld [vmem:[#allocation2 + $0x380] sm:$0xf]
      %v1376 = vld [vmem:[#allocation2 + $0x384] sm:$0xff]
      %v1377 = vld [vmem:[#allocation2 + $0x38c] sm:$0xff]
      %v1378 = vld [vmem:[#allocation2 + $0x394] sm:$0xff]
      %v1379 = vld [vmem:[#allocation2 + $0x39c] sm:$0xff]
      %v1380 = vld [vmem:[#allocation2 + $0x3a4] sm:$0xf]
      %v1381 = vld [vmem:[#allocation2 + $0x3a8] sm:$0xff]
      %v1382 = vld [vmem:[#allocation2 + $0x3b0] sm:$0xff]
      %v1383 = vld [vmem:[#allocation2 + $0x3b8] sm:$0xff]
      %v1384 = vld [vmem:[#allocation2 + $0x3c0] sm:$0xff]
      %v1385 = vld [vmem:[#allocation2 + $0x3c8] sm:$0xf]
      %v1386 = vld [vmem:[#allocation2 + $0x3cc] sm:$0xff]
      %v1387 = vld [vmem:[#allocation2 + $0x3d4] sm:$0xff]
      %v1388 = vld [vmem:[#allocation2 + $0x3dc] sm:$0xff]
      %v1389 = vld [vmem:[#allocation2 + $0x3e4] sm:$0xff]
      %v1390 = vld [vmem:[#allocation2 + $0x3ec] sm:$0xf]
      %v1391 = vld [vmem:[#allocation2 + $0x3f0] sm:$0xff]
      %v1392 = vld [vmem:[#allocation2 + $0x3f8] sm:$0xff]
      %v1393 = vld [vmem:[#allocation2 + $0x400] sm:$0xff]
      %v1394 = vld [vmem:[#allocation2 + $0x408] sm:$0xff]
      %v1395 = vld [vmem:[#allocation2 + $0x410] sm:$0xf]
      %v1396 = vld [vmem:[#allocation2 + $0x414] sm:$0xff]
      %v1397 = vld [vmem:[#allocation2 + $0x41c] sm:$0xff]
      %v1398 = vld [vmem:[#allocation2 + $0x424] sm:$0xff]
      %v1399 = vld [vmem:[#allocation2 + $0x42c] sm:$0xff]
      %v1400 = vld [vmem:[#allocation2 + $0x434] sm:$0xf]
      %v1401 = vld [vmem:[#allocation2 + $0x438] sm:$0xff]
      %v1402 = vld [vmem:[#allocation2 + $0x440] sm:$0xff]
      %v1403 = vld [vmem:[#allocation2 + $0x448] sm:$0xff]
      %v1404 = vld [vmem:[#allocation2 + $0x450] sm:$0xff]
      %v1405 = vld [vmem:[#allocation2 + $0x458] sm:$0xf]
      %v1406 = vld [vmem:[#allocation2 + $0x45c] sm:$0xff]
      %v1407 = vld [vmem:[#allocation2 + $0x464] sm:$0xff]
      %v1408 = vld [vmem:[#allocation2 + $0x46c] sm:$0xff]
      %v1409 = vld [vmem:[#allocation2 + $0x474] sm:$0xff]
      %v1410 = vld [vmem:[#allocation2 + $0x47c] sm:$0xf]
      %v1411 = vld [vmem:[%s1] sm:$0xf]
      %v1412 = vld [vmem:[%s1 + $0x4] sm:$0xf]
      %v1413 = vld [vmem:[%s1 + $0x8] sm:$0xf]
      %v1414 = vld [vmem:[%s1 + $0xc] sm:$0xf]
      %v1415 = vld [vmem:[%s1 + $0x10] sm:$0xf]
      %v1416 = vld [vmem:[%s1 + $0x14] sm:$0xf]
      %v1417 = vld [vmem:[%s1 + $0x18] sm:$0xf]
      %v1418 = vld [vmem:[%s1 + $0x1c] sm:$0xf]
      %v1419 = vld [vmem:[%s1 + $0x20] sm:$0xf]
      %v1420 = vld [vmem:[%s1 + $0x24] sm:$0xf]
      %v1421 = vld [vmem:[%s1 + $0x28] sm:$0xf]
      %v1422 = vld [vmem:[%s1 + $0x2c] sm:$0xf]
      %v1423 = vld [vmem:[%s1 + $0x30] sm:$0xf]
      %v1424 = vld [vmem:[%s1 + $0x34] sm:$0xf]
      %v1425 = vld [vmem:[%s1 + $0x38] sm:$0xf]
      %v1426 = vld [vmem:[%s1 + $0x3c] sm:$0xf]
      %v1427 = vld [vmem:[%s1 + $0x40] sm:$0xf]
      %v1428 = vld [vmem:[%s1 + $0x44] sm:$0xf]
      %v1429 = vld [vmem:[%s1 + $0x48] sm:$0xf]
      %v1430 = vld [vmem:[%s1 + $0x4c] sm:$0xf]
      %v1431 = vld [vmem:[%s1 + $0x50] sm:$0xf]
      %v1432 = vld [vmem:[%s1 + $0x54] sm:$0xf]
      %v1433 = vld [vmem:[%s1 + $0x58] sm:$0xf]
      %v1434 = vld [vmem:[%s1 + $0x5c] sm:$0xf]
      %v1435 = vld [vmem:[%s1 + $0x60] sm:$0xf]
      %v1436 = vld [vmem:[%s1 + $0x64] sm:$0xf]
      %v1437 = vld [vmem:[%s1 + $0x68] sm:$0xf]
      %v1438 = vld [vmem:[%s1 + $0x6c] sm:$0xf]
      %v1439 = vld [vmem:[%s1 + $0x70] sm:$0xf]
      %v1440 = vld [vmem:[%s1 + $0x74] sm:$0xf]
      %v1441 = vld [vmem:[%s1 + $0x78] sm:$0xf]
      %v1442 = vld [vmem:[%s1 + $0x7c] sm:$0xf]
      %v1443 = vld [vmem:[%s1 + $0x80] sm:$0xf]
      %v1444 = vld [vmem:[%s1 + $0x84] sm:$0xf]
      %v1445 = vld [vmem:[%s1 + $0x88] sm:$0xf]
      %v1446 = vld [vmem:[%s1 + $0x8c] sm:$0xf]
      %v1447 = vld [vmem:[%s1 + $0x90] sm:$0xf]
      %v1448 = vld [vmem:[%s1 + $0x94] sm:$0xf]
      %v1449 = vld [vmem:[%s1 + $0x98] sm:$0xf]
      %v1450 = vld [vmem:[%s1 + $0x9c] sm:$0xf]
      %v1451 = vld [vmem:[%s1 + $0xa0] sm:$0xf]
      %v1452 = vld [vmem:[%s1 + $0xa4] sm:$0xf]
      %v1453 = vld [vmem:[%s1 + $0xa8] sm:$0xf]
      %v1454 = vld [vmem:[%s1 + $0xac] sm:$0xf]
      %v1455 = vld [vmem:[%s1 + $0xb0] sm:$0xf]
      %v1456 = vld [vmem:[%s1 + $0xb4] sm:$0xf]
      %v1457 = vld [vmem:[%s1 + $0xb8] sm:$0xf]
      %v1458 = vld [vmem:[%s1 + $0xbc] sm:$0xf]
      %v1459 = vld [vmem:[%s1 + $0xc0] sm:$0xf]
      %v1460 = vld [vmem:[%s1 + $0xc4] sm:$0xf]
      %v1461 = vld [vmem:[%s1 + $0xc8] sm:$0xf]
      %v1462 = vld [vmem:[%s1 + $0xcc] sm:$0xf]
      %v1463 = vld [vmem:[%s1 + $0xd0] sm:$0xf]
      %v1464 = vld [vmem:[%s1 + $0xd4] sm:$0xf]
      %v1465 = vld [vmem:[%s1 + $0xd8] sm:$0xf]
      %v1466 = vld [vmem:[%s1 + $0xdc] sm:$0xf]
      %v1467 = vld [vmem:[%s1 + $0xe0] sm:$0xf]
      %v1468 = vld [vmem:[%s1 + $0xe4] sm:$0xf]
      %v1469 = vld [vmem:[%s1 + $0xe8] sm:$0xf]
      %v1470 = vld [vmem:[%s1 + $0xec] sm:$0xf]
      %v1471 = vld [vmem:[%s1 + $0xf0] sm:$0xf]
      %v1472 = vld [vmem:[%s1 + $0xf4] sm:$0xf]
      %v1473 = vld [vmem:[%s1 + $0xf8] sm:$0xf]
      %v1474 = vld [vmem:[%s1 + $0xfc] sm:$0xf]
      %v1475 = vld [vmem:[%s1 + $0x100] sm:$0xf]
      %v1476 = vld [vmem:[%s1 + $0x104] sm:$0xf]
      %v1477 = vld [vmem:[%s1 + $0x108] sm:$0xf]
      %v1478 = vld [vmem:[%s1 + $0x10c] sm:$0xf]
      %v1479 = vld [vmem:[%s1 + $0x110] sm:$0xf]
      %v1480 = vld [vmem:[%s1 + $0x114] sm:$0xf]
      %v1481 = vld [vmem:[%s1 + $0x118] sm:$0xf]
      %v1482 = vld [vmem:[%s1 + $0x11c] sm:$0xf]
      %v1483 = vld [vmem:[%s1 + $0x120] sm:$0xf]
      %v1484 = vld [vmem:[%s1 + $0x124] sm:$0xf]
      %v1485 = vld [vmem:[%s1 + $0x128] sm:$0xf]
      %v1486 = vld [vmem:[%s1 + $0x12c] sm:$0xf]
      %v1487 = vld [vmem:[%s1 + $0x130] sm:$0xf]
      %v1488 = vld [vmem:[%s1 + $0x134] sm:$0xf]
      %v1489 = vld [vmem:[%s1 + $0x138] sm:$0xf]
      %v1490 = vld [vmem:[%s1 + $0x13c] sm:$0xf]
      %v1491 = vld [vmem:[%s1 + $0x140] sm:$0xf]
      %v1492 = vld [vmem:[%s1 + $0x144] sm:$0xf]
      %v1493 = vld [vmem:[%s1 + $0x148] sm:$0xf]
      %v1494 = vld [vmem:[%s1 + $0x14c] sm:$0xf]
      %v1495 = vld [vmem:[%s1 + $0x150] sm:$0xf]
      %v1496 = vld [vmem:[%s1 + $0x154] sm:$0xf]
      %v1497 = vld [vmem:[%s1 + $0x158] sm:$0xf]
      %v1498 = vld [vmem:[%s1 + $0x15c] sm:$0xf]
      %v1499 = vld [vmem:[%s1 + $0x160] sm:$0xf]
      %v1500 = vld [vmem:[%s1 + $0x164] sm:$0xf]
      %v1501 = vld [vmem:[%s1 + $0x168] sm:$0xf]
      %v1502 = vld [vmem:[%s1 + $0x16c] sm:$0xf]
      %v1503 = vld [vmem:[%s1 + $0x170] sm:$0xf]
      %v1504 = vld [vmem:[%s1 + $0x174] sm:$0xf]
      %v1505 = vld [vmem:[%s1 + $0x178] sm:$0xf]
      %v1506 = vld [vmem:[%s1 + $0x17c] sm:$0xf]
      %v1507 = vld [vmem:[%s1 + $0x180] sm:$0xf]
      %v1508 = vld [vmem:[%s1 + $0x184] sm:$0xf]
      %v1509 = vld [vmem:[%s1 + $0x188] sm:$0xf]
      %v1510 = vld [vmem:[%s1 + $0x18c] sm:$0xf]
      %v1511 = vld [vmem:[%s1 + $0x190] sm:$0xf]
      %v1512 = vld [vmem:[%s1 + $0x194] sm:$0xf]
      %v1513 = vld [vmem:[%s1 + $0x198] sm:$0xf]
      %v1514 = vld [vmem:[%s1 + $0x19c] sm:$0xf]
      %v1515 = vld [vmem:[%s1 + $0x1a0] sm:$0xf]
      %v1516 = vld [vmem:[%s1 + $0x1a4] sm:$0xf]
      %v1517 = vld [vmem:[%s1 + $0x1a8] sm:$0xf]
      %v1518 = vld [vmem:[%s1 + $0x1ac] sm:$0xf]
      %v1519 = vld [vmem:[%s1 + $0x1b0] sm:$0xf]
      %v1520 = vld [vmem:[%s1 + $0x1b4] sm:$0xf]
      %v1521 = vld [vmem:[%s1 + $0x1b8] sm:$0xf]
      %v1522 = vld [vmem:[%s1 + $0x1bc] sm:$0xf]
      %v1523 = vld [vmem:[%s1 + $0x1c0] sm:$0xf]
      %v1524 = vld [vmem:[%s1 + $0x1c4] sm:$0xf]
      %v1525 = vld [vmem:[%s1 + $0x1c8] sm:$0xf]
      %v1526 = vld [vmem:[%s1 + $0x1cc] sm:$0xf]
      %v1527 = vld [vmem:[%s1 + $0x1d0] sm:$0xf]
      %v1528 = vld [vmem:[%s1 + $0x1d4] sm:$0xf]
      %v1529 = vld [vmem:[%s1 + $0x1d8] sm:$0xf]
      %v1530 = vld [vmem:[%s1 + $0x1dc] sm:$0xf]
      %v1531 = vld [vmem:[%s1 + $0x1e0] sm:$0xf]
      %v1532 = vld [vmem:[%s1 + $0x1e4] sm:$0xf]
      %v1533 = vld [vmem:[%s1 + $0x1e8] sm:$0xf]
      %v1534 = vld [vmem:[%s1 + $0x1ec] sm:$0xf]
      %v1535 = vld [vmem:[%s1 + $0x1f0] sm:$0xf]
      %v1536 = vld [vmem:[%s1 + $0x1f4] sm:$0xf]
      %v1537 = vld [vmem:[%s1 + $0x1f8] sm:$0xf]
      %v1538 = vld [vmem:[%s1 + $0x1fc] sm:$0xf]
      %v1539 = vld [vmem:[%s1 + $0x200] sm:$0xf]
      %v1540 = vld [vmem:[%s1 + $0x204] sm:$0xf]
      %v1541 = vld [vmem:[%s1 + $0x208] sm:$0xf]
      %v1542 = vld [vmem:[%s1 + $0x20c] sm:$0xf]
      %v1543 = vld [vmem:[%s1 + $0x210] sm:$0xf]
      %v1544 = vld [vmem:[%s1 + $0x214] sm:$0xf]
      %v1545 = vld [vmem:[%s1 + $0x218] sm:$0xf]
      %v1546 = vld [vmem:[%s1 + $0x21c] sm:$0xf]
      %v1547 = vld [vmem:[%s1 + $0x220] sm:$0xf]
      %v1548 = vld [vmem:[%s1 + $0x224] sm:$0xf]
      %v1549 = vld [vmem:[%s1 + $0x228] sm:$0xf]
      %v1550 = vld [vmem:[%s1 + $0x22c] sm:$0xf]
      %v1551 = vld [vmem:[%s1 + $0x230] sm:$0xf]
      %v1552 = vld [vmem:[%s1 + $0x234] sm:$0xf]
      %v1553 = vld [vmem:[%s1 + $0x238] sm:$0xf]
      %v1554 = vld [vmem:[%s1 + $0x23c] sm:$0xf]
      %v1715 = vunpack.c.l.b16 %v1251
      %v1716 = vunpack.c.h.b16 %v1251
      %v1717 = vunpack.c.l.b16 %v1252
      %v1718 = vunpack.c.h.b16 %v1252
      %v1719 = vunpack.c.l.b16 %v1253
      %v1720 = vunpack.c.h.b16 %v1253
      %v1721 = vunpack.c.l.b16 %v1254
      %v1722 = vunpack.c.h.b16 %v1254
      %v1723 = vunpack.c.l.b16 %v1255
      %v1724 = vunpack.c.l.b16 %v1256
      %v1725 = vunpack.c.h.b16 %v1256
      %v1726 = vunpack.c.l.b16 %v1257
      %v1727 = vunpack.c.h.b16 %v1257
      %v1728 = vunpack.c.l.b16 %v1258
      %v1729 = vunpack.c.h.b16 %v1258
      %v1730 = vunpack.c.l.b16 %v1259
      %v1731 = vunpack.c.h.b16 %v1259
      %v1732 = vunpack.c.l.b16 %v1260
      %v1733 = vunpack.c.l.b16 %v1261
      %v1734 = vunpack.c.h.b16 %v1261
      %v1735 = vunpack.c.l.b16 %v1262
      %v1736 = vunpack.c.h.b16 %v1262
      %v1737 = vunpack.c.l.b16 %v1263
      %v1738 = vunpack.c.h.b16 %v1263
      %v1739 = vunpack.c.l.b16 %v1264
      %v1740 = vunpack.c.h.b16 %v1264
      %v1741 = vunpack.c.l.b16 %v1265
      %v1742 = vunpack.c.l.b16 %v1266
      %v1743 = vunpack.c.h.b16 %v1266
      %v1744 = vunpack.c.l.b16 %v1267
      %v1745 = vunpack.c.h.b16 %v1267
      %v1746 = vunpack.c.l.b16 %v1268
      %v1747 = vunpack.c.h.b16 %v1268
      %v1748 = vunpack.c.l.b16 %v1269
      %v1749 = vunpack.c.h.b16 %v1269
      %v1750 = vunpack.c.l.b16 %v1270
      %v1751 = vunpack.c.l.b16 %v1271
      %v1752 = vunpack.c.h.b16 %v1271
      %v1753 = vunpack.c.l.b16 %v1272
      %v1754 = vunpack.c.h.b16 %v1272
      %v1755 = vunpack.c.l.b16 %v1273
      %v1756 = vunpack.c.h.b16 %v1273
      %v1757 = vunpack.c.l.b16 %v1274
      %v1758 = vunpack.c.h.b16 %v1274
      %v1759 = vunpack.c.l.b16 %v1275
      %v1760 = vunpack.c.l.b16 %v1276
      %v1761 = vunpack.c.h.b16 %v1276
      %v1762 = vunpack.c.l.b16 %v1277
      %v1763 = vunpack.c.h.b16 %v1277
      %v1764 = vunpack.c.l.b16 %v1278
      %v1765 = vunpack.c.h.b16 %v1278
      %v1766 = vunpack.c.l.b16 %v1279
      %v1767 = vunpack.c.h.b16 %v1279
      %v1768 = vunpack.c.l.b16 %v1280
      %v1769 = vunpack.c.l.b16 %v1281
      %v1770 = vunpack.c.h.b16 %v1281
      %v1771 = vunpack.c.l.b16 %v1282
      %v1772 = vunpack.c.h.b16 %v1282
      %v1773 = vunpack.c.l.b16 %v1283
      %v1774 = vunpack.c.h.b16 %v1283
      %v1775 = vunpack.c.l.b16 %v1284
      %v1776 = vunpack.c.h.b16 %v1284
      %v1777 = vunpack.c.l.b16 %v1285
      %v1778 = vunpack.c.l.b16 %v1286
      %v1779 = vunpack.c.h.b16 %v1286
      %v1780 = vunpack.c.l.b16 %v1287
      %v1781 = vunpack.c.h.b16 %v1287
      %v1782 = vunpack.c.l.b16 %v1288
      %v1783 = vunpack.c.h.b16 %v1288
      %v1784 = vunpack.c.l.b16 %v1289
      %v1785 = vunpack.c.h.b16 %v1289
      %v1786 = vunpack.c.l.b16 %v1290
      %v1787 = vunpack.c.l.b16 %v1291
      %v1788 = vunpack.c.h.b16 %v1291
      %v1789 = vunpack.c.l.b16 %v1292
      %v1790 = vunpack.c.h.b16 %v1292
      %v1791 = vunpack.c.l.b16 %v1293
      %v1792 = vunpack.c.h.b16 %v1293
      %v1793 = vunpack.c.l.b16 %v1294
      %v1794 = vunpack.c.h.b16 %v1294
      %v1795 = vunpack.c.l.b16 %v1295
      %v1796 = vunpack.c.l.b16 %v1296
      %v1797 = vunpack.c.h.b16 %v1296
      %v1798 = vunpack.c.l.b16 %v1297
      %v1799 = vunpack.c.h.b16 %v1297
      %v1800 = vunpack.c.l.b16 %v1298
      %v1801 = vunpack.c.h.b16 %v1298
      %v1802 = vunpack.c.l.b16 %v1299
      %v1803 = vunpack.c.h.b16 %v1299
      %v1804 = vunpack.c.l.b16 %v1300
      %v1805 = vunpack.c.l.b16 %v1301
      %v1806 = vunpack.c.h.b16 %v1301
      %v1807 = vunpack.c.l.b16 %v1302
      %v1808 = vunpack.c.h.b16 %v1302
      %v1809 = vunpack.c.l.b16 %v1303
      %v1810 = vunpack.c.h.b16 %v1303
      %v1811 = vunpack.c.l.b16 %v1304
      %v1812 = vunpack.c.h.b16 %v1304
      %v1813 = vunpack.c.l.b16 %v1305
      %v1814 = vunpack.c.l.b16 %v1306
      %v1815 = vunpack.c.h.b16 %v1306
      %v1816 = vunpack.c.l.b16 %v1307
      %v1817 = vunpack.c.h.b16 %v1307
      %v1818 = vunpack.c.l.b16 %v1308
      %v1819 = vunpack.c.h.b16 %v1308
      %v1820 = vunpack.c.l.b16 %v1309
      %v1821 = vunpack.c.h.b16 %v1309
      %v1822 = vunpack.c.l.b16 %v1310
      %v1823 = vunpack.c.l.b16 %v1311
      %v1824 = vunpack.c.h.b16 %v1311
      %v1825 = vunpack.c.l.b16 %v1312
      %v1826 = vunpack.c.h.b16 %v1312
      %v1827 = vunpack.c.l.b16 %v1313
      %v1828 = vunpack.c.h.b16 %v1313
      %v1829 = vunpack.c.l.b16 %v1314
      %v1830 = vunpack.c.h.b16 %v1314
      %v1831 = vunpack.c.l.b16 %v1315
      %v1832 = vunpack.c.l.b16 %v1316
      %v1833 = vunpack.c.h.b16 %v1316
      %v1834 = vunpack.c.l.b16 %v1317
      %v1835 = vunpack.c.h.b16 %v1317
      %v1836 = vunpack.c.l.b16 %v1318
      %v1837 = vunpack.c.h.b16 %v1318
      %v1838 = vunpack.c.l.b16 %v1319
      %v1839 = vunpack.c.h.b16 %v1319
      %v1840 = vunpack.c.l.b16 %v1320
      %v1841 = vunpack.c.l.b16 %v1321
      %v1842 = vunpack.c.h.b16 %v1321
      %v1843 = vunpack.c.l.b16 %v1322
      %v1844 = vunpack.c.h.b16 %v1322
      %v1845 = vunpack.c.l.b16 %v1323
      %v1846 = vunpack.c.h.b16 %v1323
      %v1847 = vunpack.c.l.b16 %v1324
      %v1848 = vunpack.c.h.b16 %v1324
      %v1849 = vunpack.c.l.b16 %v1325
      %v1850 = vunpack.c.l.b16 %v1326
      %v1851 = vunpack.c.h.b16 %v1326
      %v1852 = vunpack.c.l.b16 %v1327
      %v1853 = vunpack.c.h.b16 %v1327
      %v1854 = vunpack.c.l.b16 %v1328
      %v1855 = vunpack.c.h.b16 %v1328
      %v1856 = vunpack.c.l.b16 %v1329
      %v1857 = vunpack.c.h.b16 %v1329
      %v1858 = vunpack.c.l.b16 %v1330
      %v1859 = vunpack.c.l.b16 %v1331
      %v1860 = vunpack.c.h.b16 %v1331
      %v1861 = vunpack.c.l.b16 %v1332
      %v1862 = vunpack.c.h.b16 %v1332
      %v1863 = vunpack.c.l.b16 %v1333
      %v1864 = vunpack.c.h.b16 %v1333
      %v1865 = vunpack.c.l.b16 %v1334
      %v1866 = vunpack.c.h.b16 %v1334
      %v1867 = vunpack.c.l.b16 %v1335
      %v1868 = vunpack.c.l.b16 %v1336
      %v1869 = vunpack.c.h.b16 %v1336
      %v1870 = vunpack.c.l.b16 %v1337
      %v1871 = vunpack.c.h.b16 %v1337
      %v1872 = vunpack.c.l.b16 %v1338
      %v1873 = vunpack.c.h.b16 %v1338
      %v1874 = vunpack.c.l.b16 %v1339
      %v1875 = vunpack.c.h.b16 %v1339
      %v1876 = vunpack.c.l.b16 %v1340
      %v1877 = vunpack.c.l.b16 %v1341
      %v1878 = vunpack.c.h.b16 %v1341
      %v1879 = vunpack.c.l.b16 %v1342
      %v1880 = vunpack.c.h.b16 %v1342
      %v1881 = vunpack.c.l.b16 %v1343
      %v1882 = vunpack.c.h.b16 %v1343
      %v1883 = vunpack.c.l.b16 %v1344
      %v1884 = vunpack.c.h.b16 %v1344
      %v1885 = vunpack.c.l.b16 %v1345
      %v1886 = vunpack.c.l.b16 %v1346
      %v1887 = vunpack.c.h.b16 %v1346
      %v1888 = vunpack.c.l.b16 %v1347
      %v1889 = vunpack.c.h.b16 %v1347
      %v1890 = vunpack.c.l.b16 %v1348
      %v1891 = vunpack.c.h.b16 %v1348
      %v1892 = vunpack.c.l.b16 %v1349
      %v1893 = vunpack.c.h.b16 %v1349
      %v1894 = vunpack.c.l.b16 %v1350
      %v1895 = vunpack.c.l.b16 %v1351
      %v1896 = vunpack.c.h.b16 %v1351
      %v1897 = vunpack.c.l.b16 %v1352
      %v1898 = vunpack.c.h.b16 %v1352
      %v1899 = vunpack.c.l.b16 %v1353
      %v1900 = vunpack.c.h.b16 %v1353
      %v1901 = vunpack.c.l.b16 %v1354
      %v1902 = vunpack.c.h.b16 %v1354
      %v1903 = vunpack.c.l.b16 %v1355
      %v1904 = vunpack.c.l.b16 %v1356
      %v1905 = vunpack.c.h.b16 %v1356
      %v1906 = vunpack.c.l.b16 %v1357
      %v1907 = vunpack.c.h.b16 %v1357
      %v1908 = vunpack.c.l.b16 %v1358
      %v1909 = vunpack.c.h.b16 %v1358
      %v1910 = vunpack.c.l.b16 %v1359
      %v1911 = vunpack.c.h.b16 %v1359
      %v1912 = vunpack.c.l.b16 %v1360
      %v1913 = vunpack.c.l.b16 %v1361
      %v1914 = vunpack.c.h.b16 %v1361
      %v1915 = vunpack.c.l.b16 %v1362
      %v1916 = vunpack.c.h.b16 %v1362
      %v1917 = vunpack.c.l.b16 %v1363
      %v1918 = vunpack.c.h.b16 %v1363
      %v1919 = vunpack.c.l.b16 %v1364
      %v1920 = vunpack.c.h.b16 %v1364
      %v1921 = vunpack.c.l.b16 %v1365
      %v1922 = vunpack.c.l.b16 %v1366
      %v1923 = vunpack.c.h.b16 %v1366
      %v1924 = vunpack.c.l.b16 %v1367
      %v1925 = vunpack.c.h.b16 %v1367
      %v1926 = vunpack.c.l.b16 %v1368
      %v1927 = vunpack.c.h.b16 %v1368
      %v1928 = vunpack.c.l.b16 %v1369
      %v1929 = vunpack.c.h.b16 %v1369
      %v1930 = vunpack.c.l.b16 %v1370
      %v1931 = vunpack.c.l.b16 %v1371
      %v1932 = vunpack.c.h.b16 %v1371
      %v1933 = vunpack.c.l.b16 %v1372
      %v1934 = vunpack.c.h.b16 %v1372
      %v1935 = vunpack.c.l.b16 %v1373
      %v1936 = vunpack.c.h.b16 %v1373
      %v1937 = vunpack.c.l.b16 %v1374
      %v1938 = vunpack.c.h.b16 %v1374
      %v1939 = vunpack.c.l.b16 %v1375
      %v1940 = vunpack.c.l.b16 %v1376
      %v1941 = vunpack.c.h.b16 %v1376
      %v1942 = vunpack.c.l.b16 %v1377
      %v1943 = vunpack.c.h.b16 %v1377
      %v1944 = vunpack.c.l.b16 %v1378
      %v1945 = vunpack.c.h.b16 %v1378
      %v1946 = vunpack.c.l.b16 %v1379
      %v1947 = vunpack.c.h.b16 %v1379
      %v1948 = vunpack.c.l.b16 %v1380
      %v1949 = vunpack.c.l.b16 %v1381
      %v1950 = vunpack.c.h.b16 %v1381
      %v1951 = vunpack.c.l.b16 %v1382
      %v1952 = vunpack.c.h.b16 %v1382
      %v1953 = vunpack.c.l.b16 %v1383
      %v1954 = vunpack.c.h.b16 %v1383
      %v1955 = vunpack.c.l.b16 %v1384
      %v1956 = vunpack.c.h.b16 %v1384
      %v1957 = vunpack.c.l.b16 %v1385
      %v1958 = vunpack.c.l.b16 %v1386
      %v1959 = vunpack.c.h.b16 %v1386
      %v1960 = vunpack.c.l.b16 %v1387
      %v1961 = vunpack.c.h.b16 %v1387
      %v1962 = vunpack.c.l.b16 %v1388
      %v1963 = vunpack.c.h.b16 %v1388
      %v1964 = vunpack.c.l.b16 %v1389
      %v1965 = vunpack.c.h.b16 %v1389
      %v1966 = vunpack.c.l.b16 %v1390
      %v1967 = vunpack.c.l.b16 %v1391
      %v1968 = vunpack.c.h.b16 %v1391
      %v1969 = vunpack.c.l.b16 %v1392
      %v1970 = vunpack.c.h.b16 %v1392
      %v1971 = vunpack.c.l.b16 %v1393
      %v1972 = vunpack.c.h.b16 %v1393
      %v1973 = vunpack.c.l.b16 %v1394
      %v1974 = vunpack.c.h.b16 %v1394
      %v1975 = vunpack.c.l.b16 %v1395
      %v1976 = vunpack.c.l.b16 %v1396
      %v1977 = vunpack.c.h.b16 %v1396
      %v1978 = vunpack.c.l.b16 %v1397
      %v1979 = vunpack.c.h.b16 %v1397
      %v1980 = vunpack.c.l.b16 %v1398
      %v1981 = vunpack.c.h.b16 %v1398
      %v1982 = vunpack.c.l.b16 %v1399
      %v1983 = vunpack.c.h.b16 %v1399
      %v1984 = vunpack.c.l.b16 %v1400
      %v1985 = vunpack.c.l.b16 %v1401
      %v1986 = vunpack.c.h.b16 %v1401
      %v1987 = vunpack.c.l.b16 %v1402
      %v1988 = vunpack.c.h.b16 %v1402
      %v1989 = vunpack.c.l.b16 %v1403
      %v1990 = vunpack.c.h.b16 %v1403
      %v1991 = vunpack.c.l.b16 %v1404
      %v1992 = vunpack.c.h.b16 %v1404
      %v1993 = vunpack.c.l.b16 %v1405
      %v1994 = vunpack.c.l.b16 %v1406
      %v1995 = vunpack.c.h.b16 %v1406
      %v1996 = vunpack.c.l.b16 %v1407
      %v1997 = vunpack.c.h.b16 %v1407
      %v1998 = vunpack.c.l.b16 %v1408
      %v1999 = vunpack.c.h.b16 %v1408
      %v2000 = vunpack.c.l.b16 %v1409
      %v2001 = vunpack.c.h.b16 %v1409
      %v2002 = vunpack.c.l.b16 %v1410
      %v2003 = vpack.c.b16 %v1724, %v1715
      %v2004 = vpack.c.b16 %v1725, %v1716
      %v2005 = vpack.c.b16 %v1726, %v1717
      %v2006 = vpack.c.b16 %v1727, %v1718
      %v2007 = vpack.c.b16 %v1728, %v1719
      %v2008 = vpack.c.b16 %v1729, %v1720
      %v2009 = vpack.c.b16 %v1730, %v1721
      %v2010 = vpack.c.b16 %v1731, %v1722
      %v2011 = vpack.c.b16 %v1732, %v1723
      %v2012 = vpack.c.b16 %v1742, %v1733
      %v2013 = vpack.c.b16 %v1743, %v1734
      %v2014 = vpack.c.b16 %v1744, %v1735
      %v2015 = vpack.c.b16 %v1745, %v1736
      %v2016 = vpack.c.b16 %v1746, %v1737
      %v2017 = vpack.c.b16 %v1747, %v1738
      %v2018 = vpack.c.b16 %v1748, %v1739
      %v2019 = vpack.c.b16 %v1749, %v1740
      %v2020 = vpack.c.b16 %v1750, %v1741
      %v2021 = vpack.c.b16 %v1760, %v1751
      %v2022 = vpack.c.b16 %v1761, %v1752
      %v2023 = vpack.c.b16 %v1762, %v1753
      %v2024 = vpack.c.b16 %v1763, %v1754
      %v2025 = vpack.c.b16 %v1764, %v1755
      %v2026 = vpack.c.b16 %v1765, %v1756
      %v2027 = vpack.c.b16 %v1766, %v1757
      %v2028 = vpack.c.b16 %v1767, %v1758
      %v2029 = vpack.c.b16 %v1768, %v1759
      %v2030 = vpack.c.b16 %v1778, %v1769
      %v2031 = vpack.c.b16 %v1779, %v1770
      %v2032 = vpack.c.b16 %v1780, %v1771
      %v2033 = vpack.c.b16 %v1781, %v1772
      %v2034 = vpack.c.b16 %v1782, %v1773
      %v2035 = vpack.c.b16 %v1783, %v1774
      %v2036 = vpack.c.b16 %v1784, %v1775
      %v2037 = vpack.c.b16 %v1785, %v1776
      %v2038 = vpack.c.b16 %v1786, %v1777
      %v2039 = vpack.c.b16 %v1796, %v1787
      %v2040 = vpack.c.b16 %v1797, %v1788
      %v2041 = vpack.c.b16 %v1798, %v1789
      %v2042 = vpack.c.b16 %v1799, %v1790
      %v2043 = vpack.c.b16 %v1800, %v1791
      %v2044 = vpack.c.b16 %v1801, %v1792
      %v2045 = vpack.c.b16 %v1802, %v1793
      %v2046 = vpack.c.b16 %v1803, %v1794
      %v2047 = vpack.c.b16 %v1804, %v1795
      %v2048 = vpack.c.b16 %v1814, %v1805
      %v2049 = vpack.c.b16 %v1815, %v1806
      %v2050 = vpack.c.b16 %v1816, %v1807
      %v2051 = vpack.c.b16 %v1817, %v1808
      %v2052 = vpack.c.b16 %v1818, %v1809
      %v2053 = vpack.c.b16 %v1819, %v1810
      %v2054 = vpack.c.b16 %v1820, %v1811
      %v2055 = vpack.c.b16 %v1821, %v1812
      %v2056 = vpack.c.b16 %v1822, %v1813
      %v2057 = vpack.c.b16 %v1832, %v1823
      %v2058 = vpack.c.b16 %v1833, %v1824
      %v2059 = vpack.c.b16 %v1834, %v1825
      %v2060 = vpack.c.b16 %v1835, %v1826
      %v2061 = vpack.c.b16 %v1836, %v1827
      %v2062 = vpack.c.b16 %v1837, %v1828
      %v2063 = vpack.c.b16 %v1838, %v1829
      %v2064 = vpack.c.b16 %v1839, %v1830
      %v2065 = vpack.c.b16 %v1840, %v1831
      %v2066 = vpack.c.b16 %v1850, %v1841
      %v2067 = vpack.c.b16 %v1851, %v1842
      %v2068 = vpack.c.b16 %v1852, %v1843
      %v2069 = vpack.c.b16 %v1853, %v1844
      %v2070 = vpack.c.b16 %v1854, %v1845
      %v2071 = vpack.c.b16 %v1855, %v1846
      %v2072 = vpack.c.b16 %v1856, %v1847
      %v2073 = vpack.c.b16 %v1857, %v1848
      %v2074 = vpack.c.b16 %v1858, %v1849
      %v2075 = vpack.c.b16 %v1868, %v1859
      %v2076 = vpack.c.b16 %v1869, %v1860
      %v2077 = vpack.c.b16 %v1870, %v1861
      %v2078 = vpack.c.b16 %v1871, %v1862
      %v2079 = vpack.c.b16 %v1872, %v1863
      %v2080 = vpack.c.b16 %v1873, %v1864
      %v2081 = vpack.c.b16 %v1874, %v1865
      %v2082 = vpack.c.b16 %v1875, %v1866
      %v2083 = vpack.c.b16 %v1876, %v1867
      %v2084 = vpack.c.b16 %v1886, %v1877
      %v2085 = vpack.c.b16 %v1887, %v1878
      %v2086 = vpack.c.b16 %v1888, %v1879
      %v2087 = vpack.c.b16 %v1889, %v1880
      %v2088 = vpack.c.b16 %v1890, %v1881
      %v2089 = vpack.c.b16 %v1891, %v1882
      %v2090 = vpack.c.b16 %v1892, %v1883
      %v2091 = vpack.c.b16 %v1893, %v1884
      %v2092 = vpack.c.b16 %v1894, %v1885
      %v2093 = vpack.c.b16 %v1904, %v1895
      %v2094 = vpack.c.b16 %v1905, %v1896
      %v2095 = vpack.c.b16 %v1906, %v1897
      %v2096 = vpack.c.b16 %v1907, %v1898
      %v2097 = vpack.c.b16 %v1908, %v1899
      %v2098 = vpack.c.b16 %v1909, %v1900
      %v2099 = vpack.c.b16 %v1910, %v1901
      %v2100 = vpack.c.b16 %v1911, %v1902
      %v2101 = vpack.c.b16 %v1912, %v1903
      %v2102 = vpack.c.b16 %v1922, %v1913
      %v2103 = vpack.c.b16 %v1923, %v1914
      %v2104 = vpack.c.b16 %v1924, %v1915
      %v2105 = vpack.c.b16 %v1925, %v1916
      %v2106 = vpack.c.b16 %v1926, %v1917
      %v2107 = vpack.c.b16 %v1927, %v1918
      %v2108 = vpack.c.b16 %v1928, %v1919
      %v2109 = vpack.c.b16 %v1929, %v1920
      %v2110 = vpack.c.b16 %v1930, %v1921
      %v2111 = vpack.c.b16 %v1940, %v1931
      %v2112 = vpack.c.b16 %v1941, %v1932
      %v2113 = vpack.c.b16 %v1942, %v1933
      %v2114 = vpack.c.b16 %v1943, %v1934
      %v2115 = vpack.c.b16 %v1944, %v1935
      %v2116 = vpack.c.b16 %v1945, %v1936
      %v2117 = vpack.c.b16 %v1946, %v1937
      %v2118 = vpack.c.b16 %v1947, %v1938
      %v2119 = vpack.c.b16 %v1948, %v1939
      %v2120 = vpack.c.b16 %v1958, %v1949
      %v2121 = vpack.c.b16 %v1959, %v1950
      %v2122 = vpack.c.b16 %v1960, %v1951
      %v2123 = vpack.c.b16 %v1961, %v1952
      %v2124 = vpack.c.b16 %v1962, %v1953
      %v2125 = vpack.c.b16 %v1963, %v1954
      %v2126 = vpack.c.b16 %v1964, %v1955
      %v2127 = vpack.c.b16 %v1965, %v1956
      %v2128 = vpack.c.b16 %v1966, %v1957
      %v2129 = vpack.c.b16 %v1976, %v1967
      %v2130 = vpack.c.b16 %v1977, %v1968
      %v2131 = vpack.c.b16 %v1978, %v1969
      %v2132 = vpack.c.b16 %v1979, %v1970
      %v2133 = vpack.c.b16 %v1980, %v1971
      %v2134 = vpack.c.b16 %v1981, %v1972
      %v2135 = vpack.c.b16 %v1982, %v1973
      %v2136 = vpack.c.b16 %v1983, %v1974
      %v2137 = vpack.c.b16 %v1984, %v1975
      %v2138 = vpack.c.b16 %v1994, %v1985
      %v2139 = vpack.c.b16 %v1995, %v1986
      %v2140 = vpack.c.b16 %v1996, %v1987
      %v2141 = vpack.c.b16 %v1997, %v1988
      %v2142 = vpack.c.b16 %v1998, %v1989
      %v2143 = vpack.c.b16 %v1999, %v1990
      %v2144 = vpack.c.b16 %v2000, %v1991
      %v2145 = vpack.c.b16 %v2001, %v1992
      %v2146 = vpack.c.b16 %v2002, %v1993
      %v2435 = vunpack.c.l.b16 %v1411
      %v2436 = vunpack.c.l.b16 %v1412
      %v2437 = vunpack.c.l.b16 %v1413
      %v2438 = vunpack.c.l.b16 %v1414
      %v2439 = vunpack.c.l.b16 %v1415
      %v2440 = vunpack.c.l.b16 %v1416
      %v2441 = vunpack.c.l.b16 %v1417
      %v2442 = vunpack.c.l.b16 %v1418
      %v2443 = vunpack.c.l.b16 %v1419
      %v2444 = vunpack.c.l.b16 %v1420
      %v2445 = vunpack.c.l.b16 %v1421
      %v2446 = vunpack.c.l.b16 %v1422
      %v2447 = vunpack.c.l.b16 %v1423
      %v2448 = vunpack.c.l.b16 %v1424
      %v2449 = vunpack.c.l.b16 %v1425
      %v2450 = vunpack.c.l.b16 %v1426
      %v2451 = vunpack.c.l.b16 %v1427
      %v2452 = vunpack.c.l.b16 %v1428
      %v2453 = vunpack.c.l.b16 %v1429
      %v2454 = vunpack.c.l.b16 %v1430
      %v2455 = vunpack.c.l.b16 %v1431
      %v2456 = vunpack.c.l.b16 %v1432
      %v2457 = vunpack.c.l.b16 %v1433
      %v2458 = vunpack.c.l.b16 %v1434
      %v2459 = vunpack.c.l.b16 %v1435
      %v2460 = vunpack.c.l.b16 %v1436
      %v2461 = vunpack.c.l.b16 %v1437
      %v2462 = vunpack.c.l.b16 %v1438
      %v2463 = vunpack.c.l.b16 %v1439
      %v2464 = vunpack.c.l.b16 %v1440
      %v2465 = vunpack.c.l.b16 %v1441
      %v2466 = vunpack.c.l.b16 %v1442
      %v2467 = vunpack.c.l.b16 %v1443
      %v2468 = vunpack.c.l.b16 %v1444
      %v2469 = vunpack.c.l.b16 %v1445
      %v2470 = vunpack.c.l.b16 %v1446
      %v2471 = vunpack.c.l.b16 %v1447
      %v2472 = vunpack.c.l.b16 %v1448
      %v2473 = vunpack.c.l.b16 %v1449
      %v2474 = vunpack.c.l.b16 %v1450
      %v2475 = vunpack.c.l.b16 %v1451
      %v2476 = vunpack.c.l.b16 %v1452
      %v2477 = vunpack.c.l.b16 %v1453
      %v2478 = vunpack.c.l.b16 %v1454
      %v2479 = vunpack.c.l.b16 %v1455
      %v2480 = vunpack.c.l.b16 %v1456
      %v2481 = vunpack.c.l.b16 %v1457
      %v2482 = vunpack.c.l.b16 %v1458
      %v2483 = vunpack.c.l.b16 %v1459
      %v2484 = vunpack.c.l.b16 %v1460
      %v2485 = vunpack.c.l.b16 %v1461
      %v2486 = vunpack.c.l.b16 %v1462
      %v2487 = vunpack.c.l.b16 %v1463
      %v2488 = vunpack.c.l.b16 %v1464
      %v2489 = vunpack.c.l.b16 %v1465
      %v2490 = vunpack.c.l.b16 %v1466
      %v2491 = vunpack.c.l.b16 %v1467
      %v2492 = vunpack.c.l.b16 %v1468
      %v2493 = vunpack.c.l.b16 %v1469
      %v2494 = vunpack.c.l.b16 %v1470
      %v2495 = vunpack.c.l.b16 %v1471
      %v2496 = vunpack.c.l.b16 %v1472
      %v2497 = vunpack.c.l.b16 %v1473
      %v2498 = vunpack.c.l.b16 %v1474
      %v2499 = vunpack.c.l.b16 %v1475
      %v2500 = vunpack.c.l.b16 %v1476
      %v2501 = vunpack.c.l.b16 %v1477
      %v2502 = vunpack.c.l.b16 %v1478
      %v2503 = vunpack.c.l.b16 %v1479
      %v2504 = vunpack.c.l.b16 %v1480
      %v2505 = vunpack.c.l.b16 %v1481
      %v2506 = vunpack.c.l.b16 %v1482
      %v2507 = vunpack.c.l.b16 %v1483
      %v2508 = vunpack.c.l.b16 %v1484
      %v2509 = vunpack.c.l.b16 %v1485
      %v2510 = vunpack.c.l.b16 %v1486
      %v2511 = vunpack.c.l.b16 %v1487
      %v2512 = vunpack.c.l.b16 %v1488
      %v2513 = vunpack.c.l.b16 %v1489
      %v2514 = vunpack.c.l.b16 %v1490
      %v2515 = vunpack.c.l.b16 %v1491
      %v2516 = vunpack.c.l.b16 %v1492
      %v2517 = vunpack.c.l.b16 %v1493
      %v2518 = vunpack.c.l.b16 %v1494
      %v2519 = vunpack.c.l.b16 %v1495
      %v2520 = vunpack.c.l.b16 %v1496
      %v2521 = vunpack.c.l.b16 %v1497
      %v2522 = vunpack.c.l.b16 %v1498
      %v2523 = vunpack.c.l.b16 %v1499
      %v2524 = vunpack.c.l.b16 %v1500
      %v2525 = vunpack.c.l.b16 %v1501
      %v2526 = vunpack.c.l.b16 %v1502
      %v2527 = vunpack.c.l.b16 %v1503
      %v2528 = vunpack.c.l.b16 %v1504
      %v2529 = vunpack.c.l.b16 %v1505
      %v2530 = vunpack.c.l.b16 %v1506
      %v2531 = vunpack.c.l.b16 %v1507
      %v2532 = vunpack.c.l.b16 %v1508
      %v2533 = vunpack.c.l.b16 %v1509
      %v2534 = vunpack.c.l.b16 %v1510
      %v2535 = vunpack.c.l.b16 %v1511
      %v2536 = vunpack.c.l.b16 %v1512
      %v2537 = vunpack.c.l.b16 %v1513
      %v2538 = vunpack.c.l.b16 %v1514
      %v2539 = vunpack.c.l.b16 %v1515
      %v2540 = vunpack.c.l.b16 %v1516
      %v2541 = vunpack.c.l.b16 %v1517
      %v2542 = vunpack.c.l.b16 %v1518
      %v2543 = vunpack.c.l.b16 %v1519
      %v2544 = vunpack.c.l.b16 %v1520
      %v2545 = vunpack.c.l.b16 %v1521
      %v2546 = vunpack.c.l.b16 %v1522
      %v2547 = vunpack.c.l.b16 %v1523
      %v2548 = vunpack.c.l.b16 %v1524
      %v2549 = vunpack.c.l.b16 %v1525
      %v2550 = vunpack.c.l.b16 %v1526
      %v2551 = vunpack.c.l.b16 %v1527
      %v2552 = vunpack.c.l.b16 %v1528
      %v2553 = vunpack.c.l.b16 %v1529
      %v2554 = vunpack.c.l.b16 %v1530
      %v2555 = vunpack.c.l.b16 %v1531
      %v2556 = vunpack.c.l.b16 %v1532
      %v2557 = vunpack.c.l.b16 %v1533
      %v2558 = vunpack.c.l.b16 %v1534
      %v2559 = vunpack.c.l.b16 %v1535
      %v2560 = vunpack.c.l.b16 %v1536
      %v2561 = vunpack.c.l.b16 %v1537
      %v2562 = vunpack.c.l.b16 %v1538
      %v2563 = vunpack.c.l.b16 %v1539
      %v2564 = vunpack.c.l.b16 %v1540
      %v2565 = vunpack.c.l.b16 %v1541
      %v2566 = vunpack.c.l.b16 %v1542
      %v2567 = vunpack.c.l.b16 %v1543
      %v2568 = vunpack.c.l.b16 %v1544
      %v2569 = vunpack.c.l.b16 %v1545
      %v2570 = vunpack.c.l.b16 %v1546
      %v2571 = vunpack.c.l.b16 %v1547
      %v2572 = vunpack.c.l.b16 %v1548
      %v2573 = vunpack.c.l.b16 %v1549
      %v2574 = vunpack.c.l.b16 %v1550
      %v2575 = vunpack.c.l.b16 %v1551
      %v2576 = vunpack.c.l.b16 %v1552
      %v2577 = vunpack.c.l.b16 %v1553
      %v2578 = vunpack.c.l.b16 %v1554
      %v2579 = vpack.c.b16 %v2436, %v2435
      %v2580 = vpack.c.b16 %v2438, %v2437
      %v2581 = vpack.c.b16 %v2440, %v2439
      %v2582 = vpack.c.b16 %v2442, %v2441
      %v2583 = vpack.c.b16 %v2444, %v2443
      %v2584 = vpack.c.b16 %v2446, %v2445
      %v2585 = vpack.c.b16 %v2448, %v2447
      %v2586 = vpack.c.b16 %v2450, %v2449
      %v2587 = vpack.c.b16 %v2452, %v2451
      %v2588 = vpack.c.b16 %v2454, %v2453
      %v2589 = vpack.c.b16 %v2456, %v2455
      %v2590 = vpack.c.b16 %v2458, %v2457
      %v2591 = vpack.c.b16 %v2460, %v2459
      %v2592 = vpack.c.b16 %v2462, %v2461
      %v2593 = vpack.c.b16 %v2464, %v2463
      %v2594 = vpack.c.b16 %v2466, %v2465
      %v2595 = vpack.c.b16 %v2468, %v2467
      %v2596 = vpack.c.b16 %v2470, %v2469
      %v2597 = vpack.c.b16 %v2472, %v2471
      %v2598 = vpack.c.b16 %v2474, %v2473
      %v2599 = vpack.c.b16 %v2476, %v2475
      %v2600 = vpack.c.b16 %v2478, %v2477
      %v2601 = vpack.c.b16 %v2480, %v2479
      %v2602 = vpack.c.b16 %v2482, %v2481
      %v2603 = vpack.c.b16 %v2484, %v2483
      %v2604 = vpack.c.b16 %v2486, %v2485
      %v2605 = vpack.c.b16 %v2488, %v2487
      %v2606 = vpack.c.b16 %v2490, %v2489
      %v2607 = vpack.c.b16 %v2492, %v2491
      %v2608 = vpack.c.b16 %v2494, %v2493
      %v2609 = vpack.c.b16 %v2496, %v2495
      %v2610 = vpack.c.b16 %v2498, %v2497
      %v2611 = vpack.c.b16 %v2500, %v2499
      %v2612 = vpack.c.b16 %v2502, %v2501
      %v2613 = vpack.c.b16 %v2504, %v2503
      %v2614 = vpack.c.b16 %v2506, %v2505
      %v2615 = vpack.c.b16 %v2508, %v2507
      %v2616 = vpack.c.b16 %v2510, %v2509
      %v2617 = vpack.c.b16 %v2512, %v2511
      %v2618 = vpack.c.b16 %v2514, %v2513
      %v2619 = vpack.c.b16 %v2516, %v2515
      %v2620 = vpack.c.b16 %v2518, %v2517
      %v2621 = vpack.c.b16 %v2520, %v2519
      %v2622 = vpack.c.b16 %v2522, %v2521
      %v2623 = vpack.c.b16 %v2524, %v2523
      %v2624 = vpack.c.b16 %v2526, %v2525
      %v2625 = vpack.c.b16 %v2528, %v2527
      %v2626 = vpack.c.b16 %v2530, %v2529
      %v2627 = vpack.c.b16 %v2532, %v2531
      %v2628 = vpack.c.b16 %v2534, %v2533
      %v2629 = vpack.c.b16 %v2536, %v2535
      %v2630 = vpack.c.b16 %v2538, %v2537
      %v2631 = vpack.c.b16 %v2540, %v2539
      %v2632 = vpack.c.b16 %v2542, %v2541
      %v2633 = vpack.c.b16 %v2544, %v2543
      %v2634 = vpack.c.b16 %v2546, %v2545
      %v2635 = vpack.c.b16 %v2548, %v2547
      %v2636 = vpack.c.b16 %v2550, %v2549
      %v2637 = vpack.c.b16 %v2552, %v2551
      %v2638 = vpack.c.b16 %v2554, %v2553
      %v2639 = vpack.c.b16 %v2556, %v2555
      %v2640 = vpack.c.b16 %v2558, %v2557
      %v2641 = vpack.c.b16 %v2560, %v2559
      %v2642 = vpack.c.b16 %v2562, %v2561
      %v2643 = vpack.c.b16 %v2564, %v2563
      %v2644 = vpack.c.b16 %v2566, %v2565
      %v2645 = vpack.c.b16 %v2568, %v2567
      %v2646 = vpack.c.b16 %v2570, %v2569
      %v2647 = vpack.c.b16 %v2572, %v2571
      %v2648 = vpack.c.b16 %v2574, %v2573
      %v2649 = vpack.c.b16 %v2576, %v2575
      %v2650 = vpack.c.b16 %v2578, %v2577
      %2723 = vmatpush.bf16.msra.mxu0 %v2586
      %2724 = vmatpush.bf16.msra.mxu0 %v2585
      %2725 = vmatpush.bf16.msra.mxu0 %v2584
      %2726 = vmatpush.bf16.msra.mxu0 %v2583
      %2727 = vmatpush.bf16.msra.mxu0 %v2582
      %2728 = vmatpush.bf16.msra.mxu0 %v2581
      %2729 = vmatpush.bf16.msra.mxu0 %v2580
      %2730 = vmatpush.bf16.msra.mxu0 %v2579
      %2731 = vmatmul.bf16.gmra.mxu0 %v2003
      %v2732 = vpop.f32.mrf.mxu0
      %v2733 = vadd.f32 0.0, %v2732
      %v2734 = vpop.f32.mrf.mxu0
      %v2735 = vadd.f32 0.0, %v2734
      %2736 = vmatmul.bf16.gmra.mxu0 %v2012
      %v2737 = vpop.f32.mrf.mxu0
      %v2738 = vadd.f32 0.0, %v2737
      %v2739 = vpop.f32.mrf.mxu0
      %v2740 = vadd.f32 0.0, %v2739
      %2741 = vmatmul.bf16.gmra.mxu0 %v2021
      %v2742 = vpop.f32.mrf.mxu0
      %v2743 = vadd.f32 0.0, %v2742
      %v2744 = vpop.f32.mrf.mxu0
      %v2745 = vadd.f32 0.0, %v2744
      %2746 = vmatmul.bf16.gmra.mxu0 %v2030
      %v2747 = vpop.f32.mrf.mxu0
      %v2748 = vadd.f32 0.0, %v2747
      %v2749 = vpop.f32.mrf.mxu0
      %v2750 = vadd.f32 0.0, %v2749
      %2751 = vmatmul.bf16.gmra.mxu0 %v2039
      %v2752 = vpop.f32.mrf.mxu0
      %v2753 = vadd.f32 0.0, %v2752
      %v2754 = vpop.f32.mrf.mxu0
      %v2755 = vadd.f32 0.0, %v2754
      %2756 = vmatmul.bf16.gmra.mxu0 %v2048
      %v2757 = vpop.f32.mrf.mxu0
      %v2758 = vadd.f32 0.0, %v2757
      %v2759 = vpop.f32.mrf.mxu0
      %v2760 = vadd.f32 0.0, %v2759
      %2761 = vmatmul.bf16.gmra.mxu0 %v2057
      %v2762 = vpop.f32.mrf.mxu0
      %v2763 = vadd.f32 0.0, %v2762
      %v2764 = vpop.f32.mrf.mxu0
      %v2765 = vadd.f32 0.0, %v2764
      %2766 = vmatmul.bf16.gmra.mxu0 %v2066
      %v2767 = vpop.f32.mrf.mxu0
      %v2768 = vadd.f32 0.0, %v2767
      %v2769 = vpop.f32.mrf.mxu0
      %v2770 = vadd.f32 0.0, %v2769
      %2771 = vmatmul.bf16.gmra.mxu0 %v2075
      %v2772 = vpop.f32.mrf.mxu0
      %v2773 = vadd.f32 0.0, %v2772
      %v2774 = vpop.f32.mrf.mxu0
      %v2775 = vadd.f32 0.0, %v2774
      %2776 = vmatmul.bf16.gmra.mxu0 %v2084
      %v2777 = vpop.f32.mrf.mxu0
      %v2778 = vadd.f32 0.0, %v2777
      %v2779 = vpop.f32.mrf.mxu0
      %v2780 = vadd.f32 0.0, %v2779
      %2781 = vmatmul.bf16.gmra.mxu0 %v2093
      %v2782 = vpop.f32.mrf.mxu0
      %v2783 = vadd.f32 0.0, %v2782
      %v2784 = vpop.f32.mrf.mxu0
      %v2785 = vadd.f32 0.0, %v2784
      %2786 = vmatmul.bf16.gmra.mxu0 %v2102
      %v2787 = vpop.f32.mrf.mxu0
      %v2788 = vadd.f32 0.0, %v2787
      %v2789 = vpop.f32.mrf.mxu0
      %v2790 = vadd.f32 0.0, %v2789
      %2791 = vmatmul.bf16.gmra.mxu0 %v2111
      %v2792 = vpop.f32.mrf.mxu0
      %v2793 = vadd.f32 0.0, %v2792
      %v2794 = vpop.f32.mrf.mxu0
      %v2795 = vadd.f32 0.0, %v2794
      %2796 = vmatmul.bf16.gmra.mxu0 %v2120
      %v2797 = vpop.f32.mrf.mxu0
      %v2798 = vadd.f32 0.0, %v2797
      %v2799 = vpop.f32.mrf.mxu0
      %v2800 = vadd.f32 0.0, %v2799
      %2801 = vmatmul.bf16.gmra.mxu0 %v2129
      %v2802 = vpop.f32.mrf.mxu0
      %v2803 = vadd.f32 0.0, %v2802
      %v2804 = vpop.f32.mrf.mxu0
      %v2805 = vadd.f32 0.0, %v2804
      %2806 = vmatmul.bf16.gmra.mxu0 %v2138
      %v2807 = vpop.f32.mrf.mxu0
      %v2808 = vadd.f32 0.0, %v2807
      %v2809 = vpop.f32.mrf.mxu0
      %v2810 = vadd.f32 0.0, %v2809
      %2811 = vdwg.mxu0
      %2812 = vmatpush.bf16.msra.mxu0 %v2594
      %2813 = vmatpush.bf16.msra.mxu0 %v2593
      %2814 = vmatpush.bf16.msra.mxu0 %v2592
      %2815 = vmatpush.bf16.msra.mxu0 %v2591
      %2816 = vmatpush.bf16.msra.mxu0 %v2590
      %2817 = vmatpush.bf16.msra.mxu0 %v2589
      %2818 = vmatpush.bf16.msra.mxu0 %v2588
      %2819 = vmatpush.bf16.msra.mxu0 %v2587
      %2820 = vmatmul.bf16.gmra.mxu0 %v2004
      %v2821 = vpop.f32.mrf.mxu0
      %v2822 = vadd.f32 %v2733, %v2821
      %v2823 = vpop.f32.mrf.mxu0
      %v2824 = vadd.f32 %v2735, %v2823
      %2825 = vmatmul.bf16.gmra.mxu0 %v2013
      %v2826 = vpop.f32.mrf.mxu0
      %v2827 = vadd.f32 %v2738, %v2826
      %v2828 = vpop.f32.mrf.mxu0
      %v2829 = vadd.f32 %v2740, %v2828
      %2830 = vmatmul.bf16.gmra.mxu0 %v2022
      %v2831 = vpop.f32.mrf.mxu0
      %v2832 = vadd.f32 %v2743, %v2831
      %v2833 = vpop.f32.mrf.mxu0
      %v2834 = vadd.f32 %v2745, %v2833
      %2835 = vmatmul.bf16.gmra.mxu0 %v2031
      %v2836 = vpop.f32.mrf.mxu0
      %v2837 = vadd.f32 %v2748, %v2836
      %v2838 = vpop.f32.mrf.mxu0
      %v2839 = vadd.f32 %v2750, %v2838
      %2840 = vmatmul.bf16.gmra.mxu0 %v2040
      %v2841 = vpop.f32.mrf.mxu0
      %v2842 = vadd.f32 %v2753, %v2841
      %v2843 = vpop.f32.mrf.mxu0
      %v2844 = vadd.f32 %v2755, %v2843
      %2845 = vmatmul.bf16.gmra.mxu0 %v2049
      %v2846 = vpop.f32.mrf.mxu0
      %v2847 = vadd.f32 %v2758, %v2846
      %v2848 = vpop.f32.mrf.mxu0
      %v2849 = vadd.f32 %v2760, %v2848
      %2850 = vmatmul.bf16.gmra.mxu0 %v2058
      %v2851 = vpop.f32.mrf.mxu0
      %v2852 = vadd.f32 %v2763, %v2851
      %v2853 = vpop.f32.mrf.mxu0
      %v2854 = vadd.f32 %v2765, %v2853
      %2855 = vmatmul.bf16.gmra.mxu0 %v2067
      %v2856 = vpop.f32.mrf.mxu0
      %v2857 = vadd.f32 %v2768, %v2856
      %v2858 = vpop.f32.mrf.mxu0
      %v2859 = vadd.f32 %v2770, %v2858
      %2860 = vmatmul.bf16.gmra.mxu0 %v2076
      %v2861 = vpop.f32.mrf.mxu0
      %v2862 = vadd.f32 %v2773, %v2861
      %v2863 = vpop.f32.mrf.mxu0
      %v2864 = vadd.f32 %v2775, %v2863
      %2865 = vmatmul.bf16.gmra.mxu0 %v2085
      %v2866 = vpop.f32.mrf.mxu0
      %v2867 = vadd.f32 %v2778, %v2866
      %v2868 = vpop.f32.mrf.mxu0
      %v2869 = vadd.f32 %v2780, %v2868
      %2870 = vmatmul.bf16.gmra.mxu0 %v2094
      %v2871 = vpop.f32.mrf.mxu0
      %v2872 = vadd.f32 %v2783, %v2871
      %v2873 = vpop.f32.mrf.mxu0
      %v2874 = vadd.f32 %v2785, %v2873
      %2875 = vmatmul.bf16.gmra.mxu0 %v2103
      %v2876 = vpop.f32.mrf.mxu0
      %v2877 = vadd.f32 %v2788, %v2876
      %v2878 = vpop.f32.mrf.mxu0
      %v2879 = vadd.f32 %v2790, %v2878
      %2880 = vmatmul.bf16.gmra.mxu0 %v2112
      %v2881 = vpop.f32.mrf.mxu0
      %v2882 = vadd.f32 %v2793, %v2881
      %v2883 = vpop.f32.mrf.mxu0
      %v2884 = vadd.f32 %v2795, %v2883
      %2885 = vmatmul.bf16.gmra.mxu0 %v2121
      %v2886 = vpop.f32.mrf.mxu0
      %v2887 = vadd.f32 %v2798, %v2886
      %v2888 = vpop.f32.mrf.mxu0
      %v2889 = vadd.f32 %v2800, %v2888
      %2890 = vmatmul.bf16.gmra.mxu0 %v2130
      %v2891 = vpop.f32.mrf.mxu0
      %v2892 = vadd.f32 %v2803, %v2891
      %v2893 = vpop.f32.mrf.mxu0
      %v2894 = vadd.f32 %v2805, %v2893
      %2895 = vmatmul.bf16.gmra.mxu0 %v2139
      %v2896 = vpop.f32.mrf.mxu0
      %v2897 = vadd.f32 %v2808, %v2896
      %v2898 = vpop.f32.mrf.mxu0
      %v2899 = vadd.f32 %v2810, %v2898
      %2900 = vdwg.mxu0
      %2901 = vmatpush.bf16.msra.mxu0 %v2602
      %2902 = vmatpush.bf16.msra.mxu0 %v2601
      %2903 = vmatpush.bf16.msra.mxu0 %v2600
      %2904 = vmatpush.bf16.msra.mxu0 %v2599
      %2905 = vmatpush.bf16.msra.mxu0 %v2598
      %2906 = vmatpush.bf16.msra.mxu0 %v2597
      %2907 = vmatpush.bf16.msra.mxu0 %v2596
      %2908 = vmatpush.bf16.msra.mxu0 %v2595
      %2909 = vmatmul.bf16.gmra.mxu0 %v2005
      %v2910 = vpop.f32.mrf.mxu0
      %v2911 = vadd.f32 %v2822, %v2910
      %v2912 = vpop.f32.mrf.mxu0
      %v2913 = vadd.f32 %v2824, %v2912
      %2914 = vmatmul.bf16.gmra.mxu0 %v2014
      %v2915 = vpop.f32.mrf.mxu0
      %v2916 = vadd.f32 %v2827, %v2915
      %v2917 = vpop.f32.mrf.mxu0
      %v2918 = vadd.f32 %v2829, %v2917
      %2919 = vmatmul.bf16.gmra.mxu0 %v2023
      %v2920 = vpop.f32.mrf.mxu0
      %v2921 = vadd.f32 %v2832, %v2920
      %v2922 = vpop.f32.mrf.mxu0
      %v2923 = vadd.f32 %v2834, %v2922
      %2924 = vmatmul.bf16.gmra.mxu0 %v2032
      %v2925 = vpop.f32.mrf.mxu0
      %v2926 = vadd.f32 %v2837, %v2925
      %v2927 = vpop.f32.mrf.mxu0
      %v2928 = vadd.f32 %v2839, %v2927
      %2929 = vmatmul.bf16.gmra.mxu0 %v2041
      %v2930 = vpop.f32.mrf.mxu0
      %v2931 = vadd.f32 %v2842, %v2930
      %v2932 = vpop.f32.mrf.mxu0
      %v2933 = vadd.f32 %v2844, %v2932
      %2934 = vmatmul.bf16.gmra.mxu0 %v2050
      %v2935 = vpop.f32.mrf.mxu0
      %v2936 = vadd.f32 %v2847, %v2935
      %v2937 = vpop.f32.mrf.mxu0
      %v2938 = vadd.f32 %v2849, %v2937
      %2939 = vmatmul.bf16.gmra.mxu0 %v2059
      %v2940 = vpop.f32.mrf.mxu0
      %v2941 = vadd.f32 %v2852, %v2940
      %v2942 = vpop.f32.mrf.mxu0
      %v2943 = vadd.f32 %v2854, %v2942
      %2944 = vmatmul.bf16.gmra.mxu0 %v2068
      %v2945 = vpop.f32.mrf.mxu0
      %v2946 = vadd.f32 %v2857, %v2945
      %v2947 = vpop.f32.mrf.mxu0
      %v2948 = vadd.f32 %v2859, %v2947
      %2949 = vmatmul.bf16.gmra.mxu0 %v2077
      %v2950 = vpop.f32.mrf.mxu0
      %v2951 = vadd.f32 %v2862, %v2950
      %v2952 = vpop.f32.mrf.mxu0
      %v2953 = vadd.f32 %v2864, %v2952
      %2954 = vmatmul.bf16.gmra.mxu0 %v2086
      %v2955 = vpop.f32.mrf.mxu0
      %v2956 = vadd.f32 %v2867, %v2955
      %v2957 = vpop.f32.mrf.mxu0
      %v2958 = vadd.f32 %v2869, %v2957
      %2959 = vmatmul.bf16.gmra.mxu0 %v2095
      %v2960 = vpop.f32.mrf.mxu0
      %v2961 = vadd.f32 %v2872, %v2960
      %v2962 = vpop.f32.mrf.mxu0
      %v2963 = vadd.f32 %v2874, %v2962
      %2964 = vmatmul.bf16.gmra.mxu0 %v2104
      %v2965 = vpop.f32.mrf.mxu0
      %v2966 = vadd.f32 %v2877, %v2965
      %v2967 = vpop.f32.mrf.mxu0
      %v2968 = vadd.f32 %v2879, %v2967
      %2969 = vmatmul.bf16.gmra.mxu0 %v2113
      %v2970 = vpop.f32.mrf.mxu0
      %v2971 = vadd.f32 %v2882, %v2970
      %v2972 = vpop.f32.mrf.mxu0
      %v2973 = vadd.f32 %v2884, %v2972
      %2974 = vmatmul.bf16.gmra.mxu0 %v2122
      %v2975 = vpop.f32.mrf.mxu0
      %v2976 = vadd.f32 %v2887, %v2975
      %v2977 = vpop.f32.mrf.mxu0
      %v2978 = vadd.f32 %v2889, %v2977
      %2979 = vmatmul.bf16.gmra.mxu0 %v2131
      %v2980 = vpop.f32.mrf.mxu0
      %v2981 = vadd.f32 %v2892, %v2980
      %v2982 = vpop.f32.mrf.mxu0
      %v2983 = vadd.f32 %v2894, %v2982
      %2984 = vmatmul.bf16.gmra.mxu0 %v2140
      %v2985 = vpop.f32.mrf.mxu0
      %v2986 = vadd.f32 %v2897, %v2985
      %v2987 = vpop.f32.mrf.mxu0
      %v2988 = vadd.f32 %v2899, %v2987
      %2989 = vdwg.mxu0
      %2990 = vmatpush.bf16.msra.mxu0 %v2610
      %2991 = vmatpush.bf16.msra.mxu0 %v2609
      %2992 = vmatpush.bf16.msra.mxu0 %v2608
      %2993 = vmatpush.bf16.msra.mxu0 %v2607
      %2994 = vmatpush.bf16.msra.mxu0 %v2606
      %2995 = vmatpush.bf16.msra.mxu0 %v2605
      %2996 = vmatpush.bf16.msra.mxu0 %v2604
      %2997 = vmatpush.bf16.msra.mxu0 %v2603
      %2998 = vmatmul.bf16.gmra.mxu0 %v2006
      %v2999 = vpop.f32.mrf.mxu0
      %v3000 = vadd.f32 %v2911, %v2999
      %v3001 = vpop.f32.mrf.mxu0
      %v3002 = vadd.f32 %v2913, %v3001
      %3003 = vmatmul.bf16.gmra.mxu0 %v2015
      %v3004 = vpop.f32.mrf.mxu0
      %v3005 = vadd.f32 %v2916, %v3004
      %v3006 = vpop.f32.mrf.mxu0
      %v3007 = vadd.f32 %v2918, %v3006
      %3008 = vmatmul.bf16.gmra.mxu0 %v2024
      %v3009 = vpop.f32.mrf.mxu0
      %v3010 = vadd.f32 %v2921, %v3009
      %v3011 = vpop.f32.mrf.mxu0
      %v3012 = vadd.f32 %v2923, %v3011
      %3013 = vmatmul.bf16.gmra.mxu0 %v2033
      %v3014 = vpop.f32.mrf.mxu0
      %v3015 = vadd.f32 %v2926, %v3014
      %v3016 = vpop.f32.mrf.mxu0
      %v3017 = vadd.f32 %v2928, %v3016
      %3018 = vmatmul.bf16.gmra.mxu0 %v2042
      %v3019 = vpop.f32.mrf.mxu0
      %v3020 = vadd.f32 %v2931, %v3019
      %v3021 = vpop.f32.mrf.mxu0
      %v3022 = vadd.f32 %v2933, %v3021
      %3023 = vmatmul.bf16.gmra.mxu0 %v2051
      %v3024 = vpop.f32.mrf.mxu0
      %v3025 = vadd.f32 %v2936, %v3024
      %v3026 = vpop.f32.mrf.mxu0
      %v3027 = vadd.f32 %v2938, %v3026
      %3028 = vmatmul.bf16.gmra.mxu0 %v2060
      %v3029 = vpop.f32.mrf.mxu0
      %v3030 = vadd.f32 %v2941, %v3029
      %v3031 = vpop.f32.mrf.mxu0
      %v3032 = vadd.f32 %v2943, %v3031
      %3033 = vmatmul.bf16.gmra.mxu0 %v2069
      %v3034 = vpop.f32.mrf.mxu0
      %v3035 = vadd.f32 %v2946, %v3034
      %v3036 = vpop.f32.mrf.mxu0
      %v3037 = vadd.f32 %v2948, %v3036
      %3038 = vmatmul.bf16.gmra.mxu0 %v2078
      %v3039 = vpop.f32.mrf.mxu0
      %v3040 = vadd.f32 %v2951, %v3039
      %v3041 = vpop.f32.mrf.mxu0
      %v3042 = vadd.f32 %v2953, %v3041
      %3043 = vmatmul.bf16.gmra.mxu0 %v2087
      %v3044 = vpop.f32.mrf.mxu0
      %v3045 = vadd.f32 %v2956, %v3044
      %v3046 = vpop.f32.mrf.mxu0
      %v3047 = vadd.f32 %v2958, %v3046
      %3048 = vmatmul.bf16.gmra.mxu0 %v2096
      %v3049 = vpop.f32.mrf.mxu0
      %v3050 = vadd.f32 %v2961, %v3049
      %v3051 = vpop.f32.mrf.mxu0
      %v3052 = vadd.f32 %v2963, %v3051
      %3053 = vmatmul.bf16.gmra.mxu0 %v2105
      %v3054 = vpop.f32.mrf.mxu0
      %v3055 = vadd.f32 %v2966, %v3054
      %v3056 = vpop.f32.mrf.mxu0
      %v3057 = vadd.f32 %v2968, %v3056
      %3058 = vmatmul.bf16.gmra.mxu0 %v2114
      %v3059 = vpop.f32.mrf.mxu0
      %v3060 = vadd.f32 %v2971, %v3059
      %v3061 = vpop.f32.mrf.mxu0
      %v3062 = vadd.f32 %v2973, %v3061
      %3063 = vmatmul.bf16.gmra.mxu0 %v2123
      %v3064 = vpop.f32.mrf.mxu0
      %v3065 = vadd.f32 %v2976, %v3064
      %v3066 = vpop.f32.mrf.mxu0
      %v3067 = vadd.f32 %v2978, %v3066
      %3068 = vmatmul.bf16.gmra.mxu0 %v2132
      %v3069 = vpop.f32.mrf.mxu0
      %v3070 = vadd.f32 %v2981, %v3069
      %v3071 = vpop.f32.mrf.mxu0
      %v3072 = vadd.f32 %v2983, %v3071
      %3073 = vmatmul.bf16.gmra.mxu0 %v2141
      %v3074 = vpop.f32.mrf.mxu0
      %v3075 = vadd.f32 %v2986, %v3074
      %v3076 = vpop.f32.mrf.mxu0
      %v3077 = vadd.f32 %v2988, %v3076
      %3078 = vdwg.mxu0
      %3079 = vmatpush.bf16.msra.mxu0 %v2618
      %3080 = vmatpush.bf16.msra.mxu0 %v2617
      %3081 = vmatpush.bf16.msra.mxu0 %v2616
      %3082 = vmatpush.bf16.msra.mxu0 %v2615
      %3083 = vmatpush.bf16.msra.mxu0 %v2614
      %3084 = vmatpush.bf16.msra.mxu0 %v2613
      %3085 = vmatpush.bf16.msra.mxu0 %v2612
      %3086 = vmatpush.bf16.msra.mxu0 %v2611
      %3087 = vmatmul.bf16.gmra.mxu0 %v2007
      %v3088 = vpop.f32.mrf.mxu0
      %v3089 = vadd.f32 %v3000, %v3088
      %v3090 = vpop.f32.mrf.mxu0
      %v3091 = vadd.f32 %v3002, %v3090
      %3092 = vmatmul.bf16.gmra.mxu0 %v2016
      %v3093 = vpop.f32.mrf.mxu0
      %v3094 = vadd.f32 %v3005, %v3093
      %v3095 = vpop.f32.mrf.mxu0
      %v3096 = vadd.f32 %v3007, %v3095
      %3097 = vmatmul.bf16.gmra.mxu0 %v2025
      %v3098 = vpop.f32.mrf.mxu0
      %v3099 = vadd.f32 %v3010, %v3098
      %v3100 = vpop.f32.mrf.mxu0
      %v3101 = vadd.f32 %v3012, %v3100
      %3102 = vmatmul.bf16.gmra.mxu0 %v2034
      %v3103 = vpop.f32.mrf.mxu0
      %v3104 = vadd.f32 %v3015, %v3103
      %v3105 = vpop.f32.mrf.mxu0
      %v3106 = vadd.f32 %v3017, %v3105
      %3107 = vmatmul.bf16.gmra.mxu0 %v2043
      %v3108 = vpop.f32.mrf.mxu0
      %v3109 = vadd.f32 %v3020, %v3108
      %v3110 = vpop.f32.mrf.mxu0
      %v3111 = vadd.f32 %v3022, %v3110
      %3112 = vmatmul.bf16.gmra.mxu0 %v2052
      %v3113 = vpop.f32.mrf.mxu0
      %v3114 = vadd.f32 %v3025, %v3113
      %v3115 = vpop.f32.mrf.mxu0
      %v3116 = vadd.f32 %v3027, %v3115
      %3117 = vmatmul.bf16.gmra.mxu0 %v2061
      %v3118 = vpop.f32.mrf.mxu0
      %v3119 = vadd.f32 %v3030, %v3118
      %v3120 = vpop.f32.mrf.mxu0
      %v3121 = vadd.f32 %v3032, %v3120
      %3122 = vmatmul.bf16.gmra.mxu0 %v2070
      %v3123 = vpop.f32.mrf.mxu0
      %v3124 = vadd.f32 %v3035, %v3123
      %v3125 = vpop.f32.mrf.mxu0
      %v3126 = vadd.f32 %v3037, %v3125
      %3127 = vmatmul.bf16.gmra.mxu0 %v2079
      %v3128 = vpop.f32.mrf.mxu0
      %v3129 = vadd.f32 %v3040, %v3128
      %v3130 = vpop.f32.mrf.mxu0
      %v3131 = vadd.f32 %v3042, %v3130
      %3132 = vmatmul.bf16.gmra.mxu0 %v2088
      %v3133 = vpop.f32.mrf.mxu0
      %v3134 = vadd.f32 %v3045, %v3133
      %v3135 = vpop.f32.mrf.mxu0
      %v3136 = vadd.f32 %v3047, %v3135
      %3137 = vmatmul.bf16.gmra.mxu0 %v2097
      %v3138 = vpop.f32.mrf.mxu0
      %v3139 = vadd.f32 %v3050, %v3138
      %v3140 = vpop.f32.mrf.mxu0
      %v3141 = vadd.f32 %v3052, %v3140
      %3142 = vmatmul.bf16.gmra.mxu0 %v2106
      %v3143 = vpop.f32.mrf.mxu0
      %v3144 = vadd.f32 %v3055, %v3143
      %v3145 = vpop.f32.mrf.mxu0
      %v3146 = vadd.f32 %v3057, %v3145
      %3147 = vmatmul.bf16.gmra.mxu0 %v2115
      %v3148 = vpop.f32.mrf.mxu0
      %v3149 = vadd.f32 %v3060, %v3148
      %v3150 = vpop.f32.mrf.mxu0
      %v3151 = vadd.f32 %v3062, %v3150
      %3152 = vmatmul.bf16.gmra.mxu0 %v2124
      %v3153 = vpop.f32.mrf.mxu0
      %v3154 = vadd.f32 %v3065, %v3153
      %v3155 = vpop.f32.mrf.mxu0
      %v3156 = vadd.f32 %v3067, %v3155
      %3157 = vmatmul.bf16.gmra.mxu0 %v2133
      %v3158 = vpop.f32.mrf.mxu0
      %v3159 = vadd.f32 %v3070, %v3158
      %v3160 = vpop.f32.mrf.mxu0
      %v3161 = vadd.f32 %v3072, %v3160
      %3162 = vmatmul.bf16.gmra.mxu0 %v2142
      %v3163 = vpop.f32.mrf.mxu0
      %v3164 = vadd.f32 %v3075, %v3163
      %v3165 = vpop.f32.mrf.mxu0
      %v3166 = vadd.f32 %v3077, %v3165
      %3167 = vdwg.mxu0
      %3168 = vmatpush.bf16.msra.mxu0 %v2626
      %3169 = vmatpush.bf16.msra.mxu0 %v2625
      %3170 = vmatpush.bf16.msra.mxu0 %v2624
      %3171 = vmatpush.bf16.msra.mxu0 %v2623
      %3172 = vmatpush.bf16.msra.mxu0 %v2622
      %3173 = vmatpush.bf16.msra.mxu0 %v2621
      %3174 = vmatpush.bf16.msra.mxu0 %v2620
      %3175 = vmatpush.bf16.msra.mxu0 %v2619
      %3176 = vmatmul.bf16.gmra.mxu0 %v2008
      %v3177 = vpop.f32.mrf.mxu0
      %v3178 = vadd.f32 %v3089, %v3177
      %v3179 = vpop.f32.mrf.mxu0
      %v3180 = vadd.f32 %v3091, %v3179
      %3181 = vmatmul.bf16.gmra.mxu0 %v2017
      %v3182 = vpop.f32.mrf.mxu0
      %v3183 = vadd.f32 %v3094, %v3182
      %v3184 = vpop.f32.mrf.mxu0
      %v3185 = vadd.f32 %v3096, %v3184
      %3186 = vmatmul.bf16.gmra.mxu0 %v2026
      %v3187 = vpop.f32.mrf.mxu0
      %v3188 = vadd.f32 %v3099, %v3187
      %v3189 = vpop.f32.mrf.mxu0
      %v3190 = vadd.f32 %v3101, %v3189
      %3191 = vmatmul.bf16.gmra.mxu0 %v2035
      %v3192 = vpop.f32.mrf.mxu0
      %v3193 = vadd.f32 %v3104, %v3192
      %v3194 = vpop.f32.mrf.mxu0
      %v3195 = vadd.f32 %v3106, %v3194
      %3196 = vmatmul.bf16.gmra.mxu0 %v2044
      %v3197 = vpop.f32.mrf.mxu0
      %v3198 = vadd.f32 %v3109, %v3197
      %v3199 = vpop.f32.mrf.mxu0
      %v3200 = vadd.f32 %v3111, %v3199
      %3201 = vmatmul.bf16.gmra.mxu0 %v2053
      %v3202 = vpop.f32.mrf.mxu0
      %v3203 = vadd.f32 %v3114, %v3202
      %v3204 = vpop.f32.mrf.mxu0
      %v3205 = vadd.f32 %v3116, %v3204
      %3206 = vmatmul.bf16.gmra.mxu0 %v2062
      %v3207 = vpop.f32.mrf.mxu0
      %v3208 = vadd.f32 %v3119, %v3207
      %v3209 = vpop.f32.mrf.mxu0
      %v3210 = vadd.f32 %v3121, %v3209
      %3211 = vmatmul.bf16.gmra.mxu0 %v2071
      %v3212 = vpop.f32.mrf.mxu0
      %v3213 = vadd.f32 %v3124, %v3212
      %v3214 = vpop.f32.mrf.mxu0
      %v3215 = vadd.f32 %v3126, %v3214
      %3216 = vmatmul.bf16.gmra.mxu0 %v2080
      %v3217 = vpop.f32.mrf.mxu0
      %v3218 = vadd.f32 %v3129, %v3217
      %v3219 = vpop.f32.mrf.mxu0
      %v3220 = vadd.f32 %v3131, %v3219
      %3221 = vmatmul.bf16.gmra.mxu0 %v2089
      %v3222 = vpop.f32.mrf.mxu0
      %v3223 = vadd.f32 %v3134, %v3222
      %v3224 = vpop.f32.mrf.mxu0
      %v3225 = vadd.f32 %v3136, %v3224
      %3226 = vmatmul.bf16.gmra.mxu0 %v2098
      %v3227 = vpop.f32.mrf.mxu0
      %v3228 = vadd.f32 %v3139, %v3227
      %v3229 = vpop.f32.mrf.mxu0
      %v3230 = vadd.f32 %v3141, %v3229
      %3231 = vmatmul.bf16.gmra.mxu0 %v2107
      %v3232 = vpop.f32.mrf.mxu0
      %v3233 = vadd.f32 %v3144, %v3232
      %v3234 = vpop.f32.mrf.mxu0
      %v3235 = vadd.f32 %v3146, %v3234
      %3236 = vmatmul.bf16.gmra.mxu0 %v2116
      %v3237 = vpop.f32.mrf.mxu0
      %v3238 = vadd.f32 %v3149, %v3237
      %v3239 = vpop.f32.mrf.mxu0
      %v3240 = vadd.f32 %v3151, %v3239
      %3241 = vmatmul.bf16.gmra.mxu0 %v2125
      %v3242 = vpop.f32.mrf.mxu0
      %v3243 = vadd.f32 %v3154, %v3242
      %v3244 = vpop.f32.mrf.mxu0
      %v3245 = vadd.f32 %v3156, %v3244
      %3246 = vmatmul.bf16.gmra.mxu0 %v2134
      %v3247 = vpop.f32.mrf.mxu0
      %v3248 = vadd.f32 %v3159, %v3247
      %v3249 = vpop.f32.mrf.mxu0
      %v3250 = vadd.f32 %v3161, %v3249
      %3251 = vmatmul.bf16.gmra.mxu0 %v2143
      %v3252 = vpop.f32.mrf.mxu0
      %v3253 = vadd.f32 %v3164, %v3252
      %v3254 = vpop.f32.mrf.mxu0
      %v3255 = vadd.f32 %v3166, %v3254
      %3256 = vdwg.mxu0
      %3257 = vmatpush.bf16.msra.mxu0 %v2634
      %3258 = vmatpush.bf16.msra.mxu0 %v2633
      %3259 = vmatpush.bf16.msra.mxu0 %v2632
      %3260 = vmatpush.bf16.msra.mxu0 %v2631
      %3261 = vmatpush.bf16.msra.mxu0 %v2630
      %3262 = vmatpush.bf16.msra.mxu0 %v2629
      %3263 = vmatpush.bf16.msra.mxu0 %v2628
      %3264 = vmatpush.bf16.msra.mxu0 %v2627
      %3265 = vmatmul.bf16.gmra.mxu0 %v2009
      %v3266 = vpop.f32.mrf.mxu0
      %v3267 = vadd.f32 %v3178, %v3266
      %v3268 = vpop.f32.mrf.mxu0
      %v3269 = vadd.f32 %v3180, %v3268
      %3270 = vmatmul.bf16.gmra.mxu0 %v2018
      %v3271 = vpop.f32.mrf.mxu0
      %v3272 = vadd.f32 %v3183, %v3271
      %v3273 = vpop.f32.mrf.mxu0
      %v3274 = vadd.f32 %v3185, %v3273
      %3275 = vmatmul.bf16.gmra.mxu0 %v2027
      %v3276 = vpop.f32.mrf.mxu0
      %v3277 = vadd.f32 %v3188, %v3276
      %v3278 = vpop.f32.mrf.mxu0
      %v3279 = vadd.f32 %v3190, %v3278
      %3280 = vmatmul.bf16.gmra.mxu0 %v2036
      %v3281 = vpop.f32.mrf.mxu0
      %v3282 = vadd.f32 %v3193, %v3281
      %v3283 = vpop.f32.mrf.mxu0
      %v3284 = vadd.f32 %v3195, %v3283
      %3285 = vmatmul.bf16.gmra.mxu0 %v2045
      %v3286 = vpop.f32.mrf.mxu0
      %v3287 = vadd.f32 %v3198, %v3286
      %v3288 = vpop.f32.mrf.mxu0
      %v3289 = vadd.f32 %v3200, %v3288
      %3290 = vmatmul.bf16.gmra.mxu0 %v2054
      %v3291 = vpop.f32.mrf.mxu0
      %v3292 = vadd.f32 %v3203, %v3291
      %v3293 = vpop.f32.mrf.mxu0
      %v3294 = vadd.f32 %v3205, %v3293
      %3295 = vmatmul.bf16.gmra.mxu0 %v2063
      %v3296 = vpop.f32.mrf.mxu0
      %v3297 = vadd.f32 %v3208, %v3296
      %v3298 = vpop.f32.mrf.mxu0
      %v3299 = vadd.f32 %v3210, %v3298
      %3300 = vmatmul.bf16.gmra.mxu0 %v2072
      %v3301 = vpop.f32.mrf.mxu0
      %v3302 = vadd.f32 %v3213, %v3301
      %v3303 = vpop.f32.mrf.mxu0
      %v3304 = vadd.f32 %v3215, %v3303
      %3305 = vmatmul.bf16.gmra.mxu0 %v2081
      %v3306 = vpop.f32.mrf.mxu0
      %v3307 = vadd.f32 %v3218, %v3306
      %v3308 = vpop.f32.mrf.mxu0
      %v3309 = vadd.f32 %v3220, %v3308
      %3310 = vmatmul.bf16.gmra.mxu0 %v2090
      %v3311 = vpop.f32.mrf.mxu0
      %v3312 = vadd.f32 %v3223, %v3311
      %v3313 = vpop.f32.mrf.mxu0
      %v3314 = vadd.f32 %v3225, %v3313
      %3315 = vmatmul.bf16.gmra.mxu0 %v2099
      %v3316 = vpop.f32.mrf.mxu0
      %v3317 = vadd.f32 %v3228, %v3316
      %v3318 = vpop.f32.mrf.mxu0
      %v3319 = vadd.f32 %v3230, %v3318
      %3320 = vmatmul.bf16.gmra.mxu0 %v2108
      %v3321 = vpop.f32.mrf.mxu0
      %v3322 = vadd.f32 %v3233, %v3321
      %v3323 = vpop.f32.mrf.mxu0
      %v3324 = vadd.f32 %v3235, %v3323
      %3325 = vmatmul.bf16.gmra.mxu0 %v2117
      %v3326 = vpop.f32.mrf.mxu0
      %v3327 = vadd.f32 %v3238, %v3326
      %v3328 = vpop.f32.mrf.mxu0
      %v3329 = vadd.f32 %v3240, %v3328
      %3330 = vmatmul.bf16.gmra.mxu0 %v2126
      %v3331 = vpop.f32.mrf.mxu0
      %v3332 = vadd.f32 %v3243, %v3331
      %v3333 = vpop.f32.mrf.mxu0
      %v3334 = vadd.f32 %v3245, %v3333
      %3335 = vmatmul.bf16.gmra.mxu0 %v2135
      %v3336 = vpop.f32.mrf.mxu0
      %v3337 = vadd.f32 %v3248, %v3336
      %v3338 = vpop.f32.mrf.mxu0
      %v3339 = vadd.f32 %v3250, %v3338
      %3340 = vmatmul.bf16.gmra.mxu0 %v2144
      %v3341 = vpop.f32.mrf.mxu0
      %v3342 = vadd.f32 %v3253, %v3341
      %v3343 = vpop.f32.mrf.mxu0
      %v3344 = vadd.f32 %v3255, %v3343
      %3345 = vdwg.mxu0
      %3346 = vmatpush.bf16.msra.mxu0 %v2642
      %3347 = vmatpush.bf16.msra.mxu0 %v2641
      %3348 = vmatpush.bf16.msra.mxu0 %v2640
      %3349 = vmatpush.bf16.msra.mxu0 %v2639
      %3350 = vmatpush.bf16.msra.mxu0 %v2638
      %3351 = vmatpush.bf16.msra.mxu0 %v2637
      %3352 = vmatpush.bf16.msra.mxu0 %v2636
      %3353 = vmatpush.bf16.msra.mxu0 %v2635
      %3354 = vmatmul.bf16.gmra.mxu0 %v2010
      %v3355 = vpop.f32.mrf.mxu0
      %v3356 = vadd.f32 %v3267, %v3355
      %v3357 = vpop.f32.mrf.mxu0
      %v3358 = vadd.f32 %v3269, %v3357
      %3359 = vmatmul.bf16.gmra.mxu0 %v2019
      %v3360 = vpop.f32.mrf.mxu0
      %v3361 = vadd.f32 %v3272, %v3360
      %v3362 = vpop.f32.mrf.mxu0
      %v3363 = vadd.f32 %v3274, %v3362
      %3364 = vmatmul.bf16.gmra.mxu0 %v2028
      %v3365 = vpop.f32.mrf.mxu0
      %v3366 = vadd.f32 %v3277, %v3365
      %v3367 = vpop.f32.mrf.mxu0
      %v3368 = vadd.f32 %v3279, %v3367
      %3369 = vmatmul.bf16.gmra.mxu0 %v2037
      %v3370 = vpop.f32.mrf.mxu0
      %v3371 = vadd.f32 %v3282, %v3370
      %v3372 = vpop.f32.mrf.mxu0
      %v3373 = vadd.f32 %v3284, %v3372
      %3374 = vmatmul.bf16.gmra.mxu0 %v2046
      %v3375 = vpop.f32.mrf.mxu0
      %v3376 = vadd.f32 %v3287, %v3375
      %v3377 = vpop.f32.mrf.mxu0
      %v3378 = vadd.f32 %v3289, %v3377
      %3379 = vmatmul.bf16.gmra.mxu0 %v2055
      %v3380 = vpop.f32.mrf.mxu0
      %v3381 = vadd.f32 %v3292, %v3380
      %v3382 = vpop.f32.mrf.mxu0
      %v3383 = vadd.f32 %v3294, %v3382
      %3384 = vmatmul.bf16.gmra.mxu0 %v2064
      %v3385 = vpop.f32.mrf.mxu0
      %v3386 = vadd.f32 %v3297, %v3385
      %v3387 = vpop.f32.mrf.mxu0
      %v3388 = vadd.f32 %v3299, %v3387
      %3389 = vmatmul.bf16.gmra.mxu0 %v2073
      %v3390 = vpop.f32.mrf.mxu0
      %v3391 = vadd.f32 %v3302, %v3390
      %v3392 = vpop.f32.mrf.mxu0
      %v3393 = vadd.f32 %v3304, %v3392
      %3394 = vmatmul.bf16.gmra.mxu0 %v2082
      %v3395 = vpop.f32.mrf.mxu0
      %v3396 = vadd.f32 %v3307, %v3395
      %v3397 = vpop.f32.mrf.mxu0
      %v3398 = vadd.f32 %v3309, %v3397
      %3399 = vmatmul.bf16.gmra.mxu0 %v2091
      %v3400 = vpop.f32.mrf.mxu0
      %v3401 = vadd.f32 %v3312, %v3400
      %v3402 = vpop.f32.mrf.mxu0
      %v3403 = vadd.f32 %v3314, %v3402
      %3404 = vmatmul.bf16.gmra.mxu0 %v2100
      %v3405 = vpop.f32.mrf.mxu0
      %v3406 = vadd.f32 %v3317, %v3405
      %v3407 = vpop.f32.mrf.mxu0
      %v3408 = vadd.f32 %v3319, %v3407
      %3409 = vmatmul.bf16.gmra.mxu0 %v2109
      %v3410 = vpop.f32.mrf.mxu0
      %v3411 = vadd.f32 %v3322, %v3410
      %v3412 = vpop.f32.mrf.mxu0
      %v3413 = vadd.f32 %v3324, %v3412
      %3414 = vmatmul.bf16.gmra.mxu0 %v2118
      %v3415 = vpop.f32.mrf.mxu0
      %v3416 = vadd.f32 %v3327, %v3415
      %v3417 = vpop.f32.mrf.mxu0
      %v3418 = vadd.f32 %v3329, %v3417
      %3419 = vmatmul.bf16.gmra.mxu0 %v2127
      %v3420 = vpop.f32.mrf.mxu0
      %v3421 = vadd.f32 %v3332, %v3420
      %v3422 = vpop.f32.mrf.mxu0
      %v3423 = vadd.f32 %v3334, %v3422
      %3424 = vmatmul.bf16.gmra.mxu0 %v2136
      %v3425 = vpop.f32.mrf.mxu0
      %v3426 = vadd.f32 %v3337, %v3425
      %v3427 = vpop.f32.mrf.mxu0
      %v3428 = vadd.f32 %v3339, %v3427
      %3429 = vmatmul.bf16.gmra.mxu0 %v2145
      %v3430 = vpop.f32.mrf.mxu0
      %v3431 = vadd.f32 %v3342, %v3430
      %v3432 = vpop.f32.mrf.mxu0
      %v3433 = vadd.f32 %v3344, %v3432
      %3434 = vdwg.mxu0
      %3435 = vmatpush.bf16.msra.mxu0 %v2650
      %3436 = vmatpush.bf16.msra.mxu0 %v2649
      %3437 = vmatpush.bf16.msra.mxu0 %v2648
      %3438 = vmatpush.bf16.msra.mxu0 %v2647
      %3439 = vmatpush.bf16.msra.mxu0 %v2646
      %3440 = vmatpush.bf16.msra.mxu0 %v2645
      %3441 = vmatpush.bf16.msra.mxu0 %v2644
      %3442 = vmatpush.bf16.msra.mxu0 %v2643
      %3443 = vmatmul.bf16.gmra.mxu0 %v2011
      %v3444 = vpop.f32.mrf.mxu0
      %v3445 = vadd.f32 %v3356, %v3444
      %v3446 = vpop.f32.mrf.mxu0
      %v3447 = vadd.f32 %v3358, %v3446
      %3448 = vmatmul.bf16.gmra.mxu0 %v2020
      %v3449 = vpop.f32.mrf.mxu0
      %v3450 = vadd.f32 %v3361, %v3449
      %v3451 = vpop.f32.mrf.mxu0
      %v3452 = vadd.f32 %v3363, %v3451
      %3453 = vmatmul.bf16.gmra.mxu0 %v2029
      %v3454 = vpop.f32.mrf.mxu0
      %v3455 = vadd.f32 %v3366, %v3454
      %v3456 = vpop.f32.mrf.mxu0
      %v3457 = vadd.f32 %v3368, %v3456
      %3458 = vmatmul.bf16.gmra.mxu0 %v2038
      %v3459 = vpop.f32.mrf.mxu0
      %v3460 = vadd.f32 %v3371, %v3459
      %v3461 = vpop.f32.mrf.mxu0
      %v3462 = vadd.f32 %v3373, %v3461
      %3463 = vmatmul.bf16.gmra.mxu0 %v2047
      %v3464 = vpop.f32.mrf.mxu0
      %v3465 = vadd.f32 %v3376, %v3464
      %v3466 = vpop.f32.mrf.mxu0
      %v3467 = vadd.f32 %v3378, %v3466
      %3468 = vmatmul.bf16.gmra.mxu0 %v2056
      %v3469 = vpop.f32.mrf.mxu0
      %v3470 = vadd.f32 %v3381, %v3469
      %v3471 = vpop.f32.mrf.mxu0
      %v3472 = vadd.f32 %v3383, %v3471
      %3473 = vmatmul.bf16.gmra.mxu0 %v2065
      %v3474 = vpop.f32.mrf.mxu0
      %v3475 = vadd.f32 %v3386, %v3474
      %v3476 = vpop.f32.mrf.mxu0
      %v3477 = vadd.f32 %v3388, %v3476
      %3478 = vmatmul.bf16.gmra.mxu0 %v2074
      %v3479 = vpop.f32.mrf.mxu0
      %v3480 = vadd.f32 %v3391, %v3479
      %v3481 = vpop.f32.mrf.mxu0
      %v3482 = vadd.f32 %v3393, %v3481
      %3483 = vmatmul.bf16.gmra.mxu0 %v2083
      %v3484 = vpop.f32.mrf.mxu0
      %v3485 = vadd.f32 %v3396, %v3484
      %v3486 = vpop.f32.mrf.mxu0
      %v3487 = vadd.f32 %v3398, %v3486
      %3488 = vmatmul.bf16.gmra.mxu0 %v2092
      %v3489 = vpop.f32.mrf.mxu0
      %v3490 = vadd.f32 %v3401, %v3489
      %v3491 = vpop.f32.mrf.mxu0
      %v3492 = vadd.f32 %v3403, %v3491
      %3493 = vmatmul.bf16.gmra.mxu0 %v2101
      %v3494 = vpop.f32.mrf.mxu0
      %v3495 = vadd.f32 %v3406, %v3494
      %v3496 = vpop.f32.mrf.mxu0
      %v3497 = vadd.f32 %v3408, %v3496
      %3498 = vmatmul.bf16.gmra.mxu0 %v2110
      %v3499 = vpop.f32.mrf.mxu0
      %v3500 = vadd.f32 %v3411, %v3499
      %v3501 = vpop.f32.mrf.mxu0
      %v3502 = vadd.f32 %v3413, %v3501
      %3503 = vmatmul.bf16.gmra.mxu0 %v2119
      %v3504 = vpop.f32.mrf.mxu0
      %v3505 = vadd.f32 %v3416, %v3504
      %v3506 = vpop.f32.mrf.mxu0
      %v3507 = vadd.f32 %v3418, %v3506
      %3508 = vmatmul.bf16.gmra.mxu0 %v2128
      %v3509 = vpop.f32.mrf.mxu0
      %v3510 = vadd.f32 %v3421, %v3509
      %v3511 = vpop.f32.mrf.mxu0
      %v3512 = vadd.f32 %v3423, %v3511
      %3513 = vmatmul.bf16.gmra.mxu0 %v2137
      %v3514 = vpop.f32.mrf.mxu0
      %v3515 = vadd.f32 %v3426, %v3514
      %v3516 = vpop.f32.mrf.mxu0
      %v3517 = vadd.f32 %v3428, %v3516
      %3518 = vmatmul.bf16.gmra.mxu0 %v2146
      %v3519 = vpop.f32.mrf.mxu0
      %v3520 = vadd.f32 %v3431, %v3519
      %v3521 = vpop.f32.mrf.mxu0
      %v3522 = vadd.f32 %v3433, %v3521
      %3523 = vdwg.mxu0
      %v3524 = vpack.c.bf16 %v3445, %v3445
      %v3525 = vpack.c.bf16 %v3447, %v3447
      %v3526 = vpack.c.bf16 %v3450, %v3450
      %v3527 = vpack.c.bf16 %v3452, %v3452
      %v3528 = vpack.c.bf16 %v3455, %v3455
      %v3529 = vpack.c.bf16 %v3457, %v3457
      %v3530 = vpack.c.bf16 %v3460, %v3460
      %v3531 = vpack.c.bf16 %v3462, %v3462
      %v3532 = vpack.c.bf16 %v3465, %v3465
      %v3533 = vpack.c.bf16 %v3467, %v3467
      %v3534 = vpack.c.bf16 %v3470, %v3470
      %v3535 = vpack.c.bf16 %v3472, %v3472
      %v3536 = vpack.c.bf16 %v3475, %v3475
      %v3537 = vpack.c.bf16 %v3477, %v3477
      %v3538 = vpack.c.bf16 %v3480, %v3480
      %v3539 = vpack.c.bf16 %v3482, %v3482
      %v3540 = vpack.c.bf16 %v3485, %v3485
      %v3541 = vpack.c.bf16 %v3487, %v3487
      %v3542 = vpack.c.bf16 %v3490, %v3490
      %v3543 = vpack.c.bf16 %v3492, %v3492
      %v3544 = vpack.c.bf16 %v3495, %v3495
      %v3545 = vpack.c.bf16 %v3497, %v3497
      %v3546 = vpack.c.bf16 %v3500, %v3500
      %v3547 = vpack.c.bf16 %v3502, %v3502
      %v3548 = vpack.c.bf16 %v3505, %v3505
      %v3549 = vpack.c.bf16 %v3507, %v3507
      %v3550 = vpack.c.bf16 %v3510, %v3510
      %v3551 = vpack.c.bf16 %v3512, %v3512
      %v3552 = vpack.c.bf16 %v3515, %v3515
      %v3553 = vpack.c.bf16 %v3517, %v3517
      %v3554 = vpack.c.bf16 %v3520, %v3520
      %v3555 = vpack.c.bf16 %v3522, %v3522
      %3556 = vst [vmem:[%s206] sm:$0xf] %v3524
      %3557 = vst [vmem:[%s206 + $0x4] sm:$0xf] %v3525
      %3558 = vst [vmem:[%s206 + $0x8] sm:$0xf] %v3526
      %3559 = vst [vmem:[%s206 + $0xc] sm:$0xf] %v3527
      %3560 = vst [vmem:[%s206 + $0x10] sm:$0xf] %v3528
      %3561 = vst [vmem:[%s206 + $0x14] sm:$0xf] %v3529
      %3562 = vst [vmem:[%s206 + $0x18] sm:$0xf] %v3530
      %3563 = vst [vmem:[%s206 + $0x1c] sm:$0xf] %v3531
      %3564 = vst [vmem:[%s206 + $0x20] sm:$0xf] %v3532
      %3565 = vst [vmem:[%s206 + $0x24] sm:$0xf] %v3533
      %3566 = vst [vmem:[%s206 + $0x28] sm:$0xf] %v3534
      %3567 = vst [vmem:[%s206 + $0x2c] sm:$0xf] %v3535
      %3568 = vst [vmem:[%s206 + $0x30] sm:$0xf] %v3536
      %3569 = vst [vmem:[%s206 + $0x34] sm:$0xf] %v3537
      %3570 = vst [vmem:[%s206 + $0x38] sm:$0xf] %v3538
      %3571 = vst [vmem:[%s206 + $0x3c] sm:$0xf] %v3539
      %3572 = vst [vmem:[%s206 + $0x40] sm:$0xf] %v3540
      %3573 = vst [vmem:[%s206 + $0x44] sm:$0xf] %v3541
      %3574 = vst [vmem:[%s206 + $0x48] sm:$0xf] %v3542
      %3575 = vst [vmem:[%s206 + $0x4c] sm:$0xf] %v3543
      %3576 = vst [vmem:[%s206 + $0x50] sm:$0xf] %v3544
      %3577 = vst [vmem:[%s206 + $0x54] sm:$0xf] %v3545
      %3578 = vst [vmem:[%s206 + $0x58] sm:$0xf] %v3546
      %3579 = vst [vmem:[%s206 + $0x5c] sm:$0xf] %v3547
      %3580 = vst [vmem:[%s206 + $0x60] sm:$0xf] %v3548
      %3581 = vst [vmem:[%s206 + $0x64] sm:$0xf] %v3549
      %3582 = vst [vmem:[%s206 + $0x68] sm:$0xf] %v3550
      %3583 = vst [vmem:[%s206 + $0x6c] sm:$0xf] %v3551
      %3584 = vst [vmem:[%s206 + $0x70] sm:$0xf] %v3552
      %3585 = vst [vmem:[%s206 + $0x74] sm:$0xf] %v3553
      %3586 = vst [vmem:[%s206 + $0x78] sm:$0xf] %v3554
      %3587 = vst [vmem:[%s206 + $0x7c] sm:$0xf] %v3555
      %v3588 = vadd.f32 %v3445, %v3447
      %v3589 = vadd.f32 %v3588, %v3450
      %v3590 = vadd.f32 %v3589, %v3452
      %v3591 = vadd.f32 %v3590, %v3455
      %v3592 = vadd.f32 %v3591, %v3457
      %v3593 = vadd.f32 %v3592, %v3460
      %v3594 = vadd.f32 %v3593, %v3462
      %v3595 = vadd.f32 %v3594, %v3465
      %v3596 = vadd.f32 %v3595, %v3467
      %v3597 = vadd.f32 %v3596, %v3470
      %v3598 = vadd.f32 %v3597, %v3472
      %v3599 = vadd.f32 %v3598, %v3475
      %v3600 = vadd.f32 %v3599, %v3477
      %v3601 = vadd.f32 %v3600, %v3480
      %v3602 = vadd.f32 %v3601, %v3482
      %v3603 = vadd.f32 %v3602, %v3485
      %v3604 = vadd.f32 %v3603, %v3487
      %v3605 = vadd.f32 %v3604, %v3490
      %v3606 = vadd.f32 %v3605, %v3492
      %v3607 = vadd.f32 %v3606, %v3495
      %v3608 = vadd.f32 %v3607, %v3497
      %v3609 = vadd.f32 %v3608, %v3500
      %v3610 = vadd.f32 %v3609, %v3502
      %v3611 = vadd.f32 %v3610, %v3505
      %v3612 = vadd.f32 %v3611, %v3507
      %v3613 = vadd.f32 %v3612, %v3510
      %v3614 = vadd.f32 %v3613, %v3512
      %v3615 = vadd.f32 %v3614, %v3515
      %v3616 = vadd.f32 %v3615, %v3517
      %v3617 = vadd.f32 %v3616, %v3520
      %v3618 = vadd.f32 %v3617, %v3522
      %v3619 = vrot.slane %v3618, 4
      %v3620 = vadd.f32 %v3618, %v3619
      %v3621 = vrot.slane %v3620, 2
      %v3622 = vadd.f32 %v3620, %v3621
      %v3623 = vrot.slane %v3622, 1
      %v3624 = vadd.f32 %v3622, %v3623
      %v3625 = vmul.f32 %v3445, %v3445
      %v3626 = vmul.f32 %v3447, %v3447
      %v3627 = vmul.f32 %v3450, %v3450
      %v3628 = vmul.f32 %v3452, %v3452
      %v3629 = vmul.f32 %v3455, %v3455
      %v3630 = vmul.f32 %v3457, %v3457
      %v3631 = vmul.f32 %v3460, %v3460
      %v3632 = vmul.f32 %v3462, %v3462
      %v3633 = vmul.f32 %v3465, %v3465
      %v3634 = vmul.f32 %v3467, %v3467
      %v3635 = vmul.f32 %v3470, %v3470
      %v3636 = vmul.f32 %v3472, %v3472
      %v3637 = vmul.f32 %v3475, %v3475
      %v3638 = vmul.f32 %v3477, %v3477
      %v3639 = vmul.f32 %v3480, %v3480
      %v3640 = vmul.f32 %v3482, %v3482
      %v3641 = vmul.f32 %v3485, %v3485
      %v3642 = vmul.f32 %v3487, %v3487
      %v3643 = vmul.f32 %v3490, %v3490
      %v3644 = vmul.f32 %v3492, %v3492
      %v3645 = vmul.f32 %v3495, %v3495
      %v3646 = vmul.f32 %v3497, %v3497
      %v3647 = vmul.f32 %v3500, %v3500
      %v3648 = vmul.f32 %v3502, %v3502
      %v3649 = vmul.f32 %v3505, %v3505
      %v3650 = vmul.f32 %v3507, %v3507
      %v3651 = vmul.f32 %v3510, %v3510
      %v3652 = vmul.f32 %v3512, %v3512
      %v3653 = vmul.f32 %v3515, %v3515
      %v3654 = vmul.f32 %v3517, %v3517
      %v3655 = vmul.f32 %v3520, %v3520
      %v3656 = vmul.f32 %v3522, %v3522
      %v3657 = vadd.f32 %v3625, %v3626
      %v3658 = vadd.f32 %v3657, %v3627
      %v3659 = vadd.f32 %v3658, %v3628
      %v3660 = vadd.f32 %v3659, %v3629
      %v3661 = vadd.f32 %v3660, %v3630
      %v3662 = vadd.f32 %v3661, %v3631
      %v3663 = vadd.f32 %v3662, %v3632
      %v3664 = vadd.f32 %v3663, %v3633
      %v3665 = vadd.f32 %v3664, %v3634
      %v3666 = vadd.f32 %v3665, %v3635
      %v3667 = vadd.f32 %v3666, %v3636
      %v3668 = vadd.f32 %v3667, %v3637
      %v3669 = vadd.f32 %v3668, %v3638
      %v3670 = vadd.f32 %v3669, %v3639
      %v3671 = vadd.f32 %v3670, %v3640
      %v3672 = vadd.f32 %v3671, %v3641
      %v3673 = vadd.f32 %v3672, %v3642
      %v3674 = vadd.f32 %v3673, %v3643
      %v3675 = vadd.f32 %v3674, %v3644
      %v3676 = vadd.f32 %v3675, %v3645
      %v3677 = vadd.f32 %v3676, %v3646
      %v3678 = vadd.f32 %v3677, %v3647
      %v3679 = vadd.f32 %v3678, %v3648
      %v3680 = vadd.f32 %v3679, %v3649
      %v3681 = vadd.f32 %v3680, %v3650
      %v3682 = vadd.f32 %v3681, %v3651
      %v3683 = vadd.f32 %v3682, %v3652
      %v3684 = vadd.f32 %v3683, %v3653
      %v3685 = vadd.f32 %v3684, %v3654
      %v3686 = vadd.f32 %v3685, %v3655
      %v3687 = vadd.f32 %v3686, %v3656
      %v3688 = vrot.slane %v3687, 4
      %v3689 = vadd.f32 %v3687, %v3688
      %v3690 = vrot.slane %v3689, 2
      %v3691 = vadd.f32 %v3689, %v3690
      %v3692 = vrot.slane %v3691, 1
      %v3693 = vadd.f32 %v3691, %v3692
      %v3694 = vlaneseq
      %v3695 = vshrl.u32 %v3694, 7
      %vm3696 = vcmp.eq.s32.totalorder %v3695, 0
      %vm3697 = vcmp.eq.s32.totalorder %v3695, 1
      %v3698 = vsel %vm3697, %v3693, 0.0
      %v3699 = vsel %vm3696, %v3624, %v3698
      %3700 = vst [vmem:[%s214] sm:$0xff] %v3699
      %s3701 = smul.u32 16, %s20
      %p3702 = scmp.lt.s32.totalorder %s19, 1
      %s3703 = scalar_select %p3702, %s19, 1
      %p3704 = scmp.lt.s32.totalorder %s3701, 15
      %s3705 = scalar_select %p3704, %s3701, 15
      %s3706 = smul.addr %s3705, 2
      %s3707 = smul.addr %s3703, 32
      %s3708 = sadd.s32 %s3706, %s3707
      %s3709 = smul.addr %s3708, 4
      %s3710 = scalar_lea.vmem %s2, %s3709
      %p3711 = scmp.lt.s32.totalorder %s19, 1
      %s3712 = scalar_select %p3711, %s19, 1
      %p3713 = scmp.lt.s32.totalorder %s20, 0
      %s3714 = scalar_select %p3713, %s20, 0
      %s3715 = sadd.s32 %s3714, %s3712
      %s3716 = smul.addr %s3715, 8
      %s3717 = scalar_lea.vmem %s3, %s3716
      // Predicated region
      $region29: #{basic_block_forward.3} parent=27 // pred_check
        %p3718 = pneg %p94
      $region30: #{basic_block_forward.3} parent=27 // pred_check_branch
        %3720 = sbr.rel (%p3718) target = $region32
      $region31: #{basic_block_forward.3} parent=27 // pred_region
        %s3721 = smul.u32 16, %s20
      $region32: #{basic_block_forward.3} parent=27 // pred_fallthru
        _
      // Predicated region
      $region33: #{basic_block_forward.3} parent=27 // pred_check
        %p3722 = pneg %p122
      $region34: #{basic_block_forward.3} parent=27 // pred_check_branch
        %3724 = sbr.rel (%p3722) target = $region36
      $region35: #{basic_block_forward.3} parent=27 // pred_region
        _
      $region36: #{basic_block_forward.3} parent=27 // pred_fallthru
        _
    $region28: #{basic_block_forward.3} parent=5 // pred_fallthru
      _
    %p3725 = scmp.le.s32.totalorder 2, %s10
    // Predicated region
    $region37: #{basic_block_forward.3} parent=5 // pred_check
      %p3726 = pneg %p3725
    $region38: #{basic_block_forward.3} parent=5 // pred_check_branch
      %3728 = sbr.rel (%p3726) target = $region40
    $region39: #{basic_block_forward.3} parent=5 // pred_region
      %s3729 = ssub.s32 %s10, 2
      // Predicated region
      $region41: #{basic_block_forward.3} parent=39 // pred_check
        %p3730 = pneg %p100
      $region42: #{basic_block_forward.3} parent=39 // pred_check_branch
        %3732 = sbr.rel (%p3730) target = $region44
      $region43: #{basic_block_forward.3} parent=39 // pred_region
        %s3733 = smul.u32 16, %s22
        %p3734 = scmp.lt.s32.totalorder %s21, 1
        %s3735 = scalar_select %p3734, %s21, 1
        %p3736 = scmp.lt.s32.totalorder %s3733, 15
        %s3737 = scalar_select %p3736, %s3733, 15
        %s3738 = smul.addr %s3737, 2
        %s3739 = smul.addr %s3735, 32
        %s3740 = sadd.s32 %s3738, %s3739
        %s3741 = smul.addr %s3740, 4
        %s3742 = scalar_lea.vmem %s2, %s3741
      $region44: #{basic_block_forward.3} parent=39 // pred_fallthru
        _
      // Predicated region
      $region45: #{basic_block_forward.3} parent=39 // pred_check
        %p3743 = pneg %p128
      $region46: #{basic_block_forward.3} parent=39 // pred_check_branch
        %3745 = sbr.rel (%p3743) target = $region48
      $region47: #{basic_block_forward.3} parent=39 // pred_region
        %p3746 = scmp.lt.s32.totalorder %s21, 1
        %s3747 = scalar_select %p3746, %s21, 1
        %p3748 = scmp.lt.s32.totalorder %s22, 0
        %s3749 = scalar_select %p3748, %s22, 0
        %s3750 = sadd.s32 %s3749, %s3747
        %s3751 = smul.addr %s3750, 8
        %s3752 = scalar_lea.vmem %s3, %s3751
      $region48: #{basic_block_forward.3} parent=39 // pred_fallthru
        _
    $region40: #{basic_block_forward.3} parent=5 // pred_fallthru
      _
  $region6: #{basic_block_forward.3} parent=0 // loop_footer
    %s14 = sadd.s32 1, %s10
  $region7: #{basic_block_forward.3} parent=0 // loop_footer_branch
    %9 = sbr.rel target = $region3
  $region8: #{basic_block_forward.3} parent=0 // loop_exit
    _

// kernel: basic_block_forward.4
$region0: #{basic_block_forward.4}
  #allocation0 [shape = 'u32[]', space=smem, size = 0x4, offset = 0x4, fixed_abs, tag = 'smem constant byte address 0x4 - core index']
  #allocation1 [shape = 'u32[72,128]{1,0:T(1,128)}', space=vmem, size = 0x9000, scoped, tag = 'internal scratch']
  #allocation2 [shape = 'bf16[16,16,1152]{2,1,0:T(8,128)(2,1)}', space=vmem, size = 0x90000, scoped, tag = 'scratch operand']
  %s0 = inlined_call_operand.vmem [shape: bf16[2,18,18,128], index: 0, kind: input, shape index: {}]
  %s1 = inlined_call_operand.vmem [shape: bf16[1152,128], index: 1, kind: input, shape index: {}]
  %s2 = inlined_call_operand.vmem [shape: f32[1,128], index: 2, kind: input, shape index: {}]
  %s3 = inlined_call_operand.vmem [shape: f32[1,128], index: 3, kind: input, shape index: {}]
  %s4 = inlined_call_operand.vmem [shape: f32[1,128], index: 4, kind: input, shape index: {}]
  %s5 = inlined_call_operand.vmem [shape: bf16[2,16,16,128], index: 5, kind: output, shape index: {0}]
  %s6 = inlined_call_operand.vmem [shape: f32[2,1,8,128], index: 6, kind: output, shape index: {1}]
  %7 = xla_tuple %s5, %s6
  %s8 = sld [smem:[#allocation0]]
  $region61: #{basic_block_forward.4} parent=0
    _
  %s10 = ssub.s32 1, %s8
  %s11 = scalar_select 0, %s10, %s8
  loop: start=0, step=1, limit=4
  $region2: #{basic_block_forward.4} parent=0 // loop_pre_header
    _
  $region3: #{basic_block_forward.4} parent=0 // loop_header
    %s13 = sphi 0, %s17
    %p14 = scmp.ge.s32.totalorder %s13, 4
    %s20 = sphi 0, %s32
    %s21 = sphi 0, %s28
    %s22 = sphi 0, %s20
    %s23 = sphi 0, %s21
    %s24 = sphi 0, %s22
    %s25 = sphi 0, %s23
    %s35 = sphi 0, %s37
    %s38 = sphi 0, %s35
    %s39 = sphi 0, %s38
    %s55 = sphi 0, %s39
    %s59 = sphi 0, %s59
    %s61 = sphi 0, %s59
    %s62 = sphi 0, %s61
    %s76 = sphi 0, %s62
    %s80 = sphi 0, %s80
    %s82 = sphi 0, %s80
    %s83 = sphi 0, %s82
    %s97 = sphi 0, %s83
    %s101 = sphi 0, %s101
    %s103 = sphi 0, %s101
    %s104 = sphi 0, %s103
    %s118 = sphi 0, %s104
    %s122 = sphi 0, %s122
    %s124 = sphi 0, %s122
    %s125 = sphi 0, %s124
    %s139 = sphi 0, %s125
    %s147 = sphi 0, %s149
    %s150 = sphi 0, %s147
    %s151 = sphi 0, %s150
    %s167 = sphi 0, %s151
    %s175 = sphi 0, %s177
    %s178 = sphi 0, %s175
    %s179 = sphi 0, %s178
    %s195 = sphi 0, %s179
  $region4: #{basic_block_forward.4} parent=0 // loop_header_branch
    %16 = sbr.rel (%p14) target = $region8
  $region5: #{basic_block_forward.4} parent=0 // loop_body
    %s18 = ssub.s32 %s13, 1
    %s19 = ssub.s32 %s13, 2
    %s26 = sadd.s32 1, %s21
    %p27 = scmp.ge.s32.totalorder %s26, 1
    %s28 = scalar_select %p27, 0, %s26
    %s29 = sadd.s32 1, %s20
    %s30 = scalar_select %p27, %s29, %s20
    %p31 = scmp.ge.s32.totalorder %s30, 2
    %s32 = scalar_select %p31, 0, %s30
    %s33 = ssub.s32 %s20, %s32
    %p34 = scmp.eq.s32.totalorder %s33, 0
    %s36 = sadd.s32 %s35, 1
    %s37 = scalar_select %p34, %s35, %s36
    %p40 = pneg %p34
    %p41 = scmp.eq.s32.totalorder %s13, 1
    %p42 = por %p40, %p41
    %p43 = scmp.ne.s32.totalorder %s35, %s38
    %p44 = scmp.eq.s32.totalorder %s13, 0
    %p45 = por %p43, %p44
    %p46 = scmp.ne.s32.totalorder %s35, %s38
    %p47 = scmp.eq.s32.totalorder %s18, 1
    %p48 = por %p46, %p47
    %p49 = scmp.ne.s32.totalorder %s38, %s39
    %p50 = scmp.eq.s32.totalorder %s18, 0
    %p51 = por %p49, %p50
    %p52 = scmp.ne.s32.totalorder %s38, %s39
    %p53 = scmp.eq.s32.totalorder %s19, 1
    %p54 = por %p52, %p53
    %p56 = scmp.ne.s32.totalorder %s39, %s55
    %p57 = scmp.eq.s32.totalorder %s19, 0
    %p58 = por %p56, %p57
    %s60 = sadd.s32 %s59, 1
    %p63 = scmp.eq.s32.totalorder %s13, 1
    %p64 = scmp.ne.s32.totalorder %s59, %s61
    %p65 = scmp.eq.s32.totalorder %s13, 0
    %p66 = por %p64, %p65
    %p67 = scmp.ne.s32.totalorder %s59, %s61
    %p68 = scmp.eq.s32.totalorder %s18, 1
    %p69 = por %p67, %p68
    %p70 = scmp.ne.s32.totalorder %s61, %s62
    %p71 = scmp.eq.s32.totalorder %s18, 0
    %p72 = por %p70, %p71
    %p73 = scmp.ne.s32.totalorder %s61, %s62
    %p74 = scmp.eq.s32.totalorder %s19, 1
    %p75 = por %p73, %p74
    %p77 = scmp.ne.s32.totalorder %s62, %s76
    %p78 = scmp.eq.s32.totalorder %s19, 0
    %p79 = por %p77, %p78
    %s81 = sadd.s32 %s80, 1
    %p84 = scmp.eq.s32.totalorder %s13, 1
    %p85 = scmp.ne.s32.totalorder %s80, %s82
    %p86 = scmp.eq.s32.totalorder %s13, 0
    %p87 = por %p85, %p86
    %p88 = scmp.ne.s32.totalorder %s80, %s82
    %p89 = scmp.eq.s32.totalorder %s18, 1
    %p90 = por %p88, %p89
    %p91 = scmp.ne.s32.totalorder %s82, %s83
    %p92 = scmp.eq.s32.totalorder %s18, 0
    %p93 = por %p91, %p92
    %p94 = scmp.ne.s32.totalorder %s82, %s83
    %p95 = scmp.eq.s32.totalorder %s19, 1
    %p96 = por %p94, %p95
    %p98 = scmp.ne.s32.totalorder %s83, %s97
    %p99 = scmp.eq.s32.totalorder %s19, 0
    %p100 = por %p98, %p99
    %s102 = sadd.s32 %s101, 1
    %p105 = scmp.eq.s32.totalorder %s13, 1
    %p106 = scmp.ne.s32.totalorder %s101, %s103
    %p107 = scmp.eq.s32.totalorder %s13, 0
    %p108 = por %p106, %p107
    %p109 = scmp.ne.s32.totalorder %s101, %s103
    %p110 = scmp.eq.s32.totalorder %s18, 1
    %p111 = por %p109, %p110
    %p112 = scmp.ne.s32.totalorder %s103, %s104
    %p113 = scmp.eq.s32.totalorder %s18, 0
    %p114 = por %p112, %p113
    %p115 = scmp.ne.s32.totalorder %s103, %s104
    %p116 = scmp.eq.s32.totalorder %s19, 1
    %p117 = por %p115, %p116
    %p119 = scmp.ne.s32.totalorder %s104, %s118
    %p120 = scmp.eq.s32.totalorder %s19, 0
    %p121 = por %p119, %p120
    %s123 = sadd.s32 %s122, 1
    %p126 = scmp.eq.s32.totalorder %s13, 1
    %p127 = scmp.ne.s32.totalorder %s122, %s124
    %p128 = scmp.eq.s32.totalorder %s13, 0
    %p129 = por %p127, %p128
    %p130 = scmp.ne.s32.totalorder %s122, %s124
    %p131 = scmp.eq.s32.totalorder %s18, 1
    %p132 = por %p130, %p131
    %p133 = scmp.ne.s32.totalorder %s124, %s125
    %p134 = scmp.eq.s32.totalorder %s18, 0
    %p135 = por %p133, %p134
    %p136 = scmp.ne.s32.totalorder %s124, %s125
    %p137 = scmp.eq.s32.totalorder %s19, 1
    %p138 = por %p136, %p137
    %p140 = scmp.ne.s32.totalorder %s125, %s139
    %p141 = scmp.eq.s32.totalorder %s19, 0
    %p142 = por %p140, %p141
    %s143 = ssub.s32 %s20, %s32
    %s144 = ssub.s32 %s21, %s28
    %s145 = sor.u32 %s143, %s144
    %p146 = scmp.eq.s32.totalorder %s145, 0
    %s148 = sadd.s32 %s147, 1
    %s149 = scalar_select %p146, %s147, %s148
    %p152 = pneg %p146
    %p153 = scmp.eq.s32.totalorder %s13, 1
    %p154 = por %p152, %p153
    %p155 = scmp.ne.s32.totalorder %s147, %s150
    %p156 = scmp.eq.s32.totalorder %s13, 0
    %p157 = por %p155, %p156
    %p158 = scmp.ne.s32.totalorder %s147, %s150
    %p159 = scmp.eq.s32.totalorder %s18, 1
    %p160 = por %p158, %p159
    %p161 = scmp.ne.s32.totalorder %s150, %s151
    %p162 = scmp.eq.s32.totalorder %s18, 0
    %p163 = por %p161, %p162
    %p164 = scmp.ne.s32.totalorder %s150, %s151
    %p165 = scmp.eq.s32.totalorder %s19, 1
    %p166 = por %p164, %p165
    %p168 = scmp.ne.s32.totalorder %s151, %s167
    %p169 = scmp.eq.s32.totalorder %s19, 0
    %p170 = por %p168, %p169
    %s171 = ssub.s32 %s20, %s32
    %s172 = ssub.s32 %s21, %s28
    %s173 = sor.u32 %s171, %s172
    %p174 = scmp.eq.s32.totalorder %s173, 0
    %s176 = sadd.s32 %s175, 1
    %s177 = scalar_select %p174, %s175, %s176
    %p180 = pneg %p174
    %p181 = scmp.eq.s32.totalorder %s13, 1
    %p182 = por %p180, %p181
    %p183 = scmp.ne.s32.totalorder %s175, %s178
    %p184 = scmp.eq.s32.totalorder %s13, 0
    %p185 = por %p183, %p184
    %p186 = scmp.ne.s32.totalorder %s175, %s178
    %p187 = scmp.eq.s32.totalorder %s18, 1
    %p188 = por %p186, %p187
    %p189 = scmp.ne.s32.totalorder %s178, %s179
    %p190 = scmp.eq.s32.totalorder %s18, 0
    %p191 = por %p189, %p190
    %p192 = scmp.ne.s32.totalorder %s178, %s179
    %p193 = scmp.eq.s32.totalorder %s19, 1
    %p194 = por %p192, %p193
    %p196 = scmp.ne.s32.totalorder %s179, %s195
    %p197 = scmp.eq.s32.totalorder %s19, 0
    %p198 = por %p196, %p197
    %p199 = scmp.le.s32.totalorder 1, %s13
    %p200 = scmp.lt.s32.totalorder %s13, 3
    %p201 = pnand %p199, %p200
    %p202 = pneg %p201
    // Predicated region
    $region9: #{basic_block_forward.4} parent=5 // pred_check
      _
    $region10: #{basic_block_forward.4} parent=5 // pred_check_branch
      %204 = sbr.rel (%p201) target = $region12
    $region11: #{basic_block_forward.4} parent=5 // pred_region
      %s205 = ssub.s32 %s13, 1
      // Predicated region
      $region13: #{basic_block_forward.4} parent=11 // pred_check
        %p206 = pneg %p72
      $region14: #{basic_block_forward.4} parent=11 // pred_check_branch
        %208 = sbr.rel (%p206) target = $region16
      $region15: #{basic_block_forward.4} parent=11 // pred_region
        _
      $region16: #{basic_block_forward.4} parent=11 // pred_fallthru
        _
      // Predicated region
      $region17: #{basic_block_forward.4} parent=11 // pred_check
        %p209 = pneg %p93
      $region18: #{basic_block_forward.4} parent=11 // pred_check_branch
        %211 = sbr.rel (%p209) target = $region20
      $region19: #{basic_block_forward.4} parent=11 // pred_region
        _
      $region20: #{basic_block_forward.4} parent=11 // pred_fallthru
        _
      // Predicated region
      $region21: #{basic_block_forward.4} parent=11 // pred_check
        %p212 = pneg %p114
      $region22: #{basic_block_forward.4} parent=11 // pred_check_branch
        %214 = sbr.rel (%p212) target = $region24
      $region23: #{basic_block_forward.4} parent=11 // pred_region
        _
      $region24: #{basic_block_forward.4} parent=11 // pred_fallthru
        _
      // Predicated region
      $region25: #{basic_block_forward.4} parent=11 // pred_check
        %p215 = pneg %p135
      $region26: #{basic_block_forward.4} parent=11 // pred_check_branch
        %217 = sbr.rel (%p215) target = $region28
      $region27: #{basic_block_forward.4} parent=11 // pred_region
        _
      $region28: #{basic_block_forward.4} parent=11 // pred_fallthru
        _
    $region12: #{basic_block_forward.4} parent=5 // pred_fallthru
      _
    %p218 = scmp.lt.s32.totalorder %s13, 2
    // Predicated region
    $region29: #{basic_block_forward.4} parent=5 // pred_check
      %p219 = pneg %p218
    $region30: #{basic_block_forward.4} parent=5 // pred_check_branch
      %221 = sbr.rel (%p219) target = $region32
    $region31: #{basic_block_forward.4} parent=5 // pred_region
      // Predicated region
      $region33: #{basic_block_forward.4} parent=31 // pred_check
        %p222 = pneg %p45
      $region34: #{basic_block_forward.4} parent=31 // pred_check_branch
        %224 = sbr.rel (%p222) target = $region36
      $region35: #{basic_block_forward.4} parent=31 // pred_region
        %p225 = scmp.lt.s32.totalorder %s20, 1
        %s226 = scalar_select %p225, %s20, 1
        %s227 = smul.addr %s226, 54
        %s228 = smul.addr %s227, 4
        %s229 = scalar_lea.vmem %s0, %s228
      $region36: #{basic_block_forward.4} parent=31 // pred_fallthru
        _
    $region32: #{basic_block_forward.4} parent=5 // pred_fallthru
      _
    %p230 = scmp.le.s32.totalorder 1, %s13
    %p231 = scmp.lt.s32.totalorder %s13, 3
    %p232 = pnand %p230, %p231
    %p233 = pneg %p232
    // Predicated region
    $region37: #{basic_block_forward.4} parent=5 // pred_check
      _
    $region38: #{basic_block_forward.4} parent=5 // pred_check_branch
      %235 = sbr.rel (%p232) target = $region40
    $region39: #{basic_block_forward.4} parent=5 // pred_region
      %s236 = ssub.s32 %s13, 1
      %p237 = scmp.lt.s32.totalorder %s22, 1
      %s238 = scalar_select %p237, %s22, 1
      %s239 = smul.addr %s238, 54
      %s240 = smul.addr %s239, 4
      %s241 = scalar_lea.vmem %s0, %s240
      %p242 = pneg %p51
      %p243 = pneg %p48
      %p244 = pneg %p72
      %p245 = pneg %p69
      %p246 = pneg %p93
      %p247 = pneg %p90
      %p248 = pneg %p114
      %p249 = pneg %p111
      %p250 = pneg %p135
      %p251 = pneg %p132
      %p252 = pneg %p163
      %p253 = pneg %p160
      %s254 = smul.u32 16, %s23
      %p255 = scmp.lt.s32.totalorder %s22, 1
      %s256 = scalar_select %p255, %s22, 1
      %p257 = scmp.lt.s32.totalorder %s254, 15
      %s258 = scalar_select %p257, %s254, 15
      %s259 = smul.addr %s258, 2
      %s260 = smul.addr %s256, 32
      %s261 = sadd.s32 %s259, %s260
      %s262 = smul.addr %s261, 4
      %s263 = scalar_lea.vmem %s5, %s262
      %p264 = pneg %p191
      %p265 = pneg %p188
      %p266 = scmp.lt.s32.totalorder %s22, 1
      %s267 = scalar_select %p266, %s22, 1
      %p268 = scmp.lt.s32.totalorder %s23, 0
      %s269 = scalar_select %p268, %s23, 0
      %s270 = sadd.s32 %s269, %s267
      %s271 = smul.addr %s270, 8
      %s272 = scalar_lea.vmem %s6, %s271
      %p273 = scmp.lt.s32.totalorder %s22, 1
      %s274 = scalar_select %p273, %s22, 1
      %s275 = smul.addr %s274, 54
      %s276 = smul.addr %s275, 4
      %s277 = scalar_lea.vmem %s0, %s276
      %s278 = smul.u32 16, %s23
      %p279 = scmp.lt.s32.totalorder %s22, 1
      %s280 = scalar_select %p279, %s22, 1
      %p281 = scmp.lt.s32.totalorder %s278, 15
      %s282 = scalar_select %p281, %s278, 15
      %s283 = smul.addr %s282, 2
      %s284 = smul.addr %s280, 32
      %s285 = sadd.s32 %s283, %s284
      %s286 = smul.addr %s285, 4
      %s287 = scalar_lea.vmem %s5, %s286
      %s288 = smul.u32 16, %s23
      %p289 = scmp.lt.s32.totalorder %s22, 1
      %s290 = scalar_select %p289, %s22, 1
      %p291 = scmp.lt.s32.totalorder %s23, 0
      %s292 = scalar_select %p291, %s23, 0
      %s293 = sadd.s32 %s292, %s290
      %s294 = smul.addr %s293, 8
      %s295 = scalar_lea.vmem %s6, %s294
      %s296 = smul.u32 %s23, 16
      %s297 = smul.u32 %s296, 3
      %s298 = smul.addr %s297, 4
      %s299 = scalar_lea.vmem %s277, %s298
      %v300 = vld [vmem:[%s299] sm:$0xf]
      %v301 = vld [vmem:[%s299 + $0x4] sm:$0xf]
      %v302 = vld [vmem:[%s299 + $0x8] sm:$0x1]
      %v303 = vld [vmem:[%s299 + $0xc] sm:$0xf]
      %v304 = vld [vmem:[%s299 + $0x10] sm:$0xf]
      %v305 = vld [vmem:[%s299 + $0x14] sm:$0x1]
      %v306 = vld [vmem:[%s299 + $0x18] sm:$0xf]
      %v307 = vld [vmem:[%s299 + $0x1c] sm:$0xf]
      %v308 = vld [vmem:[%s299 + $0x20] sm:$0x1]
      %v309 = vld [vmem:[%s299 + $0x24] sm:$0xf]
      %v310 = vld [vmem:[%s299 + $0x28] sm:$0xf]
      %v311 = vld [vmem:[%s299 + $0x2c] sm:$0x1]
      %v312 = vld [vmem:[%s299 + $0x30] sm:$0xf]
      %v313 = vld [vmem:[%s299 + $0x34] sm:$0xf]
      %v314 = vld [vmem:[%s299 + $0x38] sm:$0x1]
      %v315 = vld [vmem:[%s299 + $0x3c] sm:$0xf]
      %v316 = vld [vmem:[%s299 + $0x40] sm:$0xf]
      %v317 = vld [vmem:[%s299 + $0x44] sm:$0x1]
      %v318 = vld [vmem:[%s299 + $0x48] sm:$0xf]
      %v319 = vld [vmem:[%s299 + $0x4c] sm:$0xf]
      %v320 = vld [vmem:[%s299 + $0x50] sm:$0x1]
      %v321 = vld [vmem:[%s299 + $0x54] sm:$0xf]
      %v322 = vld [vmem:[%s299 + $0x58] sm:$0xf]
      %v323 = vld [vmem:[%s299 + $0x5c] sm:$0x1]
      %v324 = vld [vmem:[%s299 + $0x60] sm:$0xf]
      %v325 = vld [vmem:[%s299 + $0x64] sm:$0xf]
      %v326 = vld [vmem:[%s299 + $0x68] sm:$0x1]
      %v327 = vld [vmem:[%s299 + $0x6c] sm:$0xf]
      %v328 = vld [vmem:[%s299 + $0x70] sm:$0xf]
      %v329 = vld [vmem:[%s299 + $0x74] sm:$0x1]
      %v330 = vld [vmem:[%s299 + $0x78] sm:$0xf]
      %v331 = vld [vmem:[%s299 + $0x7c] sm:$0xf]
      %v332 = vld [vmem:[%s299 + $0x80] sm:$0x1]
      %v333 = vld [vmem:[%s299 + $0x84] sm:$0xf]
      %v334 = vld [vmem:[%s299 + $0x88] sm:$0xf]
      %v335 = vld [vmem:[%s299 + $0x8c] sm:$0x1]
      %v336 = vld [vmem:[%s299 + $0x90] sm:$0xf]
      %v337 = vld [vmem:[%s299 + $0x94] sm:$0xf]
      %v338 = vld [vmem:[%s299 + $0x98] sm:$0x1]
      %v339 = vld [vmem:[%s299 + $0x9c] sm:$0xf]
      %v340 = vld [vmem:[%s299 + $0xa0] sm:$0xf]
      %v341 = vld [vmem:[%s299 + $0xa4] sm:$0x1]
      %v342 = vld [vmem:[%s299 + $0xa8] sm:$0xf]
      %v343 = vld [vmem:[%s299 + $0xac] sm:$0xf]
      %v344 = vld [vmem:[%s299 + $0xb0] sm:$0x1]
      %v345 = vld [vmem:[%s299 + $0xb4] sm:$0xf]
      %v346 = vld [vmem:[%s299 + $0xb8] sm:$0xf]
      %v347 = vld [vmem:[%s299 + $0xbc] sm:$0x1]
      %v348 = vld [vmem:[%s299 + $0xc0] sm:$0xf]
      %v349 = vld [vmem:[%s299 + $0xc4] sm:$0xf]
      %v350 = vld [vmem:[%s299 + $0xc8] sm:$0x1]
      %v351 = vld [vmem:[%s299 + $0xcc] sm:$0xf]
      %v352 = vld [vmem:[%s299 + $0xd0] sm:$0xf]
      %v353 = vld [vmem:[%s299 + $0xd4] sm:$0x1]
      %v354 = vld [vmem:[%s2] sm:$0x1]
      %v355 = vld [vmem:[%s3] sm:$0x1]
      %v356 = vld [vmem:[%s4] sm:$0x1]
      %v357 = vunpack.c.l.bf16 %v300
      %v358 = vunpack.c.l.bf16 %v301
      %v359 = vunpack.c.l.bf16 %v302
      %v360 = vunpack.c.l.bf16 %v303
      %v361 = vunpack.c.l.bf16 %v304
      %v362 = vunpack.c.l.bf16 %v305
      %v363 = vunpack.c.l.bf16 %v306
      %v364 = vunpack.c.l.bf16 %v307
      %v365 = vunpack.c.l.bf16 %v308
      %v366 = vunpack.c.l.bf16 %v309
      %v367 = vunpack.c.l.bf16 %v310
      %v368 = vunpack.c.l.bf16 %v311
      %v369 = vunpack.c.l.bf16 %v312
      %v370 = vunpack.c.l.bf16 %v313
      %v371 = vunpack.c.l.bf16 %v314
      %v372 = vunpack.c.l.bf16 %v315
      %v373 = vunpack.c.l.bf16 %v316
      %v374 = vunpack.c.l.bf16 %v317
      %v375 = vunpack.c.l.bf16 %v318
      %v376 = vunpack.c.l.bf16 %v319
      %v377 = vunpack.c.l.bf16 %v320
      %v378 = vunpack.c.l.bf16 %v321
      %v379 = vunpack.c.l.bf16 %v322
      %v380 = vunpack.c.l.bf16 %v323
      %v381 = vunpack.c.l.bf16 %v324
      %v382 = vunpack.c.l.bf16 %v325
      %v383 = vunpack.c.l.bf16 %v326
      %v384 = vunpack.c.l.bf16 %v327
      %v385 = vunpack.c.l.bf16 %v328
      %v386 = vunpack.c.l.bf16 %v329
      %v387 = vunpack.c.l.bf16 %v330
      %v388 = vunpack.c.l.bf16 %v331
      %v389 = vunpack.c.l.bf16 %v332
      %v390 = vunpack.c.l.bf16 %v333
      %v391 = vunpack.c.l.bf16 %v334
      %v392 = vunpack.c.l.bf16 %v335
      %v393 = vunpack.c.l.bf16 %v336
      %v394 = vunpack.c.l.bf16 %v337
      %v395 = vunpack.c.l.bf16 %v338
      %v396 = vunpack.c.l.bf16 %v339
      %v397 = vunpack.c.l.bf16 %v340
      %v398 = vunpack.c.l.bf16 %v341
      %v399 = vunpack.c.l.bf16 %v342
      %v400 = vunpack.c.l.bf16 %v343
      %v401 = vunpack.c.l.bf16 %v344
      %v402 = vunpack.c.l.bf16 %v345
      %v403 = vunpack.c.l.bf16 %v346
      %v404 = vunpack.c.l.bf16 %v347
      %v405 = vunpack.c.l.bf16 %v348
      %v406 = vunpack.c.l.bf16 %v349
      %v407 = vunpack.c.l.bf16 %v350
      %v408 = vunpack.c.l.bf16 %v351
      %v409 = vunpack.c.l.bf16 %v352
      %v410 = vunpack.c.l.bf16 %v353
      %v412 = vperm.slane %v354, 0
      %v414 = vmul.f32 %v357, %v412
      %v415 = vmul.f32 %v358, %v412
      %v416 = vmul.f32 %v359, %v412
      %v417 = vmul.f32 %v360, %v412
      %v418 = vmul.f32 %v361, %v412
      %v419 = vmul.f32 %v362, %v412
      %v420 = vmul.f32 %v363, %v412
      %v421 = vmul.f32 %v364, %v412
      %v422 = vmul.f32 %v365, %v412
      %v423 = vmul.f32 %v366, %v412
      %v424 = vmul.f32 %v367, %v412
      %v425 = vmul.f32 %v368, %v412
      %v426 = vmul.f32 %v369, %v412
      %v427 = vmul.f32 %v370, %v412
      %v428 = vmul.f32 %v371, %v412
      %v429 = vmul.f32 %v372, %v412
      %v430 = vmul.f32 %v373, %v412
      %v431 = vmul.f32 %v374, %v412
      %v432 = vmul.f32 %v375, %v412
      %v433 = vmul.f32 %v376, %v412
      %v434 = vmul.f32 %v377, %v412
      %v435 = vmul.f32 %v378, %v412
      %v436 = vmul.f32 %v379, %v412
      %v437 = vmul.f32 %v380, %v412
      %v438 = vmul.f32 %v381, %v412
      %v439 = vmul.f32 %v382, %v412
      %v440 = vmul.f32 %v383, %v412
      %v441 = vmul.f32 %v384, %v412
      %v442 = vmul.f32 %v385, %v412
      %v443 = vmul.f32 %v386, %v412
      %v444 = vmul.f32 %v387, %v412
      %v445 = vmul.f32 %v388, %v412
      %v446 = vmul.f32 %v389, %v412
      %v447 = vmul.f32 %v390, %v412
      %v448 = vmul.f32 %v391, %v412
      %v449 = vmul.f32 %v392, %v412
      %v450 = vmul.f32 %v393, %v412
      %v451 = vmul.f32 %v394, %v412
      %v452 = vmul.f32 %v395, %v412
      %v453 = vmul.f32 %v396, %v412
      %v454 = vmul.f32 %v397, %v412
      %v455 = vmul.f32 %v398, %v412
      %v456 = vmul.f32 %v399, %v412
      %v457 = vmul.f32 %v400, %v412
      %v458 = vmul.f32 %v401, %v412
      %v459 = vmul.f32 %v402, %v412
      %v460 = vmul.f32 %v403, %v412
      %v461 = vmul.f32 %v404, %v412
      %v462 = vmul.f32 %v405, %v412
      %v463 = vmul.f32 %v406, %v412
      %v464 = vmul.f32 %v407, %v412
      %v465 = vmul.f32 %v408, %v412
      %v466 = vmul.f32 %v409, %v412
      %v467 = vmul.f32 %v410, %v412
      %v469 = vperm.slane %v355, 0
      %v471 = vadd.f32 %v414, %v469
      %v472 = vadd.f32 %v415, %v469
      %v473 = vadd.f32 %v416, %v469
      %v474 = vadd.f32 %v417, %v469
      %v475 = vadd.f32 %v418, %v469
      %v476 = vadd.f32 %v419, %v469
      %v477 = vadd.f32 %v420, %v469
      %v478 = vadd.f32 %v421, %v469
      %v479 = vadd.f32 %v422, %v469
      %v480 = vadd.f32 %v423, %v469
      %v481 = vadd.f32 %v424, %v469
      %v482 = vadd.f32 %v425, %v469
      %v483 = vadd.f32 %v426, %v469
      %v484 = vadd.f32 %v427, %v469
      %v485 = vadd.f32 %v428, %v469
      %v486 = vadd.f32 %v429, %v469
      %v487 = vadd.f32 %v430, %v469
      %v488 = vadd.f32 %v431, %v469
      %v489 = vadd.f32 %v432, %v469
      %v490 = vadd.f32 %v433, %v469
      %v491 = vadd.f32 %v434, %v469
      %v492 = vadd.f32 %v435, %v469
      %v493 = vadd.f32 %v436, %v469
      %v494 = vadd.f32 %v437, %v469
      %v495 = vadd.f32 %v438, %v469
      %v496 = vadd.f32 %v439, %v469
      %v497 = vadd.f32 %v440, %v469
      %v498 = vadd.f32 %v441, %v469
      %v499 = vadd.f32 %v442, %v469
      %v500 = vadd.f32 %v443, %v469
      %v501 = vadd.f32 %v444, %v469
      %v502 = vadd.f32 %v445, %v469
      %v503 = vadd.f32 %v446, %v469
      %v504 = vadd.f32 %v447, %v469
      %v505 = vadd.f32 %v448, %v469
      %v506 = vadd.f32 %v449, %v469
      %v507 = vadd.f32 %v450, %v469
      %v508 = vadd.f32 %v451, %v469
      %v509 = vadd.f32 %v452, %v469
      %v510 = vadd.f32 %v453, %v469
      %v511 = vadd.f32 %v454, %v469
      %v512 = vadd.f32 %v455, %v469
      %v513 = vadd.f32 %v456, %v469
      %v514 = vadd.f32 %v457, %v469
      %v515 = vadd.f32 %v458, %v469
      %v516 = vadd.f32 %v459, %v469
      %v517 = vadd.f32 %v460, %v469
      %v518 = vadd.f32 %v461, %v469
      %v519 = vadd.f32 %v462, %v469
      %v520 = vadd.f32 %v463, %v469
      %v521 = vadd.f32 %v464, %v469
      %v522 = vadd.f32 %v465, %v469
      %v523 = vadd.f32 %v466, %v469
      %v524 = vadd.f32 %v467, %v469
      %vm525 = vcmp.ge.f32.partialorder %v471, 0.0
      %vm526 = vcmp.ge.f32.partialorder %v472, 0.0
      %vm527 = vcmp.ge.f32.partialorder %v473, 0.0
      %vm528 = vcmp.ge.f32.partialorder %v474, 0.0
      %vm529 = vcmp.ge.f32.partialorder %v475, 0.0
      %vm530 = vcmp.ge.f32.partialorder %v476, 0.0
      %vm531 = vcmp.ge.f32.partialorder %v477, 0.0
      %vm532 = vcmp.ge.f32.partialorder %v478, 0.0
      %vm533 = vcmp.ge.f32.partialorder %v479, 0.0
      %vm534 = vcmp.ge.f32.partialorder %v480, 0.0
      %vm535 = vcmp.ge.f32.partialorder %v481, 0.0
      %vm536 = vcmp.ge.f32.partialorder %v482, 0.0
      %vm537 = vcmp.ge.f32.partialorder %v483, 0.0
      %vm538 = vcmp.ge.f32.partialorder %v484, 0.0
      %vm539 = vcmp.ge.f32.partialorder %v485, 0.0
      %vm540 = vcmp.ge.f32.partialorder %v486, 0.0
      %vm541 = vcmp.ge.f32.partialorder %v487, 0.0
      %vm542 = vcmp.ge.f32.partialorder %v488, 0.0
      %vm543 = vcmp.ge.f32.partialorder %v489, 0.0
      %vm544 = vcmp.ge.f32.partialorder %v490, 0.0
      %vm545 = vcmp.ge.f32.partialorder %v491, 0.0
      %vm546 = vcmp.ge.f32.partialorder %v492, 0.0
      %vm547 = vcmp.ge.f32.partialorder %v493, 0.0
      %vm548 = vcmp.ge.f32.partialorder %v494, 0.0
      %vm549 = vcmp.ge.f32.partialorder %v495, 0.0
      %vm550 = vcmp.ge.f32.partialorder %v496, 0.0
      %vm551 = vcmp.ge.f32.partialorder %v497, 0.0
      %vm552 = vcmp.ge.f32.partialorder %v498, 0.0
      %vm553 = vcmp.ge.f32.partialorder %v499, 0.0
      %vm554 = vcmp.ge.f32.partialorder %v500, 0.0
      %vm555 = vcmp.ge.f32.partialorder %v501, 0.0
      %vm556 = vcmp.ge.f32.partialorder %v502, 0.0
      %vm557 = vcmp.ge.f32.partialorder %v503, 0.0
      %vm558 = vcmp.ge.f32.partialorder %v504, 0.0
      %vm559 = vcmp.ge.f32.partialorder %v505, 0.0
      %vm560 = vcmp.ge.f32.partialorder %v506, 0.0
      %vm561 = vcmp.ge.f32.partialorder %v507, 0.0
      %vm562 = vcmp.ge.f32.partialorder %v508, 0.0
      %vm563 = vcmp.ge.f32.partialorder %v509, 0.0
      %vm564 = vcmp.ge.f32.partialorder %v510, 0.0
      %vm565 = vcmp.ge.f32.partialorder %v511, 0.0
      %vm566 = vcmp.ge.f32.partialorder %v512, 0.0
      %vm567 = vcmp.ge.f32.partialorder %v513, 0.0
      %vm568 = vcmp.ge.f32.partialorder %v514, 0.0
      %vm569 = vcmp.ge.f32.partialorder %v515, 0.0
      %vm570 = vcmp.ge.f32.partialorder %v516, 0.0
      %vm571 = vcmp.ge.f32.partialorder %v517, 0.0
      %vm572 = vcmp.ge.f32.partialorder %v518, 0.0
      %vm573 = vcmp.ge.f32.partialorder %v519, 0.0
      %vm574 = vcmp.ge.f32.partialorder %v520, 0.0
      %vm575 = vcmp.ge.f32.partialorder %v521, 0.0
      %vm576 = vcmp.ge.f32.partialorder %v522, 0.0
      %vm577 = vcmp.ge.f32.partialorder %v523, 0.0
      %vm578 = vcmp.ge.f32.partialorder %v524, 0.0
      %v580 = vperm.slane %v356, 0
      %v582 = vmul.f32 %v580, %v471
      %v583 = vmul.f32 %v580, %v472
      %v584 = vmul.f32 %v580, %v473
      %v585 = vmul.f32 %v580, %v474
      %v586 = vmul.f32 %v580, %v475
      %v587 = vmul.f32 %v580, %v476
      %v588 = vmul.f32 %v580, %v477
      %v589 = vmul.f32 %v580, %v478
      %v590 = vmul.f32 %v580, %v479
      %v591 = vmul.f32 %v580, %v480
      %v592 = vmul.f32 %v580, %v481
      %v593 = vmul.f32 %v580, %v482
      %v594 = vmul.f32 %v580, %v483
      %v595 = vmul.f32 %v580, %v484
      %v596 = vmul.f32 %v580, %v485
      %v597 = vmul.f32 %v580, %v486
      %v598 = vmul.f32 %v580, %v487
      %v599 = vmul.f32 %v580, %v488
      %v600 = vmul.f32 %v580, %v489
      %v601 = vmul.f32 %v580, %v490
      %v602 = vmul.f32 %v580, %v491
      %v603 = vmul.f32 %v580, %v492
      %v604 = vmul.f32 %v580, %v493
      %v605 = vmul.f32 %v580, %v494
      %v606 = vmul.f32 %v580, %v495
      %v607 = vmul.f32 %v580, %v496
      %v608 = vmul.f32 %v580, %v497
      %v609 = vmul.f32 %v580, %v498
      %v610 = vmul.f32 %v580, %v499
      %v611 = vmul.f32 %v580, %v500
      %v612 = vmul.f32 %v580, %v501
      %v613 = vmul.f32 %v580, %v502
      %v614 = vmul.f32 %v580, %v503
      %v615 = vmul.f32 %v580, %v504
      %v616 = vmul.f32 %v580, %v505
      %v617 = vmul.f32 %v580, %v506
      %v618 = vmul.f32 %v580, %v507
      %v619 = vmul.f32 %v580, %v508
      %v620 = vmul.f32 %v580, %v509
      %v621 = vmul.f32 %v580, %v510
      %v622 = vmul.f32 %v580, %v511
      %v623 = vmul.f32 %v580, %v512
      %v624 = vmul.f32 %v580, %v513
      %v625 = vmul.f32 %v580, %v514
      %v626 = vmul.f32 %v580, %v515
      %v627 = vmul.f32 %v580, %v516
      %v628 = vmul.f32 %v580, %v517
      %v629 = vmul.f32 %v580, %v518
      %v630 = vmul.f32 %v580, %v519
      %v631 = vmul.f32 %v580, %v520
      %v632 = vmul.f32 %v580, %v521
      %v633 = vmul.f32 %v580, %v522
      %v634 = vmul.f32 %v580, %v523
      %v635 = vmul.f32 %v580, %v524
      %v636 = vsel %vm525, %v471, %v582
      %v637 = vsel %vm526, %v472, %v583
      %v638 = vsel %vm527, %v473, %v584
      %v639 = vsel %vm528, %v474, %v585
      %v640 = vsel %vm529, %v475, %v586
      %v641 = vsel %vm530, %v476, %v587
      %v642 = vsel %vm531, %v477, %v588
      %v643 = vsel %vm532, %v478, %v589
      %v644 = vsel %vm533, %v479, %v590
      %v645 = vsel %vm534, %v480, %v591
      %v646 = vsel %vm535, %v481, %v592
      %v647 = vsel %vm536, %v482, %v593
      %v648 = vsel %vm537, %v483, %v594
      %v649 = vsel %vm538, %v484, %v595
      %v650 = vsel %vm539, %v485, %v596
      %v651 = vsel %vm540, %v486, %v597
      %v652 = vsel %vm541, %v487, %v598
      %v653 = vsel %vm542, %v488, %v599
      %v654 = vsel %vm543, %v489, %v600
      %v655 = vsel %vm544, %v490, %v601
      %v656 = vsel %vm545, %v491, %v602
      %v657 = vsel %vm546, %v492, %v603
      %v658 = vsel %vm547, %v493, %v604
      %v659 = vsel %vm548, %v494, %v605
      %v660 = vsel %vm549, %v495, %v606
      %v661 = vsel %vm550, %v496, %v607
      %v662 = vsel %vm551, %v497, %v608
      %v663 = vsel %vm552, %v498, %v609
      %v664 = vsel %vm553, %v499, %v610
      %v665 = vsel %vm554, %v500, %v611
      %v666 = vsel %vm555, %v501, %v612
      %v667 = vsel %vm556, %v502, %v613
      %v668 = vsel %vm557, %v503, %v614
      %v669 = vsel %vm558, %v504, %v615
      %v670 = vsel %vm559, %v505, %v616
      %v671 = vsel %vm560, %v506, %v617
      %v672 = vsel %vm561, %v507, %v618
      %v673 = vsel %vm562, %v508, %v619
      %v674 = vsel %vm563, %v509, %v620
      %v675 = vsel %vm564, %v510, %v621
      %v676 = vsel %vm565, %v511, %v622
      %v677 = vsel %vm566, %v512, %v623
      %v678 = vsel %vm567, %v513, %v624
      %v679 = vsel %vm568, %v514, %v625
      %v680 = vsel %vm569, %v515, %v626
      %v681 = vsel %vm570, %v516, %v627
      %v682 = vsel %vm571, %v517, %v628
      %v683 = vsel %vm572, %v518, %v629
      %v684 = vsel %vm573, %v519, %v630
      %v685 = vsel %vm574, %v520, %v631
      %v686 = vsel %vm575, %v521, %v632
      %v687 = vsel %vm576, %v522, %v633
      %v688 = vsel %vm577, %v523, %v634
      %v689 = vsel %vm578, %v524, %v635
      %v690 = vstv %s296
      %v691 = vadd.s32 %v690, 1
      %v692 = vadd.s32 %v690, 2
      %v693 = vadd.s32 %v690, 3
      %v694 = vadd.s32 %v690, 4
      %v695 = vadd.s32 %v690, 5
      %v696 = vadd.s32 %v690, 6
      %v697 = vadd.s32 %v690, 7
      %v698 = vadd.s32 %v690, 8
      %v699 = vadd.s32 %v690, 9
      %v700 = vadd.s32 %v690, 10
      %v701 = vadd.s32 %v690, 11
      %v702 = vadd.s32 %v690, 12
      %v703 = vadd.s32 %v690, 13
      %v704 = vadd.s32 %v690, 14
      %v705 = vadd.s32 %v690, 15
      %v706 = vadd.s32 %v690, 16
      %v707 = vadd.s32 %v690, 17
      %v708 = vlaneseq
      %v709 = vshrl.u32 %v708, 7
      %v710 = vadd.s32 %v709, 8
      %v711 = vadd.s32 %v709, 16
      %vm712 = vcmp.ge.s32.totalorder %v690, 1
      %vm713 = vcmp.ge.s32.totalorder %v691, 1
      %vm714 = vcmp.ge.s32.totalorder %v692, 1
      %vm715 = vcmp.ge.s32.totalorder %v693, 1
      %vm716 = vcmp.ge.s32.totalorder %v694, 1
      %vm717 = vcmp.ge.s32.totalorder %v695, 1
      %vm718 = vcmp.ge.s32.totalorder %v696, 1
      %vm719 = vcmp.ge.s32.totalorder %v697, 1
      %vm720 = vcmp.ge.s32.totalorder %v698, 1
      %vm721 = vcmp.ge.s32.totalorder %v699, 1
      %vm722 = vcmp.ge.s32.totalorder %v700, 1
      %vm723 = vcmp.ge.s32.totalorder %v701, 1
      %vm724 = vcmp.ge.s32.totalorder %v702, 1
      %vm725 = vcmp.ge.s32.totalorder %v703, 1
      %vm726 = vcmp.ge.s32.totalorder %v704, 1
      %vm727 = vcmp.ge.s32.totalorder %v705, 1
      %vm728 = vcmp.ge.s32.totalorder %v706, 1
      %vm729 = vcmp.ge.s32.totalorder %v707, 1
      %vm730 = vcmp.le.s32.totalorder %v690, 16
      %vm731 = vcmp.le.s32.totalorder %v691, 16
      %vm732 = vcmp.le.s32.totalorder %v692, 16
      %vm733 = vcmp.le.s32.totalorder %v693, 16
      %vm734 = vcmp.le.s32.totalorder %v694, 16
      %vm735 = vcmp.le.s32.totalorder %v695, 16
      %vm736 = vcmp.le.s32.totalorder %v696, 16
      %vm737 = vcmp.le.s32.totalorder %v697, 16
      %vm738 = vcmp.le.s32.totalorder %v698, 16
      %vm739 = vcmp.le.s32.totalorder %v699, 16
      %vm740 = vcmp.le.s32.totalorder %v700, 16
      %vm741 = vcmp.le.s32.totalorder %v701, 16
      %vm742 = vcmp.le.s32.totalorder %v702, 16
      %vm743 = vcmp.le.s32.totalorder %v703, 16
      %vm744 = vcmp.le.s32.totalorder %v704, 16
      %vm745 = vcmp.le.s32.totalorder %v705, 16
      %vm746 = vcmp.le.s32.totalorder %v706, 16
      %vm747 = vcmp.le.s32.totalorder %v707, 16
      %vm748 = vmand %vm712, %vm730
      %vm749 = vmand %vm713, %vm731
      %vm750 = vmand %vm714, %vm732
      %vm751 = vmand %vm715, %vm733
      %vm752 = vmand %vm716, %vm734
      %vm753 = vmand %vm717, %vm735
      %vm754 = vmand %vm718, %vm736
      %vm755 = vmand %vm719, %vm737
      %vm756 = vmand %vm720, %vm738
      %vm757 = vmand %vm721, %vm739
      %vm758 = vmand %vm722, %vm740
      %vm759 = vmand %vm723, %vm741
      %vm760 = vmand %vm724, %vm742
      %vm761 = vmand %vm725, %vm743
      %vm762 = vmand %vm726, %vm744
      %vm763 = vmand %vm727, %vm745
      %vm764 = vmand %vm728, %vm746
      %vm765 = vmand %vm729, %vm747
      %vm766 = vcmp.ge.s32.totalorder %v709, 1
      %vm767 = vcmp.ge.s32.totalorder %v710, 1
      %vm768 = vcmp.ge.s32.totalorder %v711, 1
      %vm769 = vmand %vm748, %vm766
      %vm770 = vmand %vm748, %vm767
      %vm771 = vmand %vm748, %vm768
      %vm772 = vmand %vm749, %vm766
      %vm773 = vmand %vm749, %vm767
      %vm774 = vmand %vm749, %vm768
      %vm775 = vmand %vm750, %vm766
      %vm776 = vmand %vm750, %vm767
      %vm777 = vmand %vm750, %vm768
      %vm778 = vmand %vm751, %vm766
      %vm779 = vmand %vm751, %vm767
      %vm780 = vmand %vm751, %vm768
      %vm781 = vmand %vm752, %vm766
      %vm782 = vmand %vm752, %vm767
      %vm783 = vmand %vm752, %vm768
      %vm784 = vmand %vm753, %vm766
      %vm785 = vmand %vm753, %vm767
      %vm786 = vmand %vm753, %vm768
      %vm787 = vmand %vm754, %vm766
      %vm788 = vmand %vm754, %vm767
      %vm789 = vmand %vm754, %vm768
      %vm790 = vmand %vm755, %vm766
      %vm791 = vmand %vm755, %vm767
      %vm792 = vmand %vm755, %vm768
      %vm793 = vmand %vm756, %vm766
      %vm794 = vmand %vm756, %vm767
      %vm795 = vmand %vm756, %vm768
      %vm796 = vmand %vm757, %vm766
      %vm797 = vmand %vm757, %vm767
      %vm798 = vmand %vm757, %vm768
      %vm799 = vmand %vm758, %vm766
      %vm800 = vmand %vm758, %vm767
      %vm801 = vmand %vm758, %vm768
      %vm802 = vmand %vm759, %vm766
      %vm803 = vmand %vm759, %vm767
      %vm804 = vmand %vm759, %vm768
      %vm805 = vmand %vm760, %vm766
      %vm806 = vmand %vm760, %vm767
      %vm807 = vmand %vm760, %vm768
      %vm808 = vmand %vm761, %vm766
      %vm809 = vmand %vm761, %vm767
      %vm810 = vmand %vm761, %vm768
      %vm811 = vmand %vm762, %vm766
      %vm812 = vmand %vm762, %vm767
      %vm813 = vmand %vm762, %vm768
      %vm814 = vmand %vm763, %vm766
      %vm815 = vmand %vm763, %vm767
      %vm816 = vmand %vm763, %vm768
      %vm817 = vmand %vm764, %vm766
      %vm818 = vmand %vm764, %vm767
      %vm819 = vmand %vm764, %vm768
      %vm820 = vmand %vm765, %vm766
      %vm821 = vmand %vm765, %vm767
      %vm822 = vmand %vm765, %vm768
      %vm823 = vcmp.le.s32.totalorder %v709, 16
      %vm824 = vcmp.le.s32.totalorder %v710, 16
      %vm825 = vcmp.le.s32.totalorder %v711, 16
      %vm826 = vmand %vm769, %vm823
      %vm827 = vmand %vm770, %vm824
      %vm828 = vmand %vm771, %vm825
      %vm829 = vmand %vm772, %vm823
      %vm830 = vmand %vm773, %vm824
      %vm831 = vmand %vm774, %vm825
      %vm832 = vmand %vm775, %vm823
      %vm833 = vmand %vm776, %vm824
      %vm834 = vmand %vm777, %vm825
      %vm835 = vmand %vm778, %vm823
      %vm836 = vmand %vm779, %vm824
      %vm837 = vmand %vm780, %vm825
      %vm838 = vmand %vm781, %vm823
      %vm839 = vmand %vm782, %vm824
      %vm840 = vmand %vm783, %vm825
      %vm841 = vmand %vm784, %vm823
      %vm842 = vmand %vm785, %vm824
      %vm843 = vmand %vm786, %vm825
      %vm844 = vmand %vm787, %vm823
      %vm845 = vmand %vm788, %vm824
      %vm846 = vmand %vm789, %vm825
      %vm847 = vmand %vm790, %vm823
      %vm848 = vmand %vm791, %vm824
      %vm849 = vmand %vm792, %vm825
      %vm850 = vmand %vm793, %vm823
      %vm851 = vmand %vm794, %vm824
      %vm852 = vmand %vm795, %vm825
      %vm853 = vmand %vm796, %vm823
      %vm854 = vmand %vm797, %vm824
      %vm855 = vmand %vm798, %vm825
      %vm856 = vmand %vm799, %vm823
      %vm857 = vmand %vm800, %vm824
      %vm858 = vmand %vm801, %vm825
      %vm859 = vmand %vm802, %vm823
      %vm860 = vmand %vm803, %vm824
      %vm861 = vmand %vm804, %vm825
      %vm862 = vmand %vm805, %vm823
      %vm863 = vmand %vm806, %vm824
      %vm864 = vmand %vm807, %vm825
      %vm865 = vmand %vm808, %vm823
      %vm866 = vmand %vm809, %vm824
      %vm867 = vmand %vm810, %vm825
      %vm868 = vmand %vm811, %vm823
      %vm869 = vmand %vm812, %vm824
      %vm870 = vmand %vm813, %vm825
      %vm871 = vmand %vm814, %vm823
      %vm872 = vmand %vm815, %vm824
      %vm873 = vmand %vm816, %vm825
      %vm874 = vmand %vm817, %vm823
      %vm875 = vmand %vm818, %vm824
      %vm876 = vmand %vm819, %vm825
      %vm877 = vmand %vm820, %vm823
      %vm878 = vmand %vm821, %vm824
      %vm879 = vmand %vm822, %vm825
      %v880 = vsel %vm826, %v636, 0.0
      %v881 = vsel %vm827, %v637, 0.0
      %v882 = vsel %vm828, %v638, 0.0
      %v883 = vsel %vm829, %v639, 0.0
      %v884 = vsel %vm830, %v640, 0.0
      %v885 = vsel %vm831, %v641, 0.0
      %v886 = vsel %vm832, %v642, 0.0
      %v887 = vsel %vm833, %v643, 0.0
      %v888 = vsel %vm834, %v644, 0.0
      %v889 = vsel %vm835, %v645, 0.0
      %v890 = vsel %vm836, %v646, 0.0
      %v891 = vsel %vm837, %v647, 0.0
      %v892 = vsel %vm838, %v648, 0.0
      %v893 = vsel %vm839, %v649, 0.0
      %v894 = vsel %vm840, %v650, 0.0
      %v895 = vsel %vm841, %v651, 0.0
      %v896 = vsel %vm842, %v652, 0.0
      %v897 = vsel %vm843, %v653, 0.0
      %v898 = vsel %vm844, %v654, 0.0
      %v899 = vsel %vm845, %v655, 0.0
      %v900 = vsel %vm846, %v656, 0.0
      %v901 = vsel %vm847, %v657, 0.0
      %v902 = vsel %vm848, %v658, 0.0
      %v903 = vsel %vm849, %v659, 0.0
      %v904 = vsel %vm850, %v660, 0.0
      %v905 = vsel %vm851, %v661, 0.0
      %v906 = vsel %vm852, %v662, 0.0
      %v907 = vsel %vm853, %v663, 0.0
      %v908 = vsel %vm854, %v664, 0.0
      %v909 = vsel %vm855, %v665, 0.0
      %v910 = vsel %vm856, %v666, 0.0
      %v911 = vsel %vm857, %v667, 0.0
      %v912 = vsel %vm858, %v668, 0.0
      %v913 = vsel %vm859, %v669, 0.0
      %v914 = vsel %vm860, %v670, 0.0
      %v915 = vsel %vm861, %v671, 0.0
      %v916 = vsel %vm862, %v672, 0.0
      %v917 = vsel %vm863, %v673, 0.0
      %v918 = vsel %vm864, %v674, 0.0
      %v919 = vsel %vm865, %v675, 0.0
      %v920 = vsel %vm866, %v676, 0.0
      %v921 = vsel %vm867, %v677, 0.0
      %v922 = vsel %vm868, %v678, 0.0
      %v923 = vsel %vm869, %v679, 0.0
      %v924 = vsel %vm870, %v680, 0.0
      %v925 = vsel %vm871, %v681, 0.0
      %v926 = vsel %vm872, %v682, 0.0
      %v927 = vsel %vm873, %v683, 0.0
      %v928 = vsel %vm874, %v684, 0.0
      %v929 = vsel %vm875, %v685, 0.0
      %v930 = vsel %vm876, %v686, 0.0
      %v931 = vsel %vm877, %v687, 0.0
      %v932 = vsel %vm878, %v688, 0.0
      %v933 = vsel %vm879, %v689, 0.0
      %v934 = vpack.c.bf16 %v880, %v880
      %v935 = vpack.c.bf16 %v881, %v881
      %v936 = vpack.c.bf16 %v882, %v882
      %v937 = vpack.c.bf16 %v883, %v883
      %v938 = vpack.c.bf16 %v884, %v884
      %v939 = vpack.c.bf16 %v885, %v885
      %v940 = vpack.c.bf16 %v886, %v886
      %v941 = vpack.c.bf16 %v887, %v887
      %v942 = vpack.c.bf16 %v888, %v888
      %v943 = vpack.c.bf16 %v889, %v889
      %v944 = vpack.c.bf16 %v890, %v890
      %v945 = vpack.c.bf16 %v891, %v891
      %v946 = vpack.c.bf16 %v892, %v892
      %v947 = vpack.c.bf16 %v893, %v893
      %v948 = vpack.c.bf16 %v894, %v894
      %v949 = vpack.c.bf16 %v895, %v895
      %v950 = vpack.c.bf16 %v896, %v896
      %v951 = vpack.c.bf16 %v897, %v897
      %v952 = vpack.c.bf16 %v898, %v898
      %v953 = vpack.c.bf16 %v899, %v899
      %v954 = vpack.c.bf16 %v900, %v900
      %v955 = vpack.c.bf16 %v901, %v901
      %v956 = vpack.c.bf16 %v902, %v902
      %v957 = vpack.c.bf16 %v903, %v903
      %v958 = vpack.c.bf16 %v904, %v904
      %v959 = vpack.c.bf16 %v905, %v905
      %v960 = vpack.c.bf16 %v906, %v906
      %v961 = vpack.c.bf16 %v907, %v907
      %v962 = vpack.c.bf16 %v908, %v908
      %v963 = vpack.c.bf16 %v909, %v909
      %v964 = vpack.c.bf16 %v910, %v910
      %v965 = vpack.c.bf16 %v911, %v911
      %v966 = vpack.c.bf16 %v912, %v912
      %v967 = vpack.c.bf16 %v913, %v913
      %v968 = vpack.c.bf16 %v914, %v914
      %v969 = vpack.c.bf16 %v915, %v915
      %v970 = vpack.c.bf16 %v916, %v916
      %v971 = vpack.c.bf16 %v917, %v917
      %v972 = vpack.c.bf16 %v918, %v918
      %v973 = vpack.c.bf16 %v919, %v919
      %v974 = vpack.c.bf16 %v920, %v920
      %v975 = vpack.c.bf16 %v921, %v921
      %v976 = vpack.c.bf16 %v922, %v922
      %v977 = vpack.c.bf16 %v923, %v923
      %v978 = vpack.c.bf16 %v924, %v924
      %v979 = vpack.c.bf16 %v925, %v925
      %v980 = vpack.c.bf16 %v926, %v926
      %v981 = vpack.c.bf16 %v927, %v927
      %v982 = vpack.c.bf16 %v928, %v928
      %v983 = vpack.c.bf16 %v929, %v929
      %v984 = vpack.c.bf16 %v930, %v930
      %v985 = vpack.c.bf16 %v931, %v931
      %v986 = vpack.c.bf16 %v932, %v932
      %v987 = vpack.c.bf16 %v933, %v933
      %988 = vst [vmem:[#allocation2] sm:$0xf] %v934
      %989 = vst [vmem:[#allocation2 + $0x24] sm:$0xf] %v935
      %990 = vst [vmem:[#allocation2 + $0x48] sm:$0xf] %v937
      %991 = vst [vmem:[#allocation2 + $0x6c] sm:$0xf] %v938
      %992 = vst [vmem:[#allocation2 + $0x90] sm:$0xf] %v940
      %993 = vst [vmem:[#allocation2 + $0xb4] sm:$0xf] %v941
      %994 = vst [vmem:[#allocation2 + $0xd8] sm:$0xf] %v943
      %995 = vst [vmem:[#allocation2 + $0xfc] sm:$0xf] %v944
      %996 = vst [vmem:[#allocation2 + $0x120] sm:$0xf] %v946
      %997 = vst [vmem:[#allocation2 + $0x144] sm:$0xf] %v947
      %998 = vst [vmem:[#allocation2 + $0x168] sm:$0xf] %v949
      %999 = vst [vmem:[#allocation2 + $0x18c] sm:$0xf] %v950
      %1000 = vst [vmem:[#allocation2 + $0x1b0] sm:$0xf] %v952
      %1001 = vst [vmem:[#allocation2 + $0x1d4] sm:$0xf] %v953
      %1002 = vst [vmem:[#allocation2 + $0x1f8] sm:$0xf] %v955
      %1003 = vst [vmem:[#allocation2 + $0x21c] sm:$0xf] %v956
      %1004 = vst [vmem:[#allocation2 + $0x240] sm:$0xf] %v958
      %1005 = vst [vmem:[#allocation2 + $0x264] sm:$0xf] %v959
      %1006 = vst [vmem:[#allocation2 + $0x288] sm:$0xf] %v961
      %1007 = vst [vmem:[#allocation2 + $0x2ac] sm:$0xf] %v962
      %1008 = vst [vmem:[#allocation2 + $0x2d0] sm:$0xf] %v964
      %1009 = vst [vmem:[#allocation2 + $0x2f4] sm:$0xf] %v965
      %1010 = vst [vmem:[#allocation2 + $0x318] sm:$0xf] %v967
      %1011 = vst [vmem:[#allocation2 + $0x33c] sm:$0xf] %v968
      %1012 = vst [vmem:[#allocation2 + $0x360] sm:$0xf] %v970
      %1013 = vst [vmem:[#allocation2 + $0x384] sm:$0xf] %v971
      %1014 = vst [vmem:[#allocation2 + $0x3a8] sm:$0xf] %v973
      %1015 = vst [vmem:[#allocation2 + $0x3cc] sm:$0xf] %v974
      %1016 = vst [vmem:[#allocation2 + $0x3f0] sm:$0xf] %v976
      %1017 = vst [vmem:[#allocation2 + $0x414] sm:$0xf] %v977
      %1018 = vst [vmem:[#allocation2 + $0x438] sm:$0xf] %v979
      %1019 = vst [vmem:[#allocation2 + $0x45c] sm:$0xf] %v980
      %vm1020 = vsmask.f32 3328
      %vm1021 = vsmask.f32 7440
      %vm1022 = vmor %vm1020, %vm1021
      %v1024 = vshrl.u32 %v934, 16
      %v1026 = vrot.slane %v1024, 4
      %v1027 = vshll.u32 %v934, 16
      %v1029 = vrot.slane %v1027, 5
      %v1030 = vor.u32 %v1026, %v1029
      %v1031 = vrot.slane %v1030, 4
      %v1033 = vshll.u32 %v935, 16
      %v1035 = vrot.slane %v1033, 5
      %v1036 = vsel %vm1022, %v1031, %v1035
      %v1037 = vshrl.u32 %v935, 16
      %v1039 = vrot.slane %v1037, 4
      %v1040 = vor.u32 %v1039, %v1035
      %v1041 = vrot.slane %v1040, 4
      %v1043 = vshll.u32 %v936, 16
      %v1045 = vrot.slane %v1043, 5
      %v1046 = vsel %vm1022, %v1041, %v1045
      %v1048 = vshrl.u32 %v937, 16
      %v1050 = vrot.slane %v1048, 4
      %v1051 = vshll.u32 %v937, 16
      %v1053 = vrot.slane %v1051, 5
      %v1054 = vor.u32 %v1050, %v1053
      %v1055 = vrot.slane %v1054, 4
      %v1057 = vshll.u32 %v938, 16
      %v1059 = vrot.slane %v1057, 5
      %v1060 = vsel %vm1022, %v1055, %v1059
      %v1061 = vshrl.u32 %v938, 16
      %v1063 = vrot.slane %v1061, 4
      %v1064 = vor.u32 %v1063, %v1059
      %v1065 = vrot.slane %v1064, 4
      %v1067 = vshll.u32 %v939, 16
      %v1069 = vrot.slane %v1067, 5
      %v1070 = vsel %vm1022, %v1065, %v1069
      %v1072 = vshrl.u32 %v940, 16
      %v1074 = vrot.slane %v1072, 4
      %v1075 = vshll.u32 %v940, 16
      %v1077 = vrot.slane %v1075, 5
      %v1078 = vor.u32 %v1074, %v1077
      %v1079 = vrot.slane %v1078, 4
      %v1081 = vshll.u32 %v941, 16
      %v1083 = vrot.slane %v1081, 5
      %v1084 = vsel %vm1022, %v1079, %v1083
      %v1085 = vshrl.u32 %v941, 16
      %v1087 = vrot.slane %v1085, 4
      %v1088 = vor.u32 %v1087, %v1083
      %v1089 = vrot.slane %v1088, 4
      %v1091 = vshll.u32 %v942, 16
      %v1093 = vrot.slane %v1091, 5
      %v1094 = vsel %vm1022, %v1089, %v1093
      %v1096 = vshrl.u32 %v943, 16
      %v1098 = vrot.slane %v1096, 4
      %v1099 = vshll.u32 %v943, 16
      %v1101 = vrot.slane %v1099, 5
      %v1102 = vor.u32 %v1098, %v1101
      %v1103 = vrot.slane %v1102, 4
      %v1105 = vshll.u32 %v944, 16
      %v1107 = vrot.slane %v1105, 5
      %v1108 = vsel %vm1022, %v1103, %v1107
      %v1109 = vshrl.u32 %v944, 16
      %v1111 = vrot.slane %v1109, 4
      %v1112 = vor.u32 %v1111, %v1107
      %v1113 = vrot.slane %v1112, 4
      %v1115 = vshll.u32 %v945, 16
      %v1117 = vrot.slane %v1115, 5
      %v1118 = vsel %vm1022, %v1113, %v1117
      %v1120 = vshrl.u32 %v946, 16
      %v1122 = vrot.slane %v1120, 4
      %v1123 = vshll.u32 %v946, 16
      %v1125 = vrot.slane %v1123, 5
      %v1126 = vor.u32 %v1122, %v1125
      %v1127 = vrot.slane %v1126, 4
      %v1129 = vshll.u32 %v947, 16
      %v1131 = vrot.slane %v1129, 5
      %v1132 = vsel %vm1022, %v1127, %v1131
      %v1133 = vshrl.u32 %v947, 16
      %v1135 = vrot.slane %v1133, 4
      %v1136 = vor.u32 %v1135, %v1131
      %v1137 = vrot.slane %v1136, 4
      %v1139 = vshll.u32 %v948, 16
      %v1141 = vrot.slane %v1139, 5
      %v1142 = vsel %vm1022, %v1137, %v1141
      %v1144 = vshrl.u32 %v949, 16
      %v1146 = vrot.slane %v1144, 4
      %v1147 = vshll.u32 %v949, 16
      %v1149 = vrot.slane %v1147, 5
      %v1150 = vor.u32 %v1146, %v1149
      %v1151 = vrot.slane %v1150, 4
      %v1153 = vshll.u32 %v950, 16
      %v1155 = vrot.slane %v1153, 5
      %v1156 = vsel %vm1022, %v1151, %v1155
      %v1157 = vshrl.u32 %v950, 16
      %v1159 = vrot.slane %v1157, 4
      %v1160 = vor.u32 %v1159, %v1155
      %v1161 = vrot.slane %v1160, 4
      %v1163 = vshll.u32 %v951, 16
      %v1165 = vrot.slane %v1163, 5
      %v1166 = vsel %vm1022, %v1161, %v1165
      %v1168 = vshrl.u32 %v952, 16
      %v1170 = vrot.slane %v1168, 4
      %v1171 = vshll.u32 %v952, 16
      %v1173 = vrot.slane %v1171, 5
      %v1174 = vor.u32 %v1170, %v1173
      %v1175 = vrot.slane %v1174, 4
      %v1177 = vshll.u32 %v953, 16
      %v1179 = vrot.slane %v1177, 5
      %v1180 = vsel %vm1022, %v1175, %v1179
      %v1181 = vshrl.u32 %v953, 16
      %v1183 = vrot.slane %v1181, 4
      %v1184 = vor.u32 %v1183, %v1179
      %v1185 = vrot.slane %v1184, 4
      %v1187 = vshll.u32 %v954, 16
      %v1189 = vrot.slane %v1187, 5
      %v1190 = vsel %vm1022, %v1185, %v1189
      %v1192 = vshrl.u32 %v955, 16
      %v1194 = vrot.slane %v1192, 4
      %v1195 = vshll.u32 %v955, 16
      %v1197 = vrot.slane %v1195, 5
      %v1198 = vor.u32 %v1194, %v1197
      %v1199 = vrot.slane %v1198, 4
      %v1201 = vshll.u32 %v956, 16
      %v1203 = vrot.slane %v1201, 5
      %v1204 = vsel %vm1022, %v1199, %v1203
      %v1205 = vshrl.u32 %v956, 16
      %v1207 = vrot.slane %v1205, 4
      %v1208 = vor.u32 %v1207, %v1203
      %v1209 = vrot.slane %v1208, 4
      %v1211 = vshll.u32 %v957, 16
      %v1213 = vrot.slane %v1211, 5
      %v1214 = vsel %vm1022, %v1209, %v1213
      %v1216 = vshrl.u32 %v958, 16
      %v1218 = vrot.slane %v1216, 4
      %v1219 = vshll.u32 %v958, 16
      %v1221 = vrot.slane %v1219, 5
      %v1222 = vor.u32 %v1218, %v1221
      %v1223 = vrot.slane %v1222, 4
      %v1225 = vshll.u32 %v959, 16
      %v1227 = vrot.slane %v1225, 5
      %v1228 = vsel %vm1022, %v1223, %v1227
      %v1229 = vshrl.u32 %v959, 16
      %v1231 = vrot.slane %v1229, 4
      %v1232 = vor.u32 %v1231, %v1227
      %v1233 = vrot.slane %v1232, 4
      %v1235 = vshll.u32 %v960, 16
      %v1237 = vrot.slane %v1235, 5
      %v1238 = vsel %vm1022, %v1233, %v1237
      %v1240 = vshrl.u32 %v961, 16
      %v1242 = vrot.slane %v1240, 4
      %v1243 = vshll.u32 %v961, 16
      %v1245 = vrot.slane %v1243, 5
      %v1246 = vor.u32 %v1242, %v1245
      %v1247 = vrot.slane %v1246, 4
      %v1249 = vshll.u32 %v962, 16
      %v1251 = vrot.slane %v1249, 5
      %v1252 = vsel %vm1022, %v1247, %v1251
      %v1253 = vshrl.u32 %v962, 16
      %v1255 = vrot.slane %v1253, 4
      %v1256 = vor.u32 %v1255, %v1251
      %v1257 = vrot.slane %v1256, 4
      %v1259 = vshll.u32 %v963, 16
      %v1261 = vrot.slane %v1259, 5
      %v1262 = vsel %vm1022, %v1257, %v1261
      %v1264 = vshrl.u32 %v964, 16
      %v1266 = vrot.slane %v1264, 4
      %v1267 = vshll.u32 %v964, 16
      %v1269 = vrot.slane %v1267, 5
      %v1270 = vor.u32 %v1266, %v1269
      %v1271 = vrot.slane %v1270, 4
      %v1273 = vshll.u32 %v965, 16
      %v1275 = vrot.slane %v1273, 5
      %v1276 = vsel %vm1022, %v1271, %v1275
      %v1277 = vshrl.u32 %v965, 16
      %v1279 = vrot.slane %v1277, 4
      %v1280 = vor.u32 %v1279, %v1275
      %v1281 = vrot.slane %v1280, 4
      %v1283 = vshll.u32 %v966, 16
      %v1285 = vrot.slane %v1283, 5
      %v1286 = vsel %vm1022, %v1281, %v1285
      %v1288 = vshrl.u32 %v967, 16
      %v1290 = vrot.slane %v1288, 4
      %v1291 = vshll.u32 %v967, 16
      %v1293 = vrot.slane %v1291, 5
      %v1294 = vor.u32 %v1290, %v1293
      %v1295 = vrot.slane %v1294, 4
      %v1297 = vshll.u32 %v968, 16
      %v1299 = vrot.slane %v1297, 5
      %v1300 = vsel %vm1022, %v1295, %v1299
      %v1301 = vshrl.u32 %v968, 16
      %v1303 = vrot.slane %v1301, 4
      %v1304 = vor.u32 %v1303, %v1299
      %v1305 = vrot.slane %v1304, 4
      %v1307 = vshll.u32 %v969, 16
      %v1309 = vrot.slane %v1307, 5
      %v1310 = vsel %vm1022, %v1305, %v1309
      %v1312 = vshrl.u32 %v970, 16
      %v1314 = vrot.slane %v1312, 4
      %v1315 = vshll.u32 %v970, 16
      %v1317 = vrot.slane %v1315, 5
      %v1318 = vor.u32 %v1314, %v1317
      %v1319 = vrot.slane %v1318, 4
      %v1321 = vshll.u32 %v971, 16
      %v1323 = vrot.slane %v1321, 5
      %v1324 = vsel %vm1022, %v1319, %v1323
      %v1325 = vshrl.u32 %v971, 16
      %v1327 = vrot.slane %v1325, 4
      %v1328 = vor.u32 %v1327, %v1323
      %v1329 = vrot.slane %v1328, 4
      %v1331 = vshll.u32 %v972, 16
      %v1333 = vrot.slane %v1331, 5
      %v1334 = vsel %vm1022, %v1329, %v1333
      %v1336 = vshrl.u32 %v973, 16
      %v1338 = vrot.slane %v1336, 4
      %v1339 = vshll.u32 %v973, 16
      %v1341 = vrot.slane %v1339, 5
      %v1342 = vor.u32 %v1338, %v1341
      %v1343 = vrot.slane %v1342, 4
      %v1345 = vshll.u32 %v974, 16
      %v1347 = vrot.slane %v1345, 5
      %v1348 = vsel %vm1022, %v1343, %v1347
      %v1349 = vshrl.u32 %v974, 16
      %v1351 = vrot.slane %v1349, 4
      %v1352 = vor.u32 %v1351, %v1347
      %v1353 = vrot.slane %v1352, 4
      %v1355 = vshll.u32 %v975, 16
      %v1357 = vrot.slane %v1355, 5
      %v1358 = vsel %vm1022, %v1353, %v1357
      %v1360 = vshrl.u32 %v976, 16
      %v1362 = vrot.slane %v1360, 4
      %v1363 = vshll.u32 %v976, 16
      %v1365 = vrot.slane %v1363, 5
      %v1366 = vor.u32 %v1362, %v1365
      %v1367 = vrot.slane %v1366, 4
      %v1369 = vshll.u32 %v977, 16
      %v1371 = vrot.slane %v1369, 5
      %v1372 = vsel %vm1022, %v1367, %v1371
      %v1373 = vshrl.u32 %v977, 16
      %v1375 = vrot.slane %v1373, 4
      %v1376 = vor.u32 %v1375, %v1371
      %v1377 = vrot.slane %v1376, 4
      %v1379 = vshll.u32 %v978, 16
      %v1381 = vrot.slane %v1379, 5
      %v1382 = vsel %vm1022, %v1377, %v1381
      %v1384 = vshrl.u32 %v979, 16
      %v1386 = vrot.slane %v1384, 4
      %v1387 = vshll.u32 %v979, 16
      %v1389 = vrot.slane %v1387, 5
      %v1390 = vor.u32 %v1386, %v1389
      %v1391 = vrot.slane %v1390, 4
      %v1393 = vshll.u32 %v980, 16
      %v1395 = vrot.slane %v1393, 5
      %v1396 = vsel %vm1022, %v1391, %v1395
      %v1397 = vshrl.u32 %v980, 16
      %v1399 = vrot.slane %v1397, 4
      %v1400 = vor.u32 %v1399, %v1395
      %v1401 = vrot.slane %v1400, 4
      %v1403 = vshll.u32 %v981, 16
      %v1405 = vrot.slane %v1403, 5
      %v1406 = vsel %vm1022, %v1401, %v1405
      %1439 = vst [vmem:[#allocation2 + $0x4] sm:$0xf] %v1036
      %1440 = vst [vmem:[#allocation2 + $0x28] sm:$0xf] %v1046
      %1441 = vst [vmem:[#allocation2 + $0x4c] sm:$0xf] %v1060
      %1442 = vst [vmem:[#allocation2 + $0x70] sm:$0xf] %v1070
      %1443 = vst [vmem:[#allocation2 + $0x94] sm:$0xf] %v1084
      %1444 = vst [vmem:[#allocation2 + $0xb8] sm:$0xf] %v1094
      %1445 = vst [vmem:[#allocation2 + $0xdc] sm:$0xf] %v1108
      %1446 = vst [vmem:[#allocation2 + $0x100] sm:$0xf] %v1118
      %1447 = vst [vmem:[#allocation2 + $0x124] sm:$0xf] %v1132
      %1448 = vst [vmem:[#allocation2 + $0x148] sm:$0xf] %v1142
      %1449 = vst [vmem:[#allocation2 + $0x16c] sm:$0xf] %v1156
      %1450 = vst [vmem:[#allocation2 + $0x190] sm:$0xf] %v1166
      %1451 = vst [vmem:[#allocation2 + $0x1b4] sm:$0xf] %v1180
      %1452 = vst [vmem:[#allocation2 + $0x1d8] sm:$0xf] %v1190
      %1453 = vst [vmem:[#allocation2 + $0x1fc] sm:$0xf] %v1204
      %1454 = vst [vmem:[#allocation2 + $0x220] sm:$0xf] %v1214
      %1455 = vst [vmem:[#allocation2 + $0x244] sm:$0xf] %v1228
      %1456 = vst [vmem:[#allocation2 + $0x268] sm:$0xf] %v1238
      %1457 = vst [vmem:[#allocation2 + $0x28c] sm:$0xf] %v1252
      %1458 = vst [vmem:[#allocation2 + $0x2b0] sm:$0xf] %v1262
      %1459 = vst [vmem:[#allocation2 + $0x2d4] sm:$0xf] %v1276
      %1460 = vst [vmem:[#allocation2 + $0x2f8] sm:$0xf] %v1286
      %1461 = vst [vmem:[#allocation2 + $0x31c] sm:$0xf] %v1300
      %1462 = vst [vmem:[#allocation2 + $0x340] sm:$0xf] %v1310
      %1463 = vst [vmem:[#allocation2 + $0x364] sm:$0xf] %v1324
      %1464 = vst [vmem:[#allocation2 + $0x388] sm:$0xf] %v1334
      %1465 = vst [vmem:[#allocation2 + $0x3ac] sm:$0xf] %v1348
      %1466 = vst [vmem:[#allocation2 + $0x3d0] sm:$0xf] %v1358
      %1467 = vst [vmem:[#allocation2 + $0x3f4] sm:$0xf] %v1372
      %1468 = vst [vmem:[#allocation2 + $0x418] sm:$0xf] %v1382
      %1469 = vst [vmem:[#allocation2 + $0x43c] sm:$0xf] %v1396
      %1470 = vst [vmem:[#allocation2 + $0x460] sm:$0xf] %v1406
      %vm1519 = vcmask 1042432
      %vm1520 = vcmask 1046532
      %vm1521 = vmor %vm1519, %vm1520
      %v1522 = vrot.slane %v934, 5
      %v1523 = vrot.slane %v1522, 4
      %v1524 = vrot.slane %v935, 5
      %v1525 = vsel %vm1521, %v1523, %v1524
      %v1526 = vrot.slane %v1524, 4
      %v1527 = vrot.slane %v936, 5
      %v1528 = vsel %vm1521, %v1526, %v1527
      %v1529 = vrot.slane %v937, 5
      %v1530 = vrot.slane %v1529, 4
      %v1531 = vrot.slane %v938, 5
      %v1532 = vsel %vm1521, %v1530, %v1531
      %v1533 = vrot.slane %v1531, 4
      %v1534 = vrot.slane %v939, 5
      %v1535 = vsel %vm1521, %v1533, %v1534
      %v1536 = vrot.slane %v940, 5
      %v1537 = vrot.slane %v1536, 4
      %v1538 = vrot.slane %v941, 5
      %v1539 = vsel %vm1521, %v1537, %v1538
      %v1540 = vrot.slane %v1538, 4
      %v1541 = vrot.slane %v942, 5
      %v1542 = vsel %vm1521, %v1540, %v1541
      %v1543 = vrot.slane %v943, 5
      %v1544 = vrot.slane %v1543, 4
      %v1545 = vrot.slane %v944, 5
      %v1546 = vsel %vm1521, %v1544, %v1545
      %v1547 = vrot.slane %v1545, 4
      %v1548 = vrot.slane %v945, 5
      %v1549 = vsel %vm1521, %v1547, %v1548
      %v1550 = vrot.slane %v946, 5
      %v1551 = vrot.slane %v1550, 4
      %v1552 = vrot.slane %v947, 5
      %v1553 = vsel %vm1521, %v1551, %v1552
      %v1554 = vrot.slane %v1552, 4
      %v1555 = vrot.slane %v948, 5
      %v1556 = vsel %vm1521, %v1554, %v1555
      %v1557 = vrot.slane %v949, 5
      %v1558 = vrot.slane %v1557, 4
      %v1559 = vrot.slane %v950, 5
      %v1560 = vsel %vm1521, %v1558, %v1559
      %v1561 = vrot.slane %v1559, 4
      %v1562 = vrot.slane %v951, 5
      %v1563 = vsel %vm1521, %v1561, %v1562
      %v1564 = vrot.slane %v952, 5
      %v1565 = vrot.slane %v1564, 4
      %v1566 = vrot.slane %v953, 5
      %v1567 = vsel %vm1521, %v1565, %v1566
      %v1568 = vrot.slane %v1566, 4
      %v1569 = vrot.slane %v954, 5
      %v1570 = vsel %vm1521, %v1568, %v1569
      %v1571 = vrot.slane %v955, 5
      %v1572 = vrot.slane %v1571, 4
      %v1573 = vrot.slane %v956, 5
      %v1574 = vsel %vm1521, %v1572, %v1573
      %v1575 = vrot.slane %v1573, 4
      %v1576 = vrot.slane %v957, 5
      %v1577 = vsel %vm1521, %v1575, %v1576
      %v1578 = vrot.slane %v958, 5
      %v1579 = vrot.slane %v1578, 4
      %v1580 = vrot.slane %v959, 5
      %v1581 = vsel %vm1521, %v1579, %v1580
      %v1582 = vrot.slane %v1580, 4
      %v1583 = vrot.slane %v960, 5
      %v1584 = vsel %vm1521, %v1582, %v1583
      %v1585 = vrot.slane %v961, 5
      %v1586 = vrot.slane %v1585, 4
      %v1587 = vrot.slane %v962, 5
      %v1588 = vsel %vm1521, %v1586, %v1587
      %v1589 = vrot.slane %v1587, 4
      %v1590 = vrot.slane %v963, 5
      %v1591 = vsel %vm1521, %v1589, %v1590
      %v1592 = vrot.slane %v964, 5
      %v1593 = vrot.slane %v1592, 4
      %v1594 = vrot.slane %v965, 5
      %v1595 = vsel %vm1521, %v1593, %v1594
      %v1596 = vrot.slane %v1594, 4
      %v1597 = vrot.slane %v966, 5
      %v1598 = vsel %vm1521, %v1596, %v1597
      %v1599 = vrot.slane %v967, 5
      %v1600 = vrot.slane %v1599, 4
      %v1601 = vrot.slane %v968, 5
      %v1602 = vsel %vm1521, %v1600, %v1601
      %v1603 = vrot.slane %v1601, 4
      %v1604 = vrot.slane %v969, 5
      %v1605 = vsel %vm1521, %v1603, %v1604
      %v1606 = vrot.slane %v970, 5
      %v1607 = vrot.slane %v1606, 4
      %v1608 = vrot.slane %v971, 5
      %v1609 = vsel %vm1521, %v1607, %v1608
      %v1610 = vrot.slane %v1608, 4
      %v1611 = vrot.slane %v972, 5
      %v1612 = vsel %vm1521, %v1610, %v1611
      %v1613 = vrot.slane %v973, 5
      %v1614 = vrot.slane %v1613, 4
      %v1615 = vrot.slane %v974, 5
      %v1616 = vsel %vm1521, %v1614, %v1615
      %v1617 = vrot.slane %v1615, 4
      %v1618 = vrot.slane %v975, 5
      %v1619 = vsel %vm1521, %v1617, %v1618
      %v1620 = vrot.slane %v976, 5
      %v1621 = vrot.slane %v1620, 4
      %v1622 = vrot.slane %v977, 5
      %v1623 = vsel %vm1521, %v1621, %v1622
      %v1624 = vrot.slane %v1622, 4
      %v1625 = vrot.slane %v978, 5
      %v1626 = vsel %vm1521, %v1624, %v1625
      %v1627 = vrot.slane %v979, 5
      %v1628 = vrot.slane %v1627, 4
      %v1629 = vrot.slane %v980, 5
      %v1630 = vsel %vm1521, %v1628, %v1629
      %v1631 = vrot.slane %v1629, 4
      %v1632 = vrot.slane %v981, 5
      %v1633 = vsel %vm1521, %v1631, %v1632
      %1666 = vst [vmem:[#allocation2 + $0x8] sm:$0xf] %v1525
      %1667 = vst [vmem:[#allocation2 + $0x2c] sm:$0xf] %v1528
      %1668 = vst [vmem:[#allocation2 + $0x50] sm:$0xf] %v1532
      %1669 = vst [vmem:[#allocation2 + $0x74] sm:$0xf] %v1535
      %1670 = vst [vmem:[#allocation2 + $0x98] sm:$0xf] %v1539
      %1671 = vst [vmem:[#allocation2 + $0xbc] sm:$0xf] %v1542
      %1672 = vst [vmem:[#allocation2 + $0xe0] sm:$0xf] %v1546
      %1673 = vst [vmem:[#allocation2 + $0x104] sm:$0xf] %v1549
      %1674 = vst [vmem:[#allocation2 + $0x128] sm:$0xf] %v1553
      %1675 = vst [vmem:[#allocation2 + $0x14c] sm:$0xf] %v1556
      %1676 = vst [vmem:[#allocation2 + $0x170] sm:$0xf] %v1560
      %1677 = vst [vmem:[#allocation2 + $0x194] sm:$0xf] %v1563
      %1678 = vst [vmem:[#allocation2 + $0x1b8] sm:$0xf] %v1567
      %1679 = vst [vmem:[#allocation2 + $0x1dc] sm:$0xf] %v1570
      %1680 = vst [vmem:[#allocation2 + $0x200] sm:$0xf] %v1574
      %1681 = vst [vmem:[#allocation2 + $0x224] sm:$0xf] %v1577
      %1682 = vst [vmem:[#allocation2 + $0x248] sm:$0xf] %v1581
      %1683 = vst [vmem:[#allocation2 + $0x26c] sm:$0xf] %v1584
      %1684 = vst [vmem:[#allocation2 + $0x290] sm:$0xf] %v1588
      %1685 = vst [vmem:[#allocation2 + $0x2b4] sm:$0xf] %v1591
      %1686 = vst [vmem:[#allocation2 + $0x2d8] sm:$0xf] %v1595
      %1687 = vst [vmem:[#allocation2 + $0x2fc] sm:$0xf] %v1598
      %1688 = vst [vmem:[#allocation2 + $0x320] sm:$0xf] %v1602
      %1689 = vst [vmem:[#allocation2 + $0x344] sm:$0xf] %v1605
      %1690 = vst [vmem:[#allocation2 + $0x368] sm:$0xf] %v1609
      %1691 = vst [vmem:[#allocation2 + $0x38c] sm:$0xf] %v1612
      %1692 = vst [vmem:[#allocation2 + $0x3b0] sm:$0xf] %v1616
      %1693 = vst [vmem:[#allocation2 + $0x3d4] sm:$0xf] %v1619
      %1694 = vst [vmem:[#allocation2 + $0x3f8] sm:$0xf] %v1623
      %1695 = vst [vmem:[#allocation2 + $0x41c] sm:$0xf] %v1626
      %1696 = vst [vmem:[#allocation2 + $0x440] sm:$0xf] %v1630
      %1697 = vst [vmem:[#allocation2 + $0x464] sm:$0xf] %v1633
      %1698 = vst [vmem:[#allocation2 + $0xc] sm:$0xf] %v937
      %1699 = vst [vmem:[#allocation2 + $0x30] sm:$0xf] %v938
      %1700 = vst [vmem:[#allocation2 + $0x54] sm:$0xf] %v940
      %1701 = vst [vmem:[#allocation2 + $0x78] sm:$0xf] %v941
      %1702 = vst [vmem:[#allocation2 + $0x9c] sm:$0xf] %v943
      %1703 = vst [vmem:[#allocation2 + $0xc0] sm:$0xf] %v944
      %1704 = vst [vmem:[#allocation2 + $0xe4] sm:$0xf] %v946
      %1705 = vst [vmem:[#allocation2 + $0x108] sm:$0xf] %v947
      %1706 = vst [vmem:[#allocation2 + $0x12c] sm:$0xf] %v949
      %1707 = vst [vmem:[#allocation2 + $0x150] sm:$0xf] %v950
      %1708 = vst [vmem:[#allocation2 + $0x174] sm:$0xf] %v952
      %1709 = vst [vmem:[#allocation2 + $0x198] sm:$0xf] %v953
      %1710 = vst [vmem:[#allocation2 + $0x1bc] sm:$0xf] %v955
      %1711 = vst [vmem:[#allocation2 + $0x1e0] sm:$0xf] %v956
      %1712 = vst [vmem:[#allocation2 + $0x204] sm:$0xf] %v958
      %1713 = vst [vmem:[#allocation2 + $0x228] sm:$0xf] %v959
      %1714 = vst [vmem:[#allocation2 + $0x24c] sm:$0xf] %v961
      %1715 = vst [vmem:[#allocation2 + $0x270] sm:$0xf] %v962
      %1716 = vst [vmem:[#allocation2 + $0x294] sm:$0xf] %v964
      %1717 = vst [vmem:[#allocation2 + $0x2b8] sm:$0xf] %v965
      %1718 = vst [vmem:[#allocation2 + $0x2dc] sm:$0xf] %v967
      %1719 = vst [vmem:[#allocation2 + $0x300] sm:$0xf] %v968
      %1720 = vst [vmem:[#allocation2 + $0x324] sm:$0xf] %v970
      %1721 = vst [vmem:[#allocation2 + $0x348] sm:$0xf] %v971
      %1722 = vst [vmem:[#allocation2 + $0x36c] sm:$0xf] %v973
      %1723 = vst [vmem:[#allocation2 + $0x390] sm:$0xf] %v974
      %1724 = vst [vmem:[#allocation2 + $0x3b4] sm:$0xf] %v976
      %1725 = vst [vmem:[#allocation2 + $0x3d8] sm:$0xf] %v977
      %1726 = vst [vmem:[#allocation2 + $0x3fc] sm:$0xf] %v979
      %1727 = vst [vmem:[#allocation2 + $0x420] sm:$0xf] %v980
      %1728 = vst [vmem:[#allocation2 + $0x444] sm:$0xf] %v982
      %1729 = vst [vmem:[#allocation2 + $0x468] sm:$0xf] %v983
      %v1731 = vshrl.u32 %v982, 16
      %v1733 = vrot.slane %v1731, 4
      %v1734 = vshll.u32 %v982, 16
      %v1736 = vrot.slane %v1734, 5
      %v1737 = vor.u32 %v1733, %v1736
      %v1738 = vrot.slane %v1737, 4
      %v1740 = vshll.u32 %v983, 16
      %v1742 = vrot.slane %v1740, 5
      %v1743 = vsel %vm1022, %v1738, %v1742
      %v1744 = vshrl.u32 %v983, 16
      %v1746 = vrot.slane %v1744, 4
      %v1747 = vor.u32 %v1746, %v1742
      %v1748 = vrot.slane %v1747, 4
      %v1750 = vshll.u32 %v984, 16
      %v1752 = vrot.slane %v1750, 5
      %v1753 = vsel %vm1022, %v1748, %v1752
      %1756 = vst [vmem:[#allocation2 + $0x10] sm:$0xf] %v1060
      %1757 = vst [vmem:[#allocation2 + $0x34] sm:$0xf] %v1070
      %1758 = vst [vmem:[#allocation2 + $0x58] sm:$0xf] %v1084
      %1759 = vst [vmem:[#allocation2 + $0x7c] sm:$0xf] %v1094
      %1760 = vst [vmem:[#allocation2 + $0xa0] sm:$0xf] %v1108
      %1761 = vst [vmem:[#allocation2 + $0xc4] sm:$0xf] %v1118
      %1762 = vst [vmem:[#allocation2 + $0xe8] sm:$0xf] %v1132
      %1763 = vst [vmem:[#allocation2 + $0x10c] sm:$0xf] %v1142
      %1764 = vst [vmem:[#allocation2 + $0x130] sm:$0xf] %v1156
      %1765 = vst [vmem:[#allocation2 + $0x154] sm:$0xf] %v1166
      %1766 = vst [vmem:[#allocation2 + $0x178] sm:$0xf] %v1180
      %1767 = vst [vmem:[#allocation2 + $0x19c] sm:$0xf] %v1190
      %1768 = vst [vmem:[#allocation2 + $0x1c0] sm:$0xf] %v1204
      %1769 = vst [vmem:[#allocation2 + $0x1e4] sm:$0xf] %v1214
      %1770 = vst [vmem:[#allocation2 + $0x208] sm:$0xf] %v1228
      %1771 = vst [vmem:[#allocation2 + $0x22c] sm:$0xf] %v1238
      %1772 = vst [vmem:[#allocation2 + $0x250] sm:$0xf] %v1252
      %1773 = vst [vmem:[#allocation2 + $0x274] sm:$0xf] %v1262
      %1774 = vst [vmem:[#allocation2 + $0x298] sm:$0xf] %v1276
      %1775 = vst [vmem:[#allocation2 + $0x2bc] sm:$0xf] %v1286
      %1776 = vst [vmem:[#allocation2 + $0x2e0] sm:$0xf] %v1300
      %1777 = vst [vmem:[#allocation2 + $0x304] sm:$0xf] %v1310
      %1778 = vst [vmem:[#allocation2 + $0x328] sm:$0xf] %v1324
      %1779 = vst [vmem:[#allocation2 + $0x34c] sm:$0xf] %v1334
      %1780 = vst [vmem:[#allocation2 + $0x370] sm:$0xf] %v1348
      %1781 = vst [vmem:[#allocation2 + $0x394] sm:$0xf] %v1358
      %1782 = vst [vmem:[#allocation2 + $0x3b8] sm:$0xf] %v1372
      %1783 = vst [vmem:[#allocation2 + $0x3dc] sm:$0xf] %v1382
      %1784 = vst [vmem:[#allocation2 + $0x400] sm:$0xf] %v1396
      %1785 = vst [vmem:[#allocation2 + $0x424] sm:$0xf] %v1406
      %1786 = vst [vmem:[#allocation2 + $0x448] sm:$0xf] %v1743
      %1787 = vst [vmem:[#allocation2 + $0x46c] sm:$0xf] %v1753
      %v1791 = vrot.slane %v982, 5
      %v1792 = vrot.slane %v1791, 4
      %v1793 = vrot.slane %v983, 5
      %v1794 = vsel %vm1521, %v1792, %v1793
      %v1795 = vrot.slane %v1793, 4
      %v1796 = vrot.slane %v984, 5
      %v1797 = vsel %vm1521, %v1795, %v1796
      %1800 = vst [vmem:[#allocation2 + $0x14] sm:$0xf] %v1532
      %1801 = vst [vmem:[#allocation2 + $0x38] sm:$0xf] %v1535
      %1802 = vst [vmem:[#allocation2 + $0x5c] sm:$0xf] %v1539
      %1803 = vst [vmem:[#allocation2 + $0x80] sm:$0xf] %v1542
      %1804 = vst [vmem:[#allocation2 + $0xa4] sm:$0xf] %v1546
      %1805 = vst [vmem:[#allocation2 + $0xc8] sm:$0xf] %v1549
      %1806 = vst [vmem:[#allocation2 + $0xec] sm:$0xf] %v1553
      %1807 = vst [vmem:[#allocation2 + $0x110] sm:$0xf] %v1556
      %1808 = vst [vmem:[#allocation2 + $0x134] sm:$0xf] %v1560
      %1809 = vst [vmem:[#allocation2 + $0x158] sm:$0xf] %v1563
      %1810 = vst [vmem:[#allocation2 + $0x17c] sm:$0xf] %v1567
      %1811 = vst [vmem:[#allocation2 + $0x1a0] sm:$0xf] %v1570
      %1812 = vst [vmem:[#allocation2 + $0x1c4] sm:$0xf] %v1574
      %1813 = vst [vmem:[#allocation2 + $0x1e8] sm:$0xf] %v1577
      %1814 = vst [vmem:[#allocation2 + $0x20c] sm:$0xf] %v1581
      %1815 = vst [vmem:[#allocation2 + $0x230] sm:$0xf] %v1584
      %1816 = vst [vmem:[#allocation2 + $0x254] sm:$0xf] %v1588
      %1817 = vst [vmem:[#allocation2 + $0x278] sm:$0xf] %v1591
      %1818 = vst [vmem:[#allocation2 + $0x29c] sm:$0xf] %v1595
      %1819 = vst [vmem:[#allocation2 + $0x2c0] sm:$0xf] %v1598
      %1820 = vst [vmem:[#allocation2 + $0x2e4] sm:$0xf] %v1602
      %1821 = vst [vmem:[#allocation2 + $0x308] sm:$0xf] %v1605
      %1822 = vst [vmem:[#allocation2 + $0x32c] sm:$0xf] %v1609
      %1823 = vst [vmem:[#allocation2 + $0x350] sm:$0xf] %v1612
      %1824 = vst [vmem:[#allocation2 + $0x374] sm:$0xf] %v1616
      %1825 = vst [vmem:[#allocation2 + $0x398] sm:$0xf] %v1619
      %1826 = vst [vmem:[#allocation2 + $0x3bc] sm:$0xf] %v1623
      %1827 = vst [vmem:[#allocation2 + $0x3e0] sm:$0xf] %v1626
      %1828 = vst [vmem:[#allocation2 + $0x404] sm:$0xf] %v1630
      %1829 = vst [vmem:[#allocation2 + $0x428] sm:$0xf] %v1633
      %1830 = vst [vmem:[#allocation2 + $0x44c] sm:$0xf] %v1794
      %1831 = vst [vmem:[#allocation2 + $0x470] sm:$0xf] %v1797
      %1832 = vst [vmem:[#allocation2 + $0x18] sm:$0xf] %v940
      %1833 = vst [vmem:[#allocation2 + $0x3c] sm:$0xf] %v941
      %1834 = vst [vmem:[#allocation2 + $0x60] sm:$0xf] %v943
      %1835 = vst [vmem:[#allocation2 + $0x84] sm:$0xf] %v944
      %1836 = vst [vmem:[#allocation2 + $0xa8] sm:$0xf] %v946
      %1837 = vst [vmem:[#allocation2 + $0xcc] sm:$0xf] %v947
      %1838 = vst [vmem:[#allocation2 + $0xf0] sm:$0xf] %v949
      %1839 = vst [vmem:[#allocation2 + $0x114] sm:$0xf] %v950
      %1840 = vst [vmem:[#allocation2 + $0x138] sm:$0xf] %v952
      %1841 = vst [vmem:[#allocation2 + $0x15c] sm:$0xf] %v953
      %1842 = vst [vmem:[#allocation2 + $0x180] sm:$0xf] %v955
      %1843 = vst [vmem:[#allocation2 + $0x1a4] sm:$0xf] %v956
      %1844 = vst [vmem:[#allocation2 + $0x1c8] sm:$0xf] %v958
      %1845 = vst [vmem:[#allocation2 + $0x1ec] sm:$0xf] %v959
      %1846 = vst [vmem:[#allocation2 + $0x210] sm:$0xf] %v961
      %1847 = vst [vmem:[#allocation2 + $0x234] sm:$0xf] %v962
      %1848 = vst [vmem:[#allocation2 + $0x258] sm:$0xf] %v964
      %1849 = vst [vmem:[#allocation2 + $0x27c] sm:$0xf] %v965
      %1850 = vst [vmem:[#allocation2 + $0x2a0] sm:$0xf] %v967
      %1851 = vst [vmem:[#allocation2 + $0x2c4] sm:$0xf] %v968
      %1852 = vst [vmem:[#allocation2 + $0x2e8] sm:$0xf] %v970
      %1853 = vst [vmem:[#allocation2 + $0x30c] sm:$0xf] %v971
      %1854 = vst [vmem:[#allocation2 + $0x330] sm:$0xf] %v973
      %1855 = vst [vmem:[#allocation2 + $0x354] sm:$0xf] %v974
      %1856 = vst [vmem:[#allocation2 + $0x378] sm:$0xf] %v976
      %1857 = vst [vmem:[#allocation2 + $0x39c] sm:$0xf] %v977
      %1858 = vst [vmem:[#allocation2 + $0x3c0] sm:$0xf] %v979
      %1859 = vst [vmem:[#allocation2 + $0x3e4] sm:$0xf] %v980
      %1860 = vst [vmem:[#allocation2 + $0x408] sm:$0xf] %v982
      %1861 = vst [vmem:[#allocation2 + $0x42c] sm:$0xf] %v983
      %1862 = vst [vmem:[#allocation2 + $0x450] sm:$0xf] %v985
      %1863 = vst [vmem:[#allocation2 + $0x474] sm:$0xf] %v986
      %v1865 = vshrl.u32 %v985, 16
      %v1867 = vrot.slane %v1865, 4
      %v1868 = vshll.u32 %v985, 16
      %v1870 = vrot.slane %v1868, 5
      %v1871 = vor.u32 %v1867, %v1870
      %v1872 = vrot.slane %v1871, 4
      %v1874 = vshll.u32 %v986, 16
      %v1876 = vrot.slane %v1874, 5
      %v1877 = vsel %vm1022, %v1872, %v1876
      %v1878 = vshrl.u32 %v986, 16
      %v1880 = vrot.slane %v1878, 4
      %v1881 = vor.u32 %v1880, %v1876
      %v1882 = vrot.slane %v1881, 4
      %v1884 = vshll.u32 %v987, 16
      %v1886 = vrot.slane %v1884, 5
      %v1887 = vsel %vm1022, %v1882, %v1886
      %1890 = vst [vmem:[#allocation2 + $0x1c] sm:$0xf] %v1084
      %1891 = vst [vmem:[#allocation2 + $0x40] sm:$0xf] %v1094
      %1892 = vst [vmem:[#allocation2 + $0x64] sm:$0xf] %v1108
      %1893 = vst [vmem:[#allocation2 + $0x88] sm:$0xf] %v1118
      %1894 = vst [vmem:[#allocation2 + $0xac] sm:$0xf] %v1132
      %1895 = vst [vmem:[#allocation2 + $0xd0] sm:$0xf] %v1142
      %1896 = vst [vmem:[#allocation2 + $0xf4] sm:$0xf] %v1156
      %1897 = vst [vmem:[#allocation2 + $0x118] sm:$0xf] %v1166
      %1898 = vst [vmem:[#allocation2 + $0x13c] sm:$0xf] %v1180
      %1899 = vst [vmem:[#allocation2 + $0x160] sm:$0xf] %v1190
      %1900 = vst [vmem:[#allocation2 + $0x184] sm:$0xf] %v1204
      %1901 = vst [vmem:[#allocation2 + $0x1a8] sm:$0xf] %v1214
      %1902 = vst [vmem:[#allocation2 + $0x1cc] sm:$0xf] %v1228
      %1903 = vst [vmem:[#allocation2 + $0x1f0] sm:$0xf] %v1238
      %1904 = vst [vmem:[#allocation2 + $0x214] sm:$0xf] %v1252
      %1905 = vst [vmem:[#allocation2 + $0x238] sm:$0xf] %v1262
      %1906 = vst [vmem:[#allocation2 + $0x25c] sm:$0xf] %v1276
      %1907 = vst [vmem:[#allocation2 + $0x280] sm:$0xf] %v1286
      %1908 = vst [vmem:[#allocation2 + $0x2a4] sm:$0xf] %v1300
      %1909 = vst [vmem:[#allocation2 + $0x2c8] sm:$0xf] %v1310
      %1910 = vst [vmem:[#allocation2 + $0x2ec] sm:$0xf] %v1324
      %1911 = vst [vmem:[#allocation2 + $0x310] sm:$0xf] %v1334
      %1912 = vst [vmem:[#allocation2 + $0x334] sm:$0xf] %v1348
      %1913 = vst [vmem:[#allocation2 + $0x358] sm:$0xf] %v1358
      %1914 = vst [vmem:[#allocation2 + $0x37c] sm:$0xf] %v1372
      %1915 = vst [vmem:[#allocation2 + $0x3a0] sm:$0xf] %v1382
      %1916 = vst [vmem:[#allocation2 + $0x3c4] sm:$0xf] %v1396
      %1917 = vst [vmem:[#allocation2 + $0x3e8] sm:$0xf] %v1406
      %1918 = vst [vmem:[#allocation2 + $0x40c] sm:$0xf] %v1743
      %1919 = vst [vmem:[#allocation2 + $0x430] sm:$0xf] %v1753
      %1920 = vst [vmem:[#allocation2 + $0x454] sm:$0xf] %v1877
      %1921 = vst [vmem:[#allocation2 + $0x478] sm:$0xf] %v1887
      %v1925 = vrot.slane %v985, 5
      %v1926 = vrot.slane %v1925, 4
      %v1927 = vrot.slane %v986, 5
      %v1928 = vsel %vm1521, %v1926, %v1927
      %v1929 = vrot.slane %v1927, 4
      %v1930 = vrot.slane %v987, 5
      %v1931 = vsel %vm1521, %v1929, %v1930
      %1934 = vst [vmem:[#allocation2 + $0x20] sm:$0xf] %v1539
      %1935 = vst [vmem:[#allocation2 + $0x44] sm:$0xf] %v1542
      %1936 = vst [vmem:[#allocation2 + $0x68] sm:$0xf] %v1546
      %1937 = vst [vmem:[#allocation2 + $0x8c] sm:$0xf] %v1549
      %1938 = vst [vmem:[#allocation2 + $0xb0] sm:$0xf] %v1553
      %1939 = vst [vmem:[#allocation2 + $0xd4] sm:$0xf] %v1556
      %1940 = vst [vmem:[#allocation2 + $0xf8] sm:$0xf] %v1560
      %1941 = vst [vmem:[#allocation2 + $0x11c] sm:$0xf] %v1563
      %1942 = vst [vmem:[#allocation2 + $0x140] sm:$0xf] %v1567
      %1943 = vst [vmem:[#allocation2 + $0x164] sm:$0xf] %v1570
      %1944 = vst [vmem:[#allocation2 + $0x188] sm:$0xf] %v1574
      %1945 = vst [vmem:[#allocation2 + $0x1ac] sm:$0xf] %v1577
      %1946 = vst [vmem:[#allocation2 + $0x1d0] sm:$0xf] %v1581
      %1947 = vst [vmem:[#allocation2 + $0x1f4] sm:$0xf] %v1584
      %1948 = vst [vmem:[#allocation2 + $0x218] sm:$0xf] %v1588
      %1949 = vst [vmem:[#allocation2 + $0x23c] sm:$0xf] %v1591
      %1950 = vst [vmem:[#allocation2 + $0x260] sm:$0xf] %v1595
      %1951 = vst [vmem:[#allocation2 + $0x284] sm:$0xf] %v1598
      %1952 = vst [vmem:[#allocation2 + $0x2a8] sm:$0xf] %v1602
      %1953 = vst [vmem:[#allocation2 + $0x2cc] sm:$0xf] %v1605
      %1954 = vst [vmem:[#allocation2 + $0x2f0] sm:$0xf] %v1609
      %1955 = vst [vmem:[#allocation2 + $0x314] sm:$0xf] %v1612
      %1956 = vst [vmem:[#allocation2 + $0x338] sm:$0xf] %v1616
      %1957 = vst [vmem:[#allocation2 + $0x35c] sm:$0xf] %v1619
      %1958 = vst [vmem:[#allocation2 + $0x380] sm:$0xf] %v1623
      %1959 = vst [vmem:[#allocation2 + $0x3a4] sm:$0xf] %v1626
      %1960 = vst [vmem:[#allocation2 + $0x3c8] sm:$0xf] %v1630
      %1961 = vst [vmem:[#allocation2 + $0x3ec] sm:$0xf] %v1633
      %1962 = vst [vmem:[#allocation2 + $0x410] sm:$0xf] %v1794
      %1963 = vst [vmem:[#allocation2 + $0x434] sm:$0xf] %v1797
      %1964 = vst [vmem:[#allocation2 + $0x458] sm:$0xf] %v1928
      %1965 = vst [vmem:[#allocation2 + $0x47c] sm:$0xf] %v1931
      %v1966 = vld [vmem:[#allocation2] sm:$0xff]
      %v1967 = vld [vmem:[#allocation2 + $0x8] sm:$0xff]
      %v1968 = vld [vmem:[#allocation2 + $0x10] sm:$0xff]
      %v1969 = vld [vmem:[#allocation2 + $0x18] sm:$0xff]
      %v1970 = vld [vmem:[#allocation2 + $0x20] sm:$0xf]
      %v1971 = vld [vmem:[#allocation2 + $0x24] sm:$0xff]
      %v1972 = vld [vmem:[#allocation2 + $0x2c] sm:$0xff]
      %v1973 = vld [vmem:[#allocation2 + $0x34] sm:$0xff]
      %v1974 = vld [vmem:[#allocation2 + $0x3c] sm:$0xff]
      %v1975 = vld [vmem:[#allocation2 + $0x44] sm:$0xf]
      %v1976 = vld [vmem:[#allocation2 + $0x48] sm:$0xff]
      %v1977 = vld [vmem:[#allocation2 + $0x50] sm:$0xff]
      %v1978 = vld [vmem:[#allocation2 + $0x58] sm:$0xff]
      %v1979 = vld [vmem:[#allocation2 + $0x60] sm:$0xff]
      %v1980 = vld [vmem:[#allocation2 + $0x68] sm:$0xf]
      %v1981 = vld [vmem:[#allocation2 + $0x6c] sm:$0xff]
      %v1982 = vld [vmem:[#allocation2 + $0x74] sm:$0xff]
      %v1983 = vld [vmem:[#allocation2 + $0x7c] sm:$0xff]
      %v1984 = vld [vmem:[#allocation2 + $0x84] sm:$0xff]
      %v1985 = vld [vmem:[#allocation2 + $0x8c] sm:$0xf]
      %v1986 = vld [vmem:[#allocation2 + $0x90] sm:$0xff]
      %v1987 = vld [vmem:[#allocation2 + $0x98] sm:$0xff]
      %v1988 = vld [vmem:[#allocation2 + $0xa0] sm:$0xff]
      %v1989 = vld [vmem:[#allocation2 + $0xa8] sm:$0xff]
      %v1990 = vld [vmem:[#allocation2 + $0xb0] sm:$0xf]
      %v1991 = vld [vmem:[#allocation2 + $0xb4] sm:$0xff]
      %v1992 = vld [vmem:[#allocation2 + $0xbc] sm:$0xff]
      %v1993 = vld [vmem:[#allocation2 + $0xc4] sm:$0xff]
      %v1994 = vld [vmem:[#allocation2 + $0xcc] sm:$0xff]
      %v1995 = vld [vmem:[#allocation2 + $0xd4] sm:$0xf]
      %v1996 = vld [vmem:[#allocation2 + $0xd8] sm:$0xff]
      %v1997 = vld [vmem:[#allocation2 + $0xe0] sm:$0xff]
      %v1998 = vld [vmem:[#allocation2 + $0xe8] sm:$0xff]
      %v1999 = vld [vmem:[#allocation2 + $0xf0] sm:$0xff]
      %v2000 = vld [vmem:[#allocation2 + $0xf8] sm:$0xf]
      %v2001 = vld [vmem:[#allocation2 + $0xfc] sm:$0xff]
      %v2002 = vld [vmem:[#allocation2 + $0x104] sm:$0xff]
      %v2003 = vld [vmem:[#allocation2 + $0x10c] sm:$0xff]
      %v2004 = vld [vmem:[#allocation2 + $0x114] sm:$0xff]
      %v2005 = vld [vmem:[#allocation2 + $0x11c] sm:$0xf]
      %v2006 = vld [vmem:[#allocation2 + $0x120] sm:$0xff]
      %v2007 = vld [vmem:[#allocation2 + $0x128] sm:$0xff]
      %v2008 = vld [vmem:[#allocation2 + $0x130] sm:$0xff]
      %v2009 = vld [vmem:[#allocation2 + $0x138] sm:$0xff]
      %v2010 = vld [vmem:[#allocation2 + $0x140] sm:$0xf]
      %v2011 = vld [vmem:[#allocation2 + $0x144] sm:$0xff]
      %v2012 = vld [vmem:[#allocation2 + $0x14c] sm:$0xff]
      %v2013 = vld [vmem:[#allocation2 + $0x154] sm:$0xff]
      %v2014 = vld [vmem:[#allocation2 + $0x15c] sm:$0xff]
      %v2015 = vld [vmem:[#allocation2 + $0x164] sm:$0xf]
      %v2016 = vld [vmem:[#allocation2 + $0x168] sm:$0xff]
      %v2017 = vld [vmem:[#allocation2 + $0x170] sm:$0xff]
      %v2018 = vld [vmem:[#allocation2 + $0x178] sm:$0xff]
      %v2019 = vld [vmem:[#allocation2 + $0x180] sm:$0xff]
      %v2020 = vld [vmem:[#allocation2 + $0x188] sm:$0xf]
      %v2021 = vld [vmem:[#allocation2 + $0x18c] sm:$0xff]
      %v2022 = vld [vmem:[#allocation2 + $0x194] sm:$0xff]
      %v2023 = vld [vmem:[#allocation2 + $0x19c] sm:$0xff]
      %v2024 = vld [vmem:[#allocation2 + $0x1a4] sm:$0xff]
      %v2025 = vld [vmem:[#allocation2 + $0x1ac] sm:$0xf]
      %v2026 = vld [vmem:[#allocation2 + $0x1b0] sm:$0xff]
      %v2027 = vld [vmem:[#allocation2 + $0x1b8] sm:$0xff]
      %v2028 = vld [vmem:[#allocation2 + $0x1c0] sm:$0xff]
      %v2029 = vld [vmem:[#allocation2 + $0x1c8] sm:$0xff]
      %v2030 = vld [vmem:[#allocation2 + $0x1d0] sm:$0xf]
      %v2031 = vld [vmem:[#allocation2 + $0x1d4] sm:$0xff]
      %v2032 = vld [vmem:[#allocation2 + $0x1dc] sm:$0xff]
      %v2033 = vld [vmem:[#allocation2 + $0x1e4] sm:$0xff]
      %v2034 = vld [vmem:[#allocation2 + $0x1ec] sm:$0xff]
      %v2035 = vld [vmem:[#allocation2 + $0x1f4] sm:$0xf]
      %v2036 = vld [vmem:[#allocation2 + $0x1f8] sm:$0xff]
      %v2037 = vld [vmem:[#allocation2 + $0x200] sm:$0xff]
      %v2038 = vld [vmem:[#allocation2 + $0x208] sm:$0xff]
      %v2039 = vld [vmem:[#allocation2 + $0x210] sm:$0xff]
      %v2040 = vld [vmem:[#allocation2 + $0x218] sm:$0xf]
      %v2041 = vld [vmem:[#allocation2 + $0x21c] sm:$0xff]
      %v2042 = vld [vmem:[#allocation2 + $0x224] sm:$0xff]
      %v2043 = vld [vmem:[#allocation2 + $0x22c] sm:$0xff]
      %v2044 = vld [vmem:[#allocation2 + $0x234] sm:$0xff]
      %v2045 = vld [vmem:[#allocation2 + $0x23c] sm:$0xf]
      %v2046 = vld [vmem:[#allocation2 + $0x240] sm:$0xff]
      %v2047 = vld [vmem:[#allocation2 + $0x248] sm:$0xff]
      %v2048 = vld [vmem:[#allocation2 + $0x250] sm:$0xff]
      %v2049 = vld [vmem:[#allocation2 + $0x258] sm:$0xff]
      %v2050 = vld [vmem:[#allocation2 + $0x260] sm:$0xf]
      %v2051 = vld [vmem:[#allocation2 + $0x264] sm:$0xff]
      %v2052 = vld [vmem:[#allocation2 + $0x26c] sm:$0xff]
      %v2053 = vld [vmem:[#allocation2 + $0x274] sm:$0xff]
      %v2054 = vld [vmem:[#allocation2 + $0x27c] sm:$0xff]
      %v2055 = vld [vmem:[#allocation2 + $0x284] sm:$0xf]
      %v2056 = vld [vmem:[#allocation2 + $0x288] sm:$0xff]
      %v2057 = vld [vmem:[#allocation2 + $0x290] sm:$0xff]
      %v2058 = vld [vmem:[#allocation2 + $0x298] sm:$0xff]
      %v2059 = vld [vmem:[#allocation2 + $0x2a0] sm:$0xff]
      %v2060 = vld [vmem:[#allocation2 + $0x2a8] sm:$0xf]
      %v2061 = vld [vmem:[#allocation2 + $0x2ac] sm:$0xff]
      %v2062 = vld [vmem:[#allocation2 + $0x2b4] sm:$0xff]
      %v2063 = vld [vmem:[#allocation2 + $0x2bc] sm:$0xff]
      %v2064 = vld [vmem:[#allocation2 + $0x2c4] sm:$0xff]
      %v2065 = vld [vmem:[#allocation2 + $0x2cc] sm:$0xf]
      %v2066 = vld [vmem:[#allocation2 + $0x2d0] sm:$0xff]
      %v2067 = vld [vmem:[#allocation2 + $0x2d8] sm:$0xff]
      %v2068 = vld [vmem:[#allocation2 + $0x2e0] sm:$0xff]
      %v2069 = vld [vmem:[#allocation2 + $0x2e8] sm:$0xff]
      %v2070 = vld [vmem:[#allocation2 + $0x2f0] sm:$0xf]
      %v2071 = vld [vmem:[#allocation2 + $0x2f4] sm:$0xff]
      %v2072 = vld [vmem:[#allocation2 + $0x2fc] sm:$0xff]
      %v2073 = vld [vmem:[#allocation2 + $0x304] sm:$0xff]
      %v2074 = vld [vmem:[#allocation2 + $0x30c] sm:$0xff]
      %v2075 = vld [vmem:[#allocation2 + $0x314] sm:$0xf]
      %v2076 = vld [vmem:[#allocation2 + $0x318] sm:$0xff]
      %v2077 = vld [vmem:[#allocation2 + $0x320] sm:$0xff]
      %v2078 = vld [vmem:[#allocation2 + $0x328] sm:$0xff]
      %v2079 = vld [vmem:[#allocation2 + $0x330] sm:$0xff]
      %v2080 = vld [vmem:[#allocation2 + $0x338] sm:$0xf]
      %v2081 = vld [vmem:[#allocation2 + $0x33c] sm:$0xff]
      %v2082 = vld [vmem:[#allocation2 + $0x344] sm:$0xff]
      %v2083 = vld [vmem:[#allocation2 + $0x34c] sm:$0xff]
      %v2084 = vld [vmem:[#allocation2 + $0x354] sm:$0xff]
      %v2085 = vld [vmem:[#allocation2 + $0x35c] sm:$0xf]
      %v2086 = vld [vmem:[#allocation2 + $0x360] sm:$0xff]
      %v2087 = vld [vmem:[#allocation2 + $0x368] sm:$0xff]
      %v2088 = vld [vmem:[#allocation2 + $0x370] sm:$0xff]
      %v2089 = vld [vmem:[#allocation2 + $0x378] sm:$0xff]
      %v2090 = vld [vmem:[#allocation2 + $0x380] sm:$0xf]
      %v2091 = vld [vmem:[#allocation2 + $0x384] sm:$0xff]
      %v2092 = vld [vmem:[#allocation2 + $0x38c] sm:$0xff]
      %v2093 = vld [vmem:[#allocation2 + $0x394] sm:$0xff]
      %v2094 = vld [vmem:[#allocation2 + $0x39c] sm:$0xff]
      %v2095 = vld [vmem:[#allocation2 + $0x3a4] sm:$0xf]
      %v2096 = vld [vmem:[#allocation2 + $0x3a8] sm:$0xff]
      %v2097 = vld [vmem:[#allocation2 + $0x3b0] sm:$0xff]
      %v2098 = vld [vmem:[#allocation2 + $0x3b8] sm:$0xff]
      %v2099 = vld [vmem:[#allocation2 + $0x3c0] sm:$0xff]
      %v2100 = vld [vmem:[#allocation2 + $0x3c8] sm:$0xf]
      %v2101 = vld [vmem:[#allocation2 + $0x3cc] sm:$0xff]
      %v2102 = vld [vmem:[#allocation2 + $0x3d4] sm:$0xff]
      %v2103 = vld [vmem:[#allocation2 + $0x3dc] sm:$0xff]
      %v2104 = vld [vmem:[#allocation2 + $0x3e4] sm:$0xff]
      %v2105 = vld [vmem:[#allocation2 + $0x3ec] sm:$0xf]
      %v2106 = vld [vmem:[#allocation2 + $0x3f0] sm:$0xff]
      %v2107 = vld [vmem:[#allocation2 + $0x3f8] sm:$0xff]
      %v2108 = vld [vmem:[#allocation2 + $0x400] sm:$0xff]
      %v2109 = vld [vmem:[#allocation2 + $0x408] sm:$0xff]
      %v2110 = vld [vmem:[#allocation2 + $0x410] sm:$0xf]
      %v2111 = vld [vmem:[#allocation2 + $0x414] sm:$0xff]
      %v2112 = vld [vmem:[#allocation2 + $0x41c] sm:$0xff]
      %v2113 = vld [vmem:[#allocation2 + $0x424] sm:$0xff]
      %v2114 = vld [vmem:[#allocation2 + $0x42c] sm:$0xff]
      %v2115 = vld [vmem:[#allocation2 + $0x434] sm:$0xf]
      %v2116 = vld [vmem:[#allocation2 + $0x438] sm:$0xff]
      %v2117 = vld [vmem:[#allocation2 + $0x440] sm:$0xff]
      %v2118 = vld [vmem:[#allocation2 + $0x448] sm:$0xff]
      %v2119 = vld [vmem:[#allocation2 + $0x450] sm:$0xff]
      %v2120 = vld [vmem:[#allocation2 + $0x458] sm:$0xf]
      %v2121 = vld [vmem:[#allocation2 + $0x45c] sm:$0xff]
      %v2122 = vld [vmem:[#allocation2 + $0x464] sm:$0xff]
      %v2123 = vld [vmem:[#allocation2 + $0x46c] sm:$0xff]
      %v2124 = vld [vmem:[#allocation2 + $0x474] sm:$0xff]
      %v2125 = vld [vmem:[#allocation2 + $0x47c] sm:$0xf]
      %v2126 = vld [vmem:[%s1] sm:$0xf]
      %v2127 = vld [vmem:[%s1 + $0x4] sm:$0xf]
      %v2128 = vld [vmem:[%s1 + $0x8] sm:$0xf]
      %v2129 = vld [vmem:[%s1 + $0xc] sm:$0xf]
      %v2130 = vld [vmem:[%s1 + $0x10] sm:$0xf]
      %v2131 = vld [vmem:[%s1 + $0x14] sm:$0xf]
      %v2132 = vld [vmem:[%s1 + $0x18] sm:$0xf]
      %v2133 = vld [vmem:[%s1 + $0x1c] sm:$0xf]
      %v2134 = vld [vmem:[%s1 + $0x20] sm:$0xf]
      %v2135 = vld [vmem:[%s1 + $0x24] sm:$0xf]
      %v2136 = vld [vmem:[%s1 + $0x28] sm:$0xf]
      %v2137 = vld [vmem:[%s1 + $0x2c] sm:$0xf]
      %v2138 = vld [vmem:[%s1 + $0x30] sm:$0xf]
      %v2139 = vld [vmem:[%s1 + $0x34] sm:$0xf]
      %v2140 = vld [vmem:[%s1 + $0x38] sm:$0xf]
      %v2141 = vld [vmem:[%s1 + $0x3c] sm:$0xf]
      %v2142 = vld [vmem:[%s1 + $0x40] sm:$0xf]
      %v2143 = vld [vmem:[%s1 + $0x44] sm:$0xf]
      %v2144 = vld [vmem:[%s1 + $0x48] sm:$0xf]
      %v2145 = vld [vmem:[%s1 + $0x4c] sm:$0xf]
      %v2146 = vld [vmem:[%s1 + $0x50] sm:$0xf]
      %v2147 = vld [vmem:[%s1 + $0x54] sm:$0xf]
      %v2148 = vld [vmem:[%s1 + $0x58] sm:$0xf]
      %v2149 = vld [vmem:[%s1 + $0x5c] sm:$0xf]
      %v2150 = vld [vmem:[%s1 + $0x60] sm:$0xf]
      %v2151 = vld [vmem:[%s1 + $0x64] sm:$0xf]
      %v2152 = vld [vmem:[%s1 + $0x68] sm:$0xf]
      %v2153 = vld [vmem:[%s1 + $0x6c] sm:$0xf]
      %v2154 = vld [vmem:[%s1 + $0x70] sm:$0xf]
      %v2155 = vld [vmem:[%s1 + $0x74] sm:$0xf]
      %v2156 = vld [vmem:[%s1 + $0x78] sm:$0xf]
      %v2157 = vld [vmem:[%s1 + $0x7c] sm:$0xf]
      %v2158 = vld [vmem:[%s1 + $0x80] sm:$0xf]
      %v2159 = vld [vmem:[%s1 + $0x84] sm:$0xf]
      %v2160 = vld [vmem:[%s1 + $0x88] sm:$0xf]
      %v2161 = vld [vmem:[%s1 + $0x8c] sm:$0xf]
      %v2162 = vld [vmem:[%s1 + $0x90] sm:$0xf]
      %v2163 = vld [vmem:[%s1 + $0x94] sm:$0xf]
      %v2164 = vld [vmem:[%s1 + $0x98] sm:$0xf]
      %v2165 = vld [vmem:[%s1 + $0x9c] sm:$0xf]
      %v2166 = vld [vmem:[%s1 + $0xa0] sm:$0xf]
      %v2167 = vld [vmem:[%s1 + $0xa4] sm:$0xf]
      %v2168 = vld [vmem:[%s1 + $0xa8] sm:$0xf]
      %v2169 = vld [vmem:[%s1 + $0xac] sm:$0xf]
      %v2170 = vld [vmem:[%s1 + $0xb0] sm:$0xf]
      %v2171 = vld [vmem:[%s1 + $0xb4] sm:$0xf]
      %v2172 = vld [vmem:[%s1 + $0xb8] sm:$0xf]
      %v2173 = vld [vmem:[%s1 + $0xbc] sm:$0xf]
      %v2174 = vld [vmem:[%s1 + $0xc0] sm:$0xf]
      %v2175 = vld [vmem:[%s1 + $0xc4] sm:$0xf]
      %v2176 = vld [vmem:[%s1 + $0xc8] sm:$0xf]
      %v2177 = vld [vmem:[%s1 + $0xcc] sm:$0xf]
      %v2178 = vld [vmem:[%s1 + $0xd0] sm:$0xf]
      %v2179 = vld [vmem:[%s1 + $0xd4] sm:$0xf]
      %v2180 = vld [vmem:[%s1 + $0xd8] sm:$0xf]
      %v2181 = vld [vmem:[%s1 + $0xdc] sm:$0xf]
      %v2182 = vld [vmem:[%s1 + $0xe0] sm:$0xf]
      %v2183 = vld [vmem:[%s1 + $0xe4] sm:$0xf]
      %v2184 = vld [vmem:[%s1 + $0xe8] sm:$0xf]
      %v2185 = vld [vmem:[%s1 + $0xec] sm:$0xf]
      %v2186 = vld [vmem:[%s1 + $0xf0] sm:$0xf]
      %v2187 = vld [vmem:[%s1 + $0xf4] sm:$0xf]
      %v2188 = vld [vmem:[%s1 + $0xf8] sm:$0xf]
      %v2189 = vld [vmem:[%s1 + $0xfc] sm:$0xf]
      %v2190 = vld [vmem:[%s1 + $0x100] sm:$0xf]
      %v2191 = vld [vmem:[%s1 + $0x104] sm:$0xf]
      %v2192 = vld [vmem:[%s1 + $0x108] sm:$0xf]
      %v2193 = vld [vmem:[%s1 + $0x10c] sm:$0xf]
      %v2194 = vld [vmem:[%s1 + $0x110] sm:$0xf]
      %v2195 = vld [vmem:[%s1 + $0x114] sm:$0xf]
      %v2196 = vld [vmem:[%s1 + $0x118] sm:$0xf]
      %v2197 = vld [vmem:[%s1 + $0x11c] sm:$0xf]
      %v2198 = vld [vmem:[%s1 + $0x120] sm:$0xf]
      %v2199 = vld [vmem:[%s1 + $0x124] sm:$0xf]
      %v2200 = vld [vmem:[%s1 + $0x128] sm:$0xf]
      %v2201 = vld [vmem:[%s1 + $0x12c] sm:$0xf]
      %v2202 = vld [vmem:[%s1 + $0x130] sm:$0xf]
      %v2203 = vld [vmem:[%s1 + $0x134] sm:$0xf]
      %v2204 = vld [vmem:[%s1 + $0x138] sm:$0xf]
      %v2205 = vld [vmem:[%s1 + $0x13c] sm:$0xf]
      %v2206 = vld [vmem:[%s1 + $0x140] sm:$0xf]
      %v2207 = vld [vmem:[%s1 + $0x144] sm:$0xf]
      %v2208 = vld [vmem:[%s1 + $0x148] sm:$0xf]
      %v2209 = vld [vmem:[%s1 + $0x14c] sm:$0xf]
      %v2210 = vld [vmem:[%s1 + $0x150] sm:$0xf]
      %v2211 = vld [vmem:[%s1 + $0x154] sm:$0xf]
      %v2212 = vld [vmem:[%s1 + $0x158] sm:$0xf]
      %v2213 = vld [vmem:[%s1 + $0x15c] sm:$0xf]
      %v2214 = vld [vmem:[%s1 + $0x160] sm:$0xf]
      %v2215 = vld [vmem:[%s1 + $0x164] sm:$0xf]
      %v2216 = vld [vmem:[%s1 + $0x168] sm:$0xf]
      %v2217 = vld [vmem:[%s1 + $0x16c] sm:$0xf]
      %v2218 = vld [vmem:[%s1 + $0x170] sm:$0xf]
      %v2219 = vld [vmem:[%s1 + $0x174] sm:$0xf]
      %v2220 = vld [vmem:[%s1 + $0x178] sm:$0xf]
      %v2221 = vld [vmem:[%s1 + $0x17c] sm:$0xf]
      %v2222 = vld [vmem:[%s1 + $0x180] sm:$0xf]
      %v2223 = vld [vmem:[%s1 + $0x184] sm:$0xf]
      %v2224 = vld [vmem:[%s1 + $0x188] sm:$0xf]
      %v2225 = vld [vmem:[%s1 + $0x18c] sm:$0xf]
      %v2226 = vld [vmem:[%s1 + $0x190] sm:$0xf]
      %v2227 = vld [vmem:[%s1 + $0x194] sm:$0xf]
      %v2228 = vld [vmem:[%s1 + $0x198] sm:$0xf]
      %v2229 = vld [vmem:[%s1 + $0x19c] sm:$0xf]
      %v2230 = vld [vmem:[%s1 + $0x1a0] sm:$0xf]
      %v2231 = vld [vmem:[%s1 + $0x1a4] sm:$0xf]
      %v2232 = vld [vmem:[%s1 + $0x1a8] sm:$0xf]
      %v2233 = vld [vmem:[%s1 + $0x1ac] sm:$0xf]
      %v2234 = vld [vmem:[%s1 + $0x1b0] sm:$0xf]
      %v2235 = vld [vmem:[%s1 + $0x1b4] sm:$0xf]
      %v2236 = vld [vmem:[%s1 + $0x1b8] sm:$0xf]
      %v2237 = vld [vmem:[%s1 + $0x1bc] sm:$0xf]
      %v2238 = vld [vmem:[%s1 + $0x1c0] sm:$0xf]
      %v2239 = vld [vmem:[%s1 + $0x1c4] sm:$0xf]
      %v2240 = vld [vmem:[%s1 + $0x1c8] sm:$0xf]
      %v2241 = vld [vmem:[%s1 + $0x1cc] sm:$0xf]
      %v2242 = vld [vmem:[%s1 + $0x1d0] sm:$0xf]
      %v2243 = vld [vmem:[%s1 + $0x1d4] sm:$0xf]
      %v2244 = vld [vmem:[%s1 + $0x1d8] sm:$0xf]
      %v2245 = vld [vmem:[%s1 + $0x1dc] sm:$0xf]
      %v2246 = vld [vmem:[%s1 + $0x1e0] sm:$0xf]
      %v2247 = vld [vmem:[%s1 + $0x1e4] sm:$0xf]
      %v2248 = vld [vmem:[%s1 + $0x1e8] sm:$0xf]
      %v2249 = vld [vmem:[%s1 + $0x1ec] sm:$0xf]
      %v2250 = vld [vmem:[%s1 + $0x1f0] sm:$0xf]
      %v2251 = vld [vmem:[%s1 + $0x1f4] sm:$0xf]
      %v2252 = vld [vmem:[%s1 + $0x1f8] sm:$0xf]
      %v2253 = vld [vmem:[%s1 + $0x1fc] sm:$0xf]
      %v2254 = vld [vmem:[%s1 + $0x200] sm:$0xf]
      %v2255 = vld [vmem:[%s1 + $0x204] sm:$0xf]
      %v2256 = vld [vmem:[%s1 + $0x208] sm:$0xf]
      %v2257 = vld [vmem:[%s1 + $0x20c] sm:$0xf]
      %v2258 = vld [vmem:[%s1 + $0x210] sm:$0xf]
      %v2259 = vld [vmem:[%s1 + $0x214] sm:$0xf]
      %v2260 = vld [vmem:[%s1 + $0x218] sm:$0xf]
      %v2261 = vld [vmem:[%s1 + $0x21c] sm:$0xf]
      %v2262 = vld [vmem:[%s1 + $0x220] sm:$0xf]
      %v2263 = vld [vmem:[%s1 + $0x224] sm:$0xf]
      %v2264 = vld [vmem:[%s1 + $0x228] sm:$0xf]
      %v2265 = vld [vmem:[%s1 + $0x22c] sm:$0xf]
      %v2266 = vld [vmem:[%s1 + $0x230] sm:$0xf]
      %v2267 = vld [vmem:[%s1 + $0x234] sm:$0xf]
      %v2268 = vld [vmem:[%s1 + $0x238] sm:$0xf]
      %v2269 = vld [vmem:[%s1 + $0x23c] sm:$0xf]
      %v2430 = vunpack.c.l.b16 %v1966
      %v2431 = vunpack.c.h.b16 %v1966
      %v2432 = vunpack.c.l.b16 %v1967
      %v2433 = vunpack.c.h.b16 %v1967
      %v2434 = vunpack.c.l.b16 %v1968
      %v2435 = vunpack.c.h.b16 %v1968
      %v2436 = vunpack.c.l.b16 %v1969
      %v2437 = vunpack.c.h.b16 %v1969
      %v2438 = vunpack.c.l.b16 %v1970
      %v2439 = vunpack.c.l.b16 %v1971
      %v2440 = vunpack.c.h.b16 %v1971
      %v2441 = vunpack.c.l.b16 %v1972
      %v2442 = vunpack.c.h.b16 %v1972
      %v2443 = vunpack.c.l.b16 %v1973
      %v2444 = vunpack.c.h.b16 %v1973
      %v2445 = vunpack.c.l.b16 %v1974
      %v2446 = vunpack.c.h.b16 %v1974
      %v2447 = vunpack.c.l.b16 %v1975
      %v2448 = vunpack.c.l.b16 %v1976
      %v2449 = vunpack.c.h.b16 %v1976
      %v2450 = vunpack.c.l.b16 %v1977
      %v2451 = vunpack.c.h.b16 %v1977
      %v2452 = vunpack.c.l.b16 %v1978
      %v2453 = vunpack.c.h.b16 %v1978
      %v2454 = vunpack.c.l.b16 %v1979
      %v2455 = vunpack.c.h.b16 %v1979
      %v2456 = vunpack.c.l.b16 %v1980
      %v2457 = vunpack.c.l.b16 %v1981
      %v2458 = vunpack.c.h.b16 %v1981
      %v2459 = vunpack.c.l.b16 %v1982
      %v2460 = vunpack.c.h.b16 %v1982
      %v2461 = vunpack.c.l.b16 %v1983
      %v2462 = vunpack.c.h.b16 %v1983
      %v2463 = vunpack.c.l.b16 %v1984
      %v2464 = vunpack.c.h.b16 %v1984
      %v2465 = vunpack.c.l.b16 %v1985
      %v2466 = vunpack.c.l.b16 %v1986
      %v2467 = vunpack.c.h.b16 %v1986
      %v2468 = vunpack.c.l.b16 %v1987
      %v2469 = vunpack.c.h.b16 %v1987
      %v2470 = vunpack.c.l.b16 %v1988
      %v2471 = vunpack.c.h.b16 %v1988
      %v2472 = vunpack.c.l.b16 %v1989
      %v2473 = vunpack.c.h.b16 %v1989
      %v2474 = vunpack.c.l.b16 %v1990
      %v2475 = vunpack.c.l.b16 %v1991
      %v2476 = vunpack.c.h.b16 %v1991
      %v2477 = vunpack.c.l.b16 %v1992
      %v2478 = vunpack.c.h.b16 %v1992
      %v2479 = vunpack.c.l.b16 %v1993
      %v2480 = vunpack.c.h.b16 %v1993
      %v2481 = vunpack.c.l.b16 %v1994
      %v2482 = vunpack.c.h.b16 %v1994
      %v2483 = vunpack.c.l.b16 %v1995
      %v2484 = vunpack.c.l.b16 %v1996
      %v2485 = vunpack.c.h.b16 %v1996
      %v2486 = vunpack.c.l.b16 %v1997
      %v2487 = vunpack.c.h.b16 %v1997
      %v2488 = vunpack.c.l.b16 %v1998
      %v2489 = vunpack.c.h.b16 %v1998
      %v2490 = vunpack.c.l.b16 %v1999
      %v2491 = vunpack.c.h.b16 %v1999
      %v2492 = vunpack.c.l.b16 %v2000
      %v2493 = vunpack.c.l.b16 %v2001
      %v2494 = vunpack.c.h.b16 %v2001
      %v2495 = vunpack.c.l.b16 %v2002
      %v2496 = vunpack.c.h.b16 %v2002
      %v2497 = vunpack.c.l.b16 %v2003
      %v2498 = vunpack.c.h.b16 %v2003
      %v2499 = vunpack.c.l.b16 %v2004
      %v2500 = vunpack.c.h.b16 %v2004
      %v2501 = vunpack.c.l.b16 %v2005
      %v2502 = vunpack.c.l.b16 %v2006
      %v2503 = vunpack.c.h.b16 %v2006
      %v2504 = vunpack.c.l.b16 %v2007
      %v2505 = vunpack.c.h.b16 %v2007
      %v2506 = vunpack.c.l.b16 %v2008
      %v2507 = vunpack.c.h.b16 %v2008
      %v2508 = vunpack.c.l.b16 %v2009
      %v2509 = vunpack.c.h.b16 %v2009
      %v2510 = vunpack.c.l.b16 %v2010
      %v2511 = vunpack.c.l.b16 %v2011
      %v2512 = vunpack.c.h.b16 %v2011
      %v2513 = vunpack.c.l.b16 %v2012
      %v2514 = vunpack.c.h.b16 %v2012
      %v2515 = vunpack.c.l.b16 %v2013
      %v2516 = vunpack.c.h.b16 %v2013
      %v2517 = vunpack.c.l.b16 %v2014
      %v2518 = vunpack.c.h.b16 %v2014
      %v2519 = vunpack.c.l.b16 %v2015
      %v2520 = vunpack.c.l.b16 %v2016
      %v2521 = vunpack.c.h.b16 %v2016
      %v2522 = vunpack.c.l.b16 %v2017
      %v2523 = vunpack.c.h.b16 %v2017
      %v2524 = vunpack.c.l.b16 %v2018
      %v2525 = vunpack.c.h.b16 %v2018
      %v2526 = vunpack.c.l.b16 %v2019
      %v2527 = vunpack.c.h.b16 %v2019
      %v2528 = vunpack.c.l.b16 %v2020
      %v2529 = vunpack.c.l.b16 %v2021
      %v2530 = vunpack.c.h.b16 %v2021
      %v2531 = vunpack.c.l.b16 %v2022
      %v2532 = vunpack.c.h.b16 %v2022
      %v2533 = vunpack.c.l.b16 %v2023
      %v2534 = vunpack.c.h.b16 %v2023
      %v2535 = vunpack.c.l.b16 %v2024
      %v2536 = vunpack.c.h.b16 %v2024
      %v2537 = vunpack.c.l.b16 %v2025
      %v2538 = vunpack.c.l.b16 %v2026
      %v2539 = vunpack.c.h.b16 %v2026
      %v2540 = vunpack.c.l.b16 %v2027
      %v2541 = vunpack.c.h.b16 %v2027
      %v2542 = vunpack.c.l.b16 %v2028
      %v2543 = vunpack.c.h.b16 %v2028
      %v2544 = vunpack.c.l.b16 %v2029
      %v2545 = vunpack.c.h.b16 %v2029
      %v2546 = vunpack.c.l.b16 %v2030
      %v2547 = vunpack.c.l.b16 %v2031
      %v2548 = vunpack.c.h.b16 %v2031
      %v2549 = vunpack.c.l.b16 %v2032
      %v2550 = vunpack.c.h.b16 %v2032
      %v2551 = vunpack.c.l.b16 %v2033
      %v2552 = vunpack.c.h.b16 %v2033
      %v2553 = vunpack.c.l.b16 %v2034
      %v2554 = vunpack.c.h.b16 %v2034
      %v2555 = vunpack.c.l.b16 %v2035
      %v2556 = vunpack.c.l.b16 %v2036
      %v2557 = vunpack.c.h.b16 %v2036
      %v2558 = vunpack.c.l.b16 %v2037
      %v2559 = vunpack.c.h.b16 %v2037
      %v2560 = vunpack.c.l.b16 %v2038
      %v2561 = vunpack.c.h.b16 %v2038
      %v2562 = vunpack.c.l.b16 %v2039
      %v2563 = vunpack.c.h.b16 %v2039
      %v2564 = vunpack.c.l.b16 %v2040
      %v2565 = vunpack.c.l.b16 %v2041
      %v2566 = vunpack.c.h.b16 %v2041
      %v2567 = vunpack.c.l.b16 %v2042
      %v2568 = vunpack.c.h.b16 %v2042
      %v2569 = vunpack.c.l.b16 %v2043
      %v2570 = vunpack.c.h.b16 %v2043
      %v2571 = vunpack.c.l.b16 %v2044
      %v2572 = vunpack.c.h.b16 %v2044
      %v2573 = vunpack.c.l.b16 %v2045
      %v2574 = vunpack.c.l.b16 %v2046
      %v2575 = vunpack.c.h.b16 %v2046
      %v2576 = vunpack.c.l.b16 %v2047
      %v2577 = vunpack.c.h.b16 %v2047
      %v2578 = vunpack.c.l.b16 %v2048
      %v2579 = vunpack.c.h.b16 %v2048
      %v2580 = vunpack.c.l.b16 %v2049
      %v2581 = vunpack.c.h.b16 %v2049
      %v2582 = vunpack.c.l.b16 %v2050
      %v2583 = vunpack.c.l.b16 %v2051
      %v2584 = vunpack.c.h.b16 %v2051
      %v2585 = vunpack.c.l.b16 %v2052
      %v2586 = vunpack.c.h.b16 %v2052
      %v2587 = vunpack.c.l.b16 %v2053
      %v2588 = vunpack.c.h.b16 %v2053
      %v2589 = vunpack.c.l.b16 %v2054
      %v2590 = vunpack.c.h.b16 %v2054
      %v2591 = vunpack.c.l.b16 %v2055
      %v2592 = vunpack.c.l.b16 %v2056
      %v2593 = vunpack.c.h.b16 %v2056
      %v2594 = vunpack.c.l.b16 %v2057
      %v2595 = vunpack.c.h.b16 %v2057
      %v2596 = vunpack.c.l.b16 %v2058
      %v2597 = vunpack.c.h.b16 %v2058
      %v2598 = vunpack.c.l.b16 %v2059
      %v2599 = vunpack.c.h.b16 %v2059
      %v2600 = vunpack.c.l.b16 %v2060
      %v2601 = vunpack.c.l.b16 %v2061
      %v2602 = vunpack.c.h.b16 %v2061
      %v2603 = vunpack.c.l.b16 %v2062
      %v2604 = vunpack.c.h.b16 %v2062
      %v2605 = vunpack.c.l.b16 %v2063
      %v2606 = vunpack.c.h.b16 %v2063
      %v2607 = vunpack.c.l.b16 %v2064
      %v2608 = vunpack.c.h.b16 %v2064
      %v2609 = vunpack.c.l.b16 %v2065
      %v2610 = vunpack.c.l.b16 %v2066
      %v2611 = vunpack.c.h.b16 %v2066
      %v2612 = vunpack.c.l.b16 %v2067
      %v2613 = vunpack.c.h.b16 %v2067
      %v2614 = vunpack.c.l.b16 %v2068
      %v2615 = vunpack.c.h.b16 %v2068
      %v2616 = vunpack.c.l.b16 %v2069
      %v2617 = vunpack.c.h.b16 %v2069
      %v2618 = vunpack.c.l.b16 %v2070
      %v2619 = vunpack.c.l.b16 %v2071
      %v2620 = vunpack.c.h.b16 %v2071
      %v2621 = vunpack.c.l.b16 %v2072
      %v2622 = vunpack.c.h.b16 %v2072
      %v2623 = vunpack.c.l.b16 %v2073
      %v2624 = vunpack.c.h.b16 %v2073
      %v2625 = vunpack.c.l.b16 %v2074
      %v2626 = vunpack.c.h.b16 %v2074
      %v2627 = vunpack.c.l.b16 %v2075
      %v2628 = vunpack.c.l.b16 %v2076
      %v2629 = vunpack.c.h.b16 %v2076
      %v2630 = vunpack.c.l.b16 %v2077
      %v2631 = vunpack.c.h.b16 %v2077
      %v2632 = vunpack.c.l.b16 %v2078
      %v2633 = vunpack.c.h.b16 %v2078
      %v2634 = vunpack.c.l.b16 %v2079
      %v2635 = vunpack.c.h.b16 %v2079
      %v2636 = vunpack.c.l.b16 %v2080
      %v2637 = vunpack.c.l.b16 %v2081
      %v2638 = vunpack.c.h.b16 %v2081
      %v2639 = vunpack.c.l.b16 %v2082
      %v2640 = vunpack.c.h.b16 %v2082
      %v2641 = vunpack.c.l.b16 %v2083
      %v2642 = vunpack.c.h.b16 %v2083
      %v2643 = vunpack.c.l.b16 %v2084
      %v2644 = vunpack.c.h.b16 %v2084
      %v2645 = vunpack.c.l.b16 %v2085
      %v2646 = vunpack.c.l.b16 %v2086
      %v2647 = vunpack.c.h.b16 %v2086
      %v2648 = vunpack.c.l.b16 %v2087
      %v2649 = vunpack.c.h.b16 %v2087
      %v2650 = vunpack.c.l.b16 %v2088
      %v2651 = vunpack.c.h.b16 %v2088
      %v2652 = vunpack.c.l.b16 %v2089
      %v2653 = vunpack.c.h.b16 %v2089
      %v2654 = vunpack.c.l.b16 %v2090
      %v2655 = vunpack.c.l.b16 %v2091
      %v2656 = vunpack.c.h.b16 %v2091
      %v2657 = vunpack.c.l.b16 %v2092
      %v2658 = vunpack.c.h.b16 %v2092
      %v2659 = vunpack.c.l.b16 %v2093
      %v2660 = vunpack.c.h.b16 %v2093
      %v2661 = vunpack.c.l.b16 %v2094
      %v2662 = vunpack.c.h.b16 %v2094
      %v2663 = vunpack.c.l.b16 %v2095
      %v2664 = vunpack.c.l.b16 %v2096
      %v2665 = vunpack.c.h.b16 %v2096
      %v2666 = vunpack.c.l.b16 %v2097
      %v2667 = vunpack.c.h.b16 %v2097
      %v2668 = vunpack.c.l.b16 %v2098
      %v2669 = vunpack.c.h.b16 %v2098
      %v2670 = vunpack.c.l.b16 %v2099
      %v2671 = vunpack.c.h.b16 %v2099
      %v2672 = vunpack.c.l.b16 %v2100
      %v2673 = vunpack.c.l.b16 %v2101
      %v2674 = vunpack.c.h.b16 %v2101
      %v2675 = vunpack.c.l.b16 %v2102
      %v2676 = vunpack.c.h.b16 %v2102
      %v2677 = vunpack.c.l.b16 %v2103
      %v2678 = vunpack.c.h.b16 %v2103
      %v2679 = vunpack.c.l.b16 %v2104
      %v2680 = vunpack.c.h.b16 %v2104
      %v2681 = vunpack.c.l.b16 %v2105
      %v2682 = vunpack.c.l.b16 %v2106
      %v2683 = vunpack.c.h.b16 %v2106
      %v2684 = vunpack.c.l.b16 %v2107
      %v2685 = vunpack.c.h.b16 %v2107
      %v2686 = vunpack.c.l.b16 %v2108
      %v2687 = vunpack.c.h.b16 %v2108
      %v2688 = vunpack.c.l.b16 %v2109
      %v2689 = vunpack.c.h.b16 %v2109
      %v2690 = vunpack.c.l.b16 %v2110
      %v2691 = vunpack.c.l.b16 %v2111
      %v2692 = vunpack.c.h.b16 %v2111
      %v2693 = vunpack.c.l.b16 %v2112
      %v2694 = vunpack.c.h.b16 %v2112
      %v2695 = vunpack.c.l.b16 %v2113
      %v2696 = vunpack.c.h.b16 %v2113
      %v2697 = vunpack.c.l.b16 %v2114
      %v2698 = vunpack.c.h.b16 %v2114
      %v2699 = vunpack.c.l.b16 %v2115
      %v2700 = vunpack.c.l.b16 %v2116
      %v2701 = vunpack.c.h.b16 %v2116
      %v2702 = vunpack.c.l.b16 %v2117
      %v2703 = vunpack.c.h.b16 %v2117
      %v2704 = vunpack.c.l.b16 %v2118
      %v2705 = vunpack.c.h.b16 %v2118
      %v2706 = vunpack.c.l.b16 %v2119
      %v2707 = vunpack.c.h.b16 %v2119
      %v2708 = vunpack.c.l.b16 %v2120
      %v2709 = vunpack.c.l.b16 %v2121
      %v2710 = vunpack.c.h.b16 %v2121
      %v2711 = vunpack.c.l.b16 %v2122
      %v2712 = vunpack.c.h.b16 %v2122
      %v2713 = vunpack.c.l.b16 %v2123
      %v2714 = vunpack.c.h.b16 %v2123
      %v2715 = vunpack.c.l.b16 %v2124
      %v2716 = vunpack.c.h.b16 %v2124
      %v2717 = vunpack.c.l.b16 %v2125
      %v2718 = vpack.c.b16 %v2439, %v2430
      %v2719 = vpack.c.b16 %v2440, %v2431
      %v2720 = vpack.c.b16 %v2441, %v2432
      %v2721 = vpack.c.b16 %v2442, %v2433
      %v2722 = vpack.c.b16 %v2443, %v2434
      %v2723 = vpack.c.b16 %v2444, %v2435
      %v2724 = vpack.c.b16 %v2445, %v2436
      %v2725 = vpack.c.b16 %v2446, %v2437
      %v2726 = vpack.c.b16 %v2447, %v2438
      %v2727 = vpack.c.b16 %v2457, %v2448
      %v2728 = vpack.c.b16 %v2458, %v2449
      %v2729 = vpack.c.b16 %v2459, %v2450
      %v2730 = vpack.c.b16 %v2460, %v2451
      %v2731 = vpack.c.b16 %v2461, %v2452
      %v2732 = vpack.c.b16 %v2462, %v2453
      %v2733 = vpack.c.b16 %v2463, %v2454
      %v2734 = vpack.c.b16 %v2464, %v2455
      %v2735 = vpack.c.b16 %v2465, %v2456
      %v2736 = vpack.c.b16 %v2475, %v2466
      %v2737 = vpack.c.b16 %v2476, %v2467
      %v2738 = vpack.c.b16 %v2477, %v2468
      %v2739 = vpack.c.b16 %v2478, %v2469
      %v2740 = vpack.c.b16 %v2479, %v2470
      %v2741 = vpack.c.b16 %v2480, %v2471
      %v2742 = vpack.c.b16 %v2481, %v2472
      %v2743 = vpack.c.b16 %v2482, %v2473
      %v2744 = vpack.c.b16 %v2483, %v2474
      %v2745 = vpack.c.b16 %v2493, %v2484
      %v2746 = vpack.c.b16 %v2494, %v2485
      %v2747 = vpack.c.b16 %v2495, %v2486
      %v2748 = vpack.c.b16 %v2496, %v2487
      %v2749 = vpack.c.b16 %v2497, %v2488
      %v2750 = vpack.c.b16 %v2498, %v2489
      %v2751 = vpack.c.b16 %v2499, %v2490
      %v2752 = vpack.c.b16 %v2500, %v2491
      %v2753 = vpack.c.b16 %v2501, %v2492
      %v2754 = vpack.c.b16 %v2511, %v2502
      %v2755 = vpack.c.b16 %v2512, %v2503
      %v2756 = vpack.c.b16 %v2513, %v2504
      %v2757 = vpack.c.b16 %v2514, %v2505
      %v2758 = vpack.c.b16 %v2515, %v2506
      %v2759 = vpack.c.b16 %v2516, %v2507
      %v2760 = vpack.c.b16 %v2517, %v2508
      %v2761 = vpack.c.b16 %v2518, %v2509
      %v2762 = vpack.c.b16 %v2519, %v2510
      %v2763 = vpack.c.b16 %v2529, %v2520
      %v2764 = vpack.c.b16 %v2530, %v2521
      %v2765 = vpack.c.b16 %v2531, %v2522
      %v2766 = vpack.c.b16 %v2532, %v2523
      %v2767 = vpack.c.b16 %v2533, %v2524
      %v2768 = vpack.c.b16 %v2534, %v2525
      %v2769 = vpack.c.b16 %v2535, %v2526
      %v2770 = vpack.c.b16 %v2536, %v2527
      %v2771 = vpack.c.b16 %v2537, %v2528
      %v2772 = vpack.c.b16 %v2547, %v2538
      %v2773 = vpack.c.b16 %v2548, %v2539
      %v2774 = vpack.c.b16 %v2549, %v2540
      %v2775 = vpack.c.b16 %v2550, %v2541
      %v2776 = vpack.c.b16 %v2551, %v2542
      %v2777 = vpack.c.b16 %v2552, %v2543
      %v2778 = vpack.c.b16 %v2553, %v2544
      %v2779 = vpack.c.b16 %v2554, %v2545
      %v2780 = vpack.c.b16 %v2555, %v2546
      %v2781 = vpack.c.b16 %v2565, %v2556
      %v2782 = vpack.c.b16 %v2566, %v2557
      %v2783 = vpack.c.b16 %v2567, %v2558
      %v2784 = vpack.c.b16 %v2568, %v2559
      %v2785 = vpack.c.b16 %v2569, %v2560
      %v2786 = vpack.c.b16 %v2570, %v2561
      %v2787 = vpack.c.b16 %v2571, %v2562
      %v2788 = vpack.c.b16 %v2572, %v2563
      %v2789 = vpack.c.b16 %v2573, %v2564
      %v2790 = vpack.c.b16 %v2583, %v2574
      %v2791 = vpack.c.b16 %v2584, %v2575
      %v2792 = vpack.c.b16 %v2585, %v2576
      %v2793 = vpack.c.b16 %v2586, %v2577
      %v2794 = vpack.c.b16 %v2587, %v2578
      %v2795 = vpack.c.b16 %v2588, %v2579
      %v2796 = vpack.c.b16 %v2589, %v2580
      %v2797 = vpack.c.b16 %v2590, %v2581
      %v2798 = vpack.c.b16 %v2591, %v2582
      %v2799 = vpack.c.b16 %v2601, %v2592
      %v2800 = vpack.c.b16 %v2602, %v2593
      %v2801 = vpack.c.b16 %v2603, %v2594
      %v2802 = vpack.c.b16 %v2604, %v2595
      %v2803 = vpack.c.b16 %v2605, %v2596
      %v2804 = vpack.c.b16 %v2606, %v2597
      %v2805 = vpack.c.b16 %v2607, %v2598
      %v2806 = vpack.c.b16 %v2608, %v2599
      %v2807 = vpack.c.b16 %v2609, %v2600
      %v2808 = vpack.c.b16 %v2619, %v2610
      %v2809 = vpack.c.b16 %v2620, %v2611
      %v2810 = vpack.c.b16 %v2621, %v2612
      %v2811 = vpack.c.b16 %v2622, %v2613
      %v2812 = vpack.c.b16 %v2623, %v2614
      %v2813 = vpack.c.b16 %v2624, %v2615
      %v2814 = vpack.c.b16 %v2625, %v2616
      %v2815 = vpack.c.b16 %v2626, %v2617
      %v2816 = vpack.c.b16 %v2627, %v2618
      %v2817 = vpack.c.b16 %v2637, %v2628
      %v2818 = vpack.c.b16 %v2638, %v2629
      %v2819 = vpack.c.b16 %v2639, %v2630
      %v2820 = vpack.c.b16 %v2640, %v2631
      %v2821 = vpack.c.b16 %v2641, %v2632
      %v2822 = vpack.c.b16 %v2642, %v2633
      %v2823 = vpack.c.b16 %v2643, %v2634
      %v2824 = vpack.c.b16 %v2644, %v2635
      %v2825 = vpack.c.b16 %v2645, %v2636
      %v2826 = vpack.c.b16 %v2655, %v2646
      %v2827 = vpack.c.b16 %v2656, %v2647
      %v2828 = vpack.c.b16 %v2657, %v2648
      %v2829 = vpack.c.b16 %v2658, %v2649
      %v2830 = vpack.c.b16 %v2659, %v2650
      %v2831 = vpack.c.b16 %v2660, %v2651
      %v2832 = vpack.c.b16 %v2661, %v2652
      %v2833 = vpack.c.b16 %v2662, %v2653
      %v2834 = vpack.c.b16 %v2663, %v2654
      %v2835 = vpack.c.b16 %v2673, %v2664
      %v2836 = vpack.c.b16 %v2674, %v2665
      %v2837 = vpack.c.b16 %v2675, %v2666
      %v2838 = vpack.c.b16 %v2676, %v2667
      %v2839 = vpack.c.b16 %v2677, %v2668
      %v2840 = vpack.c.b16 %v2678, %v2669
      %v2841 = vpack.c.b16 %v2679, %v2670
      %v2842 = vpack.c.b16 %v2680, %v2671
      %v2843 = vpack.c.b16 %v2681, %v2672
      %v2844 = vpack.c.b16 %v2691, %v2682
      %v2845 = vpack.c.b16 %v2692, %v2683
      %v2846 = vpack.c.b16 %v2693, %v2684
      %v2847 = vpack.c.b16 %v2694, %v2685
      %v2848 = vpack.c.b16 %v2695, %v2686
      %v2849 = vpack.c.b16 %v2696, %v2687
      %v2850 = vpack.c.b16 %v2697, %v2688
      %v2851 = vpack.c.b16 %v2698, %v2689
      %v2852 = vpack.c.b16 %v2699, %v2690
      %v2853 = vpack.c.b16 %v2709, %v2700
      %v2854 = vpack.c.b16 %v2710, %v2701
      %v2855 = vpack.c.b16 %v2711, %v2702
      %v2856 = vpack.c.b16 %v2712, %v2703
      %v2857 = vpack.c.b16 %v2713, %v2704
      %v2858 = vpack.c.b16 %v2714, %v2705
      %v2859 = vpack.c.b16 %v2715, %v2706
      %v2860 = vpack.c.b16 %v2716, %v2707
      %v2861 = vpack.c.b16 %v2717, %v2708
      %v3150 = vunpack.c.l.b16 %v2126
      %v3151 = vunpack.c.l.b16 %v2127
      %v3152 = vunpack.c.l.b16 %v2128
      %v3153 = vunpack.c.l.b16 %v2129
      %v3154 = vunpack.c.l.b16 %v2130
      %v3155 = vunpack.c.l.b16 %v2131
      %v3156 = vunpack.c.l.b16 %v2132
      %v3157 = vunpack.c.l.b16 %v2133
      %v3158 = vunpack.c.l.b16 %v2134
      %v3159 = vunpack.c.l.b16 %v2135
      %v3160 = vunpack.c.l.b16 %v2136
      %v3161 = vunpack.c.l.b16 %v2137
      %v3162 = vunpack.c.l.b16 %v2138
      %v3163 = vunpack.c.l.b16 %v2139
      %v3164 = vunpack.c.l.b16 %v2140
      %v3165 = vunpack.c.l.b16 %v2141
      %v3166 = vunpack.c.l.b16 %v2142
      %v3167 = vunpack.c.l.b16 %v2143
      %v3168 = vunpack.c.l.b16 %v2144
      %v3169 = vunpack.c.l.b16 %v2145
      %v3170 = vunpack.c.l.b16 %v2146
      %v3171 = vunpack.c.l.b16 %v2147
      %v3172 = vunpack.c.l.b16 %v2148
      %v3173 = vunpack.c.l.b16 %v2149
      %v3174 = vunpack.c.l.b16 %v2150
      %v3175 = vunpack.c.l.b16 %v2151
      %v3176 = vunpack.c.l.b16 %v2152
      %v3177 = vunpack.c.l.b16 %v2153
      %v3178 = vunpack.c.l.b16 %v2154
      %v3179 = vunpack.c.l.b16 %v2155
      %v3180 = vunpack.c.l.b16 %v2156
      %v3181 = vunpack.c.l.b16 %v2157
      %v3182 = vunpack.c.l.b16 %v2158
      %v3183 = vunpack.c.l.b16 %v2159
      %v3184 = vunpack.c.l.b16 %v2160
      %v3185 = vunpack.c.l.b16 %v2161
      %v3186 = vunpack.c.l.b16 %v2162
      %v3187 = vunpack.c.l.b16 %v2163
      %v3188 = vunpack.c.l.b16 %v2164
      %v3189 = vunpack.c.l.b16 %v2165
      %v3190 = vunpack.c.l.b16 %v2166
      %v3191 = vunpack.c.l.b16 %v2167
      %v3192 = vunpack.c.l.b16 %v2168
      %v3193 = vunpack.c.l.b16 %v2169
      %v3194 = vunpack.c.l.b16 %v2170
      %v3195 = vunpack.c.l.b16 %v2171
      %v3196 = vunpack.c.l.b16 %v2172
      %v3197 = vunpack.c.l.b16 %v2173
      %v3198 = vunpack.c.l.b16 %v2174
      %v3199 = vunpack.c.l.b16 %v2175
      %v3200 = vunpack.c.l.b16 %v2176
      %v3201 = vunpack.c.l.b16 %v2177
      %v3202 = vunpack.c.l.b16 %v2178
      %v3203 = vunpack.c.l.b16 %v2179
      %v3204 = vunpack.c.l.b16 %v2180
      %v3205 = vunpack.c.l.b16 %v2181
      %v3206 = vunpack.c.l.b16 %v2182
      %v3207 = vunpack.c.l.b16 %v2183
      %v3208 = vunpack.c.l.b16 %v2184
      %v3209 = vunpack.c.l.b16 %v2185
      %v3210 = vunpack.c.l.b16 %v2186
      %v3211 = vunpack.c.l.b16 %v2187
      %v3212 = vunpack.c.l.b16 %v2188
      %v3213 = vunpack.c.l.b16 %v2189
      %v3214 = vunpack.c.l.b16 %v2190
      %v3215 = vunpack.c.l.b16 %v2191
      %v3216 = vunpack.c.l.b16 %v2192
      %v3217 = vunpack.c.l.b16 %v2193
      %v3218 = vunpack.c.l.b16 %v2194
      %v3219 = vunpack.c.l.b16 %v2195
      %v3220 = vunpack.c.l.b16 %v2196
      %v3221 = vunpack.c.l.b16 %v2197
      %v3222 = vunpack.c.l.b16 %v2198
      %v3223 = vunpack.c.l.b16 %v2199
      %v3224 = vunpack.c.l.b16 %v2200
      %v3225 = vunpack.c.l.b16 %v2201
      %v3226 = vunpack.c.l.b16 %v2202
      %v3227 = vunpack.c.l.b16 %v2203
      %v3228 = vunpack.c.l.b16 %v2204
      %v3229 = vunpack.c.l.b16 %v2205
      %v3230 = vunpack.c.l.b16 %v2206
      %v3231 = vunpack.c.l.b16 %v2207
      %v3232 = vunpack.c.l.b16 %v2208
      %v3233 = vunpack.c.l.b16 %v2209
      %v3234 = vunpack.c.l.b16 %v2210
      %v3235 = vunpack.c.l.b16 %v2211
      %v3236 = vunpack.c.l.b16 %v2212
      %v3237 = vunpack.c.l.b16 %v2213
      %v3238 = vunpack.c.l.b16 %v2214
      %v3239 = vunpack.c.l.b16 %v2215
      %v3240 = vunpack.c.l.b16 %v2216
      %v3241 = vunpack.c.l.b16 %v2217
      %v3242 = vunpack.c.l.b16 %v2218
      %v3243 = vunpack.c.l.b16 %v2219
      %v3244 = vunpack.c.l.b16 %v2220
      %v3245 = vunpack.c.l.b16 %v2221
      %v3246 = vunpack.c.l.b16 %v2222
      %v3247 = vunpack.c.l.b16 %v2223
      %v3248 = vunpack.c.l.b16 %v2224
      %v3249 = vunpack.c.l.b16 %v2225
      %v3250 = vunpack.c.l.b16 %v2226
      %v3251 = vunpack.c.l.b16 %v2227
      %v3252 = vunpack.c.l.b16 %v2228
      %v3253 = vunpack.c.l.b16 %v2229
      %v3254 = vunpack.c.l.b16 %v2230
      %v3255 = vunpack.c.l.b16 %v2231
      %v3256 = vunpack.c.l.b16 %v2232
      %v3257 = vunpack.c.l.b16 %v2233
      %v3258 = vunpack.c.l.b16 %v2234
      %v3259 = vunpack.c.l.b16 %v2235
      %v3260 = vunpack.c.l.b16 %v2236
      %v3261 = vunpack.c.l.b16 %v2237
      %v3262 = vunpack.c.l.b16 %v2238
      %v3263 = vunpack.c.l.b16 %v2239
      %v3264 = vunpack.c.l.b16 %v2240
      %v3265 = vunpack.c.l.b16 %v2241
      %v3266 = vunpack.c.l.b16 %v2242
      %v3267 = vunpack.c.l.b16 %v2243
      %v3268 = vunpack.c.l.b16 %v2244
      %v3269 = vunpack.c.l.b16 %v2245
      %v3270 = vunpack.c.l.b16 %v2246
      %v3271 = vunpack.c.l.b16 %v2247
      %v3272 = vunpack.c.l.b16 %v2248
      %v3273 = vunpack.c.l.b16 %v2249
      %v3274 = vunpack.c.l.b16 %v2250
      %v3275 = vunpack.c.l.b16 %v2251
      %v3276 = vunpack.c.l.b16 %v2252
      %v3277 = vunpack.c.l.b16 %v2253
      %v3278 = vunpack.c.l.b16 %v2254
      %v3279 = vunpack.c.l.b16 %v2255
      %v3280 = vunpack.c.l.b16 %v2256
      %v3281 = vunpack.c.l.b16 %v2257
      %v3282 = vunpack.c.l.b16 %v2258
      %v3283 = vunpack.c.l.b16 %v2259
      %v3284 = vunpack.c.l.b16 %v2260
      %v3285 = vunpack.c.l.b16 %v2261
      %v3286 = vunpack.c.l.b16 %v2262
      %v3287 = vunpack.c.l.b16 %v2263
      %v3288 = vunpack.c.l.b16 %v2264
      %v3289 = vunpack.c.l.b16 %v2265
      %v3290 = vunpack.c.l.b16 %v2266
      %v3291 = vunpack.c.l.b16 %v2267
      %v3292 = vunpack.c.l.b16 %v2268
      %v3293 = vunpack.c.l.b16 %v2269
      %v3294 = vpack.c.b16 %v3151, %v3150
      %v3295 = vpack.c.b16 %v3153, %v3152
      %v3296 = vpack.c.b16 %v3155, %v3154
      %v3297 = vpack.c.b16 %v3157, %v3156
      %v3298 = vpack.c.b16 %v3159, %v3158
      %v3299 = vpack.c.b16 %v3161, %v3160
      %v3300 = vpack.c.b16 %v3163, %v3162
      %v3301 = vpack.c.b16 %v3165, %v3164
      %v3302 = vpack.c.b16 %v3167, %v3166
      %v3303 = vpack.c.b16 %v3169, %v3168
      %v3304 = vpack.c.b16 %v3171, %v3170
      %v3305 = vpack.c.b16 %v3173, %v3172
      %v3306 = vpack.c.b16 %v3175, %v3174
      %v3307 = vpack.c.b16 %v3177, %v3176
      %v3308 = vpack.c.b16 %v3179, %v3178
      %v3309 = vpack.c.b16 %v3181, %v3180
      %v3310 = vpack.c.b16 %v3183, %v3182
      %v3311 = vpack.c.b16 %v3185, %v3184
      %v3312 = vpack.c.b16 %v3187, %v3186
      %v3313 = vpack.c.b16 %v3189, %v3188
      %v3314 = vpack.c.b16 %v3191, %v3190
      %v3315 = vpack.c.b16 %v3193, %v3192
      %v3316 = vpack.c.b16 %v3195, %v3194
      %v3317 = vpack.c.b16 %v3197, %v3196
      %v3318 = vpack.c.b16 %v3199, %v3198
      %v3319 = vpack.c.b16 %v3201, %v3200
      %v3320 = vpack.c.b16 %v3203, %v3202
      %v3321 = vpack.c.b16 %v3205, %v3204
      %v3322 = vpack.c.b16 %v3207, %v3206
      %v3323 = vpack.c.b16 %v3209, %v3208
      %v3324 = vpack.c.b16 %v3211, %v3210
      %v3325 = vpack.c.b16 %v3213, %v3212
      %v3326 = vpack.c.b16 %v3215, %v3214
      %v3327 = vpack.c.b16 %v3217, %v3216
      %v3328 = vpack.c.b16 %v3219, %v3218
      %v3329 = vpack.c.b16 %v3221, %v3220
      %v3330 = vpack.c.b16 %v3223, %v3222
      %v3331 = vpack.c.b16 %v3225, %v3224
      %v3332 = vpack.c.b16 %v3227, %v3226
      %v3333 = vpack.c.b16 %v3229, %v3228
      %v3334 = vpack.c.b16 %v3231, %v3230
      %v3335 = vpack.c.b16 %v3233, %v3232
      %v3336 = vpack.c.b16 %v3235, %v3234
      %v3337 = vpack.c.b16 %v3237, %v3236
      %v3338 = vpack.c.b16 %v3239, %v3238
      %v3339 = vpack.c.b16 %v3241, %v3240
      %v3340 = vpack.c.b16 %v3243, %v3242
      %v3341 = vpack.c.b16 %v3245, %v3244
      %v3342 = vpack.c.b16 %v3247, %v3246
      %v3343 = vpack.c.b16 %v3249, %v3248
      %v3344 = vpack.c.b16 %v3251, %v3250
      %v3345 = vpack.c.b16 %v3253, %v3252
      %v3346 = vpack.c.b16 %v3255, %v3254
      %v3347 = vpack.c.b16 %v3257, %v3256
      %v3348 = vpack.c.b16 %v3259, %v3258
      %v3349 = vpack.c.b16 %v3261, %v3260
      %v3350 = vpack.c.b16 %v3263, %v3262
      %v3351 = vpack.c.b16 %v3265, %v3264
      %v3352 = vpack.c.b16 %v3267, %v3266
      %v3353 = vpack.c.b16 %v3269, %v3268
      %v3354 = vpack.c.b16 %v3271, %v3270
      %v3355 = vpack.c.b16 %v3273, %v3272
      %v3356 = vpack.c.b16 %v3275, %v3274
      %v3357 = vpack.c.b16 %v3277, %v3276
      %v3358 = vpack.c.b16 %v3279, %v3278
      %v3359 = vpack.c.b16 %v3281, %v3280
      %v3360 = vpack.c.b16 %v3283, %v3282
      %v3361 = vpack.c.b16 %v3285, %v3284
      %v3362 = vpack.c.b16 %v3287, %v3286
      %v3363 = vpack.c.b16 %v3289, %v3288
      %v3364 = vpack.c.b16 %v3291, %v3290
      %v3365 = vpack.c.b16 %v3293, %v3292
      %3438 = vmatpush.bf16.msra.mxu0 %v3301
      %3439 = vmatpush.bf16.msra.mxu0 %v3300
      %3440 = vmatpush.bf16.msra.mxu0 %v3299
      %3441 = vmatpush.bf16.msra.mxu0 %v3298
      %3442 = vmatpush.bf16.msra.mxu0 %v3297
      %3443 = vmatpush.bf16.msra.mxu0 %v3296
      %3444 = vmatpush.bf16.msra.mxu0 %v3295
      %3445 = vmatpush.bf16.msra.mxu0 %v3294
      %3446 = vmatmul.bf16.gmra.mxu0 %v2718
      %v3447 = vpop.f32.mrf.mxu0
      %v3448 = vadd.f32 0.0, %v3447
      %v3449 = vpop.f32.mrf.mxu0
      %v3450 = vadd.f32 0.0, %v3449
      %3451 = vmatmul.bf16.gmra.mxu0 %v2727
      %v3452 = vpop.f32.mrf.mxu0
      %v3453 = vadd.f32 0.0, %v3452
      %v3454 = vpop.f32.mrf.mxu0
      %v3455 = vadd.f32 0.0, %v3454
      %3456 = vmatmul.bf16.gmra.mxu0 %v2736
      %v3457 = vpop.f32.mrf.mxu0
      %v3458 = vadd.f32 0.0, %v3457
      %v3459 = vpop.f32.mrf.mxu0
      %v3460 = vadd.f32 0.0, %v3459
      %3461 = vmatmul.bf16.gmra.mxu0 %v2745
      %v3462 = vpop.f32.mrf.mxu0
      %v3463 = vadd.f32 0.0, %v3462
      %v3464 = vpop.f32.mrf.mxu0
      %v3465 = vadd.f32 0.0, %v3464
      %3466 = vmatmul.bf16.gmra.mxu0 %v2754
      %v3467 = vpop.f32.mrf.mxu0
      %v3468 = vadd.f32 0.0, %v3467
      %v3469 = vpop.f32.mrf.mxu0
      %v3470 = vadd.f32 0.0, %v3469
      %3471 = vmatmul.bf16.gmra.mxu0 %v2763
      %v3472 = vpop.f32.mrf.mxu0
      %v3473 = vadd.f32 0.0, %v3472
      %v3474 = vpop.f32.mrf.mxu0
      %v3475 = vadd.f32 0.0, %v3474
      %3476 = vmatmul.bf16.gmra.mxu0 %v2772
      %v3477 = vpop.f32.mrf.mxu0
      %v3478 = vadd.f32 0.0, %v3477
      %v3479 = vpop.f32.mrf.mxu0
      %v3480 = vadd.f32 0.0, %v3479
      %3481 = vmatmul.bf16.gmra.mxu0 %v2781
      %v3482 = vpop.f32.mrf.mxu0
      %v3483 = vadd.f32 0.0, %v3482
      %v3484 = vpop.f32.mrf.mxu0
      %v3485 = vadd.f32 0.0, %v3484
      %3486 = vmatmul.bf16.gmra.mxu0 %v2790
      %v3487 = vpop.f32.mrf.mxu0
      %v3488 = vadd.f32 0.0, %v3487
      %v3489 = vpop.f32.mrf.mxu0
      %v3490 = vadd.f32 0.0, %v3489
      %3491 = vmatmul.bf16.gmra.mxu0 %v2799
      %v3492 = vpop.f32.mrf.mxu0
      %v3493 = vadd.f32 0.0, %v3492
      %v3494 = vpop.f32.mrf.mxu0
      %v3495 = vadd.f32 0.0, %v3494
      %3496 = vmatmul.bf16.gmra.mxu0 %v2808
      %v3497 = vpop.f32.mrf.mxu0
      %v3498 = vadd.f32 0.0, %v3497
      %v3499 = vpop.f32.mrf.mxu0
      %v3500 = vadd.f32 0.0, %v3499
      %3501 = vmatmul.bf16.gmra.mxu0 %v2817
      %v3502 = vpop.f32.mrf.mxu0
      %v3503 = vadd.f32 0.0, %v3502
      %v3504 = vpop.f32.mrf.mxu0
      %v3505 = vadd.f32 0.0, %v3504
      %3506 = vmatmul.bf16.gmra.mxu0 %v2826
      %v3507 = vpop.f32.mrf.mxu0
      %v3508 = vadd.f32 0.0, %v3507
      %v3509 = vpop.f32.mrf.mxu0
      %v3510 = vadd.f32 0.0, %v3509
      %3511 = vmatmul.bf16.gmra.mxu0 %v2835
      %v3512 = vpop.f32.mrf.mxu0
      %v3513 = vadd.f32 0.0, %v3512
      %v3514 = vpop.f32.mrf.mxu0
      %v3515 = vadd.f32 0.0, %v3514
      %3516 = vmatmul.bf16.gmra.mxu0 %v2844
      %v3517 = vpop.f32.mrf.mxu0
      %v3518 = vadd.f32 0.0, %v3517
      %v3519 = vpop.f32.mrf.mxu0
      %v3520 = vadd.f32 0.0, %v3519
      %3521 = vmatmul.bf16.gmra.mxu0 %v2853
      %v3522 = vpop.f32.mrf.mxu0
      %v3523 = vadd.f32 0.0, %v3522
      %v3524 = vpop.f32.mrf.mxu0
      %v3525 = vadd.f32 0.0, %v3524
      %3526 = vdwg.mxu0
      %3527 = vmatpush.bf16.msra.mxu0 %v3309
      %3528 = vmatpush.bf16.msra.mxu0 %v3308
      %3529 = vmatpush.bf16.msra.mxu0 %v3307
      %3530 = vmatpush.bf16.msra.mxu0 %v3306
      %3531 = vmatpush.bf16.msra.mxu0 %v3305
      %3532 = vmatpush.bf16.msra.mxu0 %v3304
      %3533 = vmatpush.bf16.msra.mxu0 %v3303
      %3534 = vmatpush.bf16.msra.mxu0 %v3302
      %3535 = vmatmul.bf16.gmra.mxu0 %v2719
      %v3536 = vpop.f32.mrf.mxu0
      %v3537 = vadd.f32 %v3448, %v3536
      %v3538 = vpop.f32.mrf.mxu0
      %v3539 = vadd.f32 %v3450, %v3538
      %3540 = vmatmul.bf16.gmra.mxu0 %v2728
      %v3541 = vpop.f32.mrf.mxu0
      %v3542 = vadd.f32 %v3453, %v3541
      %v3543 = vpop.f32.mrf.mxu0
      %v3544 = vadd.f32 %v3455, %v3543
      %3545 = vmatmul.bf16.gmra.mxu0 %v2737
      %v3546 = vpop.f32.mrf.mxu0
      %v3547 = vadd.f32 %v3458, %v3546
      %v3548 = vpop.f32.mrf.mxu0
      %v3549 = vadd.f32 %v3460, %v3548
      %3550 = vmatmul.bf16.gmra.mxu0 %v2746
      %v3551 = vpop.f32.mrf.mxu0
      %v3552 = vadd.f32 %v3463, %v3551
      %v3553 = vpop.f32.mrf.mxu0
      %v3554 = vadd.f32 %v3465, %v3553
      %3555 = vmatmul.bf16.gmra.mxu0 %v2755
      %v3556 = vpop.f32.mrf.mxu0
      %v3557 = vadd.f32 %v3468, %v3556
      %v3558 = vpop.f32.mrf.mxu0
      %v3559 = vadd.f32 %v3470, %v3558
      %3560 = vmatmul.bf16.gmra.mxu0 %v2764
      %v3561 = vpop.f32.mrf.mxu0
      %v3562 = vadd.f32 %v3473, %v3561
      %v3563 = vpop.f32.mrf.mxu0
      %v3564 = vadd.f32 %v3475, %v3563
      %3565 = vmatmul.bf16.gmra.mxu0 %v2773
      %v3566 = vpop.f32.mrf.mxu0
      %v3567 = vadd.f32 %v3478, %v3566
      %v3568 = vpop.f32.mrf.mxu0
      %v3569 = vadd.f32 %v3480, %v3568
      %3570 = vmatmul.bf16.gmra.mxu0 %v2782
      %v3571 = vpop.f32.mrf.mxu0
      %v3572 = vadd.f32 %v3483, %v3571
      %v3573 = vpop.f32.mrf.mxu0
      %v3574 = vadd.f32 %v3485, %v3573
      %3575 = vmatmul.bf16.gmra.mxu0 %v2791
      %v3576 = vpop.f32.mrf.mxu0
      %v3577 = vadd.f32 %v3488, %v3576
      %v3578 = vpop.f32.mrf.mxu0
      %v3579 = vadd.f32 %v3490, %v3578
      %3580 = vmatmul.bf16.gmra.mxu0 %v2800
      %v3581 = vpop.f32.mrf.mxu0
      %v3582 = vadd.f32 %v3493, %v3581
      %v3583 = vpop.f32.mrf.mxu0
      %v3584 = vadd.f32 %v3495, %v3583
      %3585 = vmatmul.bf16.gmra.mxu0 %v2809
      %v3586 = vpop.f32.mrf.mxu0
      %v3587 = vadd.f32 %v3498, %v3586
      %v3588 = vpop.f32.mrf.mxu0
      %v3589 = vadd.f32 %v3500, %v3588
      %3590 = vmatmul.bf16.gmra.mxu0 %v2818
      %v3591 = vpop.f32.mrf.mxu0
      %v3592 = vadd.f32 %v3503, %v3591
      %v3593 = vpop.f32.mrf.mxu0
      %v3594 = vadd.f32 %v3505, %v3593
      %3595 = vmatmul.bf16.gmra.mxu0 %v2827
      %v3596 = vpop.f32.mrf.mxu0
      %v3597 = vadd.f32 %v3508, %v3596
      %v3598 = vpop.f32.mrf.mxu0
      %v3599 = vadd.f32 %v3510, %v3598
      %3600 = vmatmul.bf16.gmra.mxu0 %v2836
      %v3601 = vpop.f32.mrf.mxu0
      %v3602 = vadd.f32 %v3513, %v3601
      %v3603 = vpop.f32.mrf.mxu0
      %v3604 = vadd.f32 %v3515, %v3603
      %3605 = vmatmul.bf16.gmra.mxu0 %v2845
      %v3606 = vpop.f32.mrf.mxu0
      %v3607 = vadd.f32 %v3518, %v3606
      %v3608 = vpop.f32.mrf.mxu0
      %v3609 = vadd.f32 %v3520, %v3608
      %3610 = vmatmul.bf16.gmra.mxu0 %v2854
      %v3611 = vpop.f32.mrf.mxu0
      %v3612 = vadd.f32 %v3523, %v3611
      %v3613 = vpop.f32.mrf.mxu0
      %v3614 = vadd.f32 %v3525, %v3613
      %3615 = vdwg.mxu0
      %3616 = vmatpush.bf16.msra.mxu0 %v3317
      %3617 = vmatpush.bf16.msra.mxu0 %v3316
      %3618 = vmatpush.bf16.msra.mxu0 %v3315
      %3619 = vmatpush.bf16.msra.mxu0 %v3314
      %3620 = vmatpush.bf16.msra.mxu0 %v3313
      %3621 = vmatpush.bf16.msra.mxu0 %v3312
      %3622 = vmatpush.bf16.msra.mxu0 %v3311
      %3623 = vmatpush.bf16.msra.mxu0 %v3310
      %3624 = vmatmul.bf16.gmra.mxu0 %v2720
      %v3625 = vpop.f32.mrf.mxu0
      %v3626 = vadd.f32 %v3537, %v3625
      %v3627 = vpop.f32.mrf.mxu0
      %v3628 = vadd.f32 %v3539, %v3627
      %3629 = vmatmul.bf16.gmra.mxu0 %v2729
      %v3630 = vpop.f32.mrf.mxu0
      %v3631 = vadd.f32 %v3542, %v3630
      %v3632 = vpop.f32.mrf.mxu0
      %v3633 = vadd.f32 %v3544, %v3632
      %3634 = vmatmul.bf16.gmra.mxu0 %v2738
      %v3635 = vpop.f32.mrf.mxu0
      %v3636 = vadd.f32 %v3547, %v3635
      %v3637 = vpop.f32.mrf.mxu0
      %v3638 = vadd.f32 %v3549, %v3637
      %3639 = vmatmul.bf16.gmra.mxu0 %v2747
      %v3640 = vpop.f32.mrf.mxu0
      %v3641 = vadd.f32 %v3552, %v3640
      %v3642 = vpop.f32.mrf.mxu0
      %v3643 = vadd.f32 %v3554, %v3642
      %3644 = vmatmul.bf16.gmra.mxu0 %v2756
      %v3645 = vpop.f32.mrf.mxu0
      %v3646 = vadd.f32 %v3557, %v3645
      %v3647 = vpop.f32.mrf.mxu0
      %v3648 = vadd.f32 %v3559, %v3647
      %3649 = vmatmul.bf16.gmra.mxu0 %v2765
      %v3650 = vpop.f32.mrf.mxu0
      %v3651 = vadd.f32 %v3562, %v3650
      %v3652 = vpop.f32.mrf.mxu0
      %v3653 = vadd.f32 %v3564, %v3652
      %3654 = vmatmul.bf16.gmra.mxu0 %v2774
      %v3655 = vpop.f32.mrf.mxu0
      %v3656 = vadd.f32 %v3567, %v3655
      %v3657 = vpop.f32.mrf.mxu0
      %v3658 = vadd.f32 %v3569, %v3657
      %3659 = vmatmul.bf16.gmra.mxu0 %v2783
      %v3660 = vpop.f32.mrf.mxu0
      %v3661 = vadd.f32 %v3572, %v3660
      %v3662 = vpop.f32.mrf.mxu0
      %v3663 = vadd.f32 %v3574, %v3662
      %3664 = vmatmul.bf16.gmra.mxu0 %v2792
      %v3665 = vpop.f32.mrf.mxu0
      %v3666 = vadd.f32 %v3577, %v3665
      %v3667 = vpop.f32.mrf.mxu0
      %v3668 = vadd.f32 %v3579, %v3667
      %3669 = vmatmul.bf16.gmra.mxu0 %v2801
      %v3670 = vpop.f32.mrf.mxu0
      %v3671 = vadd.f32 %v3582, %v3670
      %v3672 = vpop.f32.mrf.mxu0
      %v3673 = vadd.f32 %v3584, %v3672
      %3674 = vmatmul.bf16.gmra.mxu0 %v2810
      %v3675 = vpop.f32.mrf.mxu0
      %v3676 = vadd.f32 %v3587, %v3675
      %v3677 = vpop.f32.mrf.mxu0
      %v3678 = vadd.f32 %v3589, %v3677
      %3679 = vmatmul.bf16.gmra.mxu0 %v2819
      %v3680 = vpop.f32.mrf.mxu0
      %v3681 = vadd.f32 %v3592, %v3680
      %v3682 = vpop.f32.mrf.mxu0
      %v3683 = vadd.f32 %v3594, %v3682
      %3684 = vmatmul.bf16.gmra.mxu0 %v2828
      %v3685 = vpop.f32.mrf.mxu0
      %v3686 = vadd.f32 %v3597, %v3685
      %v3687 = vpop.f32.mrf.mxu0
      %v3688 = vadd.f32 %v3599, %v3687
      %3689 = vmatmul.bf16.gmra.mxu0 %v2837
      %v3690 = vpop.f32.mrf.mxu0
      %v3691 = vadd.f32 %v3602, %v3690
      %v3692 = vpop.f32.mrf.mxu0
      %v3693 = vadd.f32 %v3604, %v3692
      %3694 = vmatmul.bf16.gmra.mxu0 %v2846
      %v3695 = vpop.f32.mrf.mxu0
      %v3696 = vadd.f32 %v3607, %v3695
      %v3697 = vpop.f32.mrf.mxu0
      %v3698 = vadd.f32 %v3609, %v3697
      %3699 = vmatmul.bf16.gmra.mxu0 %v2855
      %v3700 = vpop.f32.mrf.mxu0
      %v3701 = vadd.f32 %v3612, %v3700
      %v3702 = vpop.f32.mrf.mxu0
      %v3703 = vadd.f32 %v3614, %v3702
      %3704 = vdwg.mxu0
      %3705 = vmatpush.bf16.msra.mxu0 %v3325
      %3706 = vmatpush.bf16.msra.mxu0 %v3324
      %3707 = vmatpush.bf16.msra.mxu0 %v3323
      %3708 = vmatpush.bf16.msra.mxu0 %v3322
      %3709 = vmatpush.bf16.msra.mxu0 %v3321
      %3710 = vmatpush.bf16.msra.mxu0 %v3320
      %3711 = vmatpush.bf16.msra.mxu0 %v3319
      %3712 = vmatpush.bf16.msra.mxu0 %v3318
      %3713 = vmatmul.bf16.gmra.mxu0 %v2721
      %v3714 = vpop.f32.mrf.mxu0
      %v3715 = vadd.f32 %v3626, %v3714
      %v3716 = vpop.f32.mrf.mxu0
      %v3717 = vadd.f32 %v3628, %v3716
      %3718 = vmatmul.bf16.gmra.mxu0 %v2730
      %v3719 = vpop.f32.mrf.mxu0
      %v3720 = vadd.f32 %v3631, %v3719
      %v3721 = vpop.f32.mrf.mxu0
      %v3722 = vadd.f32 %v3633, %v3721
      %3723 = vmatmul.bf16.gmra.mxu0 %v2739
      %v3724 = vpop.f32.mrf.mxu0
      %v3725 = vadd.f32 %v3636, %v3724
      %v3726 = vpop.f32.mrf.mxu0
      %v3727 = vadd.f32 %v3638, %v3726
      %3728 = vmatmul.bf16.gmra.mxu0 %v2748
      %v3729 = vpop.f32.mrf.mxu0
      %v3730 = vadd.f32 %v3641, %v3729
      %v3731 = vpop.f32.mrf.mxu0
      %v3732 = vadd.f32 %v3643, %v3731
      %3733 = vmatmul.bf16.gmra.mxu0 %v2757
      %v3734 = vpop.f32.mrf.mxu0
      %v3735 = vadd.f32 %v3646, %v3734
      %v3736 = vpop.f32.mrf.mxu0
      %v3737 = vadd.f32 %v3648, %v3736
      %3738 = vmatmul.bf16.gmra.mxu0 %v2766
      %v3739 = vpop.f32.mrf.mxu0
      %v3740 = vadd.f32 %v3651, %v3739
      %v3741 = vpop.f32.mrf.mxu0
      %v3742 = vadd.f32 %v3653, %v3741
      %3743 = vmatmul.bf16.gmra.mxu0 %v2775
      %v3744 = vpop.f32.mrf.mxu0
      %v3745 = vadd.f32 %v3656, %v3744
      %v3746 = vpop.f32.mrf.mxu0
      %v3747 = vadd.f32 %v3658, %v3746
      %3748 = vmatmul.bf16.gmra.mxu0 %v2784
      %v3749 = vpop.f32.mrf.mxu0
      %v3750 = vadd.f32 %v3661, %v3749
      %v3751 = vpop.f32.mrf.mxu0
      %v3752 = vadd.f32 %v3663, %v3751
      %3753 = vmatmul.bf16.gmra.mxu0 %v2793
      %v3754 = vpop.f32.mrf.mxu0
      %v3755 = vadd.f32 %v3666, %v3754
      %v3756 = vpop.f32.mrf.mxu0
      %v3757 = vadd.f32 %v3668, %v3756
      %3758 = vmatmul.bf16.gmra.mxu0 %v2802
      %v3759 = vpop.f32.mrf.mxu0
      %v3760 = vadd.f32 %v3671, %v3759
      %v3761 = vpop.f32.mrf.mxu0
      %v3762 = vadd.f32 %v3673, %v3761
      %3763 = vmatmul.bf16.gmra.mxu0 %v2811
      %v3764 = vpop.f32.mrf.mxu0
      %v3765 = vadd.f32 %v3676, %v3764
      %v3766 = vpop.f32.mrf.mxu0
      %v3767 = vadd.f32 %v3678, %v3766
      %3768 = vmatmul.bf16.gmra.mxu0 %v2820
      %v3769 = vpop.f32.mrf.mxu0
      %v3770 = vadd.f32 %v3681, %v3769
      %v3771 = vpop.f32.mrf.mxu0
      %v3772 = vadd.f32 %v3683, %v3771
      %3773 = vmatmul.bf16.gmra.mxu0 %v2829
      %v3774 = vpop.f32.mrf.mxu0
      %v3775 = vadd.f32 %v3686, %v3774
      %v3776 = vpop.f32.mrf.mxu0
      %v3777 = vadd.f32 %v3688, %v3776
      %3778 = vmatmul.bf16.gmra.mxu0 %v2838
      %v3779 = vpop.f32.mrf.mxu0
      %v3780 = vadd.f32 %v3691, %v3779
      %v3781 = vpop.f32.mrf.mxu0
      %v3782 = vadd.f32 %v3693, %v3781
      %3783 = vmatmul.bf16.gmra.mxu0 %v2847
      %v3784 = vpop.f32.mrf.mxu0
      %v3785 = vadd.f32 %v3696, %v3784
      %v3786 = vpop.f32.mrf.mxu0
      %v3787 = vadd.f32 %v3698, %v3786
      %3788 = vmatmul.bf16.gmra.mxu0 %v2856
      %v3789 = vpop.f32.mrf.mxu0
      %v3790 = vadd.f32 %v3701, %v3789
      %v3791 = vpop.f32.mrf.mxu0
      %v3792 = vadd.f32 %v3703, %v3791
      %3793 = vdwg.mxu0
      %3794 = vmatpush.bf16.msra.mxu0 %v3333
      %3795 = vmatpush.bf16.msra.mxu0 %v3332
      %3796 = vmatpush.bf16.msra.mxu0 %v3331
      %3797 = vmatpush.bf16.msra.mxu0 %v3330
      %3798 = vmatpush.bf16.msra.mxu0 %v3329
      %3799 = vmatpush.bf16.msra.mxu0 %v3328
      %3800 = vmatpush.bf16.msra.mxu0 %v3327
      %3801 = vmatpush.bf16.msra.mxu0 %v3326
      %3802 = vmatmul.bf16.gmra.mxu0 %v2722
      %v3803 = vpop.f32.mrf.mxu0
      %v3804 = vadd.f32 %v3715, %v3803
      %v3805 = vpop.f32.mrf.mxu0
      %v3806 = vadd.f32 %v3717, %v3805
      %3807 = vmatmul.bf16.gmra.mxu0 %v2731
      %v3808 = vpop.f32.mrf.mxu0
      %v3809 = vadd.f32 %v3720, %v3808
      %v3810 = vpop.f32.mrf.mxu0
      %v3811 = vadd.f32 %v3722, %v3810
      %3812 = vmatmul.bf16.gmra.mxu0 %v2740
      %v3813 = vpop.f32.mrf.mxu0
      %v3814 = vadd.f32 %v3725, %v3813
      %v3815 = vpop.f32.mrf.mxu0
      %v3816 = vadd.f32 %v3727, %v3815
      %3817 = vmatmul.bf16.gmra.mxu0 %v2749
      %v3818 = vpop.f32.mrf.mxu0
      %v3819 = vadd.f32 %v3730, %v3818
      %v3820 = vpop.f32.mrf.mxu0
      %v3821 = vadd.f32 %v3732, %v3820
      %3822 = vmatmul.bf16.gmra.mxu0 %v2758
      %v3823 = vpop.f32.mrf.mxu0
      %v3824 = vadd.f32 %v3735, %v3823
      %v3825 = vpop.f32.mrf.mxu0
      %v3826 = vadd.f32 %v3737, %v3825
      %3827 = vmatmul.bf16.gmra.mxu0 %v2767
      %v3828 = vpop.f32.mrf.mxu0
      %v3829 = vadd.f32 %v3740, %v3828
      %v3830 = vpop.f32.mrf.mxu0
      %v3831 = vadd.f32 %v3742, %v3830
      %3832 = vmatmul.bf16.gmra.mxu0 %v2776
      %v3833 = vpop.f32.mrf.mxu0
      %v3834 = vadd.f32 %v3745, %v3833
      %v3835 = vpop.f32.mrf.mxu0
      %v3836 = vadd.f32 %v3747, %v3835
      %3837 = vmatmul.bf16.gmra.mxu0 %v2785
      %v3838 = vpop.f32.mrf.mxu0
      %v3839 = vadd.f32 %v3750, %v3838
      %v3840 = vpop.f32.mrf.mxu0
      %v3841 = vadd.f32 %v3752, %v3840
      %3842 = vmatmul.bf16.gmra.mxu0 %v2794
      %v3843 = vpop.f32.mrf.mxu0
      %v3844 = vadd.f32 %v3755, %v3843
      %v3845 = vpop.f32.mrf.mxu0
      %v3846 = vadd.f32 %v3757, %v3845
      %3847 = vmatmul.bf16.gmra.mxu0 %v2803
      %v3848 = vpop.f32.mrf.mxu0
      %v3849 = vadd.f32 %v3760, %v3848
      %v3850 = vpop.f32.mrf.mxu0
      %v3851 = vadd.f32 %v3762, %v3850
      %3852 = vmatmul.bf16.gmra.mxu0 %v2812
      %v3853 = vpop.f32.mrf.mxu0
      %v3854 = vadd.f32 %v3765, %v3853
      %v3855 = vpop.f32.mrf.mxu0
      %v3856 = vadd.f32 %v3767, %v3855
      %3857 = vmatmul.bf16.gmra.mxu0 %v2821
      %v3858 = vpop.f32.mrf.mxu0
      %v3859 = vadd.f32 %v3770, %v3858
      %v3860 = vpop.f32.mrf.mxu0
      %v3861 = vadd.f32 %v3772, %v3860
      %3862 = vmatmul.bf16.gmra.mxu0 %v2830
      %v3863 = vpop.f32.mrf.mxu0
      %v3864 = vadd.f32 %v3775, %v3863
      %v3865 = vpop.f32.mrf.mxu0
      %v3866 = vadd.f32 %v3777, %v3865
      %3867 = vmatmul.bf16.gmra.mxu0 %v2839
      %v3868 = vpop.f32.mrf.mxu0
      %v3869 = vadd.f32 %v3780, %v3868
      %v3870 = vpop.f32.mrf.mxu0
      %v3871 = vadd.f32 %v3782, %v3870
      %3872 = vmatmul.bf16.gmra.mxu0 %v2848
      %v3873 = vpop.f32.mrf.mxu0
      %v3874 = vadd.f32 %v3785, %v3873
      %v3875 = vpop.f32.mrf.mxu0
      %v3876 = vadd.f32 %v3787, %v3875
      %3877 = vmatmul.bf16.gmra.mxu0 %v2857
      %v3878 = vpop.f32.mrf.mxu0
      %v3879 = vadd.f32 %v3790, %v3878
      %v3880 = vpop.f32.mrf.mxu0
      %v3881 = vadd.f32 %v3792, %v3880
      %3882 = vdwg.mxu0
      %3883 = vmatpush.bf16.msra.mxu0 %v3341
      %3884 = vmatpush.bf16.msra.mxu0 %v3340
      %3885 = vmatpush.bf16.msra.mxu0 %v3339
      %3886 = vmatpush.bf16.msra.mxu0 %v3338
      %3887 = vmatpush.bf16.msra.mxu0 %v3337
      %3888 = vmatpush.bf16.msra.mxu0 %v3336
      %3889 = vmatpush.bf16.msra.mxu0 %v3335
      %3890 = vmatpush.bf16.msra.mxu0 %v3334
      %3891 = vmatmul.bf16.gmra.mxu0 %v2723
      %v3892 = vpop.f32.mrf.mxu0
      %v3893 = vadd.f32 %v3804, %v3892
      %v3894 = vpop.f32.mrf.mxu0
      %v3895 = vadd.f32 %v3806, %v3894
      %3896 = vmatmul.bf16.gmra.mxu0 %v2732
      %v3897 = vpop.f32.mrf.mxu0
      %v3898 = vadd.f32 %v3809, %v3897
      %v3899 = vpop.f32.mrf.mxu0
      %v3900 = vadd.f32 %v3811, %v3899
      %3901 = vmatmul.bf16.gmra.mxu0 %v2741
      %v3902 = vpop.f32.mrf.mxu0
      %v3903 = vadd.f32 %v3814, %v3902
      %v3904 = vpop.f32.mrf.mxu0
      %v3905 = vadd.f32 %v3816, %v3904
      %3906 = vmatmul.bf16.gmra.mxu0 %v2750
      %v3907 = vpop.f32.mrf.mxu0
      %v3908 = vadd.f32 %v3819, %v3907
      %v3909 = vpop.f32.mrf.mxu0
      %v3910 = vadd.f32 %v3821, %v3909
      %3911 = vmatmul.bf16.gmra.mxu0 %v2759
      %v3912 = vpop.f32.mrf.mxu0
      %v3913 = vadd.f32 %v3824, %v3912
      %v3914 = vpop.f32.mrf.mxu0
      %v3915 = vadd.f32 %v3826, %v3914
      %3916 = vmatmul.bf16.gmra.mxu0 %v2768
      %v3917 = vpop.f32.mrf.mxu0
      %v3918 = vadd.f32 %v3829, %v3917
      %v3919 = vpop.f32.mrf.mxu0
      %v3920 = vadd.f32 %v3831, %v3919
      %3921 = vmatmul.bf16.gmra.mxu0 %v2777
      %v3922 = vpop.f32.mrf.mxu0
      %v3923 = vadd.f32 %v3834, %v3922
      %v3924 = vpop.f32.mrf.mxu0
      %v3925 = vadd.f32 %v3836, %v3924
      %3926 = vmatmul.bf16.gmra.mxu0 %v2786
      %v3927 = vpop.f32.mrf.mxu0
      %v3928 = vadd.f32 %v3839, %v3927
      %v3929 = vpop.f32.mrf.mxu0
      %v3930 = vadd.f32 %v3841, %v3929
      %3931 = vmatmul.bf16.gmra.mxu0 %v2795
      %v3932 = vpop.f32.mrf.mxu0
      %v3933 = vadd.f32 %v3844, %v3932
      %v3934 = vpop.f32.mrf.mxu0
      %v3935 = vadd.f32 %v3846, %v3934
      %3936 = vmatmul.bf16.gmra.mxu0 %v2804
      %v3937 = vpop.f32.mrf.mxu0
      %v3938 = vadd.f32 %v3849, %v3937
      %v3939 = vpop.f32.mrf.mxu0
      %v3940 = vadd.f32 %v3851, %v3939
      %3941 = vmatmul.bf16.gmra.mxu0 %v2813
      %v3942 = vpop.f32.mrf.mxu0
      %v3943 = vadd.f32 %v3854, %v3942
      %v3944 = vpop.f32.mrf.mxu0
      %v3945 = vadd.f32 %v3856, %v3944
      %3946 = vmatmul.bf16.gmra.mxu0 %v2822
      %v3947 = vpop.f32.mrf.mxu0
      %v3948 = vadd.f32 %v3859, %v3947
      %v3949 = vpop.f32.mrf.mxu0
      %v3950 = vadd.f32 %v3861, %v3949
      %3951 = vmatmul.bf16.gmra.mxu0 %v2831
      %v3952 = vpop.f32.mrf.mxu0
      %v3953 = vadd.f32 %v3864, %v3952
      %v3954 = vpop.f32.mrf.mxu0
      %v3955 = vadd.f32 %v3866, %v3954
      %3956 = vmatmul.bf16.gmra.mxu0 %v2840
      %v3957 = vpop.f32.mrf.mxu0
      %v3958 = vadd.f32 %v3869, %v3957
      %v3959 = vpop.f32.mrf.mxu0
      %v3960 = vadd.f32 %v3871, %v3959
      %3961 = vmatmul.bf16.gmra.mxu0 %v2849
      %v3962 = vpop.f32.mrf.mxu0
      %v3963 = vadd.f32 %v3874, %v3962
      %v3964 = vpop.f32.mrf.mxu0
      %v3965 = vadd.f32 %v3876, %v3964
      %3966 = vmatmul.bf16.gmra.mxu0 %v2858
      %v3967 = vpop.f32.mrf.mxu0
      %v3968 = vadd.f32 %v3879, %v3967
      %v3969 = vpop.f32.mrf.mxu0
      %v3970 = vadd.f32 %v3881, %v3969
      %3971 = vdwg.mxu0
      %3972 = vmatpush.bf16.msra.mxu0 %v3349
      %3973 = vmatpush.bf16.msra.mxu0 %v3348
      %3974 = vmatpush.bf16.msra.mxu0 %v3347
      %3975 = vmatpush.bf16.msra.mxu0 %v3346
      %3976 = vmatpush.bf16.msra.mxu0 %v3345
      %3977 = vmatpush.bf16.msra.mxu0 %v3344
      %3978 = vmatpush.bf16.msra.mxu0 %v3343
      %3979 = vmatpush.bf16.msra.mxu0 %v3342
      %3980 = vmatmul.bf16.gmra.mxu0 %v2724
      %v3981 = vpop.f32.mrf.mxu0
      %v3982 = vadd.f32 %v3893, %v3981
      %v3983 = vpop.f32.mrf.mxu0
      %v3984 = vadd.f32 %v3895, %v3983
      %3985 = vmatmul.bf16.gmra.mxu0 %v2733
      %v3986 = vpop.f32.mrf.mxu0
      %v3987 = vadd.f32 %v3898, %v3986
      %v3988 = vpop.f32.mrf.mxu0
      %v3989 = vadd.f32 %v3900, %v3988
      %3990 = vmatmul.bf16.gmra.mxu0 %v2742
      %v3991 = vpop.f32.mrf.mxu0
      %v3992 = vadd.f32 %v3903, %v3991
      %v3993 = vpop.f32.mrf.mxu0
      %v3994 = vadd.f32 %v3905, %v3993
      %3995 = vmatmul.bf16.gmra.mxu0 %v2751
      %v3996 = vpop.f32.mrf.mxu0
      %v3997 = vadd.f32 %v3908, %v3996
      %v3998 = vpop.f32.mrf.mxu0
      %v3999 = vadd.f32 %v3910, %v3998
      %4000 = vmatmul.bf16.gmra.mxu0 %v2760
      %v4001 = vpop.f32.mrf.mxu0
      %v4002 = vadd.f32 %v3913, %v4001
      %v4003 = vpop.f32.mrf.mxu0
      %v4004 = vadd.f32 %v3915, %v4003
      %4005 = vmatmul.bf16.gmra.mxu0 %v2769
      %v4006 = vpop.f32.mrf.mxu0
      %v4007 = vadd.f32 %v3918, %v4006
      %v4008 = vpop.f32.mrf.mxu0
      %v4009 = vadd.f32 %v3920, %v4008
      %4010 = vmatmul.bf16.gmra.mxu0 %v2778
      %v4011 = vpop.f32.mrf.mxu0
      %v4012 = vadd.f32 %v3923, %v4011
      %v4013 = vpop.f32.mrf.mxu0
      %v4014 = vadd.f32 %v3925, %v4013
      %4015 = vmatmul.bf16.gmra.mxu0 %v2787
      %v4016 = vpop.f32.mrf.mxu0
      %v4017 = vadd.f32 %v3928, %v4016
      %v4018 = vpop.f32.mrf.mxu0
      %v4019 = vadd.f32 %v3930, %v4018
      %4020 = vmatmul.bf16.gmra.mxu0 %v2796
      %v4021 = vpop.f32.mrf.mxu0
      %v4022 = vadd.f32 %v3933, %v4021
      %v4023 = vpop.f32.mrf.mxu0
      %v4024 = vadd.f32 %v3935, %v4023
      %4025 = vmatmul.bf16.gmra.mxu0 %v2805
      %v4026 = vpop.f32.mrf.mxu0
      %v4027 = vadd.f32 %v3938, %v4026
      %v4028 = vpop.f32.mrf.mxu0
      %v4029 = vadd.f32 %v3940, %v4028
      %4030 = vmatmul.bf16.gmra.mxu0 %v2814
      %v4031 = vpop.f32.mrf.mxu0
      %v4032 = vadd.f32 %v3943, %v4031
      %v4033 = vpop.f32.mrf.mxu0
      %v4034 = vadd.f32 %v3945, %v4033
      %4035 = vmatmul.bf16.gmra.mxu0 %v2823
      %v4036 = vpop.f32.mrf.mxu0
      %v4037 = vadd.f32 %v3948, %v4036
      %v4038 = vpop.f32.mrf.mxu0
      %v4039 = vadd.f32 %v3950, %v4038
      %4040 = vmatmul.bf16.gmra.mxu0 %v2832
      %v4041 = vpop.f32.mrf.mxu0
      %v4042 = vadd.f32 %v3953, %v4041
      %v4043 = vpop.f32.mrf.mxu0
      %v4044 = vadd.f32 %v3955, %v4043
      %4045 = vmatmul.bf16.gmra.mxu0 %v2841
      %v4046 = vpop.f32.mrf.mxu0
      %v4047 = vadd.f32 %v3958, %v4046
      %v4048 = vpop.f32.mrf.mxu0
      %v4049 = vadd.f32 %v3960, %v4048
      %4050 = vmatmul.bf16.gmra.mxu0 %v2850
      %v4051 = vpop.f32.mrf.mxu0
      %v4052 = vadd.f32 %v3963, %v4051
      %v4053 = vpop.f32.mrf.mxu0
      %v4054 = vadd.f32 %v3965, %v4053
      %4055 = vmatmul.bf16.gmra.mxu0 %v2859
      %v4056 = vpop.f32.mrf.mxu0
      %v4057 = vadd.f32 %v3968, %v4056
      %v4058 = vpop.f32.mrf.mxu0
      %v4059 = vadd.f32 %v3970, %v4058
      %4060 = vdwg.mxu0
      %4061 = vmatpush.bf16.msra.mxu0 %v3357
      %4062 = vmatpush.bf16.msra.mxu0 %v3356
      %4063 = vmatpush.bf16.msra.mxu0 %v3355
      %4064 = vmatpush.bf16.msra.mxu0 %v3354
      %4065 = vmatpush.bf16.msra.mxu0 %v3353
      %4066 = vmatpush.bf16.msra.mxu0 %v3352
      %4067 = vmatpush.bf16.msra.mxu0 %v3351
      %4068 = vmatpush.bf16.msra.mxu0 %v3350
      %4069 = vmatmul.bf16.gmra.mxu0 %v2725
      %v4070 = vpop.f32.mrf.mxu0
      %v4071 = vadd.f32 %v3982, %v4070
      %v4072 = vpop.f32.mrf.mxu0
      %v4073 = vadd.f32 %v3984, %v4072
      %4074 = vmatmul.bf16.gmra.mxu0 %v2734
      %v4075 = vpop.f32.mrf.mxu0
      %v4076 = vadd.f32 %v3987, %v4075
      %v4077 = vpop.f32.mrf.mxu0
      %v4078 = vadd.f32 %v3989, %v4077
      %4079 = vmatmul.bf16.gmra.mxu0 %v2743
      %v4080 = vpop.f32.mrf.mxu0
      %v4081 = vadd.f32 %v3992, %v4080
      %v4082 = vpop.f32.mrf.mxu0
      %v4083 = vadd.f32 %v3994, %v4082
      %4084 = vmatmul.bf16.gmra.mxu0 %v2752
      %v4085 = vpop.f32.mrf.mxu0
      %v4086 = vadd.f32 %v3997, %v4085
      %v4087 = vpop.f32.mrf.mxu0
      %v4088 = vadd.f32 %v3999, %v4087
      %4089 = vmatmul.bf16.gmra.mxu0 %v2761
      %v4090 = vpop.f32.mrf.mxu0
      %v4091 = vadd.f32 %v4002, %v4090
      %v4092 = vpop.f32.mrf.mxu0
      %v4093 = vadd.f32 %v4004, %v4092
      %4094 = vmatmul.bf16.gmra.mxu0 %v2770
      %v4095 = vpop.f32.mrf.mxu0
      %v4096 = vadd.f32 %v4007, %v4095
      %v4097 = vpop.f32.mrf.mxu0
      %v4098 = vadd.f32 %v4009, %v4097
      %4099 = vmatmul.bf16.gmra.mxu0 %v2779
      %v4100 = vpop.f32.mrf.mxu0
      %v4101 = vadd.f32 %v4012, %v4100
      %v4102 = vpop.f32.mrf.mxu0
      %v4103 = vadd.f32 %v4014, %v4102
      %4104 = vmatmul.bf16.gmra.mxu0 %v2788
      %v4105 = vpop.f32.mrf.mxu0
      %v4106 = vadd.f32 %v4017, %v4105
      %v4107 = vpop.f32.mrf.mxu0
      %v4108 = vadd.f32 %v4019, %v4107
      %4109 = vmatmul.bf16.gmra.mxu0 %v2797
      %v4110 = vpop.f32.mrf.mxu0
      %v4111 = vadd.f32 %v4022, %v4110
      %v4112 = vpop.f32.mrf.mxu0
      %v4113 = vadd.f32 %v4024, %v4112
      %4114 = vmatmul.bf16.gmra.mxu0 %v2806
      %v4115 = vpop.f32.mrf.mxu0
      %v4116 = vadd.f32 %v4027, %v4115
      %v4117 = vpop.f32.mrf.mxu0
      %v4118 = vadd.f32 %v4029, %v4117
      %4119 = vmatmul.bf16.gmra.mxu0 %v2815
      %v4120 = vpop.f32.mrf.mxu0
      %v4121 = vadd.f32 %v4032, %v4120
      %v4122 = vpop.f32.mrf.mxu0
      %v4123 = vadd.f32 %v4034, %v4122
      %4124 = vmatmul.bf16.gmra.mxu0 %v2824
      %v4125 = vpop.f32.mrf.mxu0
      %v4126 = vadd.f32 %v4037, %v4125
      %v4127 = vpop.f32.mrf.mxu0
      %v4128 = vadd.f32 %v4039, %v4127
      %4129 = vmatmul.bf16.gmra.mxu0 %v2833
      %v4130 = vpop.f32.mrf.mxu0
      %v4131 = vadd.f32 %v4042, %v4130
      %v4132 = vpop.f32.mrf.mxu0
      %v4133 = vadd.f32 %v4044, %v4132
      %4134 = vmatmul.bf16.gmra.mxu0 %v2842
      %v4135 = vpop.f32.mrf.mxu0
      %v4136 = vadd.f32 %v4047, %v4135
      %v4137 = vpop.f32.mrf.mxu0
      %v4138 = vadd.f32 %v4049, %v4137
      %4139 = vmatmul.bf16.gmra.mxu0 %v2851
      %v4140 = vpop.f32.mrf.mxu0
      %v4141 = vadd.f32 %v4052, %v4140
      %v4142 = vpop.f32.mrf.mxu0
      %v4143 = vadd.f32 %v4054, %v4142
      %4144 = vmatmul.bf16.gmra.mxu0 %v2860
      %v4145 = vpop.f32.mrf.mxu0
      %v4146 = vadd.f32 %v4057, %v4145
      %v4147 = vpop.f32.mrf.mxu0
      %v4148 = vadd.f32 %v4059, %v4147
      %4149 = vdwg.mxu0
      %4150 = vmatpush.bf16.msra.mxu0 %v3365
      %4151 = vmatpush.bf16.msra.mxu0 %v3364
      %4152 = vmatpush.bf16.msra.mxu0 %v3363
      %4153 = vmatpush.bf16.msra.mxu0 %v3362
      %4154 = vmatpush.bf16.msra.mxu0 %v3361
      %4155 = vmatpush.bf16.msra.mxu0 %v3360
      %4156 = vmatpush.bf16.msra.mxu0 %v3359
      %4157 = vmatpush.bf16.msra.mxu0 %v3358
      %4158 = vmatmul.bf16.gmra.mxu0 %v2726
      %v4159 = vpop.f32.mrf.mxu0
      %v4160 = vadd.f32 %v4071, %v4159
      %v4161 = vpop.f32.mrf.mxu0
      %v4162 = vadd.f32 %v4073, %v4161
      %4163 = vmatmul.bf16.gmra.mxu0 %v2735
      %v4164 = vpop.f32.mrf.mxu0
      %v4165 = vadd.f32 %v4076, %v4164
      %v4166 = vpop.f32.mrf.mxu0
      %v4167 = vadd.f32 %v4078, %v4166
      %4168 = vmatmul.bf16.gmra.mxu0 %v2744
      %v4169 = vpop.f32.mrf.mxu0
      %v4170 = vadd.f32 %v4081, %v4169
      %v4171 = vpop.f32.mrf.mxu0
      %v4172 = vadd.f32 %v4083, %v4171
      %4173 = vmatmul.bf16.gmra.mxu0 %v2753
      %v4174 = vpop.f32.mrf.mxu0
      %v4175 = vadd.f32 %v4086, %v4174
      %v4176 = vpop.f32.mrf.mxu0
      %v4177 = vadd.f32 %v4088, %v4176
      %4178 = vmatmul.bf16.gmra.mxu0 %v2762
      %v4179 = vpop.f32.mrf.mxu0
      %v4180 = vadd.f32 %v4091, %v4179
      %v4181 = vpop.f32.mrf.mxu0
      %v4182 = vadd.f32 %v4093, %v4181
      %4183 = vmatmul.bf16.gmra.mxu0 %v2771
      %v4184 = vpop.f32.mrf.mxu0
      %v4185 = vadd.f32 %v4096, %v4184
      %v4186 = vpop.f32.mrf.mxu0
      %v4187 = vadd.f32 %v4098, %v4186
      %4188 = vmatmul.bf16.gmra.mxu0 %v2780
      %v4189 = vpop.f32.mrf.mxu0
      %v4190 = vadd.f32 %v4101, %v4189
      %v4191 = vpop.f32.mrf.mxu0
      %v4192 = vadd.f32 %v4103, %v4191
      %4193 = vmatmul.bf16.gmra.mxu0 %v2789
      %v4194 = vpop.f32.mrf.mxu0
      %v4195 = vadd.f32 %v4106, %v4194
      %v4196 = vpop.f32.mrf.mxu0
      %v4197 = vadd.f32 %v4108, %v4196
      %4198 = vmatmul.bf16.gmra.mxu0 %v2798
      %v4199 = vpop.f32.mrf.mxu0
      %v4200 = vadd.f32 %v4111, %v4199
      %v4201 = vpop.f32.mrf.mxu0
      %v4202 = vadd.f32 %v4113, %v4201
      %4203 = vmatmul.bf16.gmra.mxu0 %v2807
      %v4204 = vpop.f32.mrf.mxu0
      %v4205 = vadd.f32 %v4116, %v4204
      %v4206 = vpop.f32.mrf.mxu0
      %v4207 = vadd.f32 %v4118, %v4206
      %4208 = vmatmul.bf16.gmra.mxu0 %v2816
      %v4209 = vpop.f32.mrf.mxu0
      %v4210 = vadd.f32 %v4121, %v4209
      %v4211 = vpop.f32.mrf.mxu0
      %v4212 = vadd.f32 %v4123, %v4211
      %4213 = vmatmul.bf16.gmra.mxu0 %v2825
      %v4214 = vpop.f32.mrf.mxu0
      %v4215 = vadd.f32 %v4126, %v4214
      %v4216 = vpop.f32.mrf.mxu0
      %v4217 = vadd.f32 %v4128, %v4216
      %4218 = vmatmul.bf16.gmra.mxu0 %v2834
      %v4219 = vpop.f32.mrf.mxu0
      %v4220 = vadd.f32 %v4131, %v4219
      %v4221 = vpop.f32.mrf.mxu0
      %v4222 = vadd.f32 %v4133, %v4221
      %4223 = vmatmul.bf16.gmra.mxu0 %v2843
      %v4224 = vpop.f32.mrf.mxu0
      %v4225 = vadd.f32 %v4136, %v4224
      %v4226 = vpop.f32.mrf.mxu0
      %v4227 = vadd.f32 %v4138, %v4226
      %4228 = vmatmul.bf16.gmra.mxu0 %v2852
      %v4229 = vpop.f32.mrf.mxu0
      %v4230 = vadd.f32 %v4141, %v4229
      %v4231 = vpop.f32.mrf.mxu0
      %v4232 = vadd.f32 %v4143, %v4231
      %4233 = vmatmul.bf16.gmra.mxu0 %v2861
      %v4234 = vpop.f32.mrf.mxu0
      %v4235 = vadd.f32 %v4146, %v4234
      %v4236 = vpop.f32.mrf.mxu0
      %v4237 = vadd.f32 %v4148, %v4236
      %4238 = vdwg.mxu0
      %v4239 = vpack.c.bf16 %v4160, %v4160
      %v4240 = vpack.c.bf16 %v4162, %v4162
      %v4241 = vpack.c.bf16 %v4165, %v4165
      %v4242 = vpack.c.bf16 %v4167, %v4167
      %v4243 = vpack.c.bf16 %v4170, %v4170
      %v4244 = vpack.c.bf16 %v4172, %v4172
      %v4245 = vpack.c.bf16 %v4175, %v4175
      %v4246 = vpack.c.bf16 %v4177, %v4177
      %v4247 = vpack.c.bf16 %v4180, %v4180
      %v4248 = vpack.c.bf16 %v4182, %v4182
      %v4249 = vpack.c.bf16 %v4185, %v4185
      %v4250 = vpack.c.bf16 %v4187, %v4187
      %v4251 = vpack.c.bf16 %v4190, %v4190
      %v4252 = vpack.c.bf16 %v4192, %v4192
      %v4253 = vpack.c.bf16 %v4195, %v4195
      %v4254 = vpack.c.bf16 %v4197, %v4197
      %v4255 = vpack.c.bf16 %v4200, %v4200
      %v4256 = vpack.c.bf16 %v4202, %v4202
      %v4257 = vpack.c.bf16 %v4205, %v4205
      %v4258 = vpack.c.bf16 %v4207, %v4207
      %v4259 = vpack.c.bf16 %v4210, %v4210
      %v4260 = vpack.c.bf16 %v4212, %v4212
      %v4261 = vpack.c.bf16 %v4215, %v4215
      %v4262 = vpack.c.bf16 %v4217, %v4217
      %v4263 = vpack.c.bf16 %v4220, %v4220
      %v4264 = vpack.c.bf16 %v4222, %v4222
      %v4265 = vpack.c.bf16 %v4225, %v4225
      %v4266 = vpack.c.bf16 %v4227, %v4227
      %v4267 = vpack.c.bf16 %v4230, %v4230
      %v4268 = vpack.c.bf16 %v4232, %v4232
      %v4269 = vpack.c.bf16 %v4235, %v4235
      %v4270 = vpack.c.bf16 %v4237, %v4237
      %4271 = vst [vmem:[%s287] sm:$0xf] %v4239
      %4272 = vst [vmem:[%s287 + $0x4] sm:$0xf] %v4240
      %4273 = vst [vmem:[%s287 + $0x8] sm:$0xf] %v4241
      %4274 = vst [vmem:[%s287 + $0xc] sm:$0xf] %v4242
      %4275 = vst [vmem:[%s287 + $0x10] sm:$0xf] %v4243
      %4276 = vst [vmem:[%s287 + $0x14] sm:$0xf] %v4244
      %4277 = vst [vmem:[%s287 + $0x18] sm:$0xf] %v4245
      %4278 = vst [vmem:[%s287 + $0x1c] sm:$0xf] %v4246
      %4279 = vst [vmem:[%s287 + $0x20] sm:$0xf] %v4247
      %4280 = vst [vmem:[%s287 + $0x24] sm:$0xf] %v4248
      %4281 = vst [vmem:[%s287 + $0x28] sm:$0xf] %v4249
      %4282 = vst [vmem:[%s287 + $0x2c] sm:$0xf] %v4250
      %4283 = vst [vmem:[%s287 + $0x30] sm:$0xf] %v4251
      %4284 = vst [vmem:[%s287 + $0x34] sm:$0xf] %v4252
      %4285 = vst [vmem:[%s287 + $0x38] sm:$0xf] %v4253
      %4286 = vst [vmem:[%s287 + $0x3c] sm:$0xf] %v4254
      %4287 = vst [vmem:[%s287 + $0x40] sm:$0xf] %v4255
      %4288 = vst [vmem:[%s287 + $0x44] sm:$0xf] %v4256
      %4289 = vst [vmem:[%s287 + $0x48] sm:$0xf] %v4257
      %4290 = vst [vmem:[%s287 + $0x4c] sm:$0xf] %v4258
      %4291 = vst [vmem:[%s287 + $0x50] sm:$0xf] %v4259
      %4292 = vst [vmem:[%s287 + $0x54] sm:$0xf] %v4260
      %4293 = vst [vmem:[%s287 + $0x58] sm:$0xf] %v4261
      %4294 = vst [vmem:[%s287 + $0x5c] sm:$0xf] %v4262
      %4295 = vst [vmem:[%s287 + $0x60] sm:$0xf] %v4263
      %4296 = vst [vmem:[%s287 + $0x64] sm:$0xf] %v4264
      %4297 = vst [vmem:[%s287 + $0x68] sm:$0xf] %v4265
      %4298 = vst [vmem:[%s287 + $0x6c] sm:$0xf] %v4266
      %4299 = vst [vmem:[%s287 + $0x70] sm:$0xf] %v4267
      %4300 = vst [vmem:[%s287 + $0x74] sm:$0xf] %v4268
      %4301 = vst [vmem:[%s287 + $0x78] sm:$0xf] %v4269
      %4302 = vst [vmem:[%s287 + $0x7c] sm:$0xf] %v4270
      %v4303 = vadd.f32 %v4160, %v4162
      %v4304 = vadd.f32 %v4303, %v4165
      %v4305 = vadd.f32 %v4304, %v4167
      %v4306 = vadd.f32 %v4305, %v4170
      %v4307 = vadd.f32 %v4306, %v4172
      %v4308 = vadd.f32 %v4307, %v4175
      %v4309 = vadd.f32 %v4308, %v4177
      %v4310 = vadd.f32 %v4309, %v4180
      %v4311 = vadd.f32 %v4310, %v4182
      %v4312 = vadd.f32 %v4311, %v4185
      %v4313 = vadd.f32 %v4312, %v4187
      %v4314 = vadd.f32 %v4313, %v4190
      %v4315 = vadd.f32 %v4314, %v4192
      %v4316 = vadd.f32 %v4315, %v4195
      %v4317 = vadd.f32 %v4316, %v4197
      %v4318 = vadd.f32 %v4317, %v4200
      %v4319 = vadd.f32 %v4318, %v4202
      %v4320 = vadd.f32 %v4319, %v4205
      %v4321 = vadd.f32 %v4320, %v4207
      %v4322 = vadd.f32 %v4321, %v4210
      %v4323 = vadd.f32 %v4322, %v4212
      %v4324 = vadd.f32 %v4323, %v4215
      %v4325 = vadd.f32 %v4324, %v4217
      %v4326 = vadd.f32 %v4325, %v4220
      %v4327 = vadd.f32 %v4326, %v4222
      %v4328 = vadd.f32 %v4327, %v4225
      %v4329 = vadd.f32 %v4328, %v4227
      %v4330 = vadd.f32 %v4329, %v4230
      %v4331 = vadd.f32 %v4330, %v4232
      %v4332 = vadd.f32 %v4331, %v4235
      %v4333 = vadd.f32 %v4332, %v4237
      %v4334 = vrot.slane %v4333, 4
      %v4335 = vadd.f32 %v4333, %v4334
      %v4336 = vrot.slane %v4335, 2
      %v4337 = vadd.f32 %v4335, %v4336
      %v4338 = vrot.slane %v4337, 1
      %v4339 = vadd.f32 %v4337, %v4338
      %v4340 = vmul.f32 %v4160, %v4160
      %v4341 = vmul.f32 %v4162, %v4162
      %v4342 = vmul.f32 %v4165, %v4165
      %v4343 = vmul.f32 %v4167, %v4167
      %v4344 = vmul.f32 %v4170, %v4170
      %v4345 = vmul.f32 %v4172, %v4172
      %v4346 = vmul.f32 %v4175, %v4175
      %v4347 = vmul.f32 %v4177, %v4177
      %v4348 = vmul.f32 %v4180, %v4180
      %v4349 = vmul.f32 %v4182, %v4182
      %v4350 = vmul.f32 %v4185, %v4185
      %v4351 = vmul.f32 %v4187, %v4187
      %v4352 = vmul.f32 %v4190, %v4190
      %v4353 = vmul.f32 %v4192, %v4192
      %v4354 = vmul.f32 %v4195, %v4195
      %v4355 = vmul.f32 %v4197, %v4197
      %v4356 = vmul.f32 %v4200, %v4200
      %v4357 = vmul.f32 %v4202, %v4202
      %v4358 = vmul.f32 %v4205, %v4205
      %v4359 = vmul.f32 %v4207, %v4207
      %v4360 = vmul.f32 %v4210, %v4210
      %v4361 = vmul.f32 %v4212, %v4212
      %v4362 = vmul.f32 %v4215, %v4215
      %v4363 = vmul.f32 %v4217, %v4217
      %v4364 = vmul.f32 %v4220, %v4220
      %v4365 = vmul.f32 %v4222, %v4222
      %v4366 = vmul.f32 %v4225, %v4225
      %v4367 = vmul.f32 %v4227, %v4227
      %v4368 = vmul.f32 %v4230, %v4230
      %v4369 = vmul.f32 %v4232, %v4232
      %v4370 = vmul.f32 %v4235, %v4235
      %v4371 = vmul.f32 %v4237, %v4237
      %v4372 = vadd.f32 %v4340, %v4341
      %v4373 = vadd.f32 %v4372, %v4342
      %v4374 = vadd.f32 %v4373, %v4343
      %v4375 = vadd.f32 %v4374, %v4344
      %v4376 = vadd.f32 %v4375, %v4345
      %v4377 = vadd.f32 %v4376, %v4346
      %v4378 = vadd.f32 %v4377, %v4347
      %v4379 = vadd.f32 %v4378, %v4348
      %v4380 = vadd.f32 %v4379, %v4349
      %v4381 = vadd.f32 %v4380, %v4350
      %v4382 = vadd.f32 %v4381, %v4351
      %v4383 = vadd.f32 %v4382, %v4352
      %v4384 = vadd.f32 %v4383, %v4353
      %v4385 = vadd.f32 %v4384, %v4354
      %v4386 = vadd.f32 %v4385, %v4355
      %v4387 = vadd.f32 %v4386, %v4356
      %v4388 = vadd.f32 %v4387, %v4357
      %v4389 = vadd.f32 %v4388, %v4358
      %v4390 = vadd.f32 %v4389, %v4359
      %v4391 = vadd.f32 %v4390, %v4360
      %v4392 = vadd.f32 %v4391, %v4361
      %v4393 = vadd.f32 %v4392, %v4362
      %v4394 = vadd.f32 %v4393, %v4363
      %v4395 = vadd.f32 %v4394, %v4364
      %v4396 = vadd.f32 %v4395, %v4365
      %v4397 = vadd.f32 %v4396, %v4366
      %v4398 = vadd.f32 %v4397, %v4367
      %v4399 = vadd.f32 %v4398, %v4368
      %v4400 = vadd.f32 %v4399, %v4369
      %v4401 = vadd.f32 %v4400, %v4370
      %v4402 = vadd.f32 %v4401, %v4371
      %v4403 = vrot.slane %v4402, 4
      %v4404 = vadd.f32 %v4402, %v4403
      %v4405 = vrot.slane %v4404, 2
      %v4406 = vadd.f32 %v4404, %v4405
      %v4407 = vrot.slane %v4406, 1
      %v4408 = vadd.f32 %v4406, %v4407
      %vm4409 = vcmp.eq.s32.totalorder %v709, 0
      %vm4410 = vcmp.eq.s32.totalorder %v709, 1
      %v4411 = vsel %vm4410, %v4408, 0.0
      %v4412 = vsel %vm4409, %v4339, %v4411
      %4413 = vst [vmem:[%s295] sm:$0xff] %v4412
      %s4414 = smul.u32 16, %s23
      %p4415 = scmp.lt.s32.totalorder %s22, 1
      %s4416 = scalar_select %p4415, %s22, 1
      %p4417 = scmp.lt.s32.totalorder %s4414, 15
      %s4418 = scalar_select %p4417, %s4414, 15
      %s4419 = smul.addr %s4418, 2
      %s4420 = smul.addr %s4416, 32
      %s4421 = sadd.s32 %s4419, %s4420
      %s4422 = smul.addr %s4421, 4
      %s4423 = scalar_lea.vmem %s5, %s4422
      %p4424 = scmp.lt.s32.totalorder %s22, 1
      %s4425 = scalar_select %p4424, %s22, 1
      %p4426 = scmp.lt.s32.totalorder %s23, 0
      %s4427 = scalar_select %p4426, %s23, 0
      %s4428 = sadd.s32 %s4427, %s4425
      %s4429 = smul.addr %s4428, 8
      %s4430 = scalar_lea.vmem %s6, %s4429
      // Predicated region
      $region41: #{basic_block_forward.4} parent=39 // pred_check
        %p4431 = pneg %p160
      $region42: #{basic_block_forward.4} parent=39 // pred_check_branch
        %4433 = sbr.rel (%p4431) target = $region44
      $region43: #{basic_block_forward.4} parent=39 // pred_region
        %s4434 = smul.u32 16, %s23
      $region44: #{basic_block_forward.4} parent=39 // pred_fallthru
        _
      // Predicated region
      $region45: #{basic_block_forward.4} parent=39 // pred_check
        %p4435 = pneg %p188
      $region46: #{basic_block_forward.4} parent=39 // pred_check_branch
        %4437 = sbr.rel (%p4435) target = $region48
      $region47: #{basic_block_forward.4} parent=39 // pred_region
        _
      $region48: #{basic_block_forward.4} parent=39 // pred_fallthru
        _
    $region40: #{basic_block_forward.4} parent=5 // pred_fallthru
      _
    %p4438 = scmp.le.s32.totalorder 2, %s13
    // Predicated region
    $region49: #{basic_block_forward.4} parent=5 // pred_check
      %p4439 = pneg %p4438
    $region50: #{basic_block_forward.4} parent=5 // pred_check_branch
      %4441 = sbr.rel (%p4439) target = $region52
    $region51: #{basic_block_forward.4} parent=5 // pred_region
      %s4442 = ssub.s32 %s13, 2
      // Predicated region
      $region53: #{basic_block_forward.4} parent=51 // pred_check
        %p4443 = pneg %p166
      $region54: #{basic_block_forward.4} parent=51 // pred_check_branch
        %4445 = sbr.rel (%p4443) target = $region56
      $region55: #{basic_block_forward.4} parent=51 // pred_region
        %s4446 = smul.u32 16, %s25
        %p4447 = scmp.lt.s32.totalorder %s24, 1
        %s4448 = scalar_select %p4447, %s24, 1
        %p4449 = scmp.lt.s32.totalorder %s4446, 15
        %s4450 = scalar_select %p4449, %s4446, 15
        %s4451 = smul.addr %s4450, 2
        %s4452 = smul.addr %s4448, 32
        %s4453 = sadd.s32 %s4451, %s4452
        %s4454 = smul.addr %s4453, 4
        %s4455 = scalar_lea.vmem %s5, %s4454
      $region56: #{basic_block_forward.4} parent=51 // pred_fallthru
        _
      // Predicated region
      $region57: #{basic_block_forward.4} parent=51 // pred_check
        %p4456 = pneg %p194
      $region58: #{basic_block_forward.4} parent=51 // pred_check_branch
        %4458 = sbr.rel (%p4456) target = $region60
      $region59: #{basic_block_forward.4} parent=51 // pred_region
        %p4459 = scmp.lt.s32.totalorder %s24, 1
        %s4460 = scalar_select %p4459, %s24, 1
        %p4461 = scmp.lt.s32.totalorder %s25, 0
        %s4462 = scalar_select %p4461, %s25, 0
        %s4463 = sadd.s32 %s4462, %s4460
        %s4464 = smul.addr %s4463, 8
        %s4465 = scalar_lea.vmem %s6, %s4464
      $region60: #{basic_block_forward.4} parent=51 // pred_fallthru
        _
    $region52: #{basic_block_forward.4} parent=5 // pred_fallthru
      _
  $region6: #{basic_block_forward.4} parent=0 // loop_footer
    %s17 = sadd.s32 1, %s13
  $region7: #{basic_block_forward.4} parent=0 // loop_footer_branch
    %12 = sbr.rel target = $region3
  $region8: #{basic_block_forward.4} parent=0 // loop_exit
    _

</llo_original>
